<compile_context>
chip_gen: v6e
topology: v6e:2x2x1
jax: 0.10.0
libtpu: 0.0.40
codegen_flags: <defaults>
</compile_context>

<pallas_src>
import functools

import jax
import jax.numpy as jnp
from jax.experimental import pallas as pl
from jax.experimental.pallas import tpu as pltpu

LANE = 128
_MIB = 1024 * 1024


def _round_up(v, m):
    return ((v + m - 1) // m) * m


def _vmem_capacity_bytes():
    try:
        return int(pltpu.get_tpu_info().vmem_capacity_bytes)
    except Exception:
        return 64 * _MIB          # conservative fallback (v7x per-TensorCore size)


def _vmem_limit_bytes():
    # Leave headroom under the physical per-core VMEM (64 MiB on v7x, 128 MiB on v5e/v6e).
    return min(int(_vmem_capacity_bytes()) * 3 // 4, 96 * _MIB)


def _conv_footprint_bytes(rows, W, cinp, coutp):
    """Per-grid-step VMEM footprint of the fused conv kernel (double buffers included)."""
    bf, f32 = 2, 4
    band_in = rows * W * cinp * bf
    band_out = rows * W * coutp * bf
    halo = W * cinp * bf
    scratch = (rows + 2) * W * cinp * bf
    acc = rows * W * coutp * f32
    act_tmp = rows * W * cinp * f32               # f32 affine+ReLU temp on the input path
    patch = rows * W * 3 * cinp * bf              # per-kh patch fed to the MXU
    taps = 2 * rows * W * cinp * bf               # shifted left/right tap temporaries
    weight = 2 * 9 * cinp * coutp * bf            # weight block (counted double-buffered)
    stats = 2 * 2 * coutp * f32
    return (2 * band_in + 2 * band_out + 2 * halo + scratch + acc + act_tmp
            + patch + taps + weight + stats)


def _pick_conv_rows(H, W, cinp, coutp, budget):
    """Largest divisor of H (<=256) whose per-step footprint fits the budget."""
    best = 1
    for rows in range(1, min(H, 256) + 1):
        if H % rows:
            continue
        if _conv_footprint_bytes(rows, W, cinp, coutp) <= budget:
            best = rows
    return best


def _pick_affine_rows(H, W, coutp, budget):
    """Band size for the purely memory-bound BN+ReLU pass (decoupled from the conv)."""
    best = 1
    for rows in range(1, min(H, 512) + 1):
        if H % rows:
            continue
        per_step = rows * W * coutp * (2 * 2 + 2 * 4 + 4)   # bf16 in + f32 out (dbl) + f32 tmp
        if per_step <= budget:
            best = rows
    return best


# --------------------------------------------------------------------------- fused conv
def _conv_bn_kernel(x_ref, bot_ref, w_ref, s_ref, b_ref,
                    y_ref, stats_ref, pad_ref, *,
                    rows, width, cinp, coutp, input_act):
    r = pl.program_id(1)
    last = pl.num_programs(1) - 1

    def activate(v):
        # Fused BN-affine + ReLU of the previous layer, applied to this conv's input.
        if input_act:
            v32 = v.astype(jnp.float32)
            v32 = jnp.maximum(v32 * s_ref[0] + b_ref[0], 0.0)
            return v32.astype(pad_ref.dtype)
        return v.astype(pad_ref.dtype)

    # Top halo: carried from the previous band's last interior row (the band axis runs
    # sequentially per n and pad_ref persists across steps); zero at the image top.
    prev_last = pad_ref[rows]
    pad_ref[0] = jnp.where(r > 0, prev_last, jnp.zeros_like(prev_last))

    # Interior rows of the band — aligned, dense stores (no column padding in the scratch,
    # so nothing needs to be re-zeroed each step).
    pad_ref[1:rows + 1] = activate(x_ref[0])

    # Bottom 1-row halo (fetched); zeroed at the image bottom AFTER the input activation.
    bot = activate(bot_ref[0, 0])
    pad_ref[rows + 1] = jnp.where(r < last, bot, jnp.zeros_like(bot))

    # 3x3 conv as 3 MXU matmuls (one per kernel row, K = 3*cinp).  The +/-1 column taps
    # are built on values with a zero-column concat, so all scratch traffic stays aligned.
    zcol = jnp.zeros((rows, 1, cinp), pad_ref.dtype)
    acc = jnp.zeros((rows * width, coutp), jnp.float32)
    for kh in range(3):
        c = pad_ref[kh:kh + rows]                                    # (rows, W, cinp)
        left = jnp.concatenate([zcol, c[:, :width - 1, :]], axis=1)  # tap kw=0 (col w-1)
        right = jnp.concatenate([c[:, 1:, :], zcol], axis=1)         # tap kw=2 (col w+1)
        patch = jnp.concatenate([left, c, right], axis=-1)
        acc = acc + jnp.dot(patch.reshape(rows * width, 3 * cinp), w_ref[kh],
                            preferred_element_type=jnp.float32)

    # Lane-dense bf16 store of the conv output.
    y_ref[0] = acc.reshape(rows, width, coutp).astype(y_ref.dtype)

    # Fused BN batch statistics (from the f32 accumulator, accumulated over bands).
    @pl.when(r == 0)
    def _():
        stats_ref[...] = jnp.zeros_like(stats_ref)

    s = jnp.sum(acc, axis=0, keepdims=True)          # (1, coutp)
    sq = jnp.sum(acc * acc, axis=0, keepdims=True)   # (1, coutp)
    stats_ref[...] += jnp.concatenate([s, sq], axis=0)[None]


def conv3x3_bn_stats(x, w_mat, scale, bias, *, rows, input_act, vmem_limit):
    """x: (N, H, W, cinp) bf16; w_mat: (3, 3*cinp, coutp) bf16; scale/bias: (1, cinp) f32.

    Returns (y: (N, H, W, coutp) bf16, stats: (N, 2, coutp) f32 = [sum, sum_of_squares]).
    If input_act, computes conv(relu(x * scale + bias)) with zero spatial padding of the
    activated tensor (BN+ReLU of the previous layer fused into this conv's input path).
    """
    N, H, W, cinp = x.shape
    coutp = w_mat.shape[-1]
    assert H % rows == 0
    nbands = H // rows

    kernel = functools.partial(_conv_bn_kernel, rows=rows, width=W,
                               cinp=cinp, coutp=coutp, input_act=input_act)

    return pl.pallas_call(
        kernel,
        out_shape=(jax.ShapeDtypeStruct((N, H, W, coutp), jnp.bfloat16),
                   jax.ShapeDtypeStruct((N, 2, coutp), jnp.float32)),
        grid=(N, nbands),
        in_specs=[
            pl.BlockSpec((1, rows, W, cinp), lambda n, r: (n, r, 0, 0)),
            # Bottom 1-row halo (block size 1 along H => block index == row index).
            pl.BlockSpec((1, 1, W, cinp),
                         lambda n, r: (n, jnp.minimum((r + 1) * rows, H - 1), 0, 0)),
            # TODO(synk): mark the grid-invariant operands below with pipeline_mode=
            # pl.Buffered(1) to avoid double-buffering the weight block on v7x.
            pl.BlockSpec((3, 3 * cinp, coutp), lambda n, r: (0, 0, 0)),
            pl.BlockSpec((1, cinp), lambda n, r: (0, 0)),
            pl.BlockSpec((1, cinp), lambda n, r: (0, 0)),
        ],
        out_specs=(
            pl.BlockSpec((1, rows, W, coutp), lambda n, r: (n, r, 0, 0)),
            pl.BlockSpec((1, 2, coutp), lambda n, r: (n, 0, 0)),   # resident across bands
        ),
        scratch_shapes=[pltpu.VMEM((rows + 2, W, cinp), jnp.bfloat16)],
        compiler_params=pltpu.CompilerParams(
            dimension_semantics=("parallel", "arbitrary"),
            vmem_limit_bytes=vmem_limit),
    )(x, x, w_mat, scale, bias)


# --------------------------------------------------------------------------- final BN+ReLU
def _affine_relu_kernel(x_ref, s_ref, b_ref, o_ref):
    x = x_ref[0].astype(jnp.float32)
    o_ref[0] = jnp.maximum(x * s_ref[0] + b_ref[0], 0.0).astype(o_ref.dtype)


def affine_relu(y, scale, bias, *, rows, vmem_limit):
    """relu(y * scale + bias); y: (N, H, W, coutp) bf16 -> f32 output (lane-dense)."""
    N, H, W, coutp = y.shape
    nbands = H // rows
    return pl.pallas_call(
        _affine_relu_kernel,
        out_shape=jax.ShapeDtypeStruct((N, H, W, coutp), jnp.float32),
        grid=(N, nbands),
        in_specs=[
            pl.BlockSpec((1, rows, W, coutp), lambda n, r: (n, r, 0, 0)),
            pl.BlockSpec((1, coutp), lambda n, r: (0, 0)),
            pl.BlockSpec((1, coutp), lambda n, r: (0, 0)),
        ],
        out_specs=pl.BlockSpec((1, rows, W, coutp), lambda n, r: (n, r, 0, 0)),
        compiler_params=pltpu.CompilerParams(
            dimension_semantics=("parallel", "parallel"),
            vmem_limit_bytes=vmem_limit),
    )(y, scale, bias)


# --------------------------------------------------------------------------- wrappers
def _prep_weight(w, cinp, coutp):
    """w: (3, 3, Cin, Cout) -> channel-padded (3, 3*cinp, coutp) bf16 (kh-major, kw, cin)."""
    _, _, cin, cout = w.shape
    wp = jnp.pad(w, ((0, 0), (0, 0), (0, cinp - cin), (0, coutp - cout)))
    return wp.reshape(3, 3 * cinp, coutp).astype(jnp.bfloat16)


def _bn_scale_bias(stats, gamma, beta, count, eps):
    s = jnp.sum(stats, axis=0)                             # reduce per-batch partials
    mean = s[0] / count
    var = jnp.maximum(s[1] / count - mean * mean, 0.0)     # biased var, clamped >= 0
    scale = gamma * jax.lax.rsqrt(var + eps)
    bias = beta - mean * scale
    return scale, bias


def double_conv_forward(x_nchw, params, eps=1e-5):
    """x_nchw: (N, Cin, H, W) f32 -> (N, Cout, H, W) f32, matching the PyTorch module."""
    w1, g1, b1, w2, g2, b2 = params
    N, Cin, H, W = x_nchw.shape
    Cout = w1.shape[-1]
    cinp = _round_up(Cin, LANE)
    coutp = _round_up(Cout, LANE)

    vmem_limit = _vmem_limit_bytes()
    budget = int(vmem_limit * 0.7)

    # TODO(synk): when DoubleConv blocks are chained in a full U-Net, hoist this
    # NCHW<->NHWC transpose + channel pad to the model boundary and keep the padded
    # NHWC bf16 layout between blocks.
    x = jnp.transpose(x_nchw, (0, 2, 3, 1))
    x = jnp.pad(x, ((0, 0), (0, 0), (0, 0), (0, cinp - Cin))).astype(jnp.bfloat16)

    w1m = _prep_weight(w1, cinp, coutp)
    w2m = _prep_weight(w2, coutp, coutp)
    g1p = jnp.pad(g1, (0, coutp - Cout), constant_values=1.0)
    b1p = jnp.pad(b1, (0, coutp - Cout))
    g2p = jnp.pad(g2, (0, coutp - Cout), constant_values=1.0)
    b2p = jnp.pad(b2, (0, coutp - Cout))

    rows1 = _pick_conv_rows(H, W, cinp, coutp, budget)
    rows2 = _pick_conv_rows(H, W, coutp, coutp, budget)
    rows_ar = _pick_affine_rows(H, W, coutp, budget)
    count = float(N * H * W)

    # conv1 (+ fused BN1 statistics); no input activation.
    one = jnp.ones((1, cinp), jnp.float32)
    zero = jnp.zeros((1, cinp), jnp.float32)
    y1, st1 = conv3x3_bn_stats(x, w1m, one, zero, rows=rows1,
                               input_act=False, vmem_limit=vmem_limit)
    s1, o1 = _bn_scale_bias(st1, g1p, b1p, count, eps)

    # conv2 with BN1+ReLU fused into its input path (+ fused BN2 statistics).
    y2, st2 = conv3x3_bn_stats(y1, w2m, s1.reshape(1, -1), o1.reshape(1, -1),
                               rows=rows2, input_act=True, vmem_limit=vmem_limit)
    s2, o2 = _bn_scale_bias(st2, g2p, b2p, count, eps)

    # Final BN2 + ReLU (single lane-dense pass over y2, band size decoupled from the conv).
    out = affine_relu(y2, s2.reshape(1, -1), o2.reshape(1, -1),
                      rows=rows_ar, vmem_limit=vmem_limit)

    # Crop padded channels BEFORE the layout transpose (cuts transpose bytes by coutp/Cout).
    return jnp.transpose(out[..., :Cout], (0, 3, 1, 2))


def init_params(key, in_channels, out_channels):
    """Deterministic init; shapes match nn.Conv2d(bias=False) / nn.BatchNorm2d."""
    k1, k2 = jax.random.split(key)
    bound1 = 1.0 / jnp.sqrt(in_channels * 9.0)
    bound2 = 1.0 / jnp.sqrt(out_channels * 9.0)
    # PyTorch conv weights are (Cout, Cin, 3, 3); kernels want HWIO = (3, 3, Cin, Cout).
    w1_t = jax.random.uniform(k1, (out_channels, in_channels, 3, 3),
                              jnp.float32, -bound1, bound1)
    w2_t = jax.random.uniform(k2, (out_channels, out_channels, 3, 3),
                              jnp.float32, -bound2, bound2)
    w1 = jnp.transpose(w1_t, (2, 3, 1, 0))
    w2 = jnp.transpose(w2_t, (2, 3, 1, 0))
    gamma1 = jnp.ones((out_channels,), jnp.float32)
    beta1 = jnp.zeros((out_channels,), jnp.float32)
    gamma2 = jnp.ones((out_channels,), jnp.float32)
    beta2 = jnp.zeros((out_channels,), jnp.float32)
    return (w1, gamma1, beta1, w2, gamma2, beta2)


def _reference(x_nchw, params, eps=1e-5):
    """Pure-JAX f32 reference of the PyTorch DoubleConv forward (training-mode BN)."""
    w1, g1, b1, w2, g2, b2 = params
    x = jnp.transpose(x_nchw, (0, 2, 3, 1)).astype(jnp.float32)

    def block(x, w, g, b):
        y = jax.lax.conv_general_dilated(
            x, w, (1, 1), ((1, 1), (1, 1)),
            dimension_numbers=("NHWC", "HWIO", "NHWC"))
        m = jnp.mean(y, axis=(0, 1, 2))
        v = jnp.mean((y - m) ** 2, axis=(0, 1, 2))
        return jnp.maximum((y - m) * jax.lax.rsqrt(v + eps) * g + b, 0.0)

    y = block(block(x, w1, g1, b1), w2, g2, b2)
    return jnp.transpose(y, (0, 3, 1, 2))


if __name__ == "__main__":
    N, Cin, Cout, H, W = 2, 4, 8, 16, 16
    key = jax.random.PRNGKey(0)
    kx, kp = jax.random.split(key)
    x = jax.random.normal(kx, (N, Cin, H, W), jnp.float32)
    params = init_params(kp, Cin, Cout)

    out = jax.block_until_ready(jax.jit(double_conv_forward)(x, params))
    assert out.shape == (N, Cout, H, W), out.shape
    assert bool(jnp.all(out >= 0.0))  # ReLU output is non-negative

    ref = jax.block_until_ready(_reference(x, params))
    max_err = float(jnp.max(jnp.abs(out - ref)))
    assert max_err < 0.15, f"max abs error vs f32 reference = {max_err}"
    print("KERNEL_OK")
</pallas_src>

<mosaic_0001>
module attributes {stable_mosaic.version = 11 : i64} {
  func.func @_conv_bn_kernel(%arg0: i32, %arg1: i32, %arg2: memref<1x16x16x128xbf16, #tpu.memory_space<vmem>>, %arg3: memref<1x1x16x128xbf16, #tpu.memory_space<vmem>>, %arg4: memref<3x384x128xbf16, #tpu.memory_space<vmem>>, %arg5: memref<1x128xf32, #tpu.memory_space<vmem>>, %arg6: memref<1x128xf32, #tpu.memory_space<vmem>>, %arg7: memref<1x16x16x128xbf16, #tpu.memory_space<vmem>>, %arg8: memref<1x2x128xf32, #tpu.memory_space<vmem>>, %arg9: memref<18x16x128xbf16, #tpu.memory_space<vmem>>) attributes {dimension_semantics = [#tpu.dimension_semantics<parallel>, #tpu.dimension_semantics<arbitrary>], iteration_bounds = array<i64: 2, 1>, scalar_prefetch = 0 : i64, scratch_operands = 1 : i64, tpu.core_type = #tpu.core_type<tc>, window_params = [{transform_indices = @transform_0, window_bounds = array<i64: 1, 16, 16, 128>}, {transform_indices = @transform_1, window_bounds = array<i64: 1, 1, 16, 128>}, {pipeline_mode = #tpu.pipeline_mode<synchronous>, transform_indices = @transform_2, window_bounds = array<i64: 3, 384, 128>}, {pipeline_mode = #tpu.pipeline_mode<synchronous>, transform_indices = @transform_3, window_bounds = array<i64: 1, 128>}, {pipeline_mode = #tpu.pipeline_mode<synchronous>, transform_indices = @transform_4, window_bounds = array<i64: 1, 128>}, {transform_indices = @transform_5, window_bounds = array<i64: 1, 16, 16, 128>}, {transform_indices = @transform_6, window_bounds = array<i64: 1, 2, 128>}]} {
    %c16 = arith.constant 16 : index
    %c0 = arith.constant 0 : index
    %c0_0 = arith.constant 0 : index
    %0 = vector.load %arg9[%c16, %c0, %c0_0] : memref<18x16x128xbf16, #tpu.memory_space<vmem>>, vector<1x16x128xbf16>
    %1 = vector.shape_cast %0 : vector<1x16x128xbf16> to vector<16x128xbf16>
    %c0_i32 = arith.constant 0 : i32
    %2 = arith.cmpi sgt, %arg1, %c0_i32 : i32
    %cst = arith.constant 0.000000e+00 : bf16
    %3 = vector.broadcast %cst : bf16 to vector<16x128xbf16>
    %4 = arith.select %2, %1, %3 : vector<16x128xbf16>
    %c0_1 = arith.constant 0 : index
    %c0_2 = arith.constant 0 : index
    %c0_3 = arith.constant 0 : index
    %5 = vector.load %arg9[%c0_1, %c0_2, %c0_3] : memref<18x16x128xbf16, #tpu.memory_space<vmem>>, vector<1x16x128xbf16>
    %6 = vector.shape_cast %5 : vector<1x16x128xbf16> to vector<16x128xbf16>
    %7 = vector.shape_cast %4 : vector<16x128xbf16> to vector<1x16x128xbf16>
    tpu.vector_store %arg9[%c0_1, %c0_2, %c0_3], %7 {strides = array<i32>} : memref<18x16x128xbf16, #tpu.memory_space<vmem>>, vector<1x16x128xbf16>,
    %c0_4 = arith.constant 0 : index
    %c0_5 = arith.constant 0 : index
    %c0_6 = arith.constant 0 : index
    %c0_7 = arith.constant 0 : index
    %8 = vector.load %arg2[%c0_4, %c0_5, %c0_6, %c0_7] : memref<1x16x16x128xbf16, #tpu.memory_space<vmem>>, vector<1x16x16x128xbf16>
    %9 = vector.shape_cast %8 : vector<1x16x16x128xbf16> to vector<16x16x128xbf16>
    %c1 = arith.constant 1 : index
    %c0_8 = arith.constant 0 : index
    %c0_9 = arith.constant 0 : index
    %10 = vector.load %arg9[%c1, %c0_8, %c0_9] : memref<18x16x128xbf16, #tpu.memory_space<vmem>>, vector<16x16x128xbf16>
    tpu.vector_store %arg9[%c1, %c0_8, %c0_9], %9 {strides = array<i32>} : memref<18x16x128xbf16, #tpu.memory_space<vmem>>, vector<16x16x128xbf16>,
    %c0_10 = arith.constant 0 : index
    %c0_11 = arith.constant 0 : index
    %c0_12 = arith.constant 0 : index
    %c0_13 = arith.constant 0 : index
    %11 = vector.load %arg3[%c0_10, %c0_11, %c0_12, %c0_13] : memref<1x1x16x128xbf16, #tpu.memory_space<vmem>>, vector<1x1x16x128xbf16>
    %12 = vector.shape_cast %11 : vector<1x1x16x128xbf16> to vector<16x128xbf16>
    %c0_i32_14 = arith.constant 0 : i32
    %13 = arith.cmpi slt, %arg1, %c0_i32_14 : i32
    %cst_15 = arith.constant 0.000000e+00 : bf16
    %14 = vector.broadcast %cst_15 : bf16 to vector<16x128xbf16>
    %15 = arith.select %13, %12, %14 : vector<16x128xbf16>
    %c17 = arith.constant 17 : index
    %c0_16 = arith.constant 0 : index
    %c0_17 = arith.constant 0 : index
    %16 = vector.load %arg9[%c17, %c0_16, %c0_17] : memref<18x16x128xbf16, #tpu.memory_space<vmem>>, vector<1x16x128xbf16>
    %17 = vector.shape_cast %16 : vector<1x16x128xbf16> to vector<16x128xbf16>
    %18 = vector.shape_cast %15 : vector<16x128xbf16> to vector<1x16x128xbf16>
    tpu.vector_store %arg9[%c17, %c0_16, %c0_17], %18 {strides = array<i32>} : memref<18x16x128xbf16, #tpu.memory_space<vmem>>, vector<1x16x128xbf16>,
    %cst_18 = arith.constant 0.000000e+00 : bf16
    %19 = vector.broadcast %cst_18 : bf16 to vector<16x1x128xbf16>
    %cst_19 = arith.constant 0.000000e+00 : f32
    %20 = vector.broadcast %cst_19 : f32 to vector<256x128xf32>
    %c0_20 = arith.constant 0 : index
    %c0_21 = arith.constant 0 : index
    %c0_22 = arith.constant 0 : index
    %21 = vector.load %arg9[%c0_20, %c0_21, %c0_22] : memref<18x16x128xbf16, #tpu.memory_space<vmem>>, vector<16x16x128xbf16>
    %22 = vector.extract_strided_slice %21 {offsets = [0, 0, 0], sizes = [16, 15, 128], strides = [1, 1, 1]} : vector<16x16x128xbf16> to vector<16x15x128xbf16>
    %23 = tpu.concatenate %19, %22 in 1 : vector<16x1x128xbf16>, vector<16x15x128xbf16> -> vector<16x16x128xbf16>
    %24 = vector.extract_strided_slice %21 {offsets = [0, 1, 0], sizes = [16, 15, 128], strides = [1, 1, 1]} : vector<16x16x128xbf16> to vector<16x15x128xbf16>
    %25 = tpu.concatenate %24, %19 in 1 : vector<16x15x128xbf16>, vector<16x1x128xbf16> -> vector<16x16x128xbf16>
    %26 = tpu.concatenate %23, %21, %25 in 2 : vector<16x16x128xbf16>, vector<16x16x128xbf16>, vector<16x16x128xbf16> -> vector<16x16x384xbf16>
    %27 = vector.shape_cast %26 : vector<16x16x384xbf16> to vector<256x384xbf16>
    %c0_23 = arith.constant 0 : index
    %c0_24 = arith.constant 0 : index
    %c0_25 = arith.constant 0 : index
    %28 = vector.load %arg4[%c0_23, %c0_24, %c0_25] : memref<3x384x128xbf16, #tpu.memory_space<vmem>>, vector<1x384x128xbf16>
    %29 = vector.shape_cast %28 : vector<1x384x128xbf16> to vector<384x128xbf16>
    %cst_26 = arith.constant dense<0.000000e+00> : vector<256x128xf32>
    %30 = tpu.matmul %27, %29, %cst_26 {dimension_numbers = #tpu.dot_dimension_numbers<[1], [0], [0], [1], [0, 0, 1, 1], [], []>} : vector<256x384xbf16>, vector<384x128xbf16>, vector<256x128xf32> -> vector<256x128xf32>
    %31 = arith.addf %20, %30 : vector<256x128xf32>
    %c1_27 = arith.constant 1 : index
    %c0_28 = arith.constant 0 : index
    %c0_29 = arith.constant 0 : index
    %32 = vector.load %arg9[%c1_27, %c0_28, %c0_29] : memref<18x16x128xbf16, #tpu.memory_space<vmem>>, vector<16x16x128xbf16>
    %33 = vector.extract_strided_slice %32 {offsets = [0, 0, 0], sizes = [16, 15, 128], strides = [1, 1, 1]} : vector<16x16x128xbf16> to vector<16x15x128xbf16>
    %34 = tpu.concatenate %19, %33 in 1 : vector<16x1x128xbf16>, vector<16x15x128xbf16> -> vector<16x16x128xbf16>
    %35 = vector.extract_strided_slice %32 {offsets = [0, 1, 0], sizes = [16, 15, 128], strides = [1, 1, 1]} : vector<16x16x128xbf16> to vector<16x15x128xbf16>
    %36 = tpu.concatenate %35, %19 in 1 : vector<16x15x128xbf16>, vector<16x1x128xbf16> -> vector<16x16x128xbf16>
    %37 = tpu.concatenate %34, %32, %36 in 2 : vector<16x16x128xbf16>, vector<16x16x128xbf16>, vector<16x16x128xbf16> -> vector<16x16x384xbf16>
    %38 = vector.shape_cast %37 : vector<16x16x384xbf16> to vector<256x384xbf16>
    %c1_30 = arith.constant 1 : index
    %c0_31 = arith.constant 0 : index
    %c0_32 = arith.constant 0 : index
    %39 = vector.load %arg4[%c1_30, %c0_31, %c0_32] : memref<3x384x128xbf16, #tpu.memory_space<vmem>>, vector<1x384x128xbf16>
    %40 = vector.shape_cast %39 : vector<1x384x128xbf16> to vector<384x128xbf16>
    %cst_33 = arith.constant dense<0.000000e+00> : vector<256x128xf32>
    %41 = tpu.matmul %38, %40, %cst_33 {dimension_numbers = #tpu.dot_dimension_numbers<[1], [0], [0], [1], [0, 0, 1, 1], [], []>} : vector<256x384xbf16>, vector<384x128xbf16>, vector<256x128xf32> -> vector<256x128xf32>
    %42 = arith.addf %31, %41 : vector<256x128xf32>
    %c2 = arith.constant 2 : index
    %c0_34 = arith.constant 0 : index
    %c0_35 = arith.constant 0 : index
    %43 = vector.load %arg9[%c2, %c0_34, %c0_35] : memref<18x16x128xbf16, #tpu.memory_space<vmem>>, vector<16x16x128xbf16>
    %44 = vector.extract_strided_slice %43 {offsets = [0, 0, 0], sizes = [16, 15, 128], strides = [1, 1, 1]} : vector<16x16x128xbf16> to vector<16x15x128xbf16>
    %45 = tpu.concatenate %19, %44 in 1 : vector<16x1x128xbf16>, vector<16x15x128xbf16> -> vector<16x16x128xbf16>
    %46 = vector.extract_strided_slice %43 {offsets = [0, 1, 0], sizes = [16, 15, 128], strides = [1, 1, 1]} : vector<16x16x128xbf16> to vector<16x15x128xbf16>
    %47 = tpu.concatenate %46, %19 in 1 : vector<16x15x128xbf16>, vector<16x1x128xbf16> -> vector<16x16x128xbf16>
    %48 = tpu.concatenate %45, %43, %47 in 2 : vector<16x16x128xbf16>, vector<16x16x128xbf16>, vector<16x16x128xbf16> -> vector<16x16x384xbf16>
    %49 = vector.shape_cast %48 : vector<16x16x384xbf16> to vector<256x384xbf16>
    %c2_36 = arith.constant 2 : index
    %c0_37 = arith.constant 0 : index
    %c0_38 = arith.constant 0 : index
    %50 = vector.load %arg4[%c2_36, %c0_37, %c0_38] : memref<3x384x128xbf16, #tpu.memory_space<vmem>>, vector<1x384x128xbf16>
    %51 = vector.shape_cast %50 : vector<1x384x128xbf16> to vector<384x128xbf16>
    %cst_39 = arith.constant dense<0.000000e+00> : vector<256x128xf32>
    %52 = tpu.matmul %49, %51, %cst_39 {dimension_numbers = #tpu.dot_dimension_numbers<[1], [0], [0], [1], [0, 0, 1, 1], [], []>} : vector<256x384xbf16>, vector<384x128xbf16>, vector<256x128xf32> -> vector<256x128xf32>
    %53 = arith.addf %42, %52 : vector<256x128xf32>
    %54 = vector.shape_cast %53 : vector<256x128xf32> to vector<16x16x128xf32>
    %55 = arith.truncf %54 : vector<16x16x128xf32> to vector<16x16x128xbf16>
    %c0_40 = arith.constant 0 : index
    %c0_41 = arith.constant 0 : index
    %c0_42 = arith.constant 0 : index
    %c0_43 = arith.constant 0 : index
    %56 = vector.load %arg7[%c0_40, %c0_41, %c0_42, %c0_43] : memref<1x16x16x128xbf16, #tpu.memory_space<vmem>>, vector<1x16x16x128xbf16>
    %57 = vector.shape_cast %56 : vector<1x16x16x128xbf16> to vector<16x16x128xbf16>
    %58 = vector.shape_cast %55 : vector<16x16x128xbf16> to vector<1x16x16x128xbf16>
    tpu.vector_store %arg7[%c0_40, %c0_41, %c0_42, %c0_43], %58 {strides = array<i32>} : memref<1x16x16x128xbf16, #tpu.memory_space<vmem>>, vector<1x16x16x128xbf16>,
    %c0_i32_44 = arith.constant 0 : i32
    %59 = arith.cmpi eq, %arg1, %c0_i32_44 : i32
    %60 = arith.extui %59 : i1 to i32
    %c0_i32_45 = arith.constant 0 : i32
    %61 = arith.cmpi ne, %60, %c0_i32_45 : i32
    scf.if %61 {
      %cst_54 = arith.constant 0.000000e+00 : f32
      %72 = vector.broadcast %cst_54 : f32 to vector<1x2x128xf32>
      %c0_55 = arith.constant 0 : index
      %c0_56 = arith.constant 0 : index
      %c0_57 = arith.constant 0 : index
      %73 = vector.load %arg8[%c0_55, %c0_56, %c0_57] : memref<1x2x128xf32, #tpu.memory_space<vmem>>, vector<1x2x128xf32>
      tpu.vector_store %arg8[%c0_55, %c0_56, %c0_57], %72 {strides = array<i32>} : memref<1x2x128xf32, #tpu.memory_space<vmem>>, vector<1x2x128xf32>,
    } else {
    }
    %cst_46 = arith.constant dense<0.000000e+00> : vector<128xf32>
    %62 = vector.multi_reduction <add>, %53, %cst_46 [0] : vector<256x128xf32> to vector<128xf32>
    %63 = vector.shape_cast %62 : vector<128xf32> to vector<1x128xf32>
    %64 = arith.mulf %53, %53 : vector<256x128xf32>
    %cst_47 = arith.constant dense<0.000000e+00> : vector<128xf32>
    %65 = vector.multi_reduction <add>, %64, %cst_47 [0] : vector<256x128xf32> to vector<128xf32>
    %66 = vector.shape_cast %65 : vector<128xf32> to vector<1x128xf32>
    %c0_48 = arith.constant 0 : index
    %c0_49 = arith.constant 0 : index
    %c0_50 = arith.constant 0 : index
    %67 = vector.load %arg8[%c0_48, %c0_49, %c0_50] : memref<1x2x128xf32, #tpu.memory_space<vmem>>, vector<1x2x128xf32>
    %68 = tpu.concatenate %63, %66 in 0 : vector<1x128xf32>, vector<1x128xf32> -> vector<2x128xf32>
    %69 = vector.shape_cast %68 : vector<2x128xf32> to vector<1x2x128xf32>
    %70 = arith.addf %67, %69 : vector<1x2x128xf32>
    %c0_51 = arith.constant 0 : index
    %c0_52 = arith.constant 0 : index
    %c0_53 = arith.constant 0 : index
    %71 = vector.load %arg8[%c0_51, %c0_52, %c0_53] : memref<1x2x128xf32, #tpu.memory_space<vmem>>, vector<1x2x128xf32>
    tpu.vector_store %arg8[%c0_51, %c0_52, %c0_53], %70 {strides = array<i32>} : memref<1x2x128xf32, #tpu.memory_space<vmem>>, vector<1x2x128xf32>,
    return
  }
  func.func @transform_0(%arg0: i32, %arg1: i32) -> (i32, i32, i32, i32) {
    %c0_i32 = arith.constant 0 : i32
    %c0_i32_0 = arith.constant 0 : i32
    %c0_i32_1 = arith.constant 0 : i32
    return %arg0, %arg1, %c0_i32, %c0_i32_0 : i32, i32, i32, i32
  }
  func.func @transform_1(%arg0: i32, %arg1: i32) -> (i32, i32, i32, i32) {
    %c1_i32 = arith.constant 1 : i32
    %0 = arith.addi %arg1, %c1_i32 : i32
    %c16_i32 = arith.constant 16 : i32
    %1 = arith.muli %0, %c16_i32 : i32
    %c15_i32 = arith.constant 15 : i32
    %2 = arith.minsi %1, %c15_i32 : i32
    %c0_i32 = arith.constant 0 : i32
    %c0_i32_0 = arith.constant 0 : i32
    %c0_i32_1 = arith.constant 0 : i32
    return %arg0, %2, %c0_i32, %c0_i32_0 : i32, i32, i32, i32
  }
  func.func @transform_2(%arg0: i32, %arg1: i32) -> (i32, i32, i32) {
    %c0_i32 = arith.constant 0 : i32
    %c0_i32_0 = arith.constant 0 : i32
    %c0_i32_1 = arith.constant 0 : i32
    %c0_i32_2 = arith.constant 0 : i32
    return %c0_i32, %c0_i32_0, %c0_i32_1 : i32, i32, i32
  }
  func.func @transform_3(%arg0: i32, %arg1: i32) -> (i32, i32) {
    %c0_i32 = arith.constant 0 : i32
    %c0_i32_0 = arith.constant 0 : i32
    %c0_i32_1 = arith.constant 0 : i32
    return %c0_i32, %c0_i32_0 : i32, i32
  }
  func.func @transform_4(%arg0: i32, %arg1: i32) -> (i32, i32) {
    %c0_i32 = arith.constant 0 : i32
    %c0_i32_0 = arith.constant 0 : i32
    %c0_i32_1 = arith.constant 0 : i32
    return %c0_i32, %c0_i32_0 : i32, i32
  }
  func.func @transform_5(%arg0: i32, %arg1: i32) -> (i32, i32, i32, i32) {
    %c0_i32 = arith.constant 0 : i32
    %c0_i32_0 = arith.constant 0 : i32
    %c0_i32_1 = arith.constant 0 : i32
    return %arg0, %arg1, %c0_i32, %c0_i32_0 : i32, i32, i32, i32
  }
  func.func @transform_6(%arg0: i32, %arg1: i32) -> (i32, i32, i32) {
    %c0_i32 = arith.constant 0 : i32
    %c0_i32_0 = arith.constant 0 : i32
    %c0_i32_1 = arith.constant 0 : i32
    return %arg0, %c0_i32, %c0_i32_0 : i32, i32, i32
  }
}

module attributes {stable_mosaic.version = 11 : i64} {
  func.func @_affine_relu_kernel(%arg0: i32, %arg1: i32, %arg2: memref<1x16x16x128xbf16, #tpu.memory_space<vmem>>, %arg3: memref<1x128xf32, #tpu.memory_space<vmem>>, %arg4: memref<1x128xf32, #tpu.memory_space<vmem>>, %arg5: memref<1x16x16x128xf32, #tpu.memory_space<vmem>>) attributes {dimension_semantics = [#tpu.dimension_semantics<parallel>, #tpu.dimension_semantics<parallel>], iteration_bounds = array<i64: 2, 1>, scalar_prefetch = 0 : i64, scratch_operands = 0 : i64, tpu.core_type = #tpu.core_type<tc>, window_params = [{transform_indices = @transform_0, window_bounds = array<i64: 1, 16, 16, 128>}, {pipeline_mode = #tpu.pipeline_mode<synchronous>, transform_indices = @transform_1, window_bounds = array<i64: 1, 128>}, {pipeline_mode = #tpu.pipeline_mode<synchronous>, transform_indices = @transform_2, window_bounds = array<i64: 1, 128>}, {transform_indices = @transform_3, window_bounds = array<i64: 1, 16, 16, 128>}]} {
    %c0 = arith.constant 0 : index
    %c0_0 = arith.constant 0 : index
    %c0_1 = arith.constant 0 : index
    %c0_2 = arith.constant 0 : index
    %0 = vector.load %arg2[%c0, %c0_0, %c0_1, %c0_2] : memref<1x16x16x128xbf16, #tpu.memory_space<vmem>>, vector<1x16x16x128xbf16>
    %1 = vector.shape_cast %0 : vector<1x16x16x128xbf16> to vector<16x16x128xbf16>
    %2 = arith.extf %1 : vector<16x16x128xbf16> to vector<16x16x128xf32>
    %c0_3 = arith.constant 0 : index
    %c0_4 = arith.constant 0 : index
    %3 = vector.load %arg3[%c0_3, %c0_4] : memref<1x128xf32, #tpu.memory_space<vmem>>, vector<1x128xf32>
    %4 = vector.shape_cast %3 : vector<1x128xf32> to vector<128xf32>
    %5 = vector.shape_cast %4 : vector<128xf32> to vector<1x1x128xf32>
    %6 = vector.broadcast %5 : vector<1x1x128xf32> to vector<16x16x128xf32>
    %7 = arith.mulf %2, %6 : vector<16x16x128xf32>
    %c0_5 = arith.constant 0 : index
    %c0_6 = arith.constant 0 : index
    %8 = vector.load %arg4[%c0_5, %c0_6] : memref<1x128xf32, #tpu.memory_space<vmem>>, vector<1x128xf32>
    %9 = vector.shape_cast %8 : vector<1x128xf32> to vector<128xf32>
    %10 = vector.shape_cast %9 : vector<128xf32> to vector<1x1x128xf32>
    %11 = vector.broadcast %10 : vector<1x1x128xf32> to vector<16x16x128xf32>
    %12 = arith.addf %7, %11 : vector<16x16x128xf32>
    %cst = arith.constant 0.000000e+00 : f32
    %13 = vector.broadcast %cst : f32 to vector<16x16x128xf32>
    %14 = arith.maximumf %12, %13 : vector<16x16x128xf32>
    %c0_7 = arith.constant 0 : index
    %c0_8 = arith.constant 0 : index
    %c0_9 = arith.constant 0 : index
    %c0_10 = arith.constant 0 : index
    %15 = vector.load %arg5[%c0_7, %c0_8, %c0_9, %c0_10] : memref<1x16x16x128xf32, #tpu.memory_space<vmem>>, vector<1x16x16x128xf32>
    %16 = vector.shape_cast %15 : vector<1x16x16x128xf32> to vector<16x16x128xf32>
    %17 = vector.shape_cast %14 : vector<16x16x128xf32> to vector<1x16x16x128xf32>
    tpu.vector_store %arg5[%c0_7, %c0_8, %c0_9, %c0_10], %17 {strides = array<i32>} : memref<1x16x16x128xf32, #tpu.memory_space<vmem>>, vector<1x16x16x128xf32>,
    return
  }
  func.func @transform_0(%arg0: i32, %arg1: i32) -> (i32, i32, i32, i32) {
    %c0_i32 = arith.constant 0 : i32
    %c0_i32_0 = arith.constant 0 : i32
    %c0_i32_1 = arith.constant 0 : i32
    return %arg0, %arg1, %c0_i32, %c0_i32_0 : i32, i32, i32, i32
  }
  func.func @transform_1(%arg0: i32, %arg1: i32) -> (i32, i32) {
    %c0_i32 = arith.constant 0 : i32
    %c0_i32_0 = arith.constant 0 : i32
    %c0_i32_1 = arith.constant 0 : i32
    return %c0_i32, %c0_i32_0 : i32, i32
  }
  func.func @transform_2(%arg0: i32, %arg1: i32) -> (i32, i32) {
    %c0_i32 = arith.constant 0 : i32
    %c0_i32_0 = arith.constant 0 : i32
    %c0_i32_1 = arith.constant 0 : i32
    return %c0_i32, %c0_i32_0 : i32, i32
  }
  func.func @transform_3(%arg0: i32, %arg1: i32) -> (i32, i32, i32, i32) {
    %c0_i32 = arith.constant 0 : i32
    %c0_i32_0 = arith.constant 0 : i32
    %c0_i32_1 = arith.constant 0 : i32
    return %arg0, %arg1, %c0_i32, %c0_i32_0 : i32, i32, i32, i32
  }
}

module attributes {stable_mosaic.version = 11 : i64} {
  func.func @_conv_bn_kernel(%arg0: i32, %arg1: i32, %arg2: memref<1x16x16x128xbf16, #tpu.memory_space<vmem>>, %arg3: memref<1x1x16x128xbf16, #tpu.memory_space<vmem>>, %arg4: memref<3x384x128xbf16, #tpu.memory_space<vmem>>, %arg5: memref<1x128xf32, #tpu.memory_space<vmem>>, %arg6: memref<1x128xf32, #tpu.memory_space<vmem>>, %arg7: memref<1x16x16x128xbf16, #tpu.memory_space<vmem>>, %arg8: memref<1x2x128xf32, #tpu.memory_space<vmem>>, %arg9: memref<18x16x128xbf16, #tpu.memory_space<vmem>>) attributes {dimension_semantics = [#tpu.dimension_semantics<parallel>, #tpu.dimension_semantics<arbitrary>], iteration_bounds = array<i64: 2, 1>, scalar_prefetch = 0 : i64, scratch_operands = 1 : i64, tpu.core_type = #tpu.core_type<tc>, window_params = [{transform_indices = @transform_0, window_bounds = array<i64: 1, 16, 16, 128>}, {transform_indices = @transform_1, window_bounds = array<i64: 1, 1, 16, 128>}, {pipeline_mode = #tpu.pipeline_mode<synchronous>, transform_indices = @transform_2, window_bounds = array<i64: 3, 384, 128>}, {pipeline_mode = #tpu.pipeline_mode<synchronous>, transform_indices = @transform_3, window_bounds = array<i64: 1, 128>}, {pipeline_mode = #tpu.pipeline_mode<synchronous>, transform_indices = @transform_4, window_bounds = array<i64: 1, 128>}, {transform_indices = @transform_5, window_bounds = array<i64: 1, 16, 16, 128>}, {transform_indices = @transform_6, window_bounds = array<i64: 1, 2, 128>}]} {
    %c16 = arith.constant 16 : index
    %c0 = arith.constant 0 : index
    %c0_0 = arith.constant 0 : index
    %0 = vector.load %arg9[%c16, %c0, %c0_0] : memref<18x16x128xbf16, #tpu.memory_space<vmem>>, vector<1x16x128xbf16>
    %1 = vector.shape_cast %0 : vector<1x16x128xbf16> to vector<16x128xbf16>
    %c0_i32 = arith.constant 0 : i32
    %2 = arith.cmpi sgt, %arg1, %c0_i32 : i32
    %cst = arith.constant 0.000000e+00 : bf16
    %3 = vector.broadcast %cst : bf16 to vector<16x128xbf16>
    %4 = arith.select %2, %1, %3 : vector<16x128xbf16>
    %c0_1 = arith.constant 0 : index
    %c0_2 = arith.constant 0 : index
    %c0_3 = arith.constant 0 : index
    %5 = vector.load %arg9[%c0_1, %c0_2, %c0_3] : memref<18x16x128xbf16, #tpu.memory_space<vmem>>, vector<1x16x128xbf16>
    %6 = vector.shape_cast %5 : vector<1x16x128xbf16> to vector<16x128xbf16>
    %7 = vector.shape_cast %4 : vector<16x128xbf16> to vector<1x16x128xbf16>
    tpu.vector_store %arg9[%c0_1, %c0_2, %c0_3], %7 {strides = array<i32>} : memref<18x16x128xbf16, #tpu.memory_space<vmem>>, vector<1x16x128xbf16>,
    %c0_4 = arith.constant 0 : index
    %c0_5 = arith.constant 0 : index
    %c0_6 = arith.constant 0 : index
    %c0_7 = arith.constant 0 : index
    %8 = vector.load %arg2[%c0_4, %c0_5, %c0_6, %c0_7] : memref<1x16x16x128xbf16, #tpu.memory_space<vmem>>, vector<1x16x16x128xbf16>
    %9 = vector.shape_cast %8 : vector<1x16x16x128xbf16> to vector<16x16x128xbf16>
    %10 = arith.extf %9 : vector<16x16x128xbf16> to vector<16x16x128xf32>
    %c0_8 = arith.constant 0 : index
    %c0_9 = arith.constant 0 : index
    %11 = vector.load %arg5[%c0_8, %c0_9] : memref<1x128xf32, #tpu.memory_space<vmem>>, vector<1x128xf32>
    %12 = vector.shape_cast %11 : vector<1x128xf32> to vector<128xf32>
    %13 = vector.shape_cast %12 : vector<128xf32> to vector<1x1x128xf32>
    %14 = vector.broadcast %13 : vector<1x1x128xf32> to vector<16x16x128xf32>
    %15 = arith.mulf %10, %14 : vector<16x16x128xf32>
    %c0_10 = arith.constant 0 : index
    %c0_11 = arith.constant 0 : index
    %16 = vector.load %arg6[%c0_10, %c0_11] : memref<1x128xf32, #tpu.memory_space<vmem>>, vector<1x128xf32>
    %17 = vector.shape_cast %16 : vector<1x128xf32> to vector<128xf32>
    %18 = vector.shape_cast %17 : vector<128xf32> to vector<1x1x128xf32>
    %19 = vector.broadcast %18 : vector<1x1x128xf32> to vector<16x16x128xf32>
    %20 = arith.addf %15, %19 : vector<16x16x128xf32>
    %cst_12 = arith.constant 0.000000e+00 : f32
    %21 = vector.broadcast %cst_12 : f32 to vector<16x16x128xf32>
    %22 = arith.maximumf %20, %21 : vector<16x16x128xf32>
    %23 = arith.truncf %22 : vector<16x16x128xf32> to vector<16x16x128xbf16>
    %c1 = arith.constant 1 : index
    %c0_13 = arith.constant 0 : index
    %c0_14 = arith.constant 0 : index
    %24 = vector.load %arg9[%c1, %c0_13, %c0_14] : memref<18x16x128xbf16, #tpu.memory_space<vmem>>, vector<16x16x128xbf16>
    tpu.vector_store %arg9[%c1, %c0_13, %c0_14], %23 {strides = array<i32>} : memref<18x16x128xbf16, #tpu.memory_space<vmem>>, vector<16x16x128xbf16>,
    %c0_15 = arith.constant 0 : index
    %c0_16 = arith.constant 0 : index
    %c0_17 = arith.constant 0 : index
    %c0_18 = arith.constant 0 : index
    %25 = vector.load %arg3[%c0_15, %c0_16, %c0_17, %c0_18] : memref<1x1x16x128xbf16, #tpu.memory_space<vmem>>, vector<1x1x16x128xbf16>
    %26 = vector.shape_cast %25 : vector<1x1x16x128xbf16> to vector<16x128xbf16>
    %27 = arith.extf %26 : vector<16x128xbf16> to vector<16x128xf32>
    %c0_19 = arith.constant 0 : index
    %c0_20 = arith.constant 0 : index
    %28 = vector.load %arg5[%c0_19, %c0_20] : memref<1x128xf32, #tpu.memory_space<vmem>>, vector<1x128xf32>
    %29 = vector.shape_cast %28 : vector<1x128xf32> to vector<128xf32>
    %30 = vector.shape_cast %29 : vector<128xf32> to vector<1x128xf32>
    %31 = vector.broadcast %30 : vector<1x128xf32> to vector<16x128xf32>
    %32 = arith.mulf %27, %31 : vector<16x128xf32>
    %c0_21 = arith.constant 0 : index
    %c0_22 = arith.constant 0 : index
    %33 = vector.load %arg6[%c0_21, %c0_22] : memref<1x128xf32, #tpu.memory_space<vmem>>, vector<1x128xf32>
    %34 = vector.shape_cast %33 : vector<1x128xf32> to vector<128xf32>
    %35 = vector.shape_cast %34 : vector<128xf32> to vector<1x128xf32>
    %36 = vector.broadcast %35 : vector<1x128xf32> to vector<16x128xf32>
    %37 = arith.addf %32, %36 : vector<16x128xf32>
    %cst_23 = arith.constant 0.000000e+00 : f32
    %38 = vector.broadcast %cst_23 : f32 to vector<16x128xf32>
    %39 = arith.maximumf %37, %38 : vector<16x128xf32>
    %40 = arith.truncf %39 : vector<16x128xf32> to vector<16x128xbf16>
    %c0_i32_24 = arith.constant 0 : i32
    %41 = arith.cmpi slt, %arg1, %c0_i32_24 : i32
    %cst_25 = arith.constant 0.000000e+00 : bf16
    %42 = vector.broadcast %cst_25 : bf16 to vector<16x128xbf16>
    %43 = arith.select %41, %40, %42 : vector<16x128xbf16>
    %c17 = arith.constant 17 : index
    %c0_26 = arith.constant 0 : index
    %c0_27 = arith.constant 0 : index
    %44 = vector.load %arg9[%c17, %c0_26, %c0_27] : memref<18x16x128xbf16, #tpu.memory_space<vmem>>, vector<1x16x128xbf16>
    %45 = vector.shape_cast %44 : vector<1x16x128xbf16> to vector<16x128xbf16>
    %46 = vector.shape_cast %43 : vector<16x128xbf16> to vector<1x16x128xbf16>
    tpu.vector_store %arg9[%c17, %c0_26, %c0_27], %46 {strides = array<i32>} : memref<18x16x128xbf16, #tpu.memory_space<vmem>>, vector<1x16x128xbf16>,
    %cst_28 = arith.constant 0.000000e+00 : bf16
    %47 = vector.broadcast %cst_28 : bf16 to vector<16x1x128xbf16>
    %cst_29 = arith.constant 0.000000e+00 : f32
    %48 = vector.broadcast %cst_29 : f32 to vector<256x128xf32>
    %c0_30 = arith.constant 0 : index
    %c0_31 = arith.constant 0 : index
    %c0_32 = arith.constant 0 : index
    %49 = vector.load %arg9[%c0_30, %c0_31, %c0_32] : memref<18x16x128xbf16, #tpu.memory_space<vmem>>, vector<16x16x128xbf16>
    %50 = vector.extract_strided_slice %49 {offsets = [0, 0, 0], sizes = [16, 15, 128], strides = [1, 1, 1]} : vector<16x16x128xbf16> to vector<16x15x128xbf16>
    %51 = tpu.concatenate %47, %50 in 1 : vector<16x1x128xbf16>, vector<16x15x128xbf16> -> vector<16x16x128xbf16>
    %52 = vector.extract_strided_slice %49 {offsets = [0, 1, 0], sizes = [16, 15, 128], strides = [1, 1, 1]} : vector<16x16x128xbf16> to vector<16x15x128xbf16>
    %53 = tpu.concatenate %52, %47 in 1 : vector<16x15x128xbf16>, vector<16x1x128xbf16> -> vector<16x16x128xbf16>
    %54 = tpu.concatenate %51, %49, %53 in 2 : vector<16x16x128xbf16>, vector<16x16x128xbf16>, vector<16x16x128xbf16> -> vector<16x16x384xbf16>
    %55 = vector.shape_cast %54 : vector<16x16x384xbf16> to vector<256x384xbf16>
    %c0_33 = arith.constant 0 : index
    %c0_34 = arith.constant 0 : index
    %c0_35 = arith.constant 0 : index
    %56 = vector.load %arg4[%c0_33, %c0_34, %c0_35] : memref<3x384x128xbf16, #tpu.memory_space<vmem>>, vector<1x384x128xbf16>
    %57 = vector.shape_cast %56 : vector<1x384x128xbf16> to vector<384x128xbf16>
    %cst_36 = arith.constant dense<0.000000e+00> : vector<256x128xf32>
    %58 = tpu.matmul %55, %57, %cst_36 {dimension_numbers = #tpu.dot_dimension_numbers<[1], [0], [0], [1], [0, 0, 1, 1], [], []>} : vector<256x384xbf16>, vector<384x128xbf16>, vector<256x128xf32> -> vector<256x128xf32>
    %59 = arith.addf %48, %58 : vector<256x128xf32>
    %c1_37 = arith.constant 1 : index
    %c0_38 = arith.constant 0 : index
    %c0_39 = arith.constant 0 : index
    %60 = vector.load %arg9[%c1_37, %c0_38, %c0_39] : memref<18x16x128xbf16, #tpu.memory_space<vmem>>, vector<16x16x128xbf16>
    %61 = vector.extract_strided_slice %60 {offsets = [0, 0, 0], sizes = [16, 15, 128], strides = [1, 1, 1]} : vector<16x16x128xbf16> to vector<16x15x128xbf16>
    %62 = tpu.concatenate %47, %61 in 1 : vector<16x1x128xbf16>, vector<16x15x128xbf16> -> vector<16x16x128xbf16>
    %63 = vector.extract_strided_slice %60 {offsets = [0, 1, 0], sizes = [16, 15, 128], strides = [1, 1, 1]} : vector<16x16x128xbf16> to vector<16x15x128xbf16>
    %64 = tpu.concatenate %63, %47 in 1 : vector<16x15x128xbf16>, vector<16x1x128xbf16> -> vector<16x16x128xbf16>
    %65 = tpu.concatenate %62, %60, %64 in 2 : vector<16x16x128xbf16>, vector<16x16x128xbf16>, vector<16x16x128xbf16> -> vector<16x16x384xbf16>
    %66 = vector.shape_cast %65 : vector<16x16x384xbf16> to vector<256x384xbf16>
    %c1_40 = arith.constant 1 : index
    %c0_41 = arith.constant 0 : index
    %c0_42 = arith.constant 0 : index
    %67 = vector.load %arg4[%c1_40, %c0_41, %c0_42] : memref<3x384x128xbf16, #tpu.memory_space<vmem>>, vector<1x384x128xbf16>
    %68 = vector.shape_cast %67 : vector<1x384x128xbf16> to vector<384x128xbf16>
    %cst_43 = arith.constant dense<0.000000e+00> : vector<256x128xf32>
    %69 = tpu.matmul %66, %68, %cst_43 {dimension_numbers = #tpu.dot_dimension_numbers<[1], [0], [0], [1], [0, 0, 1, 1], [], []>} : vector<256x384xbf16>, vector<384x128xbf16>, vector<256x128xf32> -> vector<256x128xf32>
    %70 = arith.addf %59, %69 : vector<256x128xf32>
    %c2 = arith.constant 2 : index
    %c0_44 = arith.constant 0 : index
    %c0_45 = arith.constant 0 : index
    %71 = vector.load %arg9[%c2, %c0_44, %c0_45] : memref<18x16x128xbf16, #tpu.memory_space<vmem>>, vector<16x16x128xbf16>
    %72 = vector.extract_strided_slice %71 {offsets = [0, 0, 0], sizes = [16, 15, 128], strides = [1, 1, 1]} : vector<16x16x128xbf16> to vector<16x15x128xbf16>
    %73 = tpu.concatenate %47, %72 in 1 : vector<16x1x128xbf16>, vector<16x15x128xbf16> -> vector<16x16x128xbf16>
    %74 = vector.extract_strided_slice %71 {offsets = [0, 1, 0], sizes = [16, 15, 128], strides = [1, 1, 1]} : vector<16x16x128xbf16> to vector<16x15x128xbf16>
    %75 = tpu.concatenate %74, %47 in 1 : vector<16x15x128xbf16>, vector<16x1x128xbf16> -> vector<16x16x128xbf16>
    %76 = tpu.concatenate %73, %71, %75 in 2 : vector<16x16x128xbf16>, vector<16x16x128xbf16>, vector<16x16x128xbf16> -> vector<16x16x384xbf16>
    %77 = vector.shape_cast %76 : vector<16x16x384xbf16> to vector<256x384xbf16>
    %c2_46 = arith.constant 2 : index
    %c0_47 = arith.constant 0 : index
    %c0_48 = arith.constant 0 : index
    %78 = vector.load %arg4[%c2_46, %c0_47, %c0_48] : memref<3x384x128xbf16, #tpu.memory_space<vmem>>, vector<1x384x128xbf16>
    %79 = vector.shape_cast %78 : vector<1x384x128xbf16> to vector<384x128xbf16>
    %cst_49 = arith.constant dense<0.000000e+00> : vector<256x128xf32>
    %80 = tpu.matmul %77, %79, %cst_49 {dimension_numbers = #tpu.dot_dimension_numbers<[1], [0], [0], [1], [0, 0, 1, 1], [], []>} : vector<256x384xbf16>, vector<384x128xbf16>, vector<256x128xf32> -> vector<256x128xf32>
    %81 = arith.addf %70, %80 : vector<256x128xf32>
    %82 = vector.shape_cast %81 : vector<256x128xf32> to vector<16x16x128xf32>
    %83 = arith.truncf %82 : vector<16x16x128xf32> to vector<16x16x128xbf16>
    %c0_50 = arith.constant 0 : index
    %c0_51 = arith.constant 0 : index
    %c0_52 = arith.constant 0 : index
    %c0_53 = arith.constant 0 : index
    %84 = vector.load %arg7[%c0_50, %c0_51, %c0_52, %c0_53] : memref<1x16x16x128xbf16, #tpu.memory_space<vmem>>, vector<1x16x16x128xbf16>
    %85 = vector.shape_cast %84 : vector<1x16x16x128xbf16> to vector<16x16x128xbf16>
    %86 = vector.shape_cast %83 : vector<16x16x128xbf16> to vector<1x16x16x128xbf16>
    tpu.vector_store %arg7[%c0_50, %c0_51, %c0_52, %c0_53], %86 {strides = array<i32>} : memref<1x16x16x128xbf16, #tpu.memory_space<vmem>>, vector<1x16x16x128xbf16>,
    %c0_i32_54 = arith.constant 0 : i32
    %87 = arith.cmpi eq, %arg1, %c0_i32_54 : i32
    %88 = arith.extui %87 : i1 to i32
    %c0_i32_55 = arith.constant 0 : i32
    %89 = arith.cmpi ne, %88, %c0_i32_55 : i32
    scf.if %89 {
      %cst_64 = arith.constant 0.000000e+00 : f32
      %100 = vector.broadcast %cst_64 : f32 to vector<1x2x128xf32>
      %c0_65 = arith.constant 0 : index
      %c0_66 = arith.constant 0 : index
      %c0_67 = arith.constant 0 : index
      %101 = vector.load %arg8[%c0_65, %c0_66, %c0_67] : memref<1x2x128xf32, #tpu.memory_space<vmem>>, vector<1x2x128xf32>
      tpu.vector_store %arg8[%c0_65, %c0_66, %c0_67], %100 {strides = array<i32>} : memref<1x2x128xf32, #tpu.memory_space<vmem>>, vector<1x2x128xf32>,
    } else {
    }
    %cst_56 = arith.constant dense<0.000000e+00> : vector<128xf32>
    %90 = vector.multi_reduction <add>, %81, %cst_56 [0] : vector<256x128xf32> to vector<128xf32>
    %91 = vector.shape_cast %90 : vector<128xf32> to vector<1x128xf32>
    %92 = arith.mulf %81, %81 : vector<256x128xf32>
    %cst_57 = arith.constant dense<0.000000e+00> : vector<128xf32>
    %93 = vector.multi_reduction <add>, %92, %cst_57 [0] : vector<256x128xf32> to vector<128xf32>
    %94 = vector.shape_cast %93 : vector<128xf32> to vector<1x128xf32>
    %c0_58 = arith.constant 0 : index
    %c0_59 = arith.constant 0 : index
    %c0_60 = arith.constant 0 : index
    %95 = vector.load %arg8[%c0_58, %c0_59, %c0_60] : memref<1x2x128xf32, #tpu.memory_space<vmem>>, vector<1x2x128xf32>
    %96 = tpu.concatenate %91, %94 in 0 : vector<1x128xf32>, vector<1x128xf32> -> vector<2x128xf32>
    %97 = vector.shape_cast %96 : vector<2x128xf32> to vector<1x2x128xf32>
    %98 = arith.addf %95, %97 : vector<1x2x128xf32>
    %c0_61 = arith.constant 0 : index
    %c0_62 = arith.constant 0 : index
    %c0_63 = arith.constant 0 : index
    %99 = vector.load %arg8[%c0_61, %c0_62, %c0_63] : memref<1x2x128xf32, #tpu.memory_space<vmem>>, vector<1x2x128xf32>
    tpu.vector_store %arg8[%c0_61, %c0_62, %c0_63], %98 {strides = array<i32>} : memref<1x2x128xf32, #tpu.memory_space<vmem>>, vector<1x2x128xf32>,
    return
  }
  func.func @transform_0(%arg0: i32, %arg1: i32) -> (i32, i32, i32, i32) {
    %c0_i32 = arith.constant 0 : i32
    %c0_i32_0 = arith.constant 0 : i32
    %c0_i32_1 = arith.constant 0 : i32
    return %arg0, %arg1, %c0_i32, %c0_i32_0 : i32, i32, i32, i32
  }
  func.func @transform_1(%arg0: i32, %arg1: i32) -> (i32, i32, i32, i32) {
    %c1_i32 = arith.constant 1 : i32
    %0 = arith.addi %arg1, %c1_i32 : i32
    %c16_i32 = arith.constant 16 : i32
    %1 = arith.muli %0, %c16_i32 : i32
    %c15_i32 = arith.constant 15 : i32
    %2 = arith.minsi %1, %c15_i32 : i32
    %c0_i32 = arith.constant 0 : i32
    %c0_i32_0 = arith.constant 0 : i32
    %c0_i32_1 = arith.constant 0 : i32
    return %arg0, %2, %c0_i32, %c0_i32_0 : i32, i32, i32, i32
  }
  func.func @transform_2(%arg0: i32, %arg1: i32) -> (i32, i32, i32) {
    %c0_i32 = arith.constant 0 : i32
    %c0_i32_0 = arith.constant 0 : i32
    %c0_i32_1 = arith.constant 0 : i32
    %c0_i32_2 = arith.constant 0 : i32
    return %c0_i32, %c0_i32_0, %c0_i32_1 : i32, i32, i32
  }
  func.func @transform_3(%arg0: i32, %arg1: i32) -> (i32, i32) {
    %c0_i32 = arith.constant 0 : i32
    %c0_i32_0 = arith.constant 0 : i32
    %c0_i32_1 = arith.constant 0 : i32
    return %c0_i32, %c0_i32_0 : i32, i32
  }
  func.func @transform_4(%arg0: i32, %arg1: i32) -> (i32, i32) {
    %c0_i32 = arith.constant 0 : i32
    %c0_i32_0 = arith.constant 0 : i32
    %c0_i32_1 = arith.constant 0 : i32
    return %c0_i32, %c0_i32_0 : i32, i32
  }
  func.func @transform_5(%arg0: i32, %arg1: i32) -> (i32, i32, i32, i32) {
    %c0_i32 = arith.constant 0 : i32
    %c0_i32_0 = arith.constant 0 : i32
    %c0_i32_1 = arith.constant 0 : i32
    return %arg0, %arg1, %c0_i32, %c0_i32_0 : i32, i32, i32, i32
  }
  func.func @transform_6(%arg0: i32, %arg1: i32) -> (i32, i32, i32) {
    %c0_i32 = arith.constant 0 : i32
    %c0_i32_0 = arith.constant 0 : i32
    %c0_i32_1 = arith.constant 0 : i32
    return %arg0, %c0_i32, %c0_i32_0 : i32, i32, i32
  }
}

</mosaic_0001>

<llo_original>
// kernel: double_conv_forward.5
$region0: #{double_conv_forward.5}
  #allocation0 [shape = 'u32[]', space=smem, size = 0x4, offset = 0x4, fixed_abs, tag = 'smem constant byte address 0x4 - core index']
  #allocation1 [shape = 'u32[144,128]{1,0:T(1,128)}', space=vmem, size = 0x12000, scoped, tag = 'internal scratch']
  %s0 = inlined_call_operand.vmem [shape: bf16[2,16,16,128], index: 0, kind: input, shape index: {}]
  %s1 = inlined_call_operand.vmem [shape: f32[1,128], index: 1, kind: input, shape index: {}]
  %s2 = inlined_call_operand.vmem [shape: f32[1,128], index: 2, kind: input, shape index: {}]
  %s3 = inlined_call_operand.vmem [shape: f32[2,16,16,128], index: 3, kind: output, shape index: {}]
  %s4 = sld [smem:[#allocation0]]
  $region45: #{double_conv_forward.5} parent=0
    _
  %s6 = ssub.s32 1, %s4
  %s7 = scalar_select 0, %s6, %s4
  loop: start=0, step=1, limit=4
  $region2: #{double_conv_forward.5} parent=0 // loop_pre_header
    _
  $region3: #{double_conv_forward.5} parent=0 // loop_header
    %s9 = sphi 0, %s13
    %p10 = scmp.ge.s32.totalorder %s9, 4
    %s16 = sphi 0, %s28
    %s17 = sphi 0, %s24
    %s18 = sphi 0, %s16
    %s19 = sphi 0, %s17
    %s20 = sphi 0, %s18
    %s21 = sphi 0, %s19
    %s33 = sphi 0, %s35
    %s36 = sphi 0, %s33
    %s37 = sphi 0, %s36
    %s53 = sphi 0, %s37
    %s57 = sphi 0, %s57
    %s59 = sphi 0, %s57
    %s60 = sphi 0, %s59
    %s74 = sphi 0, %s60
    %s78 = sphi 0, %s78
    %s80 = sphi 0, %s78
    %s81 = sphi 0, %s80
    %s95 = sphi 0, %s81
    %s103 = sphi 0, %s105
    %s106 = sphi 0, %s103
    %s107 = sphi 0, %s106
    %s123 = sphi 0, %s107
  $region4: #{double_conv_forward.5} parent=0 // loop_header_branch
    %12 = sbr.rel (%p10) target = $region8
  $region5: #{double_conv_forward.5} parent=0 // loop_body
    %s14 = ssub.s32 %s9, 1
    %s15 = ssub.s32 %s9, 2
    %s22 = sadd.s32 1, %s17
    %p23 = scmp.ge.s32.totalorder %s22, 1
    %s24 = scalar_select %p23, 0, %s22
    %s25 = sadd.s32 1, %s16
    %s26 = scalar_select %p23, %s25, %s16
    %p27 = scmp.ge.s32.totalorder %s26, 2
    %s28 = scalar_select %p27, 0, %s26
    %s29 = ssub.s32 %s16, %s28
    %s30 = ssub.s32 %s17, %s24
    %s31 = sor.u32 %s29, %s30
    %p32 = scmp.eq.s32.totalorder %s31, 0
    %s34 = sadd.s32 %s33, 1
    %s35 = scalar_select %p32, %s33, %s34
    %p38 = pneg %p32
    %p39 = scmp.eq.s32.totalorder %s9, 1
    %p40 = por %p38, %p39
    %p41 = scmp.ne.s32.totalorder %s33, %s36
    %p42 = scmp.eq.s32.totalorder %s9, 0
    %p43 = por %p41, %p42
    %p44 = scmp.ne.s32.totalorder %s33, %s36
    %p45 = scmp.eq.s32.totalorder %s14, 1
    %p46 = por %p44, %p45
    %p47 = scmp.ne.s32.totalorder %s36, %s37
    %p48 = scmp.eq.s32.totalorder %s14, 0
    %p49 = por %p47, %p48
    %p50 = scmp.ne.s32.totalorder %s36, %s37
    %p51 = scmp.eq.s32.totalorder %s15, 1
    %p52 = por %p50, %p51
    %p54 = scmp.ne.s32.totalorder %s37, %s53
    %p55 = scmp.eq.s32.totalorder %s15, 0
    %p56 = por %p54, %p55
    %s58 = sadd.s32 %s57, 1
    %p61 = scmp.eq.s32.totalorder %s9, 1
    %p62 = scmp.ne.s32.totalorder %s57, %s59
    %p63 = scmp.eq.s32.totalorder %s9, 0
    %p64 = por %p62, %p63
    %p65 = scmp.ne.s32.totalorder %s57, %s59
    %p66 = scmp.eq.s32.totalorder %s14, 1
    %p67 = por %p65, %p66
    %p68 = scmp.ne.s32.totalorder %s59, %s60
    %p69 = scmp.eq.s32.totalorder %s14, 0
    %p70 = por %p68, %p69
    %p71 = scmp.ne.s32.totalorder %s59, %s60
    %p72 = scmp.eq.s32.totalorder %s15, 1
    %p73 = por %p71, %p72
    %p75 = scmp.ne.s32.totalorder %s60, %s74
    %p76 = scmp.eq.s32.totalorder %s15, 0
    %p77 = por %p75, %p76
    %s79 = sadd.s32 %s78, 1
    %p82 = scmp.eq.s32.totalorder %s9, 1
    %p83 = scmp.ne.s32.totalorder %s78, %s80
    %p84 = scmp.eq.s32.totalorder %s9, 0
    %p85 = por %p83, %p84
    %p86 = scmp.ne.s32.totalorder %s78, %s80
    %p87 = scmp.eq.s32.totalorder %s14, 1
    %p88 = por %p86, %p87
    %p89 = scmp.ne.s32.totalorder %s80, %s81
    %p90 = scmp.eq.s32.totalorder %s14, 0
    %p91 = por %p89, %p90
    %p92 = scmp.ne.s32.totalorder %s80, %s81
    %p93 = scmp.eq.s32.totalorder %s15, 1
    %p94 = por %p92, %p93
    %p96 = scmp.ne.s32.totalorder %s81, %s95
    %p97 = scmp.eq.s32.totalorder %s15, 0
    %p98 = por %p96, %p97
    %s99 = ssub.s32 %s16, %s28
    %s100 = ssub.s32 %s17, %s24
    %s101 = sor.u32 %s99, %s100
    %p102 = scmp.eq.s32.totalorder %s101, 0
    %s104 = sadd.s32 %s103, 1
    %s105 = scalar_select %p102, %s103, %s104
    %p108 = pneg %p102
    %p109 = scmp.eq.s32.totalorder %s9, 1
    %p110 = por %p108, %p109
    %p111 = scmp.ne.s32.totalorder %s103, %s106
    %p112 = scmp.eq.s32.totalorder %s9, 0
    %p113 = por %p111, %p112
    %p114 = scmp.ne.s32.totalorder %s103, %s106
    %p115 = scmp.eq.s32.totalorder %s14, 1
    %p116 = por %p114, %p115
    %p117 = scmp.ne.s32.totalorder %s106, %s107
    %p118 = scmp.eq.s32.totalorder %s14, 0
    %p119 = por %p117, %p118
    %p120 = scmp.ne.s32.totalorder %s106, %s107
    %p121 = scmp.eq.s32.totalorder %s15, 1
    %p122 = por %p120, %p121
    %p124 = scmp.ne.s32.totalorder %s107, %s123
    %p125 = scmp.eq.s32.totalorder %s15, 0
    %p126 = por %p124, %p125
    %p127 = scmp.le.s32.totalorder 1, %s9
    %p128 = scmp.lt.s32.totalorder %s9, 3
    %p129 = pnand %p127, %p128
    %p130 = pneg %p129
    // Predicated region
    $region9: #{double_conv_forward.5} parent=5 // pred_check
      _
    $region10: #{double_conv_forward.5} parent=5 // pred_check_branch
      %132 = sbr.rel (%p129) target = $region12
    $region11: #{double_conv_forward.5} parent=5 // pred_region
      %s133 = ssub.s32 %s9, 1
      // Predicated region
      $region13: #{double_conv_forward.5} parent=11 // pred_check
        %p134 = pneg %p70
      $region14: #{double_conv_forward.5} parent=11 // pred_check_branch
        %136 = sbr.rel (%p134) target = $region16
      $region15: #{double_conv_forward.5} parent=11 // pred_region
        _
      $region16: #{double_conv_forward.5} parent=11 // pred_fallthru
        _
      // Predicated region
      $region17: #{double_conv_forward.5} parent=11 // pred_check
        %p137 = pneg %p91
      $region18: #{double_conv_forward.5} parent=11 // pred_check_branch
        %139 = sbr.rel (%p137) target = $region20
      $region19: #{double_conv_forward.5} parent=11 // pred_region
        _
      $region20: #{double_conv_forward.5} parent=11 // pred_fallthru
        _
    $region12: #{double_conv_forward.5} parent=5 // pred_fallthru
      _
    %p140 = scmp.lt.s32.totalorder %s9, 2
    // Predicated region
    $region21: #{double_conv_forward.5} parent=5 // pred_check
      %p141 = pneg %p140
    $region22: #{double_conv_forward.5} parent=5 // pred_check_branch
      %143 = sbr.rel (%p141) target = $region24
    $region23: #{double_conv_forward.5} parent=5 // pred_region
      // Predicated region
      $region25: #{double_conv_forward.5} parent=23 // pred_check
        %p144 = pneg %p43
      $region26: #{double_conv_forward.5} parent=23 // pred_check_branch
        %146 = sbr.rel (%p144) target = $region28
      $region27: #{double_conv_forward.5} parent=23 // pred_region
        %s147 = smul.u32 16, %s17
        %p148 = scmp.lt.s32.totalorder %s16, 1
        %s149 = scalar_select %p148, %s16, 1
        %p150 = scmp.lt.s32.totalorder %s147, 15
        %s151 = scalar_select %p150, %s147, 15
        %s152 = smul.addr %s151, 2
        %s153 = smul.addr %s149, 32
        %s154 = sadd.s32 %s152, %s153
        %s155 = smul.addr %s154, 4
        %s156 = scalar_lea.vmem %s0, %s155
        %s157 = smul.u32 16, %s17
      $region28: #{double_conv_forward.5} parent=23 // pred_fallthru
        _
    $region24: #{double_conv_forward.5} parent=5 // pred_fallthru
      _
    %p158 = scmp.le.s32.totalorder 1, %s9
    %p159 = scmp.lt.s32.totalorder %s9, 3
    %p160 = pnand %p158, %p159
    %p161 = pneg %p160
    // Predicated region
    $region29: #{double_conv_forward.5} parent=5 // pred_check
      _
    $region30: #{double_conv_forward.5} parent=5 // pred_check_branch
      %163 = sbr.rel (%p160) target = $region32
    $region31: #{double_conv_forward.5} parent=5 // pred_region
      %s164 = ssub.s32 %s9, 1
      %s165 = smul.u32 16, %s19
      %p166 = scmp.lt.s32.totalorder %s18, 1
      %s167 = scalar_select %p166, %s18, 1
      %p168 = scmp.lt.s32.totalorder %s165, 15
      %s169 = scalar_select %p168, %s165, 15
      %s170 = smul.addr %s169, 2
      %s171 = smul.addr %s167, 32
      %s172 = sadd.s32 %s170, %s171
      %s173 = smul.addr %s172, 4
      %s174 = scalar_lea.vmem %s0, %s173
      %p175 = pneg %p49
      %p176 = pneg %p46
      %p177 = pneg %p70
      %p178 = pneg %p67
      %p179 = pneg %p91
      %p180 = pneg %p88
      %p181 = pneg %p119
      %p182 = pneg %p116
      %s183 = smul.u32 16, %s19
      %p184 = scmp.lt.s32.totalorder %s18, 1
      %s185 = scalar_select %p184, %s18, 1
      %p186 = scmp.lt.s32.totalorder %s183, 15
      %s187 = scalar_select %p186, %s183, 15
      %s188 = smul.addr %s187, 2
      %s189 = smul.addr %s185, 32
      %s190 = sadd.s32 %s188, %s189
      %s191 = smul.addr %s190, 8
      %s192 = scalar_lea.vmem %s3, %s191
      %s193 = smul.u32 16, %s19
      %p194 = scmp.lt.s32.totalorder %s18, 1
      %s195 = scalar_select %p194, %s18, 1
      %p196 = scmp.lt.s32.totalorder %s193, 15
      %s197 = scalar_select %p196, %s193, 15
      %s198 = smul.addr %s197, 2
      %s199 = smul.addr %s195, 32
      %s200 = sadd.s32 %s198, %s199
      %s201 = smul.addr %s200, 4
      %s202 = scalar_lea.vmem %s0, %s201
      %s203 = smul.u32 16, %s19
      %s204 = smul.u32 16, %s19
      %p205 = scmp.lt.s32.totalorder %s18, 1
      %s206 = scalar_select %p205, %s18, 1
      %p207 = scmp.lt.s32.totalorder %s204, 15
      %s208 = scalar_select %p207, %s204, 15
      %s209 = smul.addr %s208, 2
      %s210 = smul.addr %s206, 32
      %s211 = sadd.s32 %s209, %s210
      %s212 = smul.addr %s211, 8
      %s213 = scalar_lea.vmem %s3, %s212
      %s214 = smul.u32 16, %s19
      %v215 = vld [vmem:[%s202] sm:$0xf]
      %v216 = vld [vmem:[%s202 + $0x4] sm:$0xf]
      %v217 = vld [vmem:[%s202 + $0x8] sm:$0xf]
      %v218 = vld [vmem:[%s202 + $0xc] sm:$0xf]
      %v219 = vld [vmem:[%s202 + $0x10] sm:$0xf]
      %v220 = vld [vmem:[%s202 + $0x14] sm:$0xf]
      %v221 = vld [vmem:[%s202 + $0x18] sm:$0xf]
      %v222 = vld [vmem:[%s202 + $0x1c] sm:$0xf]
      %v223 = vld [vmem:[%s202 + $0x20] sm:$0xf]
      %v224 = vld [vmem:[%s202 + $0x24] sm:$0xf]
      %v225 = vld [vmem:[%s202 + $0x28] sm:$0xf]
      %v226 = vld [vmem:[%s202 + $0x2c] sm:$0xf]
      %v227 = vld [vmem:[%s202 + $0x30] sm:$0xf]
      %v228 = vld [vmem:[%s202 + $0x34] sm:$0xf]
      %v229 = vld [vmem:[%s202 + $0x38] sm:$0xf]
      %v230 = vld [vmem:[%s202 + $0x3c] sm:$0xf]
      %v231 = vld [vmem:[%s202 + $0x40] sm:$0xf]
      %v232 = vld [vmem:[%s202 + $0x44] sm:$0xf]
      %v233 = vld [vmem:[%s202 + $0x48] sm:$0xf]
      %v234 = vld [vmem:[%s202 + $0x4c] sm:$0xf]
      %v235 = vld [vmem:[%s202 + $0x50] sm:$0xf]
      %v236 = vld [vmem:[%s202 + $0x54] sm:$0xf]
      %v237 = vld [vmem:[%s202 + $0x58] sm:$0xf]
      %v238 = vld [vmem:[%s202 + $0x5c] sm:$0xf]
      %v239 = vld [vmem:[%s202 + $0x60] sm:$0xf]
      %v240 = vld [vmem:[%s202 + $0x64] sm:$0xf]
      %v241 = vld [vmem:[%s202 + $0x68] sm:$0xf]
      %v242 = vld [vmem:[%s202 + $0x6c] sm:$0xf]
      %v243 = vld [vmem:[%s202 + $0x70] sm:$0xf]
      %v244 = vld [vmem:[%s202 + $0x74] sm:$0xf]
      %v245 = vld [vmem:[%s202 + $0x78] sm:$0xf]
      %v246 = vld [vmem:[%s202 + $0x7c] sm:$0xf]
      %v247 = vunpack.c.l.bf16 %v215
      %v248 = vunpack.c.l.bf16 %v216
      %v249 = vunpack.c.l.bf16 %v217
      %v250 = vunpack.c.l.bf16 %v218
      %v251 = vunpack.c.l.bf16 %v219
      %v252 = vunpack.c.l.bf16 %v220
      %v253 = vunpack.c.l.bf16 %v221
      %v254 = vunpack.c.l.bf16 %v222
      %v255 = vunpack.c.l.bf16 %v223
      %v256 = vunpack.c.l.bf16 %v224
      %v257 = vunpack.c.l.bf16 %v225
      %v258 = vunpack.c.l.bf16 %v226
      %v259 = vunpack.c.l.bf16 %v227
      %v260 = vunpack.c.l.bf16 %v228
      %v261 = vunpack.c.l.bf16 %v229
      %v262 = vunpack.c.l.bf16 %v230
      %v263 = vunpack.c.l.bf16 %v231
      %v264 = vunpack.c.l.bf16 %v232
      %v265 = vunpack.c.l.bf16 %v233
      %v266 = vunpack.c.l.bf16 %v234
      %v267 = vunpack.c.l.bf16 %v235
      %v268 = vunpack.c.l.bf16 %v236
      %v269 = vunpack.c.l.bf16 %v237
      %v270 = vunpack.c.l.bf16 %v238
      %v271 = vunpack.c.l.bf16 %v239
      %v272 = vunpack.c.l.bf16 %v240
      %v273 = vunpack.c.l.bf16 %v241
      %v274 = vunpack.c.l.bf16 %v242
      %v275 = vunpack.c.l.bf16 %v243
      %v276 = vunpack.c.l.bf16 %v244
      %v277 = vunpack.c.l.bf16 %v245
      %v278 = vunpack.c.l.bf16 %v246
      %v279 = vld [vmem:[%s1] sm:$0x1]
      %v281 = vlaneseq
      %v282 = vshrl.u32 %v281, 7
      %v283 = vsub.s32 0, %v282
      %v284 = vrot.slane %v279, %v283
      %v286 = vmul.f32 %v247, %v284
      %v287 = vmul.f32 %v248, %v284
      %v288 = vmul.f32 %v249, %v284
      %v289 = vmul.f32 %v250, %v284
      %v290 = vmul.f32 %v251, %v284
      %v291 = vmul.f32 %v252, %v284
      %v292 = vmul.f32 %v253, %v284
      %v293 = vmul.f32 %v254, %v284
      %v294 = vmul.f32 %v255, %v284
      %v295 = vmul.f32 %v256, %v284
      %v296 = vmul.f32 %v257, %v284
      %v297 = vmul.f32 %v258, %v284
      %v298 = vmul.f32 %v259, %v284
      %v299 = vmul.f32 %v260, %v284
      %v300 = vmul.f32 %v261, %v284
      %v301 = vmul.f32 %v262, %v284
      %v302 = vmul.f32 %v263, %v284
      %v303 = vmul.f32 %v264, %v284
      %v304 = vmul.f32 %v265, %v284
      %v305 = vmul.f32 %v266, %v284
      %v306 = vmul.f32 %v267, %v284
      %v307 = vmul.f32 %v268, %v284
      %v308 = vmul.f32 %v269, %v284
      %v309 = vmul.f32 %v270, %v284
      %v310 = vmul.f32 %v271, %v284
      %v311 = vmul.f32 %v272, %v284
      %v312 = vmul.f32 %v273, %v284
      %v313 = vmul.f32 %v274, %v284
      %v314 = vmul.f32 %v275, %v284
      %v315 = vmul.f32 %v276, %v284
      %v316 = vmul.f32 %v277, %v284
      %v317 = vmul.f32 %v278, %v284
      %v318 = vld [vmem:[%s2] sm:$0x1]
      %v320 = vlaneseq
      %v321 = vshrl.u32 %v320, 7
      %v322 = vsub.s32 0, %v321
      %v323 = vrot.slane %v318, %v322
      %v325 = vadd.f32 %v286, %v323
      %v326 = vadd.f32 %v287, %v323
      %v327 = vadd.f32 %v288, %v323
      %v328 = vadd.f32 %v289, %v323
      %v329 = vadd.f32 %v290, %v323
      %v330 = vadd.f32 %v291, %v323
      %v331 = vadd.f32 %v292, %v323
      %v332 = vadd.f32 %v293, %v323
      %v333 = vadd.f32 %v294, %v323
      %v334 = vadd.f32 %v295, %v323
      %v335 = vadd.f32 %v296, %v323
      %v336 = vadd.f32 %v297, %v323
      %v337 = vadd.f32 %v298, %v323
      %v338 = vadd.f32 %v299, %v323
      %v339 = vadd.f32 %v300, %v323
      %v340 = vadd.f32 %v301, %v323
      %v341 = vadd.f32 %v302, %v323
      %v342 = vadd.f32 %v303, %v323
      %v343 = vadd.f32 %v304, %v323
      %v344 = vadd.f32 %v305, %v323
      %v345 = vadd.f32 %v306, %v323
      %v346 = vadd.f32 %v307, %v323
      %v347 = vadd.f32 %v308, %v323
      %v348 = vadd.f32 %v309, %v323
      %v349 = vadd.f32 %v310, %v323
      %v350 = vadd.f32 %v311, %v323
      %v351 = vadd.f32 %v312, %v323
      %v352 = vadd.f32 %v313, %v323
      %v353 = vadd.f32 %v314, %v323
      %v354 = vadd.f32 %v315, %v323
      %v355 = vadd.f32 %v316, %v323
      %v356 = vadd.f32 %v317, %v323
      %v357 = vmax.f32 %v325, 0.0
      %v358 = vmax.f32 %v326, 0.0
      %v359 = vmax.f32 %v327, 0.0
      %v360 = vmax.f32 %v328, 0.0
      %v361 = vmax.f32 %v329, 0.0
      %v362 = vmax.f32 %v330, 0.0
      %v363 = vmax.f32 %v331, 0.0
      %v364 = vmax.f32 %v332, 0.0
      %v365 = vmax.f32 %v333, 0.0
      %v366 = vmax.f32 %v334, 0.0
      %v367 = vmax.f32 %v335, 0.0
      %v368 = vmax.f32 %v336, 0.0
      %v369 = vmax.f32 %v337, 0.0
      %v370 = vmax.f32 %v338, 0.0
      %v371 = vmax.f32 %v339, 0.0
      %v372 = vmax.f32 %v340, 0.0
      %v373 = vmax.f32 %v341, 0.0
      %v374 = vmax.f32 %v342, 0.0
      %v375 = vmax.f32 %v343, 0.0
      %v376 = vmax.f32 %v344, 0.0
      %v377 = vmax.f32 %v345, 0.0
      %v378 = vmax.f32 %v346, 0.0
      %v379 = vmax.f32 %v347, 0.0
      %v380 = vmax.f32 %v348, 0.0
      %v381 = vmax.f32 %v349, 0.0
      %v382 = vmax.f32 %v350, 0.0
      %v383 = vmax.f32 %v351, 0.0
      %v384 = vmax.f32 %v352, 0.0
      %v385 = vmax.f32 %v353, 0.0
      %v386 = vmax.f32 %v354, 0.0
      %v387 = vmax.f32 %v355, 0.0
      %v388 = vmax.f32 %v356, 0.0
      %389 = vst [vmem:[%s213] sm:$0xff] %v357
      %390 = vst [vmem:[%s213 + $0x8] sm:$0xff] %v358
      %391 = vst [vmem:[%s213 + $0x10] sm:$0xff] %v359
      %392 = vst [vmem:[%s213 + $0x18] sm:$0xff] %v360
      %393 = vst [vmem:[%s213 + $0x20] sm:$0xff] %v361
      %394 = vst [vmem:[%s213 + $0x28] sm:$0xff] %v362
      %395 = vst [vmem:[%s213 + $0x30] sm:$0xff] %v363
      %396 = vst [vmem:[%s213 + $0x38] sm:$0xff] %v364
      %397 = vst [vmem:[%s213 + $0x40] sm:$0xff] %v365
      %398 = vst [vmem:[%s213 + $0x48] sm:$0xff] %v366
      %399 = vst [vmem:[%s213 + $0x50] sm:$0xff] %v367
      %400 = vst [vmem:[%s213 + $0x58] sm:$0xff] %v368
      %401 = vst [vmem:[%s213 + $0x60] sm:$0xff] %v369
      %402 = vst [vmem:[%s213 + $0x68] sm:$0xff] %v370
      %403 = vst [vmem:[%s213 + $0x70] sm:$0xff] %v371
      %404 = vst [vmem:[%s213 + $0x78] sm:$0xff] %v372
      %405 = vst [vmem:[%s213 + $0x80] sm:$0xff] %v373
      %406 = vst [vmem:[%s213 + $0x88] sm:$0xff] %v374
      %407 = vst [vmem:[%s213 + $0x90] sm:$0xff] %v375
      %408 = vst [vmem:[%s213 + $0x98] sm:$0xff] %v376
      %409 = vst [vmem:[%s213 + $0xa0] sm:$0xff] %v377
      %410 = vst [vmem:[%s213 + $0xa8] sm:$0xff] %v378
      %411 = vst [vmem:[%s213 + $0xb0] sm:$0xff] %v379
      %412 = vst [vmem:[%s213 + $0xb8] sm:$0xff] %v380
      %413 = vst [vmem:[%s213 + $0xc0] sm:$0xff] %v381
      %414 = vst [vmem:[%s213 + $0xc8] sm:$0xff] %v382
      %415 = vst [vmem:[%s213 + $0xd0] sm:$0xff] %v383
      %416 = vst [vmem:[%s213 + $0xd8] sm:$0xff] %v384
      %417 = vst [vmem:[%s213 + $0xe0] sm:$0xff] %v385
      %418 = vst [vmem:[%s213 + $0xe8] sm:$0xff] %v386
      %419 = vst [vmem:[%s213 + $0xf0] sm:$0xff] %v387
      %420 = vst [vmem:[%s213 + $0xf8] sm:$0xff] %v388
      %s421 = smul.u32 16, %s19
      %p422 = scmp.lt.s32.totalorder %s18, 1
      %s423 = scalar_select %p422, %s18, 1
      %p424 = scmp.lt.s32.totalorder %s421, 15
      %s425 = scalar_select %p424, %s421, 15
      %s426 = smul.addr %s425, 2
      %s427 = smul.addr %s423, 32
      %s428 = sadd.s32 %s426, %s427
      %s429 = smul.addr %s428, 8
      %s430 = scalar_lea.vmem %s3, %s429
      // Predicated region
      $region33: #{double_conv_forward.5} parent=31 // pred_check
        %p431 = pneg %p116
      $region34: #{double_conv_forward.5} parent=31 // pred_check_branch
        %433 = sbr.rel (%p431) target = $region36
      $region35: #{double_conv_forward.5} parent=31 // pred_region
        %s434 = smul.u32 16, %s19
      $region36: #{double_conv_forward.5} parent=31 // pred_fallthru
        _
    $region32: #{double_conv_forward.5} parent=5 // pred_fallthru
      _
    %p435 = scmp.le.s32.totalorder 2, %s9
    // Predicated region
    $region37: #{double_conv_forward.5} parent=5 // pred_check
      %p436 = pneg %p435
    $region38: #{double_conv_forward.5} parent=5 // pred_check_branch
      %438 = sbr.rel (%p436) target = $region40
    $region39: #{double_conv_forward.5} parent=5 // pred_region
      %s439 = ssub.s32 %s9, 2
      // Predicated region
      $region41: #{double_conv_forward.5} parent=39 // pred_check
        %p440 = pneg %p122
      $region42: #{double_conv_forward.5} parent=39 // pred_check_branch
        %442 = sbr.rel (%p440) target = $region44
      $region43: #{double_conv_forward.5} parent=39 // pred_region
        %s443 = smul.u32 16, %s21
        %p444 = scmp.lt.s32.totalorder %s20, 1
        %s445 = scalar_select %p444, %s20, 1
        %p446 = scmp.lt.s32.totalorder %s443, 15
        %s447 = scalar_select %p446, %s443, 15
        %s448 = smul.addr %s447, 2
        %s449 = smul.addr %s445, 32
        %s450 = sadd.s32 %s448, %s449
        %s451 = smul.addr %s450, 8
        %s452 = scalar_lea.vmem %s3, %s451
      $region44: #{double_conv_forward.5} parent=39 // pred_fallthru
        _
    $region40: #{double_conv_forward.5} parent=5 // pred_fallthru
      _
  $region6: #{double_conv_forward.5} parent=0 // loop_footer
    %s13 = sadd.s32 1, %s9
  $region7: #{double_conv_forward.5} parent=0 // loop_footer_branch
    %8 = sbr.rel target = $region3
  $region8: #{double_conv_forward.5} parent=0 // loop_exit
    _

// kernel: double_conv_forward.3
$region0: #{double_conv_forward.3}
  #allocation0 [shape = 'u32[]', space=smem, size = 0x4, offset = 0x4, fixed_abs, tag = 'smem constant byte address 0x4 - core index']
  #allocation1 [shape = 'u32[144,128]{1,0:T(1,128)}', space=vmem, size = 0x12000, scoped, tag = 'internal scratch']
  #allocation2 [shape = 'bf16[18,16,128]{2,1,0:T(8,128)(2,1)}', space=vmem, size = 0x12000, scoped, tag = 'scratch operand']
  %s0 = inlined_call_operand.vmem [shape: bf16[2,16,16,128], index: 0, kind: input, shape index: {}, may-alias: {0,1}]
  %s1 = inlined_call_operand.vmem [shape: bf16[2,16,16,128], index: 1, kind: input, shape index: {}, may-alias: {0,1}]
  %s2 = inlined_call_operand.vmem [shape: bf16[3,384,128], index: 2, kind: input, shape index: {}]
  %s3 = inlined_call_operand.vmem [shape: f32[1,128], index: 3, kind: input, shape index: {}]
  %s4 = inlined_call_operand.vmem [shape: f32[1,128], index: 4, kind: input, shape index: {}]
  %s5 = inlined_call_operand.vmem [shape: bf16[2,16,16,128], index: 5, kind: output, shape index: {0}]
  %s6 = inlined_call_operand.vmem [shape: f32[2,2,128], index: 6, kind: output, shape index: {1}]
  %7 = xla_tuple %s5, %s6
  %s8 = sld [smem:[#allocation0]]
  $region65: #{double_conv_forward.3} parent=0
    _
  %s10 = ssub.s32 1, %s8
  %s11 = scalar_select 0, %s10, %s8
  loop: start=0, step=1, limit=4
  $region2: #{double_conv_forward.3} parent=0 // loop_pre_header
    _
  $region3: #{double_conv_forward.3} parent=0 // loop_header
    %s13 = sphi 0, %s17
    %p14 = scmp.ge.s32.totalorder %s13, 4
    %s20 = sphi 0, %s32
    %s21 = sphi 0, %s28
    %s22 = sphi 0, %s20
    %s23 = sphi 0, %s21
    %s24 = sphi 0, %s22
    %s25 = sphi 0, %s23
    %s37 = sphi 0, %s39
    %s40 = sphi 0, %s37
    %s41 = sphi 0, %s40
    %s57 = sphi 0, %s41
    %s73 = sphi 0, %s75
    %s76 = sphi 0, %s73
    %s77 = sphi 0, %s76
    %s93 = sphi 0, %s77
    %s97 = sphi 0, %s97
    %s99 = sphi 0, %s97
    %s100 = sphi 0, %s99
    %s114 = sphi 0, %s100
    %s118 = sphi 0, %s118
    %s120 = sphi 0, %s118
    %s121 = sphi 0, %s120
    %s135 = sphi 0, %s121
    %s139 = sphi 0, %s139
    %s141 = sphi 0, %s139
    %s142 = sphi 0, %s141
    %s156 = sphi 0, %s142
    %s164 = sphi 0, %s166
    %s167 = sphi 0, %s164
    %s168 = sphi 0, %s167
    %s184 = sphi 0, %s168
    %s190 = sphi 0, %s192
    %s193 = sphi 0, %s190
    %s194 = sphi 0, %s193
    %s210 = sphi 0, %s194
  $region4: #{double_conv_forward.3} parent=0 // loop_header_branch
    %16 = sbr.rel (%p14) target = $region8
  $region5: #{double_conv_forward.3} parent=0 // loop_body
    %s18 = ssub.s32 %s13, 1
    %s19 = ssub.s32 %s13, 2
    %s26 = sadd.s32 1, %s21
    %p27 = scmp.ge.s32.totalorder %s26, 1
    %s28 = scalar_select %p27, 0, %s26
    %s29 = sadd.s32 1, %s20
    %s30 = scalar_select %p27, %s29, %s20
    %p31 = scmp.ge.s32.totalorder %s30, 2
    %s32 = scalar_select %p31, 0, %s30
    %s33 = ssub.s32 %s20, %s32
    %s34 = ssub.s32 %s21, %s28
    %s35 = sor.u32 %s33, %s34
    %p36 = scmp.eq.s32.totalorder %s35, 0
    %s38 = sadd.s32 %s37, 1
    %s39 = scalar_select %p36, %s37, %s38
    %p42 = pneg %p36
    %p43 = scmp.eq.s32.totalorder %s13, 1
    %p44 = por %p42, %p43
    %p45 = scmp.ne.s32.totalorder %s37, %s40
    %p46 = scmp.eq.s32.totalorder %s13, 0
    %p47 = por %p45, %p46
    %p48 = scmp.ne.s32.totalorder %s37, %s40
    %p49 = scmp.eq.s32.totalorder %s18, 1
    %p50 = por %p48, %p49
    %p51 = scmp.ne.s32.totalorder %s40, %s41
    %p52 = scmp.eq.s32.totalorder %s18, 0
    %p53 = por %p51, %p52
    %p54 = scmp.ne.s32.totalorder %s40, %s41
    %p55 = scmp.eq.s32.totalorder %s19, 1
    %p56 = por %p54, %p55
    %p58 = scmp.ne.s32.totalorder %s41, %s57
    %p59 = scmp.eq.s32.totalorder %s19, 0
    %p60 = por %p58, %p59
    %s61 = sadd.s32 %s21, 1
    %s62 = smul.u32 %s61, 16
    %p63 = scmp.lt.s32.totalorder %s62, 15
    %s64 = scalar_select %p63, %s62, 15
    %s65 = sadd.s32 %s28, 1
    %s66 = smul.u32 %s65, 16
    %p67 = scmp.lt.s32.totalorder %s66, 15
    %s68 = scalar_select %p67, %s66, 15
    %s69 = ssub.s32 %s20, %s32
    %s70 = ssub.s32 %s64, %s68
    %s71 = sor.u32 %s69, %s70
    %p72 = scmp.eq.s32.totalorder %s71, 0
    %s74 = sadd.s32 %s73, 1
    %s75 = scalar_select %p72, %s73, %s74
    %p78 = pneg %p72
    %p79 = scmp.eq.s32.totalorder %s13, 1
    %p80 = por %p78, %p79
    %p81 = scmp.ne.s32.totalorder %s73, %s76
    %p82 = scmp.eq.s32.totalorder %s13, 0
    %p83 = por %p81, %p82
    %p84 = scmp.ne.s32.totalorder %s73, %s76
    %p85 = scmp.eq.s32.totalorder %s18, 1
    %p86 = por %p84, %p85
    %p87 = scmp.ne.s32.totalorder %s76, %s77
    %p88 = scmp.eq.s32.totalorder %s18, 0
    %p89 = por %p87, %p88
    %p90 = scmp.ne.s32.totalorder %s76, %s77
    %p91 = scmp.eq.s32.totalorder %s19, 1
    %p92 = por %p90, %p91
    %p94 = scmp.ne.s32.totalorder %s77, %s93
    %p95 = scmp.eq.s32.totalorder %s19, 0
    %p96 = por %p94, %p95
    %s98 = sadd.s32 %s97, 1
    %p101 = scmp.eq.s32.totalorder %s13, 1
    %p102 = scmp.ne.s32.totalorder %s97, %s99
    %p103 = scmp.eq.s32.totalorder %s13, 0
    %p104 = por %p102, %p103
    %p105 = scmp.ne.s32.totalorder %s97, %s99
    %p106 = scmp.eq.s32.totalorder %s18, 1
    %p107 = por %p105, %p106
    %p108 = scmp.ne.s32.totalorder %s99, %s100
    %p109 = scmp.eq.s32.totalorder %s18, 0
    %p110 = por %p108, %p109
    %p111 = scmp.ne.s32.totalorder %s99, %s100
    %p112 = scmp.eq.s32.totalorder %s19, 1
    %p113 = por %p111, %p112
    %p115 = scmp.ne.s32.totalorder %s100, %s114
    %p116 = scmp.eq.s32.totalorder %s19, 0
    %p117 = por %p115, %p116
    %s119 = sadd.s32 %s118, 1
    %p122 = scmp.eq.s32.totalorder %s13, 1
    %p123 = scmp.ne.s32.totalorder %s118, %s120
    %p124 = scmp.eq.s32.totalorder %s13, 0
    %p125 = por %p123, %p124
    %p126 = scmp.ne.s32.totalorder %s118, %s120
    %p127 = scmp.eq.s32.totalorder %s18, 1
    %p128 = por %p126, %p127
    %p129 = scmp.ne.s32.totalorder %s120, %s121
    %p130 = scmp.eq.s32.totalorder %s18, 0
    %p131 = por %p129, %p130
    %p132 = scmp.ne.s32.totalorder %s120, %s121
    %p133 = scmp.eq.s32.totalorder %s19, 1
    %p134 = por %p132, %p133
    %p136 = scmp.ne.s32.totalorder %s121, %s135
    %p137 = scmp.eq.s32.totalorder %s19, 0
    %p138 = por %p136, %p137
    %s140 = sadd.s32 %s139, 1
    %p143 = scmp.eq.s32.totalorder %s13, 1
    %p144 = scmp.ne.s32.totalorder %s139, %s141
    %p145 = scmp.eq.s32.totalorder %s13, 0
    %p146 = por %p144, %p145
    %p147 = scmp.ne.s32.totalorder %s139, %s141
    %p148 = scmp.eq.s32.totalorder %s18, 1
    %p149 = por %p147, %p148
    %p150 = scmp.ne.s32.totalorder %s141, %s142
    %p151 = scmp.eq.s32.totalorder %s18, 0
    %p152 = por %p150, %p151
    %p153 = scmp.ne.s32.totalorder %s141, %s142
    %p154 = scmp.eq.s32.totalorder %s19, 1
    %p155 = por %p153, %p154
    %p157 = scmp.ne.s32.totalorder %s142, %s156
    %p158 = scmp.eq.s32.totalorder %s19, 0
    %p159 = por %p157, %p158
    %s160 = ssub.s32 %s20, %s32
    %s161 = ssub.s32 %s21, %s28
    %s162 = sor.u32 %s160, %s161
    %p163 = scmp.eq.s32.totalorder %s162, 0
    %s165 = sadd.s32 %s164, 1
    %s166 = scalar_select %p163, %s164, %s165
    %p169 = pneg %p163
    %p170 = scmp.eq.s32.totalorder %s13, 1
    %p171 = por %p169, %p170
    %p172 = scmp.ne.s32.totalorder %s164, %s167
    %p173 = scmp.eq.s32.totalorder %s13, 0
    %p174 = por %p172, %p173
    %p175 = scmp.ne.s32.totalorder %s164, %s167
    %p176 = scmp.eq.s32.totalorder %s18, 1
    %p177 = por %p175, %p176
    %p178 = scmp.ne.s32.totalorder %s167, %s168
    %p179 = scmp.eq.s32.totalorder %s18, 0
    %p180 = por %p178, %p179
    %p181 = scmp.ne.s32.totalorder %s167, %s168
    %p182 = scmp.eq.s32.totalorder %s19, 1
    %p183 = por %p181, %p182
    %p185 = scmp.ne.s32.totalorder %s168, %s184
    %p186 = scmp.eq.s32.totalorder %s19, 0
    %p187 = por %p185, %p186
    %s188 = ssub.s32 %s20, %s32
    %p189 = scmp.eq.s32.totalorder %s188, 0
    %s191 = sadd.s32 %s190, 1
    %s192 = scalar_select %p189, %s190, %s191
    %p195 = pneg %p189
    %p196 = scmp.eq.s32.totalorder %s13, 1
    %p197 = por %p195, %p196
    %p198 = scmp.ne.s32.totalorder %s190, %s193
    %p199 = scmp.eq.s32.totalorder %s13, 0
    %p200 = por %p198, %p199
    %p201 = scmp.ne.s32.totalorder %s190, %s193
    %p202 = scmp.eq.s32.totalorder %s18, 1
    %p203 = por %p201, %p202
    %p204 = scmp.ne.s32.totalorder %s193, %s194
    %p205 = scmp.eq.s32.totalorder %s18, 0
    %p206 = por %p204, %p205
    %p207 = scmp.ne.s32.totalorder %s193, %s194
    %p208 = scmp.eq.s32.totalorder %s19, 1
    %p209 = por %p207, %p208
    %p211 = scmp.ne.s32.totalorder %s194, %s210
    %p212 = scmp.eq.s32.totalorder %s19, 0
    %p213 = por %p211, %p212
    %p214 = scmp.le.s32.totalorder 1, %s13
    %p215 = scmp.lt.s32.totalorder %s13, 3
    %p216 = pnand %p214, %p215
    %p217 = pneg %p216
    // Predicated region
    $region9: #{double_conv_forward.3} parent=5 // pred_check
      _
    $region10: #{double_conv_forward.3} parent=5 // pred_check_branch
      %219 = sbr.rel (%p216) target = $region12
    $region11: #{double_conv_forward.3} parent=5 // pred_region
      %s220 = ssub.s32 %s13, 1
      // Predicated region
      $region13: #{double_conv_forward.3} parent=11 // pred_check
        %p221 = pneg %p110
      $region14: #{double_conv_forward.3} parent=11 // pred_check_branch
        %223 = sbr.rel (%p221) target = $region16
      $region15: #{double_conv_forward.3} parent=11 // pred_region
        _
      $region16: #{double_conv_forward.3} parent=11 // pred_fallthru
        _
      // Predicated region
      $region17: #{double_conv_forward.3} parent=11 // pred_check
        %p224 = pneg %p131
      $region18: #{double_conv_forward.3} parent=11 // pred_check_branch
        %226 = sbr.rel (%p224) target = $region20
      $region19: #{double_conv_forward.3} parent=11 // pred_region
        _
      $region20: #{double_conv_forward.3} parent=11 // pred_fallthru
        _
      // Predicated region
      $region21: #{double_conv_forward.3} parent=11 // pred_check
        %p227 = pneg %p152
      $region22: #{double_conv_forward.3} parent=11 // pred_check_branch
        %229 = sbr.rel (%p227) target = $region24
      $region23: #{double_conv_forward.3} parent=11 // pred_region
        _
      $region24: #{double_conv_forward.3} parent=11 // pred_fallthru
        _
    $region12: #{double_conv_forward.3} parent=5 // pred_fallthru
      _
    %p230 = scmp.lt.s32.totalorder %s13, 2
    // Predicated region
    $region25: #{double_conv_forward.3} parent=5 // pred_check
      %p231 = pneg %p230
    $region26: #{double_conv_forward.3} parent=5 // pred_check_branch
      %233 = sbr.rel (%p231) target = $region28
    $region27: #{double_conv_forward.3} parent=5 // pred_region
      // Predicated region
      $region29: #{double_conv_forward.3} parent=27 // pred_check
        %p234 = pneg %p47
      $region30: #{double_conv_forward.3} parent=27 // pred_check_branch
        %236 = sbr.rel (%p234) target = $region32
      $region31: #{double_conv_forward.3} parent=27 // pred_region
        %s237 = smul.u32 16, %s21
        %p238 = scmp.lt.s32.totalorder %s20, 1
        %s239 = scalar_select %p238, %s20, 1
        %p240 = scmp.lt.s32.totalorder %s237, 15
        %s241 = scalar_select %p240, %s237, 15
        %s242 = smul.addr %s241, 2
        %s243 = smul.addr %s239, 32
        %s244 = sadd.s32 %s242, %s243
        %s245 = smul.addr %s244, 4
        %s246 = scalar_lea.vmem %s0, %s245
        %s247 = smul.u32 16, %s21
      $region32: #{double_conv_forward.3} parent=27 // pred_fallthru
        _
      // Predicated region
      $region33: #{double_conv_forward.3} parent=27 // pred_check
        %p248 = pneg %p83
      $region34: #{double_conv_forward.3} parent=27 // pred_check_branch
        %250 = sbr.rel (%p248) target = $region36
      $region35: #{double_conv_forward.3} parent=27 // pred_region
        %s251 = sadd.s32 %s21, 1
        %s252 = smul.u32 %s251, 16
        %p253 = scmp.lt.s32.totalorder %s252, 15
        %s254 = scalar_select %p253, %s252, 15
        %p255 = scmp.lt.s32.totalorder %s20, 1
        %s256 = scalar_select %p255, %s20, 1
        %p257 = scmp.lt.s32.totalorder %s254, 15
        %s258 = scalar_select %p257, %s254, 15
        %s259 = smul.addr %s258, 2
        %s260 = smul.addr %s256, 32
        %s261 = sadd.s32 %s259, %s260
        %s262 = smul.addr %s261, 4
        %s263 = scalar_lea.vmem %s1, %s262
        %s264 = sadd.s32 %s21, 1
        %s265 = smul.u32 %s264, 16
        %p266 = scmp.lt.s32.totalorder %s265, 15
        %s267 = scalar_select %p266, %s265, 15
      $region36: #{double_conv_forward.3} parent=27 // pred_fallthru
        _
    $region28: #{double_conv_forward.3} parent=5 // pred_fallthru
      _
    %p268 = scmp.le.s32.totalorder 1, %s13
    %p269 = scmp.lt.s32.totalorder %s13, 3
    %p270 = pnand %p268, %p269
    %p271 = pneg %p270
    // Predicated region
    $region37: #{double_conv_forward.3} parent=5 // pred_check
      _
    $region38: #{double_conv_forward.3} parent=5 // pred_check_branch
      %273 = sbr.rel (%p270) target = $region40
    $region39: #{double_conv_forward.3} parent=5 // pred_region
      %s274 = ssub.s32 %s13, 1
      %s275 = smul.u32 16, %s23
      %p276 = scmp.lt.s32.totalorder %s22, 1
      %s277 = scalar_select %p276, %s22, 1
      %p278 = scmp.lt.s32.totalorder %s275, 15
      %s279 = scalar_select %p278, %s275, 15
      %s280 = smul.addr %s279, 2
      %s281 = smul.addr %s277, 32
      %s282 = sadd.s32 %s280, %s281
      %s283 = smul.addr %s282, 4
      %s284 = scalar_lea.vmem %s0, %s283
      %p285 = pneg %p53
      %p286 = pneg %p50
      %s287 = sadd.s32 %s23, 1
      %s288 = smul.u32 %s287, 16
      %p289 = scmp.lt.s32.totalorder %s288, 15
      %s290 = scalar_select %p289, %s288, 15
      %p291 = scmp.lt.s32.totalorder %s22, 1
      %s292 = scalar_select %p291, %s22, 1
      %p293 = scmp.lt.s32.totalorder %s290, 15
      %s294 = scalar_select %p293, %s290, 15
      %s295 = smul.addr %s294, 2
      %s296 = smul.addr %s292, 32
      %s297 = sadd.s32 %s295, %s296
      %s298 = smul.addr %s297, 4
      %s299 = scalar_lea.vmem %s1, %s298
      %p300 = pneg %p89
      %p301 = pneg %p86
      %p302 = pneg %p110
      %p303 = pneg %p107
      %p304 = pneg %p131
      %p305 = pneg %p128
      %p306 = pneg %p152
      %p307 = pneg %p149
      %p308 = pneg %p180
      %p309 = pneg %p177
      %s310 = smul.u32 16, %s23
      %p311 = scmp.lt.s32.totalorder %s22, 1
      %s312 = scalar_select %p311, %s22, 1
      %p313 = scmp.lt.s32.totalorder %s310, 15
      %s314 = scalar_select %p313, %s310, 15
      %s315 = smul.addr %s314, 2
      %s316 = smul.addr %s312, 32
      %s317 = sadd.s32 %s315, %s316
      %s318 = smul.addr %s317, 4
      %s319 = scalar_lea.vmem %s5, %s318
      %p320 = pneg %p206
      %p321 = pneg %p203
      %p322 = scmp.lt.s32.totalorder %s22, 1
      %s323 = scalar_select %p322, %s22, 1
      %s324 = smul.addr %s323, 2
      %s325 = scalar_lea.vmem %s6, %s324
      %s326 = smul.u32 16, %s23
      %p327 = scmp.lt.s32.totalorder %s22, 1
      %s328 = scalar_select %p327, %s22, 1
      %p329 = scmp.lt.s32.totalorder %s326, 15
      %s330 = scalar_select %p329, %s326, 15
      %s331 = smul.addr %s330, 2
      %s332 = smul.addr %s328, 32
      %s333 = sadd.s32 %s331, %s332
      %s334 = smul.addr %s333, 4
      %s335 = scalar_lea.vmem %s0, %s334
      %s336 = smul.u32 16, %s23
      %s337 = sadd.s32 %s23, 1
      %s338 = smul.u32 %s337, 16
      %p339 = scmp.lt.s32.totalorder %s338, 15
      %s340 = scalar_select %p339, %s338, 15
      %p341 = scmp.lt.s32.totalorder %s22, 1
      %s342 = scalar_select %p341, %s22, 1
      %p343 = scmp.lt.s32.totalorder %s340, 15
      %s344 = scalar_select %p343, %s340, 15
      %s345 = smul.addr %s344, 2
      %s346 = smul.addr %s342, 32
      %s347 = sadd.s32 %s345, %s346
      %s348 = smul.addr %s347, 4
      %s349 = scalar_lea.vmem %s1, %s348
      %s350 = sadd.s32 %s23, 1
      %s351 = smul.u32 %s350, 16
      %p352 = scmp.lt.s32.totalorder %s351, 15
      %s353 = scalar_select %p352, %s351, 15
      %s354 = smul.u32 16, %s23
      %p355 = scmp.lt.s32.totalorder %s22, 1
      %s356 = scalar_select %p355, %s22, 1
      %p357 = scmp.lt.s32.totalorder %s354, 15
      %s358 = scalar_select %p357, %s354, 15
      %s359 = smul.addr %s358, 2
      %s360 = smul.addr %s356, 32
      %s361 = sadd.s32 %s359, %s360
      %s362 = smul.addr %s361, 4
      %s363 = scalar_lea.vmem %s5, %s362
      %s364 = smul.u32 16, %s23
      %p365 = scmp.lt.s32.totalorder %s22, 1
      %s366 = scalar_select %p365, %s22, 1
      %s367 = smul.addr %s366, 2
      %s368 = scalar_lea.vmem %s6, %s367
      %s370 = scalar_lea.vmem [#allocation2], 128
      %v371 = vld [vmem:[%s370] sm:$0xf]
      %v372 = vld [vmem:[%s370 + $0x4] sm:$0xf]
      %p373 = scmp.gt.s32.totalorder %s23, 0
      %s374 = scalar_select %p373, 1, 0
      %v375 = vstv %s374
      %vm376 = vcmp.eq.s32.totalorder %v375, 1
      %v377 = vsel %vm376, %v371, 0
      %v378 = vsel %vm376, %v372, 0
      %379 = vst [vmem:[#allocation2] sm:$0xf] %v377
      %380 = vst [vmem:[#allocation2 + $0x4] sm:$0xf] %v378
      %v381 = vld [vmem:[%s335] sm:$0xf]
      %v382 = vld [vmem:[%s335 + $0x4] sm:$0xf]
      %v383 = vld [vmem:[%s335 + $0x8] sm:$0xf]
      %v384 = vld [vmem:[%s335 + $0xc] sm:$0xf]
      %v385 = vld [vmem:[%s335 + $0x10] sm:$0xf]
      %v386 = vld [vmem:[%s335 + $0x14] sm:$0xf]
      %v387 = vld [vmem:[%s335 + $0x18] sm:$0xf]
      %v388 = vld [vmem:[%s335 + $0x1c] sm:$0xf]
      %v389 = vld [vmem:[%s335 + $0x20] sm:$0xf]
      %v390 = vld [vmem:[%s335 + $0x24] sm:$0xf]
      %v391 = vld [vmem:[%s335 + $0x28] sm:$0xf]
      %v392 = vld [vmem:[%s335 + $0x2c] sm:$0xf]
      %v393 = vld [vmem:[%s335 + $0x30] sm:$0xf]
      %v394 = vld [vmem:[%s335 + $0x34] sm:$0xf]
      %v395 = vld [vmem:[%s335 + $0x38] sm:$0xf]
      %v396 = vld [vmem:[%s335 + $0x3c] sm:$0xf]
      %v397 = vld [vmem:[%s335 + $0x40] sm:$0xf]
      %v398 = vld [vmem:[%s335 + $0x44] sm:$0xf]
      %v399 = vld [vmem:[%s335 + $0x48] sm:$0xf]
      %v400 = vld [vmem:[%s335 + $0x4c] sm:$0xf]
      %v401 = vld [vmem:[%s335 + $0x50] sm:$0xf]
      %v402 = vld [vmem:[%s335 + $0x54] sm:$0xf]
      %v403 = vld [vmem:[%s335 + $0x58] sm:$0xf]
      %v404 = vld [vmem:[%s335 + $0x5c] sm:$0xf]
      %v405 = vld [vmem:[%s335 + $0x60] sm:$0xf]
      %v406 = vld [vmem:[%s335 + $0x64] sm:$0xf]
      %v407 = vld [vmem:[%s335 + $0x68] sm:$0xf]
      %v408 = vld [vmem:[%s335 + $0x6c] sm:$0xf]
      %v409 = vld [vmem:[%s335 + $0x70] sm:$0xf]
      %v410 = vld [vmem:[%s335 + $0x74] sm:$0xf]
      %v411 = vld [vmem:[%s335 + $0x78] sm:$0xf]
      %v412 = vld [vmem:[%s335 + $0x7c] sm:$0xf]
      %s413 = scalar_lea.vmem [#allocation2], 8
      %414 = vst [vmem:[%s413] sm:$0xf] %v381
      %415 = vst [vmem:[%s413 + $0x4] sm:$0xf] %v382
      %416 = vst [vmem:[%s413 + $0x8] sm:$0xf] %v383
      %417 = vst [vmem:[%s413 + $0xc] sm:$0xf] %v384
      %418 = vst [vmem:[%s413 + $0x10] sm:$0xf] %v385
      %419 = vst [vmem:[%s413 + $0x14] sm:$0xf] %v386
      %420 = vst [vmem:[%s413 + $0x18] sm:$0xf] %v387
      %421 = vst [vmem:[%s413 + $0x1c] sm:$0xf] %v388
      %422 = vst [vmem:[%s413 + $0x20] sm:$0xf] %v389
      %423 = vst [vmem:[%s413 + $0x24] sm:$0xf] %v390
      %424 = vst [vmem:[%s413 + $0x28] sm:$0xf] %v391
      %425 = vst [vmem:[%s413 + $0x2c] sm:$0xf] %v392
      %426 = vst [vmem:[%s413 + $0x30] sm:$0xf] %v393
      %427 = vst [vmem:[%s413 + $0x34] sm:$0xf] %v394
      %428 = vst [vmem:[%s413 + $0x38] sm:$0xf] %v395
      %429 = vst [vmem:[%s413 + $0x3c] sm:$0xf] %v396
      %430 = vst [vmem:[%s413 + $0x40] sm:$0xf] %v397
      %431 = vst [vmem:[%s413 + $0x44] sm:$0xf] %v398
      %432 = vst [vmem:[%s413 + $0x48] sm:$0xf] %v399
      %433 = vst [vmem:[%s413 + $0x4c] sm:$0xf] %v400
      %434 = vst [vmem:[%s413 + $0x50] sm:$0xf] %v401
      %435 = vst [vmem:[%s413 + $0x54] sm:$0xf] %v402
      %436 = vst [vmem:[%s413 + $0x58] sm:$0xf] %v403
      %437 = vst [vmem:[%s413 + $0x5c] sm:$0xf] %v404
      %438 = vst [vmem:[%s413 + $0x60] sm:$0xf] %v405
      %439 = vst [vmem:[%s413 + $0x64] sm:$0xf] %v406
      %440 = vst [vmem:[%s413 + $0x68] sm:$0xf] %v407
      %441 = vst [vmem:[%s413 + $0x6c] sm:$0xf] %v408
      %442 = vst [vmem:[%s413 + $0x70] sm:$0xf] %v409
      %443 = vst [vmem:[%s413 + $0x74] sm:$0xf] %v410
      %444 = vst [vmem:[%s413 + $0x78] sm:$0xf] %v411
      %445 = vst [vmem:[%s413 + $0x7c] sm:$0xf] %v412
      %v446 = vld [vmem:[%s349] sm:$0xf]
      %v447 = vld [vmem:[%s349 + $0x4] sm:$0xf]
      %p448 = scmp.lt.s32.totalorder %s23, 0
      %s449 = scalar_select %p448, 1, 0
      %v450 = vstv %s449
      %vm451 = vcmp.eq.s32.totalorder %v450, 1
      %v452 = vsel %vm451, %v446, 0
      %v453 = vsel %vm451, %v447, 0
      %s454 = scalar_lea.vmem [#allocation2], 136
      %455 = vst [vmem:[%s454] sm:$0xf] %v452
      %456 = vst [vmem:[%s454 + $0x4] sm:$0xf] %v453
      %v457 = vld [vmem:[#allocation2] sm:$0xf]
      %v458 = vld [vmem:[#allocation2 + $0x4] sm:$0xf]
      %v459 = vld [vmem:[#allocation2 + $0x8] sm:$0xf]
      %v460 = vld [vmem:[#allocation2 + $0xc] sm:$0xf]
      %v461 = vld [vmem:[#allocation2 + $0x10] sm:$0xf]
      %v462 = vld [vmem:[#allocation2 + $0x14] sm:$0xf]
      %v463 = vld [vmem:[#allocation2 + $0x18] sm:$0xf]
      %v464 = vld [vmem:[#allocation2 + $0x1c] sm:$0xf]
      %v465 = vld [vmem:[#allocation2 + $0x20] sm:$0xf]
      %v466 = vld [vmem:[#allocation2 + $0x24] sm:$0xf]
      %v467 = vld [vmem:[#allocation2 + $0x28] sm:$0xf]
      %v468 = vld [vmem:[#allocation2 + $0x2c] sm:$0xf]
      %v469 = vld [vmem:[#allocation2 + $0x30] sm:$0xf]
      %v470 = vld [vmem:[#allocation2 + $0x34] sm:$0xf]
      %v471 = vld [vmem:[#allocation2 + $0x38] sm:$0xf]
      %v472 = vld [vmem:[#allocation2 + $0x3c] sm:$0xf]
      %v473 = vld [vmem:[#allocation2 + $0x40] sm:$0xf]
      %v474 = vld [vmem:[#allocation2 + $0x44] sm:$0xf]
      %v475 = vld [vmem:[#allocation2 + $0x48] sm:$0xf]
      %v476 = vld [vmem:[#allocation2 + $0x4c] sm:$0xf]
      %v477 = vld [vmem:[#allocation2 + $0x50] sm:$0xf]
      %v478 = vld [vmem:[#allocation2 + $0x54] sm:$0xf]
      %v479 = vld [vmem:[#allocation2 + $0x58] sm:$0xf]
      %v480 = vld [vmem:[#allocation2 + $0x5c] sm:$0xf]
      %v481 = vld [vmem:[#allocation2 + $0x60] sm:$0xf]
      %v482 = vld [vmem:[#allocation2 + $0x64] sm:$0xf]
      %v483 = vld [vmem:[#allocation2 + $0x68] sm:$0xf]
      %v484 = vld [vmem:[#allocation2 + $0x6c] sm:$0xf]
      %v485 = vld [vmem:[#allocation2 + $0x70] sm:$0xf]
      %v486 = vld [vmem:[#allocation2 + $0x74] sm:$0xf]
      %v487 = vld [vmem:[#allocation2 + $0x78] sm:$0xf]
      %v488 = vld [vmem:[#allocation2 + $0x7c] sm:$0xf]
      %v521 = vunpack.c.l.b16 %v457
      %v522 = vunpack.c.l.b16 %v458
      %v523 = vunpack.c.l.b16 %v459
      %v524 = vunpack.c.l.b16 %v460
      %v525 = vunpack.c.l.b16 %v461
      %v526 = vunpack.c.l.b16 %v462
      %v527 = vunpack.c.l.b16 %v463
      %v528 = vunpack.c.l.b16 %v464
      %v529 = vunpack.c.l.b16 %v465
      %v530 = vunpack.c.l.b16 %v466
      %v531 = vunpack.c.l.b16 %v467
      %v532 = vunpack.c.l.b16 %v468
      %v533 = vunpack.c.l.b16 %v469
      %v534 = vunpack.c.l.b16 %v470
      %v535 = vunpack.c.l.b16 %v471
      %v536 = vunpack.c.l.b16 %v472
      %v537 = vunpack.c.l.b16 %v473
      %v538 = vunpack.c.l.b16 %v474
      %v539 = vunpack.c.l.b16 %v475
      %v540 = vunpack.c.l.b16 %v476
      %v541 = vunpack.c.l.b16 %v477
      %v542 = vunpack.c.l.b16 %v478
      %v543 = vunpack.c.l.b16 %v479
      %v544 = vunpack.c.l.b16 %v480
      %v545 = vunpack.c.l.b16 %v481
      %v546 = vunpack.c.l.b16 %v482
      %v547 = vunpack.c.l.b16 %v483
      %v548 = vunpack.c.l.b16 %v484
      %v549 = vunpack.c.l.b16 %v485
      %v550 = vunpack.c.l.b16 %v486
      %v551 = vunpack.c.l.b16 %v487
      %v552 = vunpack.c.l.b16 %v488
      %v553 = vpack.c.b16 %v522, %v521
      %v554 = vpack.c.b16 %v524, %v523
      %v555 = vpack.c.b16 %v526, %v525
      %v556 = vpack.c.b16 %v528, %v527
      %v557 = vpack.c.b16 %v530, %v529
      %v558 = vpack.c.b16 %v532, %v531
      %v559 = vpack.c.b16 %v534, %v533
      %v560 = vpack.c.b16 %v536, %v535
      %v561 = vpack.c.b16 %v538, %v537
      %v562 = vpack.c.b16 %v540, %v539
      %v563 = vpack.c.b16 %v542, %v541
      %v564 = vpack.c.b16 %v544, %v543
      %v565 = vpack.c.b16 %v546, %v545
      %v566 = vpack.c.b16 %v548, %v547
      %v567 = vpack.c.b16 %v550, %v549
      %v568 = vpack.c.b16 %v552, %v551
      %v570 = vshrl.u32 %v553, 16
      %v572 = vrot.slane %v570, 7
      %v573 = vshll.u32 %v553, 16
      %v575 = vor.u32 %v572, %v573
      %v577 = vshrl.u32 %v554, 16
      %v579 = vrot.slane %v577, 7
      %v580 = vshll.u32 %v554, 16
      %v582 = vor.u32 %v579, %v580
      %v584 = vshrl.u32 %v555, 16
      %v586 = vrot.slane %v584, 7
      %v587 = vshll.u32 %v555, 16
      %v589 = vor.u32 %v586, %v587
      %v591 = vshrl.u32 %v556, 16
      %v593 = vrot.slane %v591, 7
      %v594 = vshll.u32 %v556, 16
      %v596 = vor.u32 %v593, %v594
      %v598 = vshrl.u32 %v557, 16
      %v600 = vrot.slane %v598, 7
      %v601 = vshll.u32 %v557, 16
      %v603 = vor.u32 %v600, %v601
      %v605 = vshrl.u32 %v558, 16
      %v607 = vrot.slane %v605, 7
      %v608 = vshll.u32 %v558, 16
      %v610 = vor.u32 %v607, %v608
      %v612 = vshrl.u32 %v559, 16
      %v614 = vrot.slane %v612, 7
      %v615 = vshll.u32 %v559, 16
      %v617 = vor.u32 %v614, %v615
      %v619 = vshrl.u32 %v560, 16
      %v621 = vrot.slane %v619, 7
      %v622 = vshll.u32 %v560, 16
      %v624 = vor.u32 %v621, %v622
      %v626 = vshrl.u32 %v561, 16
      %v628 = vrot.slane %v626, 7
      %v629 = vshll.u32 %v561, 16
      %v631 = vor.u32 %v628, %v629
      %v633 = vshrl.u32 %v562, 16
      %v635 = vrot.slane %v633, 7
      %v636 = vshll.u32 %v562, 16
      %v638 = vor.u32 %v635, %v636
      %v640 = vshrl.u32 %v563, 16
      %v642 = vrot.slane %v640, 7
      %v643 = vshll.u32 %v563, 16
      %v645 = vor.u32 %v642, %v643
      %v647 = vshrl.u32 %v564, 16
      %v649 = vrot.slane %v647, 7
      %v650 = vshll.u32 %v564, 16
      %v652 = vor.u32 %v649, %v650
      %v654 = vshrl.u32 %v565, 16
      %v656 = vrot.slane %v654, 7
      %v657 = vshll.u32 %v565, 16
      %v659 = vor.u32 %v656, %v657
      %v661 = vshrl.u32 %v566, 16
      %v663 = vrot.slane %v661, 7
      %v664 = vshll.u32 %v566, 16
      %v666 = vor.u32 %v663, %v664
      %v668 = vshrl.u32 %v567, 16
      %v670 = vrot.slane %v668, 7
      %v671 = vshll.u32 %v567, 16
      %v673 = vor.u32 %v670, %v671
      %v675 = vshrl.u32 %v568, 16
      %v677 = vrot.slane %v675, 7
      %v678 = vshll.u32 %v568, 16
      %v680 = vor.u32 %v677, %v678
      %vm697 = vcmask 1040384
      %vm698 = vsmask.f32 256
      %vm699 = vmand %vm697, %vm698
      %v700 = vsel %vm699, 0, %v575
      %v701 = vsel %vm699, 0, %v582
      %v702 = vsel %vm699, 0, %v589
      %v703 = vsel %vm699, 0, %v596
      %v704 = vsel %vm699, 0, %v603
      %v705 = vsel %vm699, 0, %v610
      %v706 = vsel %vm699, 0, %v617
      %v707 = vsel %vm699, 0, %v624
      %v708 = vsel %vm699, 0, %v631
      %v709 = vsel %vm699, 0, %v638
      %v710 = vsel %vm699, 0, %v645
      %v711 = vsel %vm699, 0, %v652
      %v712 = vsel %vm699, 0, %v659
      %v713 = vsel %vm699, 0, %v666
      %v714 = vsel %vm699, 0, %v673
      %v715 = vsel %vm699, 0, %v680
      %v716 = vrot.slane %v573, 1
      %v717 = vor.u32 %v570, %v716
      %v718 = vrot.slane %v580, 1
      %v719 = vor.u32 %v577, %v718
      %v720 = vrot.slane %v587, 1
      %v721 = vor.u32 %v584, %v720
      %v722 = vrot.slane %v594, 1
      %v723 = vor.u32 %v591, %v722
      %v724 = vrot.slane %v601, 1
      %v725 = vor.u32 %v598, %v724
      %v726 = vrot.slane %v608, 1
      %v727 = vor.u32 %v605, %v726
      %v728 = vrot.slane %v615, 1
      %v729 = vor.u32 %v612, %v728
      %v730 = vrot.slane %v622, 1
      %v731 = vor.u32 %v619, %v730
      %v732 = vrot.slane %v629, 1
      %v733 = vor.u32 %v626, %v732
      %v734 = vrot.slane %v636, 1
      %v735 = vor.u32 %v633, %v734
      %v736 = vrot.slane %v643, 1
      %v737 = vor.u32 %v640, %v736
      %v738 = vrot.slane %v650, 1
      %v739 = vor.u32 %v647, %v738
      %v740 = vrot.slane %v657, 1
      %v741 = vor.u32 %v654, %v740
      %v742 = vrot.slane %v664, 1
      %v743 = vor.u32 %v661, %v742
      %v744 = vrot.slane %v671, 1
      %v745 = vor.u32 %v668, %v744
      %v746 = vrot.slane %v678, 1
      %v747 = vor.u32 %v675, %v746
      %vm764 = vcmask 1047552
      %vm765 = vsmask.f32 7424
      %vm766 = vmand %vm764, %vm765
      %v767 = vsel %vm766, %v717, 0
      %v768 = vsel %vm766, %v719, 0
      %v769 = vsel %vm766, %v721, 0
      %v770 = vsel %vm766, %v723, 0
      %v771 = vsel %vm766, %v725, 0
      %v772 = vsel %vm766, %v727, 0
      %v773 = vsel %vm766, %v729, 0
      %v774 = vsel %vm766, %v731, 0
      %v775 = vsel %vm766, %v733, 0
      %v776 = vsel %vm766, %v735, 0
      %v777 = vsel %vm766, %v737, 0
      %v778 = vsel %vm766, %v739, 0
      %v779 = vsel %vm766, %v741, 0
      %v780 = vsel %vm766, %v743, 0
      %v781 = vsel %vm766, %v745, 0
      %v782 = vsel %vm766, %v747, 0
      %v799 = vld [vmem:[%s2] sm:$0xf]
      %v800 = vld [vmem:[%s2 + $0x4] sm:$0xf]
      %v801 = vld [vmem:[%s2 + $0x8] sm:$0xf]
      %v802 = vld [vmem:[%s2 + $0xc] sm:$0xf]
      %v803 = vld [vmem:[%s2 + $0x10] sm:$0xf]
      %v804 = vld [vmem:[%s2 + $0x14] sm:$0xf]
      %v805 = vld [vmem:[%s2 + $0x18] sm:$0xf]
      %v806 = vld [vmem:[%s2 + $0x1c] sm:$0xf]
      %v807 = vld [vmem:[%s2 + $0x20] sm:$0xf]
      %v808 = vld [vmem:[%s2 + $0x24] sm:$0xf]
      %v809 = vld [vmem:[%s2 + $0x28] sm:$0xf]
      %v810 = vld [vmem:[%s2 + $0x2c] sm:$0xf]
      %v811 = vld [vmem:[%s2 + $0x30] sm:$0xf]
      %v812 = vld [vmem:[%s2 + $0x34] sm:$0xf]
      %v813 = vld [vmem:[%s2 + $0x38] sm:$0xf]
      %v814 = vld [vmem:[%s2 + $0x3c] sm:$0xf]
      %v815 = vld [vmem:[%s2 + $0x40] sm:$0xf]
      %v816 = vld [vmem:[%s2 + $0x44] sm:$0xf]
      %v817 = vld [vmem:[%s2 + $0x48] sm:$0xf]
      %v818 = vld [vmem:[%s2 + $0x4c] sm:$0xf]
      %v819 = vld [vmem:[%s2 + $0x50] sm:$0xf]
      %v820 = vld [vmem:[%s2 + $0x54] sm:$0xf]
      %v821 = vld [vmem:[%s2 + $0x58] sm:$0xf]
      %v822 = vld [vmem:[%s2 + $0x5c] sm:$0xf]
      %v823 = vld [vmem:[%s2 + $0x60] sm:$0xf]
      %v824 = vld [vmem:[%s2 + $0x64] sm:$0xf]
      %v825 = vld [vmem:[%s2 + $0x68] sm:$0xf]
      %v826 = vld [vmem:[%s2 + $0x6c] sm:$0xf]
      %v827 = vld [vmem:[%s2 + $0x70] sm:$0xf]
      %v828 = vld [vmem:[%s2 + $0x74] sm:$0xf]
      %v829 = vld [vmem:[%s2 + $0x78] sm:$0xf]
      %v830 = vld [vmem:[%s2 + $0x7c] sm:$0xf]
      %v831 = vld [vmem:[%s2 + $0x80] sm:$0xf]
      %v832 = vld [vmem:[%s2 + $0x84] sm:$0xf]
      %v833 = vld [vmem:[%s2 + $0x88] sm:$0xf]
      %v834 = vld [vmem:[%s2 + $0x8c] sm:$0xf]
      %v835 = vld [vmem:[%s2 + $0x90] sm:$0xf]
      %v836 = vld [vmem:[%s2 + $0x94] sm:$0xf]
      %v837 = vld [vmem:[%s2 + $0x98] sm:$0xf]
      %v838 = vld [vmem:[%s2 + $0x9c] sm:$0xf]
      %v839 = vld [vmem:[%s2 + $0xa0] sm:$0xf]
      %v840 = vld [vmem:[%s2 + $0xa4] sm:$0xf]
      %v841 = vld [vmem:[%s2 + $0xa8] sm:$0xf]
      %v842 = vld [vmem:[%s2 + $0xac] sm:$0xf]
      %v843 = vld [vmem:[%s2 + $0xb0] sm:$0xf]
      %v844 = vld [vmem:[%s2 + $0xb4] sm:$0xf]
      %v845 = vld [vmem:[%s2 + $0xb8] sm:$0xf]
      %v846 = vld [vmem:[%s2 + $0xbc] sm:$0xf]
      %v847 = vld [vmem:[%s413] sm:$0xf]
      %v848 = vld [vmem:[%s413 + $0x4] sm:$0xf]
      %v849 = vld [vmem:[%s413 + $0x8] sm:$0xf]
      %v850 = vld [vmem:[%s413 + $0xc] sm:$0xf]
      %v851 = vld [vmem:[%s413 + $0x10] sm:$0xf]
      %v852 = vld [vmem:[%s413 + $0x14] sm:$0xf]
      %v853 = vld [vmem:[%s413 + $0x18] sm:$0xf]
      %v854 = vld [vmem:[%s413 + $0x1c] sm:$0xf]
      %v855 = vld [vmem:[%s413 + $0x20] sm:$0xf]
      %v856 = vld [vmem:[%s413 + $0x24] sm:$0xf]
      %v857 = vld [vmem:[%s413 + $0x28] sm:$0xf]
      %v858 = vld [vmem:[%s413 + $0x2c] sm:$0xf]
      %v859 = vld [vmem:[%s413 + $0x30] sm:$0xf]
      %v860 = vld [vmem:[%s413 + $0x34] sm:$0xf]
      %v861 = vld [vmem:[%s413 + $0x38] sm:$0xf]
      %v862 = vld [vmem:[%s413 + $0x3c] sm:$0xf]
      %v863 = vld [vmem:[%s413 + $0x40] sm:$0xf]
      %v864 = vld [vmem:[%s413 + $0x44] sm:$0xf]
      %v865 = vld [vmem:[%s413 + $0x48] sm:$0xf]
      %v866 = vld [vmem:[%s413 + $0x4c] sm:$0xf]
      %v867 = vld [vmem:[%s413 + $0x50] sm:$0xf]
      %v868 = vld [vmem:[%s413 + $0x54] sm:$0xf]
      %v869 = vld [vmem:[%s413 + $0x58] sm:$0xf]
      %v870 = vld [vmem:[%s413 + $0x5c] sm:$0xf]
      %v871 = vld [vmem:[%s413 + $0x60] sm:$0xf]
      %v872 = vld [vmem:[%s413 + $0x64] sm:$0xf]
      %v873 = vld [vmem:[%s413 + $0x68] sm:$0xf]
      %v874 = vld [vmem:[%s413 + $0x6c] sm:$0xf]
      %v875 = vld [vmem:[%s413 + $0x70] sm:$0xf]
      %v876 = vld [vmem:[%s413 + $0x74] sm:$0xf]
      %v877 = vld [vmem:[%s413 + $0x78] sm:$0xf]
      %v878 = vld [vmem:[%s413 + $0x7c] sm:$0xf]
      %v911 = vunpack.c.l.b16 %v847
      %v912 = vunpack.c.l.b16 %v848
      %v913 = vunpack.c.l.b16 %v849
      %v914 = vunpack.c.l.b16 %v850
      %v915 = vunpack.c.l.b16 %v851
      %v916 = vunpack.c.l.b16 %v852
      %v917 = vunpack.c.l.b16 %v853
      %v918 = vunpack.c.l.b16 %v854
      %v919 = vunpack.c.l.b16 %v855
      %v920 = vunpack.c.l.b16 %v856
      %v921 = vunpack.c.l.b16 %v857
      %v922 = vunpack.c.l.b16 %v858
      %v923 = vunpack.c.l.b16 %v859
      %v924 = vunpack.c.l.b16 %v860
      %v925 = vunpack.c.l.b16 %v861
      %v926 = vunpack.c.l.b16 %v862
      %v927 = vunpack.c.l.b16 %v863
      %v928 = vunpack.c.l.b16 %v864
      %v929 = vunpack.c.l.b16 %v865
      %v930 = vunpack.c.l.b16 %v866
      %v931 = vunpack.c.l.b16 %v867
      %v932 = vunpack.c.l.b16 %v868
      %v933 = vunpack.c.l.b16 %v869
      %v934 = vunpack.c.l.b16 %v870
      %v935 = vunpack.c.l.b16 %v871
      %v936 = vunpack.c.l.b16 %v872
      %v937 = vunpack.c.l.b16 %v873
      %v938 = vunpack.c.l.b16 %v874
      %v939 = vunpack.c.l.b16 %v875
      %v940 = vunpack.c.l.b16 %v876
      %v941 = vunpack.c.l.b16 %v877
      %v942 = vunpack.c.l.b16 %v878
      %v943 = vpack.c.b16 %v912, %v911
      %v944 = vpack.c.b16 %v914, %v913
      %v945 = vpack.c.b16 %v916, %v915
      %v946 = vpack.c.b16 %v918, %v917
      %v947 = vpack.c.b16 %v920, %v919
      %v948 = vpack.c.b16 %v922, %v921
      %v949 = vpack.c.b16 %v924, %v923
      %v950 = vpack.c.b16 %v926, %v925
      %v951 = vpack.c.b16 %v928, %v927
      %v952 = vpack.c.b16 %v930, %v929
      %v953 = vpack.c.b16 %v932, %v931
      %v954 = vpack.c.b16 %v934, %v933
      %v955 = vpack.c.b16 %v936, %v935
      %v956 = vpack.c.b16 %v938, %v937
      %v957 = vpack.c.b16 %v940, %v939
      %v958 = vpack.c.b16 %v942, %v941
      %v960 = vshrl.u32 %v943, 16
      %v962 = vrot.slane %v960, 7
      %v963 = vshll.u32 %v943, 16
      %v965 = vor.u32 %v962, %v963
      %v967 = vshrl.u32 %v944, 16
      %v969 = vrot.slane %v967, 7
      %v970 = vshll.u32 %v944, 16
      %v972 = vor.u32 %v969, %v970
      %v974 = vshrl.u32 %v945, 16
      %v976 = vrot.slane %v974, 7
      %v977 = vshll.u32 %v945, 16
      %v979 = vor.u32 %v976, %v977
      %v981 = vshrl.u32 %v946, 16
      %v983 = vrot.slane %v981, 7
      %v984 = vshll.u32 %v946, 16
      %v986 = vor.u32 %v983, %v984
      %v988 = vshrl.u32 %v947, 16
      %v990 = vrot.slane %v988, 7
      %v991 = vshll.u32 %v947, 16
      %v993 = vor.u32 %v990, %v991
      %v995 = vshrl.u32 %v948, 16
      %v997 = vrot.slane %v995, 7
      %v998 = vshll.u32 %v948, 16
      %v1000 = vor.u32 %v997, %v998
      %v1002 = vshrl.u32 %v949, 16
      %v1004 = vrot.slane %v1002, 7
      %v1005 = vshll.u32 %v949, 16
      %v1007 = vor.u32 %v1004, %v1005
      %v1009 = vshrl.u32 %v950, 16
      %v1011 = vrot.slane %v1009, 7
      %v1012 = vshll.u32 %v950, 16
      %v1014 = vor.u32 %v1011, %v1012
      %v1016 = vshrl.u32 %v951, 16
      %v1018 = vrot.slane %v1016, 7
      %v1019 = vshll.u32 %v951, 16
      %v1021 = vor.u32 %v1018, %v1019
      %v1023 = vshrl.u32 %v952, 16
      %v1025 = vrot.slane %v1023, 7
      %v1026 = vshll.u32 %v952, 16
      %v1028 = vor.u32 %v1025, %v1026
      %v1030 = vshrl.u32 %v953, 16
      %v1032 = vrot.slane %v1030, 7
      %v1033 = vshll.u32 %v953, 16
      %v1035 = vor.u32 %v1032, %v1033
      %v1037 = vshrl.u32 %v954, 16
      %v1039 = vrot.slane %v1037, 7
      %v1040 = vshll.u32 %v954, 16
      %v1042 = vor.u32 %v1039, %v1040
      %v1044 = vshrl.u32 %v955, 16
      %v1046 = vrot.slane %v1044, 7
      %v1047 = vshll.u32 %v955, 16
      %v1049 = vor.u32 %v1046, %v1047
      %v1051 = vshrl.u32 %v956, 16
      %v1053 = vrot.slane %v1051, 7
      %v1054 = vshll.u32 %v956, 16
      %v1056 = vor.u32 %v1053, %v1054
      %v1058 = vshrl.u32 %v957, 16
      %v1060 = vrot.slane %v1058, 7
      %v1061 = vshll.u32 %v957, 16
      %v1063 = vor.u32 %v1060, %v1061
      %v1065 = vshrl.u32 %v958, 16
      %v1067 = vrot.slane %v1065, 7
      %v1068 = vshll.u32 %v958, 16
      %v1070 = vor.u32 %v1067, %v1068
      %v1087 = vsel %vm699, 0, %v965
      %v1088 = vsel %vm699, 0, %v972
      %v1089 = vsel %vm699, 0, %v979
      %v1090 = vsel %vm699, 0, %v986
      %v1091 = vsel %vm699, 0, %v993
      %v1092 = vsel %vm699, 0, %v1000
      %v1093 = vsel %vm699, 0, %v1007
      %v1094 = vsel %vm699, 0, %v1014
      %v1095 = vsel %vm699, 0, %v1021
      %v1096 = vsel %vm699, 0, %v1028
      %v1097 = vsel %vm699, 0, %v1035
      %v1098 = vsel %vm699, 0, %v1042
      %v1099 = vsel %vm699, 0, %v1049
      %v1100 = vsel %vm699, 0, %v1056
      %v1101 = vsel %vm699, 0, %v1063
      %v1102 = vsel %vm699, 0, %v1070
      %v1103 = vrot.slane %v963, 1
      %v1104 = vor.u32 %v960, %v1103
      %v1105 = vrot.slane %v970, 1
      %v1106 = vor.u32 %v967, %v1105
      %v1107 = vrot.slane %v977, 1
      %v1108 = vor.u32 %v974, %v1107
      %v1109 = vrot.slane %v984, 1
      %v1110 = vor.u32 %v981, %v1109
      %v1111 = vrot.slane %v991, 1
      %v1112 = vor.u32 %v988, %v1111
      %v1113 = vrot.slane %v998, 1
      %v1114 = vor.u32 %v995, %v1113
      %v1115 = vrot.slane %v1005, 1
      %v1116 = vor.u32 %v1002, %v1115
      %v1117 = vrot.slane %v1012, 1
      %v1118 = vor.u32 %v1009, %v1117
      %v1119 = vrot.slane %v1019, 1
      %v1120 = vor.u32 %v1016, %v1119
      %v1121 = vrot.slane %v1026, 1
      %v1122 = vor.u32 %v1023, %v1121
      %v1123 = vrot.slane %v1033, 1
      %v1124 = vor.u32 %v1030, %v1123
      %v1125 = vrot.slane %v1040, 1
      %v1126 = vor.u32 %v1037, %v1125
      %v1127 = vrot.slane %v1047, 1
      %v1128 = vor.u32 %v1044, %v1127
      %v1129 = vrot.slane %v1054, 1
      %v1130 = vor.u32 %v1051, %v1129
      %v1131 = vrot.slane %v1061, 1
      %v1132 = vor.u32 %v1058, %v1131
      %v1133 = vrot.slane %v1068, 1
      %v1134 = vor.u32 %v1065, %v1133
      %v1151 = vsel %vm766, %v1104, 0
      %v1152 = vsel %vm766, %v1106, 0
      %v1153 = vsel %vm766, %v1108, 0
      %v1154 = vsel %vm766, %v1110, 0
      %v1155 = vsel %vm766, %v1112, 0
      %v1156 = vsel %vm766, %v1114, 0
      %v1157 = vsel %vm766, %v1116, 0
      %v1158 = vsel %vm766, %v1118, 0
      %v1159 = vsel %vm766, %v1120, 0
      %v1160 = vsel %vm766, %v1122, 0
      %v1161 = vsel %vm766, %v1124, 0
      %v1162 = vsel %vm766, %v1126, 0
      %v1163 = vsel %vm766, %v1128, 0
      %v1164 = vsel %vm766, %v1130, 0
      %v1165 = vsel %vm766, %v1132, 0
      %v1166 = vsel %vm766, %v1134, 0
      %s1183 = scalar_lea.vmem %s2, 192
      %v1184 = vld [vmem:[%s1183] sm:$0xf]
      %v1185 = vld [vmem:[%s1183 + $0x4] sm:$0xf]
      %v1186 = vld [vmem:[%s1183 + $0x8] sm:$0xf]
      %v1187 = vld [vmem:[%s1183 + $0xc] sm:$0xf]
      %v1188 = vld [vmem:[%s1183 + $0x10] sm:$0xf]
      %v1189 = vld [vmem:[%s1183 + $0x14] sm:$0xf]
      %v1190 = vld [vmem:[%s1183 + $0x18] sm:$0xf]
      %v1191 = vld [vmem:[%s1183 + $0x1c] sm:$0xf]
      %v1192 = vld [vmem:[%s1183 + $0x20] sm:$0xf]
      %v1193 = vld [vmem:[%s1183 + $0x24] sm:$0xf]
      %v1194 = vld [vmem:[%s1183 + $0x28] sm:$0xf]
      %v1195 = vld [vmem:[%s1183 + $0x2c] sm:$0xf]
      %v1196 = vld [vmem:[%s1183 + $0x30] sm:$0xf]
      %v1197 = vld [vmem:[%s1183 + $0x34] sm:$0xf]
      %v1198 = vld [vmem:[%s1183 + $0x38] sm:$0xf]
      %v1199 = vld [vmem:[%s1183 + $0x3c] sm:$0xf]
      %v1200 = vld [vmem:[%s1183 + $0x40] sm:$0xf]
      %v1201 = vld [vmem:[%s1183 + $0x44] sm:$0xf]
      %v1202 = vld [vmem:[%s1183 + $0x48] sm:$0xf]
      %v1203 = vld [vmem:[%s1183 + $0x4c] sm:$0xf]
      %v1204 = vld [vmem:[%s1183 + $0x50] sm:$0xf]
      %v1205 = vld [vmem:[%s1183 + $0x54] sm:$0xf]
      %v1206 = vld [vmem:[%s1183 + $0x58] sm:$0xf]
      %v1207 = vld [vmem:[%s1183 + $0x5c] sm:$0xf]
      %v1208 = vld [vmem:[%s1183 + $0x60] sm:$0xf]
      %v1209 = vld [vmem:[%s1183 + $0x64] sm:$0xf]
      %v1210 = vld [vmem:[%s1183 + $0x68] sm:$0xf]
      %v1211 = vld [vmem:[%s1183 + $0x6c] sm:$0xf]
      %v1212 = vld [vmem:[%s1183 + $0x70] sm:$0xf]
      %v1213 = vld [vmem:[%s1183 + $0x74] sm:$0xf]
      %v1214 = vld [vmem:[%s1183 + $0x78] sm:$0xf]
      %v1215 = vld [vmem:[%s1183 + $0x7c] sm:$0xf]
      %v1216 = vld [vmem:[%s1183 + $0x80] sm:$0xf]
      %v1217 = vld [vmem:[%s1183 + $0x84] sm:$0xf]
      %v1218 = vld [vmem:[%s1183 + $0x88] sm:$0xf]
      %v1219 = vld [vmem:[%s1183 + $0x8c] sm:$0xf]
      %v1220 = vld [vmem:[%s1183 + $0x90] sm:$0xf]
      %v1221 = vld [vmem:[%s1183 + $0x94] sm:$0xf]
      %v1222 = vld [vmem:[%s1183 + $0x98] sm:$0xf]
      %v1223 = vld [vmem:[%s1183 + $0x9c] sm:$0xf]
      %v1224 = vld [vmem:[%s1183 + $0xa0] sm:$0xf]
      %v1225 = vld [vmem:[%s1183 + $0xa4] sm:$0xf]
      %v1226 = vld [vmem:[%s1183 + $0xa8] sm:$0xf]
      %v1227 = vld [vmem:[%s1183 + $0xac] sm:$0xf]
      %v1228 = vld [vmem:[%s1183 + $0xb0] sm:$0xf]
      %v1229 = vld [vmem:[%s1183 + $0xb4] sm:$0xf]
      %v1230 = vld [vmem:[%s1183 + $0xb8] sm:$0xf]
      %v1231 = vld [vmem:[%s1183 + $0xbc] sm:$0xf]
      %v1280 = vunpack.c.l.b16 %v1184
      %v1281 = vunpack.c.l.b16 %v1185
      %v1282 = vunpack.c.l.b16 %v1186
      %v1283 = vunpack.c.l.b16 %v1187
      %v1284 = vunpack.c.l.b16 %v1188
      %v1285 = vunpack.c.l.b16 %v1189
      %v1286 = vunpack.c.l.b16 %v1190
      %v1287 = vunpack.c.l.b16 %v1191
      %v1288 = vunpack.c.l.b16 %v1192
      %v1289 = vunpack.c.l.b16 %v1193
      %v1290 = vunpack.c.l.b16 %v1194
      %v1291 = vunpack.c.l.b16 %v1195
      %v1292 = vunpack.c.l.b16 %v1196
      %v1293 = vunpack.c.l.b16 %v1197
      %v1294 = vunpack.c.l.b16 %v1198
      %v1295 = vunpack.c.l.b16 %v1199
      %v1296 = vunpack.c.l.b16 %v1200
      %v1297 = vunpack.c.l.b16 %v1201
      %v1298 = vunpack.c.l.b16 %v1202
      %v1299 = vunpack.c.l.b16 %v1203
      %v1300 = vunpack.c.l.b16 %v1204
      %v1301 = vunpack.c.l.b16 %v1205
      %v1302 = vunpack.c.l.b16 %v1206
      %v1303 = vunpack.c.l.b16 %v1207
      %v1304 = vunpack.c.l.b16 %v1208
      %v1305 = vunpack.c.l.b16 %v1209
      %v1306 = vunpack.c.l.b16 %v1210
      %v1307 = vunpack.c.l.b16 %v1211
      %v1308 = vunpack.c.l.b16 %v1212
      %v1309 = vunpack.c.l.b16 %v1213
      %v1310 = vunpack.c.l.b16 %v1214
      %v1311 = vunpack.c.l.b16 %v1215
      %v1312 = vunpack.c.l.b16 %v1216
      %v1313 = vunpack.c.l.b16 %v1217
      %v1314 = vunpack.c.l.b16 %v1218
      %v1315 = vunpack.c.l.b16 %v1219
      %v1316 = vunpack.c.l.b16 %v1220
      %v1317 = vunpack.c.l.b16 %v1221
      %v1318 = vunpack.c.l.b16 %v1222
      %v1319 = vunpack.c.l.b16 %v1223
      %v1320 = vunpack.c.l.b16 %v1224
      %v1321 = vunpack.c.l.b16 %v1225
      %v1322 = vunpack.c.l.b16 %v1226
      %v1323 = vunpack.c.l.b16 %v1227
      %v1324 = vunpack.c.l.b16 %v1228
      %v1325 = vunpack.c.l.b16 %v1229
      %v1326 = vunpack.c.l.b16 %v1230
      %v1327 = vunpack.c.l.b16 %v1231
      %v1328 = vpack.c.b16 %v1281, %v1280
      %v1329 = vpack.c.b16 %v1283, %v1282
      %v1330 = vpack.c.b16 %v1285, %v1284
      %v1331 = vpack.c.b16 %v1287, %v1286
      %v1332 = vpack.c.b16 %v1289, %v1288
      %v1333 = vpack.c.b16 %v1291, %v1290
      %v1334 = vpack.c.b16 %v1293, %v1292
      %v1335 = vpack.c.b16 %v1295, %v1294
      %v1336 = vpack.c.b16 %v1297, %v1296
      %v1337 = vpack.c.b16 %v1299, %v1298
      %v1338 = vpack.c.b16 %v1301, %v1300
      %v1339 = vpack.c.b16 %v1303, %v1302
      %v1340 = vpack.c.b16 %v1305, %v1304
      %v1341 = vpack.c.b16 %v1307, %v1306
      %v1342 = vpack.c.b16 %v1309, %v1308
      %v1343 = vpack.c.b16 %v1311, %v1310
      %v1344 = vpack.c.b16 %v1313, %v1312
      %v1345 = vpack.c.b16 %v1315, %v1314
      %v1346 = vpack.c.b16 %v1317, %v1316
      %v1347 = vpack.c.b16 %v1319, %v1318
      %v1348 = vpack.c.b16 %v1321, %v1320
      %v1349 = vpack.c.b16 %v1323, %v1322
      %v1350 = vpack.c.b16 %v1325, %v1324
      %v1351 = vpack.c.b16 %v1327, %v1326
      %1376 = vmatprep.subr.bf16.mxu0 0
      %1377 = vmatpush1.bf16.msra.mxu0 %v1335
      %1378 = vmatprep.subr.bf16.mxu0 0
      %1379 = vmatpush1.bf16.msra.mxu0 %v1334
      %1380 = vmatprep.subr.bf16.mxu0 0
      %1381 = vmatpush1.bf16.msra.mxu0 %v1333
      %1382 = vmatprep.subr.bf16.mxu0 0
      %1383 = vmatpush1.bf16.msra.mxu0 %v1332
      %1384 = vmatprep.subr.bf16.mxu0 0
      %1385 = vmatpush1.bf16.msra.mxu0 %v1331
      %1386 = vmatprep.subr.bf16.mxu0 0
      %1387 = vmatpush1.bf16.msra.mxu0 %v1330
      %1388 = vmatprep.subr.bf16.mxu0 0
      %1389 = vmatpush1.bf16.msra.mxu0 %v1329
      %1390 = vmatprep.subr.bf16.mxu0 0
      %1391 = vmatpush1.bf16.msra.mxu0 %v1328
      %1392 = vmatprep.subr.bf16.mxu0 0
      %1393 = vmatpush2.bf16.msra.mxu0 %v1343
      %1394 = vmatprep.subr.bf16.mxu0 0
      %1395 = vmatpush2.bf16.msra.mxu0 %v1342
      %1396 = vmatprep.subr.bf16.mxu0 0
      %1397 = vmatpush2.bf16.msra.mxu0 %v1341
      %1398 = vmatprep.subr.bf16.mxu0 0
      %1399 = vmatpush2.bf16.msra.mxu0 %v1340
      %1400 = vmatprep.subr.bf16.mxu0 0
      %1401 = vmatpush2.bf16.msra.mxu0 %v1339
      %1402 = vmatprep.subr.bf16.mxu0 0
      %1403 = vmatpush2.bf16.msra.mxu0 %v1338
      %1404 = vmatprep.subr.bf16.mxu0 0
      %1405 = vmatpush2.bf16.msra.mxu0 %v1337
      %1406 = vmatprep.subr.bf16.mxu0 0
      %1407 = vmatpush2.bf16.msra.mxu0 %v1336
      %1408 = vmatprep.mubr.bf16.mxu0 %v943
      %1409 = vmatmul.mubr.bf16.gmra.mxu0 %v1087
      %v1410 = vpop.f32.mrf.mxu0
      %v1411 = vadd.f32 0.0, %v1410
      %v1412 = vpop.f32.mrf.mxu0
      %v1413 = vpop.f32.mrf.mxu0
      %v1414 = vadd.f32 0.0, %v1413
      %v1415 = vpop.f32.mrf.mxu0
      %1416 = vmatprep.mubr.bf16.mxu0 %v944
      %1417 = vmatmul.mubr.bf16.gmra.mxu0 %v1088
      %v1418 = vpop.f32.mrf.mxu0
      %v1419 = vadd.f32 0.0, %v1418
      %v1420 = vpop.f32.mrf.mxu0
      %v1421 = vpop.f32.mrf.mxu0
      %v1422 = vadd.f32 0.0, %v1421
      %v1423 = vpop.f32.mrf.mxu0
      %1424 = vmatprep.mubr.bf16.mxu0 %v945
      %1425 = vmatmul.mubr.bf16.gmra.mxu0 %v1089
      %v1426 = vpop.f32.mrf.mxu0
      %v1427 = vadd.f32 0.0, %v1426
      %v1428 = vpop.f32.mrf.mxu0
      %v1429 = vpop.f32.mrf.mxu0
      %v1430 = vadd.f32 0.0, %v1429
      %v1431 = vpop.f32.mrf.mxu0
      %1432 = vmatprep.mubr.bf16.mxu0 %v946
      %1433 = vmatmul.mubr.bf16.gmra.mxu0 %v1090
      %v1434 = vpop.f32.mrf.mxu0
      %v1435 = vadd.f32 0.0, %v1434
      %v1436 = vpop.f32.mrf.mxu0
      %v1437 = vpop.f32.mrf.mxu0
      %v1438 = vadd.f32 0.0, %v1437
      %v1439 = vpop.f32.mrf.mxu0
      %1440 = vmatprep.mubr.bf16.mxu0 %v947
      %1441 = vmatmul.mubr.bf16.gmra.mxu0 %v1091
      %v1442 = vpop.f32.mrf.mxu0
      %v1443 = vadd.f32 0.0, %v1442
      %v1444 = vpop.f32.mrf.mxu0
      %v1445 = vpop.f32.mrf.mxu0
      %v1446 = vadd.f32 0.0, %v1445
      %v1447 = vpop.f32.mrf.mxu0
      %1448 = vmatprep.mubr.bf16.mxu0 %v948
      %1449 = vmatmul.mubr.bf16.gmra.mxu0 %v1092
      %v1450 = vpop.f32.mrf.mxu0
      %v1451 = vadd.f32 0.0, %v1450
      %v1452 = vpop.f32.mrf.mxu0
      %v1453 = vpop.f32.mrf.mxu0
      %v1454 = vadd.f32 0.0, %v1453
      %v1455 = vpop.f32.mrf.mxu0
      %1456 = vmatprep.mubr.bf16.mxu0 %v949
      %1457 = vmatmul.mubr.bf16.gmra.mxu0 %v1093
      %v1458 = vpop.f32.mrf.mxu0
      %v1459 = vadd.f32 0.0, %v1458
      %v1460 = vpop.f32.mrf.mxu0
      %v1461 = vpop.f32.mrf.mxu0
      %v1462 = vadd.f32 0.0, %v1461
      %v1463 = vpop.f32.mrf.mxu0
      %1464 = vmatprep.mubr.bf16.mxu0 %v950
      %1465 = vmatmul.mubr.bf16.gmra.mxu0 %v1094
      %v1466 = vpop.f32.mrf.mxu0
      %v1467 = vadd.f32 0.0, %v1466
      %v1468 = vpop.f32.mrf.mxu0
      %v1469 = vpop.f32.mrf.mxu0
      %v1470 = vadd.f32 0.0, %v1469
      %v1471 = vpop.f32.mrf.mxu0
      %1472 = vmatprep.mubr.bf16.mxu0 %v951
      %1473 = vmatmul.mubr.bf16.gmra.mxu0 %v1095
      %v1474 = vpop.f32.mrf.mxu0
      %v1475 = vadd.f32 0.0, %v1474
      %v1476 = vpop.f32.mrf.mxu0
      %v1477 = vpop.f32.mrf.mxu0
      %v1478 = vadd.f32 0.0, %v1477
      %v1479 = vpop.f32.mrf.mxu0
      %1480 = vmatprep.mubr.bf16.mxu0 %v952
      %1481 = vmatmul.mubr.bf16.gmra.mxu0 %v1096
      %v1482 = vpop.f32.mrf.mxu0
      %v1483 = vadd.f32 0.0, %v1482
      %v1484 = vpop.f32.mrf.mxu0
      %v1485 = vpop.f32.mrf.mxu0
      %v1486 = vadd.f32 0.0, %v1485
      %v1487 = vpop.f32.mrf.mxu0
      %1488 = vmatprep.mubr.bf16.mxu0 %v953
      %1489 = vmatmul.mubr.bf16.gmra.mxu0 %v1097
      %v1490 = vpop.f32.mrf.mxu0
      %v1491 = vadd.f32 0.0, %v1490
      %v1492 = vpop.f32.mrf.mxu0
      %v1493 = vpop.f32.mrf.mxu0
      %v1494 = vadd.f32 0.0, %v1493
      %v1495 = vpop.f32.mrf.mxu0
      %1496 = vmatprep.mubr.bf16.mxu0 %v954
      %1497 = vmatmul.mubr.bf16.gmra.mxu0 %v1098
      %v1498 = vpop.f32.mrf.mxu0
      %v1499 = vadd.f32 0.0, %v1498
      %v1500 = vpop.f32.mrf.mxu0
      %v1501 = vpop.f32.mrf.mxu0
      %v1502 = vadd.f32 0.0, %v1501
      %v1503 = vpop.f32.mrf.mxu0
      %1504 = vmatprep.mubr.bf16.mxu0 %v955
      %1505 = vmatmul.mubr.bf16.gmra.mxu0 %v1099
      %v1506 = vpop.f32.mrf.mxu0
      %v1507 = vadd.f32 0.0, %v1506
      %v1508 = vpop.f32.mrf.mxu0
      %v1509 = vpop.f32.mrf.mxu0
      %v1510 = vadd.f32 0.0, %v1509
      %v1511 = vpop.f32.mrf.mxu0
      %1512 = vmatprep.mubr.bf16.mxu0 %v956
      %1513 = vmatmul.mubr.bf16.gmra.mxu0 %v1100
      %v1514 = vpop.f32.mrf.mxu0
      %v1515 = vadd.f32 0.0, %v1514
      %v1516 = vpop.f32.mrf.mxu0
      %v1517 = vpop.f32.mrf.mxu0
      %v1518 = vadd.f32 0.0, %v1517
      %v1519 = vpop.f32.mrf.mxu0
      %1520 = vmatprep.mubr.bf16.mxu0 %v957
      %1521 = vmatmul.mubr.bf16.gmra.mxu0 %v1101
      %v1522 = vpop.f32.mrf.mxu0
      %v1523 = vadd.f32 0.0, %v1522
      %v1524 = vpop.f32.mrf.mxu0
      %v1525 = vpop.f32.mrf.mxu0
      %v1526 = vadd.f32 0.0, %v1525
      %v1527 = vpop.f32.mrf.mxu0
      %1528 = vmatprep.mubr.bf16.mxu0 %v958
      %1529 = vmatmul.mubr.bf16.gmra.mxu0 %v1102
      %v1530 = vpop.f32.mrf.mxu0
      %v1531 = vadd.f32 0.0, %v1530
      %v1532 = vpop.f32.mrf.mxu0
      %v1533 = vpop.f32.mrf.mxu0
      %v1534 = vadd.f32 0.0, %v1533
      %v1535 = vpop.f32.mrf.mxu0
      %1536 = vdwg.mxu0
      %1537 = vmatprep.subr.bf16.mxu0 0
      %1538 = vmatpush1.bf16.msra.mxu0 %v1351
      %1539 = vmatprep.subr.bf16.mxu0 0
      %1540 = vmatpush1.bf16.msra.mxu0 %v1350
      %1541 = vmatprep.subr.bf16.mxu0 0
      %1542 = vmatpush1.bf16.msra.mxu0 %v1349
      %1543 = vmatprep.subr.bf16.mxu0 0
      %1544 = vmatpush1.bf16.msra.mxu0 %v1348
      %1545 = vmatprep.subr.bf16.mxu0 0
      %1546 = vmatpush1.bf16.msra.mxu0 %v1347
      %1547 = vmatprep.subr.bf16.mxu0 0
      %1548 = vmatpush1.bf16.msra.mxu0 %v1346
      %1549 = vmatprep.subr.bf16.mxu0 0
      %1550 = vmatpush1.bf16.msra.mxu0 %v1345
      %1551 = vmatprep.subr.bf16.mxu0 0
      %1552 = vmatpush1.bf16.msra.mxu0 %v1344
      %1553 = vmatprep.subr.bf16.mxu0 0
      %1554 = vmatpush2.bf16.msra.mxu0 0
      %1555 = vmatprep.subr.bf16.mxu0 0
      %1556 = vmatpush2.bf16.msra.mxu0 0
      %1557 = vmatprep.subr.bf16.mxu0 0
      %1558 = vmatpush2.bf16.msra.mxu0 0
      %1559 = vmatprep.subr.bf16.mxu0 0
      %1560 = vmatpush2.bf16.msra.mxu0 0
      %1561 = vmatprep.subr.bf16.mxu0 0
      %1562 = vmatpush2.bf16.msra.mxu0 0
      %1563 = vmatprep.subr.bf16.mxu0 0
      %1564 = vmatpush2.bf16.msra.mxu0 0
      %1565 = vmatprep.subr.bf16.mxu0 0
      %1566 = vmatpush2.bf16.msra.mxu0 0
      %1567 = vmatprep.subr.bf16.mxu0 0
      %1568 = vmatpush2.bf16.msra.mxu0 0
      %1569 = vmatprep.mubr.bf16.mxu0 0
      %1570 = vmatmul.mubr.bf16.gmra.mxu0 %v1151
      %v1571 = vpop.f32.mrf.mxu0
      %v1572 = vadd.f32 %v1411, %v1571
      %v1573 = vpop.f32.mrf.mxu0
      %v1574 = vpop.f32.mrf.mxu0
      %v1575 = vadd.f32 %v1414, %v1574
      %v1576 = vpop.f32.mrf.mxu0
      %1577 = vmatprep.mubr.bf16.mxu0 0
      %1578 = vmatmul.mubr.bf16.gmra.mxu0 %v1152
      %v1579 = vpop.f32.mrf.mxu0
      %v1580 = vadd.f32 %v1419, %v1579
      %v1581 = vpop.f32.mrf.mxu0
      %v1582 = vpop.f32.mrf.mxu0
      %v1583 = vadd.f32 %v1422, %v1582
      %v1584 = vpop.f32.mrf.mxu0
      %1585 = vmatprep.mubr.bf16.mxu0 0
      %1586 = vmatmul.mubr.bf16.gmra.mxu0 %v1153
      %v1587 = vpop.f32.mrf.mxu0
      %v1588 = vadd.f32 %v1427, %v1587
      %v1589 = vpop.f32.mrf.mxu0
      %v1590 = vpop.f32.mrf.mxu0
      %v1591 = vadd.f32 %v1430, %v1590
      %v1592 = vpop.f32.mrf.mxu0
      %1593 = vmatprep.mubr.bf16.mxu0 0
      %1594 = vmatmul.mubr.bf16.gmra.mxu0 %v1154
      %v1595 = vpop.f32.mrf.mxu0
      %v1596 = vadd.f32 %v1435, %v1595
      %v1597 = vpop.f32.mrf.mxu0
      %v1598 = vpop.f32.mrf.mxu0
      %v1599 = vadd.f32 %v1438, %v1598
      %v1600 = vpop.f32.mrf.mxu0
      %1601 = vmatprep.mubr.bf16.mxu0 0
      %1602 = vmatmul.mubr.bf16.gmra.mxu0 %v1155
      %v1603 = vpop.f32.mrf.mxu0
      %v1604 = vadd.f32 %v1443, %v1603
      %v1605 = vpop.f32.mrf.mxu0
      %v1606 = vpop.f32.mrf.mxu0
      %v1607 = vadd.f32 %v1446, %v1606
      %v1608 = vpop.f32.mrf.mxu0
      %1609 = vmatprep.mubr.bf16.mxu0 0
      %1610 = vmatmul.mubr.bf16.gmra.mxu0 %v1156
      %v1611 = vpop.f32.mrf.mxu0
      %v1612 = vadd.f32 %v1451, %v1611
      %v1613 = vpop.f32.mrf.mxu0
      %v1614 = vpop.f32.mrf.mxu0
      %v1615 = vadd.f32 %v1454, %v1614
      %v1616 = vpop.f32.mrf.mxu0
      %1617 = vmatprep.mubr.bf16.mxu0 0
      %1618 = vmatmul.mubr.bf16.gmra.mxu0 %v1157
      %v1619 = vpop.f32.mrf.mxu0
      %v1620 = vadd.f32 %v1459, %v1619
      %v1621 = vpop.f32.mrf.mxu0
      %v1622 = vpop.f32.mrf.mxu0
      %v1623 = vadd.f32 %v1462, %v1622
      %v1624 = vpop.f32.mrf.mxu0
      %1625 = vmatprep.mubr.bf16.mxu0 0
      %1626 = vmatmul.mubr.bf16.gmra.mxu0 %v1158
      %v1627 = vpop.f32.mrf.mxu0
      %v1628 = vadd.f32 %v1467, %v1627
      %v1629 = vpop.f32.mrf.mxu0
      %v1630 = vpop.f32.mrf.mxu0
      %v1631 = vadd.f32 %v1470, %v1630
      %v1632 = vpop.f32.mrf.mxu0
      %1633 = vmatprep.mubr.bf16.mxu0 0
      %1634 = vmatmul.mubr.bf16.gmra.mxu0 %v1159
      %v1635 = vpop.f32.mrf.mxu0
      %v1636 = vadd.f32 %v1475, %v1635
      %v1637 = vpop.f32.mrf.mxu0
      %v1638 = vpop.f32.mrf.mxu0
      %v1639 = vadd.f32 %v1478, %v1638
      %v1640 = vpop.f32.mrf.mxu0
      %1641 = vmatprep.mubr.bf16.mxu0 0
      %1642 = vmatmul.mubr.bf16.gmra.mxu0 %v1160
      %v1643 = vpop.f32.mrf.mxu0
      %v1644 = vadd.f32 %v1483, %v1643
      %v1645 = vpop.f32.mrf.mxu0
      %v1646 = vpop.f32.mrf.mxu0
      %v1647 = vadd.f32 %v1486, %v1646
      %v1648 = vpop.f32.mrf.mxu0
      %1649 = vmatprep.mubr.bf16.mxu0 0
      %1650 = vmatmul.mubr.bf16.gmra.mxu0 %v1161
      %v1651 = vpop.f32.mrf.mxu0
      %v1652 = vadd.f32 %v1491, %v1651
      %v1653 = vpop.f32.mrf.mxu0
      %v1654 = vpop.f32.mrf.mxu0
      %v1655 = vadd.f32 %v1494, %v1654
      %v1656 = vpop.f32.mrf.mxu0
      %1657 = vmatprep.mubr.bf16.mxu0 0
      %1658 = vmatmul.mubr.bf16.gmra.mxu0 %v1162
      %v1659 = vpop.f32.mrf.mxu0
      %v1660 = vadd.f32 %v1499, %v1659
      %v1661 = vpop.f32.mrf.mxu0
      %v1662 = vpop.f32.mrf.mxu0
      %v1663 = vadd.f32 %v1502, %v1662
      %v1664 = vpop.f32.mrf.mxu0
      %1665 = vmatprep.mubr.bf16.mxu0 0
      %1666 = vmatmul.mubr.bf16.gmra.mxu0 %v1163
      %v1667 = vpop.f32.mrf.mxu0
      %v1668 = vadd.f32 %v1507, %v1667
      %v1669 = vpop.f32.mrf.mxu0
      %v1670 = vpop.f32.mrf.mxu0
      %v1671 = vadd.f32 %v1510, %v1670
      %v1672 = vpop.f32.mrf.mxu0
      %1673 = vmatprep.mubr.bf16.mxu0 0
      %1674 = vmatmul.mubr.bf16.gmra.mxu0 %v1164
      %v1675 = vpop.f32.mrf.mxu0
      %v1676 = vadd.f32 %v1515, %v1675
      %v1677 = vpop.f32.mrf.mxu0
      %v1678 = vpop.f32.mrf.mxu0
      %v1679 = vadd.f32 %v1518, %v1678
      %v1680 = vpop.f32.mrf.mxu0
      %1681 = vmatprep.mubr.bf16.mxu0 0
      %1682 = vmatmul.mubr.bf16.gmra.mxu0 %v1165
      %v1683 = vpop.f32.mrf.mxu0
      %v1684 = vadd.f32 %v1523, %v1683
      %v1685 = vpop.f32.mrf.mxu0
      %v1686 = vpop.f32.mrf.mxu0
      %v1687 = vadd.f32 %v1526, %v1686
      %v1688 = vpop.f32.mrf.mxu0
      %1689 = vmatprep.mubr.bf16.mxu0 0
      %1690 = vmatmul.mubr.bf16.gmra.mxu0 %v1166
      %v1691 = vpop.f32.mrf.mxu0
      %v1692 = vadd.f32 %v1531, %v1691
      %v1693 = vpop.f32.mrf.mxu0
      %v1694 = vpop.f32.mrf.mxu0
      %v1695 = vadd.f32 %v1534, %v1694
      %v1696 = vpop.f32.mrf.mxu0
      %1697 = vdwg.mxu0
      %v1746 = vunpack.c.l.b16 %v799
      %v1747 = vunpack.c.l.b16 %v800
      %v1748 = vunpack.c.l.b16 %v801
      %v1749 = vunpack.c.l.b16 %v802
      %v1750 = vunpack.c.l.b16 %v803
      %v1751 = vunpack.c.l.b16 %v804
      %v1752 = vunpack.c.l.b16 %v805
      %v1753 = vunpack.c.l.b16 %v806
      %v1754 = vunpack.c.l.b16 %v807
      %v1755 = vunpack.c.l.b16 %v808
      %v1756 = vunpack.c.l.b16 %v809
      %v1757 = vunpack.c.l.b16 %v810
      %v1758 = vunpack.c.l.b16 %v811
      %v1759 = vunpack.c.l.b16 %v812
      %v1760 = vunpack.c.l.b16 %v813
      %v1761 = vunpack.c.l.b16 %v814
      %v1762 = vunpack.c.l.b16 %v815
      %v1763 = vunpack.c.l.b16 %v816
      %v1764 = vunpack.c.l.b16 %v817
      %v1765 = vunpack.c.l.b16 %v818
      %v1766 = vunpack.c.l.b16 %v819
      %v1767 = vunpack.c.l.b16 %v820
      %v1768 = vunpack.c.l.b16 %v821
      %v1769 = vunpack.c.l.b16 %v822
      %v1770 = vunpack.c.l.b16 %v823
      %v1771 = vunpack.c.l.b16 %v824
      %v1772 = vunpack.c.l.b16 %v825
      %v1773 = vunpack.c.l.b16 %v826
      %v1774 = vunpack.c.l.b16 %v827
      %v1775 = vunpack.c.l.b16 %v828
      %v1776 = vunpack.c.l.b16 %v829
      %v1777 = vunpack.c.l.b16 %v830
      %v1778 = vunpack.c.l.b16 %v831
      %v1779 = vunpack.c.l.b16 %v832
      %v1780 = vunpack.c.l.b16 %v833
      %v1781 = vunpack.c.l.b16 %v834
      %v1782 = vunpack.c.l.b16 %v835
      %v1783 = vunpack.c.l.b16 %v836
      %v1784 = vunpack.c.l.b16 %v837
      %v1785 = vunpack.c.l.b16 %v838
      %v1786 = vunpack.c.l.b16 %v839
      %v1787 = vunpack.c.l.b16 %v840
      %v1788 = vunpack.c.l.b16 %v841
      %v1789 = vunpack.c.l.b16 %v842
      %v1790 = vunpack.c.l.b16 %v843
      %v1791 = vunpack.c.l.b16 %v844
      %v1792 = vunpack.c.l.b16 %v845
      %v1793 = vunpack.c.l.b16 %v846
      %v1794 = vpack.c.b16 %v1747, %v1746
      %v1795 = vpack.c.b16 %v1749, %v1748
      %v1796 = vpack.c.b16 %v1751, %v1750
      %v1797 = vpack.c.b16 %v1753, %v1752
      %v1798 = vpack.c.b16 %v1755, %v1754
      %v1799 = vpack.c.b16 %v1757, %v1756
      %v1800 = vpack.c.b16 %v1759, %v1758
      %v1801 = vpack.c.b16 %v1761, %v1760
      %v1802 = vpack.c.b16 %v1763, %v1762
      %v1803 = vpack.c.b16 %v1765, %v1764
      %v1804 = vpack.c.b16 %v1767, %v1766
      %v1805 = vpack.c.b16 %v1769, %v1768
      %v1806 = vpack.c.b16 %v1771, %v1770
      %v1807 = vpack.c.b16 %v1773, %v1772
      %v1808 = vpack.c.b16 %v1775, %v1774
      %v1809 = vpack.c.b16 %v1777, %v1776
      %v1810 = vpack.c.b16 %v1779, %v1778
      %v1811 = vpack.c.b16 %v1781, %v1780
      %v1812 = vpack.c.b16 %v1783, %v1782
      %v1813 = vpack.c.b16 %v1785, %v1784
      %v1814 = vpack.c.b16 %v1787, %v1786
      %v1815 = vpack.c.b16 %v1789, %v1788
      %v1816 = vpack.c.b16 %v1791, %v1790
      %v1817 = vpack.c.b16 %v1793, %v1792
      %1842 = vmatprep.subr.bf16.mxu0 0
      %1843 = vmatpush1.bf16.msra.mxu0 %v1801
      %1844 = vmatprep.subr.bf16.mxu0 0
      %1845 = vmatpush1.bf16.msra.mxu0 %v1800
      %1846 = vmatprep.subr.bf16.mxu0 0
      %1847 = vmatpush1.bf16.msra.mxu0 %v1799
      %1848 = vmatprep.subr.bf16.mxu0 0
      %1849 = vmatpush1.bf16.msra.mxu0 %v1798
      %1850 = vmatprep.subr.bf16.mxu0 0
      %1851 = vmatpush1.bf16.msra.mxu0 %v1797
      %1852 = vmatprep.subr.bf16.mxu0 0
      %1853 = vmatpush1.bf16.msra.mxu0 %v1796
      %1854 = vmatprep.subr.bf16.mxu0 0
      %1855 = vmatpush1.bf16.msra.mxu0 %v1795
      %1856 = vmatprep.subr.bf16.mxu0 0
      %1857 = vmatpush1.bf16.msra.mxu0 %v1794
      %1858 = vmatprep.subr.bf16.mxu0 0
      %1859 = vmatpush2.bf16.msra.mxu0 %v1809
      %1860 = vmatprep.subr.bf16.mxu0 0
      %1861 = vmatpush2.bf16.msra.mxu0 %v1808
      %1862 = vmatprep.subr.bf16.mxu0 0
      %1863 = vmatpush2.bf16.msra.mxu0 %v1807
      %1864 = vmatprep.subr.bf16.mxu0 0
      %1865 = vmatpush2.bf16.msra.mxu0 %v1806
      %1866 = vmatprep.subr.bf16.mxu0 0
      %1867 = vmatpush2.bf16.msra.mxu0 %v1805
      %1868 = vmatprep.subr.bf16.mxu0 0
      %1869 = vmatpush2.bf16.msra.mxu0 %v1804
      %1870 = vmatprep.subr.bf16.mxu0 0
      %1871 = vmatpush2.bf16.msra.mxu0 %v1803
      %1872 = vmatprep.subr.bf16.mxu0 0
      %1873 = vmatpush2.bf16.msra.mxu0 %v1802
      %1874 = vmatprep.mubr.bf16.mxu0 %v553
      %1875 = vmatmul.mubr.bf16.gmra.mxu0 %v700
      %v1876 = vpop.f32.mrf.mxu0
      %v1877 = vadd.f32 %v1572, %v1876
      %v1878 = vpop.f32.mrf.mxu0
      %v1879 = vpop.f32.mrf.mxu0
      %v1880 = vadd.f32 %v1575, %v1879
      %v1881 = vpop.f32.mrf.mxu0
      %1882 = vmatprep.mubr.bf16.mxu0 %v554
      %1883 = vmatmul.mubr.bf16.gmra.mxu0 %v701
      %v1884 = vpop.f32.mrf.mxu0
      %v1885 = vadd.f32 %v1580, %v1884
      %v1886 = vpop.f32.mrf.mxu0
      %v1887 = vpop.f32.mrf.mxu0
      %v1888 = vadd.f32 %v1583, %v1887
      %v1889 = vpop.f32.mrf.mxu0
      %1890 = vmatprep.mubr.bf16.mxu0 %v555
      %1891 = vmatmul.mubr.bf16.gmra.mxu0 %v702
      %v1892 = vpop.f32.mrf.mxu0
      %v1893 = vadd.f32 %v1588, %v1892
      %v1894 = vpop.f32.mrf.mxu0
      %v1895 = vpop.f32.mrf.mxu0
      %v1896 = vadd.f32 %v1591, %v1895
      %v1897 = vpop.f32.mrf.mxu0
      %1898 = vmatprep.mubr.bf16.mxu0 %v556
      %1899 = vmatmul.mubr.bf16.gmra.mxu0 %v703
      %v1900 = vpop.f32.mrf.mxu0
      %v1901 = vadd.f32 %v1596, %v1900
      %v1902 = vpop.f32.mrf.mxu0
      %v1903 = vpop.f32.mrf.mxu0
      %v1904 = vadd.f32 %v1599, %v1903
      %v1905 = vpop.f32.mrf.mxu0
      %1906 = vmatprep.mubr.bf16.mxu0 %v557
      %1907 = vmatmul.mubr.bf16.gmra.mxu0 %v704
      %v1908 = vpop.f32.mrf.mxu0
      %v1909 = vadd.f32 %v1604, %v1908
      %v1910 = vpop.f32.mrf.mxu0
      %v1911 = vpop.f32.mrf.mxu0
      %v1912 = vadd.f32 %v1607, %v1911
      %v1913 = vpop.f32.mrf.mxu0
      %1914 = vmatprep.mubr.bf16.mxu0 %v558
      %1915 = vmatmul.mubr.bf16.gmra.mxu0 %v705
      %v1916 = vpop.f32.mrf.mxu0
      %v1917 = vadd.f32 %v1612, %v1916
      %v1918 = vpop.f32.mrf.mxu0
      %v1919 = vpop.f32.mrf.mxu0
      %v1920 = vadd.f32 %v1615, %v1919
      %v1921 = vpop.f32.mrf.mxu0
      %1922 = vmatprep.mubr.bf16.mxu0 %v559
      %1923 = vmatmul.mubr.bf16.gmra.mxu0 %v706
      %v1924 = vpop.f32.mrf.mxu0
      %v1925 = vadd.f32 %v1620, %v1924
      %v1926 = vpop.f32.mrf.mxu0
      %v1927 = vpop.f32.mrf.mxu0
      %v1928 = vadd.f32 %v1623, %v1927
      %v1929 = vpop.f32.mrf.mxu0
      %1930 = vmatprep.mubr.bf16.mxu0 %v560
      %1931 = vmatmul.mubr.bf16.gmra.mxu0 %v707
      %v1932 = vpop.f32.mrf.mxu0
      %v1933 = vadd.f32 %v1628, %v1932
      %v1934 = vpop.f32.mrf.mxu0
      %v1935 = vpop.f32.mrf.mxu0
      %v1936 = vadd.f32 %v1631, %v1935
      %v1937 = vpop.f32.mrf.mxu0
      %1938 = vmatprep.mubr.bf16.mxu0 %v561
      %1939 = vmatmul.mubr.bf16.gmra.mxu0 %v708
      %v1940 = vpop.f32.mrf.mxu0
      %v1941 = vadd.f32 %v1636, %v1940
      %v1942 = vpop.f32.mrf.mxu0
      %v1943 = vpop.f32.mrf.mxu0
      %v1944 = vadd.f32 %v1639, %v1943
      %v1945 = vpop.f32.mrf.mxu0
      %1946 = vmatprep.mubr.bf16.mxu0 %v562
      %1947 = vmatmul.mubr.bf16.gmra.mxu0 %v709
      %v1948 = vpop.f32.mrf.mxu0
      %v1949 = vadd.f32 %v1644, %v1948
      %v1950 = vpop.f32.mrf.mxu0
      %v1951 = vpop.f32.mrf.mxu0
      %v1952 = vadd.f32 %v1647, %v1951
      %v1953 = vpop.f32.mrf.mxu0
      %1954 = vmatprep.mubr.bf16.mxu0 %v563
      %1955 = vmatmul.mubr.bf16.gmra.mxu0 %v710
      %v1956 = vpop.f32.mrf.mxu0
      %v1957 = vadd.f32 %v1652, %v1956
      %v1958 = vpop.f32.mrf.mxu0
      %v1959 = vpop.f32.mrf.mxu0
      %v1960 = vadd.f32 %v1655, %v1959
      %v1961 = vpop.f32.mrf.mxu0
      %1962 = vmatprep.mubr.bf16.mxu0 %v564
      %1963 = vmatmul.mubr.bf16.gmra.mxu0 %v711
      %v1964 = vpop.f32.mrf.mxu0
      %v1965 = vadd.f32 %v1660, %v1964
      %v1966 = vpop.f32.mrf.mxu0
      %v1967 = vpop.f32.mrf.mxu0
      %v1968 = vadd.f32 %v1663, %v1967
      %v1969 = vpop.f32.mrf.mxu0
      %1970 = vmatprep.mubr.bf16.mxu0 %v565
      %1971 = vmatmul.mubr.bf16.gmra.mxu0 %v712
      %v1972 = vpop.f32.mrf.mxu0
      %v1973 = vadd.f32 %v1668, %v1972
      %v1974 = vpop.f32.mrf.mxu0
      %v1975 = vpop.f32.mrf.mxu0
      %v1976 = vadd.f32 %v1671, %v1975
      %v1977 = vpop.f32.mrf.mxu0
      %1978 = vmatprep.mubr.bf16.mxu0 %v566
      %1979 = vmatmul.mubr.bf16.gmra.mxu0 %v713
      %v1980 = vpop.f32.mrf.mxu0
      %v1981 = vadd.f32 %v1676, %v1980
      %v1982 = vpop.f32.mrf.mxu0
      %v1983 = vpop.f32.mrf.mxu0
      %v1984 = vadd.f32 %v1679, %v1983
      %v1985 = vpop.f32.mrf.mxu0
      %1986 = vmatprep.mubr.bf16.mxu0 %v567
      %1987 = vmatmul.mubr.bf16.gmra.mxu0 %v714
      %v1988 = vpop.f32.mrf.mxu0
      %v1989 = vadd.f32 %v1684, %v1988
      %v1990 = vpop.f32.mrf.mxu0
      %v1991 = vpop.f32.mrf.mxu0
      %v1992 = vadd.f32 %v1687, %v1991
      %v1993 = vpop.f32.mrf.mxu0
      %1994 = vmatprep.mubr.bf16.mxu0 %v568
      %1995 = vmatmul.mubr.bf16.gmra.mxu0 %v715
      %v1996 = vpop.f32.mrf.mxu0
      %v1997 = vadd.f32 %v1692, %v1996
      %v1998 = vpop.f32.mrf.mxu0
      %v1999 = vpop.f32.mrf.mxu0
      %v2000 = vadd.f32 %v1695, %v1999
      %v2001 = vpop.f32.mrf.mxu0
      %2002 = vdwg.mxu0
      %2003 = vmatprep.subr.bf16.mxu0 0
      %2004 = vmatpush1.bf16.msra.mxu0 %v1817
      %2005 = vmatprep.subr.bf16.mxu0 0
      %2006 = vmatpush1.bf16.msra.mxu0 %v1816
      %2007 = vmatprep.subr.bf16.mxu0 0
      %2008 = vmatpush1.bf16.msra.mxu0 %v1815
      %2009 = vmatprep.subr.bf16.mxu0 0
      %2010 = vmatpush1.bf16.msra.mxu0 %v1814
      %2011 = vmatprep.subr.bf16.mxu0 0
      %2012 = vmatpush1.bf16.msra.mxu0 %v1813
      %2013 = vmatprep.subr.bf16.mxu0 0
      %2014 = vmatpush1.bf16.msra.mxu0 %v1812
      %2015 = vmatprep.subr.bf16.mxu0 0
      %2016 = vmatpush1.bf16.msra.mxu0 %v1811
      %2017 = vmatprep.subr.bf16.mxu0 0
      %2018 = vmatpush1.bf16.msra.mxu0 %v1810
      %2019 = vmatprep.subr.bf16.mxu0 0
      %2020 = vmatpush2.bf16.msra.mxu0 0
      %2021 = vmatprep.subr.bf16.mxu0 0
      %2022 = vmatpush2.bf16.msra.mxu0 0
      %2023 = vmatprep.subr.bf16.mxu0 0
      %2024 = vmatpush2.bf16.msra.mxu0 0
      %2025 = vmatprep.subr.bf16.mxu0 0
      %2026 = vmatpush2.bf16.msra.mxu0 0
      %2027 = vmatprep.subr.bf16.mxu0 0
      %2028 = vmatpush2.bf16.msra.mxu0 0
      %2029 = vmatprep.subr.bf16.mxu0 0
      %2030 = vmatpush2.bf16.msra.mxu0 0
      %2031 = vmatprep.subr.bf16.mxu0 0
      %2032 = vmatpush2.bf16.msra.mxu0 0
      %2033 = vmatprep.subr.bf16.mxu0 0
      %2034 = vmatpush2.bf16.msra.mxu0 0
      %2035 = vmatprep.mubr.bf16.mxu0 0
      %2036 = vmatmul.mubr.bf16.gmra.mxu0 %v767
      %v2037 = vpop.f32.mrf.mxu0
      %v2038 = vadd.f32 %v1877, %v2037
      %v2039 = vpop.f32.mrf.mxu0
      %v2040 = vpop.f32.mrf.mxu0
      %v2041 = vadd.f32 %v1880, %v2040
      %v2042 = vpop.f32.mrf.mxu0
      %2043 = vmatprep.mubr.bf16.mxu0 0
      %2044 = vmatmul.mubr.bf16.gmra.mxu0 %v768
      %v2045 = vpop.f32.mrf.mxu0
      %v2046 = vadd.f32 %v1885, %v2045
      %v2047 = vpop.f32.mrf.mxu0
      %v2048 = vpop.f32.mrf.mxu0
      %v2049 = vadd.f32 %v1888, %v2048
      %v2050 = vpop.f32.mrf.mxu0
      %2051 = vmatprep.mubr.bf16.mxu0 0
      %2052 = vmatmul.mubr.bf16.gmra.mxu0 %v769
      %v2053 = vpop.f32.mrf.mxu0
      %v2054 = vadd.f32 %v1893, %v2053
      %v2055 = vpop.f32.mrf.mxu0
      %v2056 = vpop.f32.mrf.mxu0
      %v2057 = vadd.f32 %v1896, %v2056
      %v2058 = vpop.f32.mrf.mxu0
      %2059 = vmatprep.mubr.bf16.mxu0 0
      %2060 = vmatmul.mubr.bf16.gmra.mxu0 %v770
      %v2061 = vpop.f32.mrf.mxu0
      %v2062 = vadd.f32 %v1901, %v2061
      %v2063 = vpop.f32.mrf.mxu0
      %v2064 = vpop.f32.mrf.mxu0
      %v2065 = vadd.f32 %v1904, %v2064
      %v2066 = vpop.f32.mrf.mxu0
      %2067 = vmatprep.mubr.bf16.mxu0 0
      %2068 = vmatmul.mubr.bf16.gmra.mxu0 %v771
      %v2069 = vpop.f32.mrf.mxu0
      %v2070 = vadd.f32 %v1909, %v2069
      %v2071 = vpop.f32.mrf.mxu0
      %v2072 = vpop.f32.mrf.mxu0
      %v2073 = vadd.f32 %v1912, %v2072
      %v2074 = vpop.f32.mrf.mxu0
      %2075 = vmatprep.mubr.bf16.mxu0 0
      %2076 = vmatmul.mubr.bf16.gmra.mxu0 %v772
      %v2077 = vpop.f32.mrf.mxu0
      %v2078 = vadd.f32 %v1917, %v2077
      %v2079 = vpop.f32.mrf.mxu0
      %v2080 = vpop.f32.mrf.mxu0
      %v2081 = vadd.f32 %v1920, %v2080
      %v2082 = vpop.f32.mrf.mxu0
      %2083 = vmatprep.mubr.bf16.mxu0 0
      %2084 = vmatmul.mubr.bf16.gmra.mxu0 %v773
      %v2085 = vpop.f32.mrf.mxu0
      %v2086 = vadd.f32 %v1925, %v2085
      %v2087 = vpop.f32.mrf.mxu0
      %v2088 = vpop.f32.mrf.mxu0
      %v2089 = vadd.f32 %v1928, %v2088
      %v2090 = vpop.f32.mrf.mxu0
      %2091 = vmatprep.mubr.bf16.mxu0 0
      %2092 = vmatmul.mubr.bf16.gmra.mxu0 %v774
      %v2093 = vpop.f32.mrf.mxu0
      %v2094 = vadd.f32 %v1933, %v2093
      %v2095 = vpop.f32.mrf.mxu0
      %v2096 = vpop.f32.mrf.mxu0
      %v2097 = vadd.f32 %v1936, %v2096
      %v2098 = vpop.f32.mrf.mxu0
      %2099 = vmatprep.mubr.bf16.mxu0 0
      %2100 = vmatmul.mubr.bf16.gmra.mxu0 %v775
      %v2101 = vpop.f32.mrf.mxu0
      %v2102 = vadd.f32 %v1941, %v2101
      %v2103 = vpop.f32.mrf.mxu0
      %v2104 = vpop.f32.mrf.mxu0
      %v2105 = vadd.f32 %v1944, %v2104
      %v2106 = vpop.f32.mrf.mxu0
      %2107 = vmatprep.mubr.bf16.mxu0 0
      %2108 = vmatmul.mubr.bf16.gmra.mxu0 %v776
      %v2109 = vpop.f32.mrf.mxu0
      %v2110 = vadd.f32 %v1949, %v2109
      %v2111 = vpop.f32.mrf.mxu0
      %v2112 = vpop.f32.mrf.mxu0
      %v2113 = vadd.f32 %v1952, %v2112
      %v2114 = vpop.f32.mrf.mxu0
      %2115 = vmatprep.mubr.bf16.mxu0 0
      %2116 = vmatmul.mubr.bf16.gmra.mxu0 %v777
      %v2117 = vpop.f32.mrf.mxu0
      %v2118 = vadd.f32 %v1957, %v2117
      %v2119 = vpop.f32.mrf.mxu0
      %v2120 = vpop.f32.mrf.mxu0
      %v2121 = vadd.f32 %v1960, %v2120
      %v2122 = vpop.f32.mrf.mxu0
      %2123 = vmatprep.mubr.bf16.mxu0 0
      %2124 = vmatmul.mubr.bf16.gmra.mxu0 %v778
      %v2125 = vpop.f32.mrf.mxu0
      %v2126 = vadd.f32 %v1965, %v2125
      %v2127 = vpop.f32.mrf.mxu0
      %v2128 = vpop.f32.mrf.mxu0
      %v2129 = vadd.f32 %v1968, %v2128
      %v2130 = vpop.f32.mrf.mxu0
      %2131 = vmatprep.mubr.bf16.mxu0 0
      %2132 = vmatmul.mubr.bf16.gmra.mxu0 %v779
      %v2133 = vpop.f32.mrf.mxu0
      %v2134 = vadd.f32 %v1973, %v2133
      %v2135 = vpop.f32.mrf.mxu0
      %v2136 = vpop.f32.mrf.mxu0
      %v2137 = vadd.f32 %v1976, %v2136
      %v2138 = vpop.f32.mrf.mxu0
      %2139 = vmatprep.mubr.bf16.mxu0 0
      %2140 = vmatmul.mubr.bf16.gmra.mxu0 %v780
      %v2141 = vpop.f32.mrf.mxu0
      %v2142 = vadd.f32 %v1981, %v2141
      %v2143 = vpop.f32.mrf.mxu0
      %v2144 = vpop.f32.mrf.mxu0
      %v2145 = vadd.f32 %v1984, %v2144
      %v2146 = vpop.f32.mrf.mxu0
      %2147 = vmatprep.mubr.bf16.mxu0 0
      %2148 = vmatmul.mubr.bf16.gmra.mxu0 %v781
      %v2149 = vpop.f32.mrf.mxu0
      %v2150 = vadd.f32 %v1989, %v2149
      %v2151 = vpop.f32.mrf.mxu0
      %v2152 = vpop.f32.mrf.mxu0
      %v2153 = vadd.f32 %v1992, %v2152
      %v2154 = vpop.f32.mrf.mxu0
      %2155 = vmatprep.mubr.bf16.mxu0 0
      %2156 = vmatmul.mubr.bf16.gmra.mxu0 %v782
      %v2157 = vpop.f32.mrf.mxu0
      %v2158 = vadd.f32 %v1997, %v2157
      %v2159 = vpop.f32.mrf.mxu0
      %v2160 = vpop.f32.mrf.mxu0
      %v2161 = vadd.f32 %v2000, %v2160
      %v2162 = vpop.f32.mrf.mxu0
      %2163 = vdwg.mxu0
      %s2164 = scalar_lea.vmem [#allocation2], 16
      %v2165 = vld [vmem:[%s2164] sm:$0xf]
      %v2166 = vld [vmem:[%s2164 + $0x4] sm:$0xf]
      %v2167 = vld [vmem:[%s2164 + $0x8] sm:$0xf]
      %v2168 = vld [vmem:[%s2164 + $0xc] sm:$0xf]
      %v2169 = vld [vmem:[%s2164 + $0x10] sm:$0xf]
      %v2170 = vld [vmem:[%s2164 + $0x14] sm:$0xf]
      %v2171 = vld [vmem:[%s2164 + $0x18] sm:$0xf]
      %v2172 = vld [vmem:[%s2164 + $0x1c] sm:$0xf]
      %v2173 = vld [vmem:[%s2164 + $0x20] sm:$0xf]
      %v2174 = vld [vmem:[%s2164 + $0x24] sm:$0xf]
      %v2175 = vld [vmem:[%s2164 + $0x28] sm:$0xf]
      %v2176 = vld [vmem:[%s2164 + $0x2c] sm:$0xf]
      %v2177 = vld [vmem:[%s2164 + $0x30] sm:$0xf]
      %v2178 = vld [vmem:[%s2164 + $0x34] sm:$0xf]
      %v2179 = vld [vmem:[%s2164 + $0x38] sm:$0xf]
      %v2180 = vld [vmem:[%s2164 + $0x3c] sm:$0xf]
      %v2181 = vld [vmem:[%s2164 + $0x40] sm:$0xf]
      %v2182 = vld [vmem:[%s2164 + $0x44] sm:$0xf]
      %v2183 = vld [vmem:[%s2164 + $0x48] sm:$0xf]
      %v2184 = vld [vmem:[%s2164 + $0x4c] sm:$0xf]
      %v2185 = vld [vmem:[%s2164 + $0x50] sm:$0xf]
      %v2186 = vld [vmem:[%s2164 + $0x54] sm:$0xf]
      %v2187 = vld [vmem:[%s2164 + $0x58] sm:$0xf]
      %v2188 = vld [vmem:[%s2164 + $0x5c] sm:$0xf]
      %v2189 = vld [vmem:[%s2164 + $0x60] sm:$0xf]
      %v2190 = vld [vmem:[%s2164 + $0x64] sm:$0xf]
      %v2191 = vld [vmem:[%s2164 + $0x68] sm:$0xf]
      %v2192 = vld [vmem:[%s2164 + $0x6c] sm:$0xf]
      %v2193 = vld [vmem:[%s2164 + $0x70] sm:$0xf]
      %v2194 = vld [vmem:[%s2164 + $0x74] sm:$0xf]
      %v2195 = vld [vmem:[%s2164 + $0x78] sm:$0xf]
      %v2196 = vld [vmem:[%s2164 + $0x7c] sm:$0xf]
      %v2229 = vunpack.c.l.b16 %v2165
      %v2230 = vunpack.c.l.b16 %v2166
      %v2231 = vunpack.c.l.b16 %v2167
      %v2232 = vunpack.c.l.b16 %v2168
      %v2233 = vunpack.c.l.b16 %v2169
      %v2234 = vunpack.c.l.b16 %v2170
      %v2235 = vunpack.c.l.b16 %v2171
      %v2236 = vunpack.c.l.b16 %v2172
      %v2237 = vunpack.c.l.b16 %v2173
      %v2238 = vunpack.c.l.b16 %v2174
      %v2239 = vunpack.c.l.b16 %v2175
      %v2240 = vunpack.c.l.b16 %v2176
      %v2241 = vunpack.c.l.b16 %v2177
      %v2242 = vunpack.c.l.b16 %v2178
      %v2243 = vunpack.c.l.b16 %v2179
      %v2244 = vunpack.c.l.b16 %v2180
      %v2245 = vunpack.c.l.b16 %v2181
      %v2246 = vunpack.c.l.b16 %v2182
      %v2247 = vunpack.c.l.b16 %v2183
      %v2248 = vunpack.c.l.b16 %v2184
      %v2249 = vunpack.c.l.b16 %v2185
      %v2250 = vunpack.c.l.b16 %v2186
      %v2251 = vunpack.c.l.b16 %v2187
      %v2252 = vunpack.c.l.b16 %v2188
      %v2253 = vunpack.c.l.b16 %v2189
      %v2254 = vunpack.c.l.b16 %v2190
      %v2255 = vunpack.c.l.b16 %v2191
      %v2256 = vunpack.c.l.b16 %v2192
      %v2257 = vunpack.c.l.b16 %v2193
      %v2258 = vunpack.c.l.b16 %v2194
      %v2259 = vunpack.c.l.b16 %v2195
      %v2260 = vunpack.c.l.b16 %v2196
      %v2261 = vpack.c.b16 %v2230, %v2229
      %v2262 = vpack.c.b16 %v2232, %v2231
      %v2263 = vpack.c.b16 %v2234, %v2233
      %v2264 = vpack.c.b16 %v2236, %v2235
      %v2265 = vpack.c.b16 %v2238, %v2237
      %v2266 = vpack.c.b16 %v2240, %v2239
      %v2267 = vpack.c.b16 %v2242, %v2241
      %v2268 = vpack.c.b16 %v2244, %v2243
      %v2269 = vpack.c.b16 %v2246, %v2245
      %v2270 = vpack.c.b16 %v2248, %v2247
      %v2271 = vpack.c.b16 %v2250, %v2249
      %v2272 = vpack.c.b16 %v2252, %v2251
      %v2273 = vpack.c.b16 %v2254, %v2253
      %v2274 = vpack.c.b16 %v2256, %v2255
      %v2275 = vpack.c.b16 %v2258, %v2257
      %v2276 = vpack.c.b16 %v2260, %v2259
      %v2278 = vshrl.u32 %v2261, 16
      %v2280 = vrot.slane %v2278, 7
      %v2281 = vshll.u32 %v2261, 16
      %v2283 = vor.u32 %v2280, %v2281
      %v2285 = vshrl.u32 %v2262, 16
      %v2287 = vrot.slane %v2285, 7
      %v2288 = vshll.u32 %v2262, 16
      %v2290 = vor.u32 %v2287, %v2288
      %v2292 = vshrl.u32 %v2263, 16
      %v2294 = vrot.slane %v2292, 7
      %v2295 = vshll.u32 %v2263, 16
      %v2297 = vor.u32 %v2294, %v2295
      %v2299 = vshrl.u32 %v2264, 16
      %v2301 = vrot.slane %v2299, 7
      %v2302 = vshll.u32 %v2264, 16
      %v2304 = vor.u32 %v2301, %v2302
      %v2306 = vshrl.u32 %v2265, 16
      %v2308 = vrot.slane %v2306, 7
      %v2309 = vshll.u32 %v2265, 16
      %v2311 = vor.u32 %v2308, %v2309
      %v2313 = vshrl.u32 %v2266, 16
      %v2315 = vrot.slane %v2313, 7
      %v2316 = vshll.u32 %v2266, 16
      %v2318 = vor.u32 %v2315, %v2316
      %v2320 = vshrl.u32 %v2267, 16
      %v2322 = vrot.slane %v2320, 7
      %v2323 = vshll.u32 %v2267, 16
      %v2325 = vor.u32 %v2322, %v2323
      %v2327 = vshrl.u32 %v2268, 16
      %v2329 = vrot.slane %v2327, 7
      %v2330 = vshll.u32 %v2268, 16
      %v2332 = vor.u32 %v2329, %v2330
      %v2334 = vshrl.u32 %v2269, 16
      %v2336 = vrot.slane %v2334, 7
      %v2337 = vshll.u32 %v2269, 16
      %v2339 = vor.u32 %v2336, %v2337
      %v2341 = vshrl.u32 %v2270, 16
      %v2343 = vrot.slane %v2341, 7
      %v2344 = vshll.u32 %v2270, 16
      %v2346 = vor.u32 %v2343, %v2344
      %v2348 = vshrl.u32 %v2271, 16
      %v2350 = vrot.slane %v2348, 7
      %v2351 = vshll.u32 %v2271, 16
      %v2353 = vor.u32 %v2350, %v2351
      %v2355 = vshrl.u32 %v2272, 16
      %v2357 = vrot.slane %v2355, 7
      %v2358 = vshll.u32 %v2272, 16
      %v2360 = vor.u32 %v2357, %v2358
      %v2362 = vshrl.u32 %v2273, 16
      %v2364 = vrot.slane %v2362, 7
      %v2365 = vshll.u32 %v2273, 16
      %v2367 = vor.u32 %v2364, %v2365
      %v2369 = vshrl.u32 %v2274, 16
      %v2371 = vrot.slane %v2369, 7
      %v2372 = vshll.u32 %v2274, 16
      %v2374 = vor.u32 %v2371, %v2372
      %v2376 = vshrl.u32 %v2275, 16
      %v2378 = vrot.slane %v2376, 7
      %v2379 = vshll.u32 %v2275, 16
      %v2381 = vor.u32 %v2378, %v2379
      %v2383 = vshrl.u32 %v2276, 16
      %v2385 = vrot.slane %v2383, 7
      %v2386 = vshll.u32 %v2276, 16
      %v2388 = vor.u32 %v2385, %v2386
      %v2405 = vsel %vm699, 0, %v2283
      %v2406 = vsel %vm699, 0, %v2290
      %v2407 = vsel %vm699, 0, %v2297
      %v2408 = vsel %vm699, 0, %v2304
      %v2409 = vsel %vm699, 0, %v2311
      %v2410 = vsel %vm699, 0, %v2318
      %v2411 = vsel %vm699, 0, %v2325
      %v2412 = vsel %vm699, 0, %v2332
      %v2413 = vsel %vm699, 0, %v2339
      %v2414 = vsel %vm699, 0, %v2346
      %v2415 = vsel %vm699, 0, %v2353
      %v2416 = vsel %vm699, 0, %v2360
      %v2417 = vsel %vm699, 0, %v2367
      %v2418 = vsel %vm699, 0, %v2374
      %v2419 = vsel %vm699, 0, %v2381
      %v2420 = vsel %vm699, 0, %v2388
      %v2421 = vrot.slane %v2281, 1
      %v2422 = vor.u32 %v2278, %v2421
      %v2423 = vrot.slane %v2288, 1
      %v2424 = vor.u32 %v2285, %v2423
      %v2425 = vrot.slane %v2295, 1
      %v2426 = vor.u32 %v2292, %v2425
      %v2427 = vrot.slane %v2302, 1
      %v2428 = vor.u32 %v2299, %v2427
      %v2429 = vrot.slane %v2309, 1
      %v2430 = vor.u32 %v2306, %v2429
      %v2431 = vrot.slane %v2316, 1
      %v2432 = vor.u32 %v2313, %v2431
      %v2433 = vrot.slane %v2323, 1
      %v2434 = vor.u32 %v2320, %v2433
      %v2435 = vrot.slane %v2330, 1
      %v2436 = vor.u32 %v2327, %v2435
      %v2437 = vrot.slane %v2337, 1
      %v2438 = vor.u32 %v2334, %v2437
      %v2439 = vrot.slane %v2344, 1
      %v2440 = vor.u32 %v2341, %v2439
      %v2441 = vrot.slane %v2351, 1
      %v2442 = vor.u32 %v2348, %v2441
      %v2443 = vrot.slane %v2358, 1
      %v2444 = vor.u32 %v2355, %v2443
      %v2445 = vrot.slane %v2365, 1
      %v2446 = vor.u32 %v2362, %v2445
      %v2447 = vrot.slane %v2372, 1
      %v2448 = vor.u32 %v2369, %v2447
      %v2449 = vrot.slane %v2379, 1
      %v2450 = vor.u32 %v2376, %v2449
      %v2451 = vrot.slane %v2386, 1
      %v2452 = vor.u32 %v2383, %v2451
      %v2469 = vsel %vm766, %v2422, 0
      %v2470 = vsel %vm766, %v2424, 0
      %v2471 = vsel %vm766, %v2426, 0
      %v2472 = vsel %vm766, %v2428, 0
      %v2473 = vsel %vm766, %v2430, 0
      %v2474 = vsel %vm766, %v2432, 0
      %v2475 = vsel %vm766, %v2434, 0
      %v2476 = vsel %vm766, %v2436, 0
      %v2477 = vsel %vm766, %v2438, 0
      %v2478 = vsel %vm766, %v2440, 0
      %v2479 = vsel %vm766, %v2442, 0
      %v2480 = vsel %vm766, %v2444, 0
      %v2481 = vsel %vm766, %v2446, 0
      %v2482 = vsel %vm766, %v2448, 0
      %v2483 = vsel %vm766, %v2450, 0
      %v2484 = vsel %vm766, %v2452, 0
      %s2501 = scalar_lea.vmem %s2, 384
      %v2502 = vld [vmem:[%s2501] sm:$0xf]
      %v2503 = vld [vmem:[%s2501 + $0x4] sm:$0xf]
      %v2504 = vld [vmem:[%s2501 + $0x8] sm:$0xf]
      %v2505 = vld [vmem:[%s2501 + $0xc] sm:$0xf]
      %v2506 = vld [vmem:[%s2501 + $0x10] sm:$0xf]
      %v2507 = vld [vmem:[%s2501 + $0x14] sm:$0xf]
      %v2508 = vld [vmem:[%s2501 + $0x18] sm:$0xf]
      %v2509 = vld [vmem:[%s2501 + $0x1c] sm:$0xf]
      %v2510 = vld [vmem:[%s2501 + $0x20] sm:$0xf]
      %v2511 = vld [vmem:[%s2501 + $0x24] sm:$0xf]
      %v2512 = vld [vmem:[%s2501 + $0x28] sm:$0xf]
      %v2513 = vld [vmem:[%s2501 + $0x2c] sm:$0xf]
      %v2514 = vld [vmem:[%s2501 + $0x30] sm:$0xf]
      %v2515 = vld [vmem:[%s2501 + $0x34] sm:$0xf]
      %v2516 = vld [vmem:[%s2501 + $0x38] sm:$0xf]
      %v2517 = vld [vmem:[%s2501 + $0x3c] sm:$0xf]
      %v2518 = vld [vmem:[%s2501 + $0x40] sm:$0xf]
      %v2519 = vld [vmem:[%s2501 + $0x44] sm:$0xf]
      %v2520 = vld [vmem:[%s2501 + $0x48] sm:$0xf]
      %v2521 = vld [vmem:[%s2501 + $0x4c] sm:$0xf]
      %v2522 = vld [vmem:[%s2501 + $0x50] sm:$0xf]
      %v2523 = vld [vmem:[%s2501 + $0x54] sm:$0xf]
      %v2524 = vld [vmem:[%s2501 + $0x58] sm:$0xf]
      %v2525 = vld [vmem:[%s2501 + $0x5c] sm:$0xf]
      %v2526 = vld [vmem:[%s2501 + $0x60] sm:$0xf]
      %v2527 = vld [vmem:[%s2501 + $0x64] sm:$0xf]
      %v2528 = vld [vmem:[%s2501 + $0x68] sm:$0xf]
      %v2529 = vld [vmem:[%s2501 + $0x6c] sm:$0xf]
      %v2530 = vld [vmem:[%s2501 + $0x70] sm:$0xf]
      %v2531 = vld [vmem:[%s2501 + $0x74] sm:$0xf]
      %v2532 = vld [vmem:[%s2501 + $0x78] sm:$0xf]
      %v2533 = vld [vmem:[%s2501 + $0x7c] sm:$0xf]
      %v2534 = vld [vmem:[%s2501 + $0x80] sm:$0xf]
      %v2535 = vld [vmem:[%s2501 + $0x84] sm:$0xf]
      %v2536 = vld [vmem:[%s2501 + $0x88] sm:$0xf]
      %v2537 = vld [vmem:[%s2501 + $0x8c] sm:$0xf]
      %v2538 = vld [vmem:[%s2501 + $0x90] sm:$0xf]
      %v2539 = vld [vmem:[%s2501 + $0x94] sm:$0xf]
      %v2540 = vld [vmem:[%s2501 + $0x98] sm:$0xf]
      %v2541 = vld [vmem:[%s2501 + $0x9c] sm:$0xf]
      %v2542 = vld [vmem:[%s2501 + $0xa0] sm:$0xf]
      %v2543 = vld [vmem:[%s2501 + $0xa4] sm:$0xf]
      %v2544 = vld [vmem:[%s2501 + $0xa8] sm:$0xf]
      %v2545 = vld [vmem:[%s2501 + $0xac] sm:$0xf]
      %v2546 = vld [vmem:[%s2501 + $0xb0] sm:$0xf]
      %v2547 = vld [vmem:[%s2501 + $0xb4] sm:$0xf]
      %v2548 = vld [vmem:[%s2501 + $0xb8] sm:$0xf]
      %v2549 = vld [vmem:[%s2501 + $0xbc] sm:$0xf]
      %v2598 = vunpack.c.l.b16 %v2502
      %v2599 = vunpack.c.l.b16 %v2503
      %v2600 = vunpack.c.l.b16 %v2504
      %v2601 = vunpack.c.l.b16 %v2505
      %v2602 = vunpack.c.l.b16 %v2506
      %v2603 = vunpack.c.l.b16 %v2507
      %v2604 = vunpack.c.l.b16 %v2508
      %v2605 = vunpack.c.l.b16 %v2509
      %v2606 = vunpack.c.l.b16 %v2510
      %v2607 = vunpack.c.l.b16 %v2511
      %v2608 = vunpack.c.l.b16 %v2512
      %v2609 = vunpack.c.l.b16 %v2513
      %v2610 = vunpack.c.l.b16 %v2514
      %v2611 = vunpack.c.l.b16 %v2515
      %v2612 = vunpack.c.l.b16 %v2516
      %v2613 = vunpack.c.l.b16 %v2517
      %v2614 = vunpack.c.l.b16 %v2518
      %v2615 = vunpack.c.l.b16 %v2519
      %v2616 = vunpack.c.l.b16 %v2520
      %v2617 = vunpack.c.l.b16 %v2521
      %v2618 = vunpack.c.l.b16 %v2522
      %v2619 = vunpack.c.l.b16 %v2523
      %v2620 = vunpack.c.l.b16 %v2524
      %v2621 = vunpack.c.l.b16 %v2525
      %v2622 = vunpack.c.l.b16 %v2526
      %v2623 = vunpack.c.l.b16 %v2527
      %v2624 = vunpack.c.l.b16 %v2528
      %v2625 = vunpack.c.l.b16 %v2529
      %v2626 = vunpack.c.l.b16 %v2530
      %v2627 = vunpack.c.l.b16 %v2531
      %v2628 = vunpack.c.l.b16 %v2532
      %v2629 = vunpack.c.l.b16 %v2533
      %v2630 = vunpack.c.l.b16 %v2534
      %v2631 = vunpack.c.l.b16 %v2535
      %v2632 = vunpack.c.l.b16 %v2536
      %v2633 = vunpack.c.l.b16 %v2537
      %v2634 = vunpack.c.l.b16 %v2538
      %v2635 = vunpack.c.l.b16 %v2539
      %v2636 = vunpack.c.l.b16 %v2540
      %v2637 = vunpack.c.l.b16 %v2541
      %v2638 = vunpack.c.l.b16 %v2542
      %v2639 = vunpack.c.l.b16 %v2543
      %v2640 = vunpack.c.l.b16 %v2544
      %v2641 = vunpack.c.l.b16 %v2545
      %v2642 = vunpack.c.l.b16 %v2546
      %v2643 = vunpack.c.l.b16 %v2547
      %v2644 = vunpack.c.l.b16 %v2548
      %v2645 = vunpack.c.l.b16 %v2549
      %v2646 = vpack.c.b16 %v2599, %v2598
      %v2647 = vpack.c.b16 %v2601, %v2600
      %v2648 = vpack.c.b16 %v2603, %v2602
      %v2649 = vpack.c.b16 %v2605, %v2604
      %v2650 = vpack.c.b16 %v2607, %v2606
      %v2651 = vpack.c.b16 %v2609, %v2608
      %v2652 = vpack.c.b16 %v2611, %v2610
      %v2653 = vpack.c.b16 %v2613, %v2612
      %v2654 = vpack.c.b16 %v2615, %v2614
      %v2655 = vpack.c.b16 %v2617, %v2616
      %v2656 = vpack.c.b16 %v2619, %v2618
      %v2657 = vpack.c.b16 %v2621, %v2620
      %v2658 = vpack.c.b16 %v2623, %v2622
      %v2659 = vpack.c.b16 %v2625, %v2624
      %v2660 = vpack.c.b16 %v2627, %v2626
      %v2661 = vpack.c.b16 %v2629, %v2628
      %v2662 = vpack.c.b16 %v2631, %v2630
      %v2663 = vpack.c.b16 %v2633, %v2632
      %v2664 = vpack.c.b16 %v2635, %v2634
      %v2665 = vpack.c.b16 %v2637, %v2636
      %v2666 = vpack.c.b16 %v2639, %v2638
      %v2667 = vpack.c.b16 %v2641, %v2640
      %v2668 = vpack.c.b16 %v2643, %v2642
      %v2669 = vpack.c.b16 %v2645, %v2644
      %2694 = vmatprep.subr.bf16.mxu0 0
      %2695 = vmatpush1.bf16.msra.mxu0 %v2653
      %2696 = vmatprep.subr.bf16.mxu0 0
      %2697 = vmatpush1.bf16.msra.mxu0 %v2652
      %2698 = vmatprep.subr.bf16.mxu0 0
      %2699 = vmatpush1.bf16.msra.mxu0 %v2651
      %2700 = vmatprep.subr.bf16.mxu0 0
      %2701 = vmatpush1.bf16.msra.mxu0 %v2650
      %2702 = vmatprep.subr.bf16.mxu0 0
      %2703 = vmatpush1.bf16.msra.mxu0 %v2649
      %2704 = vmatprep.subr.bf16.mxu0 0
      %2705 = vmatpush1.bf16.msra.mxu0 %v2648
      %2706 = vmatprep.subr.bf16.mxu0 0
      %2707 = vmatpush1.bf16.msra.mxu0 %v2647
      %2708 = vmatprep.subr.bf16.mxu0 0
      %2709 = vmatpush1.bf16.msra.mxu0 %v2646
      %2710 = vmatprep.subr.bf16.mxu0 0
      %2711 = vmatpush2.bf16.msra.mxu0 %v2661
      %2712 = vmatprep.subr.bf16.mxu0 0
      %2713 = vmatpush2.bf16.msra.mxu0 %v2660
      %2714 = vmatprep.subr.bf16.mxu0 0
      %2715 = vmatpush2.bf16.msra.mxu0 %v2659
      %2716 = vmatprep.subr.bf16.mxu0 0
      %2717 = vmatpush2.bf16.msra.mxu0 %v2658
      %2718 = vmatprep.subr.bf16.mxu0 0
      %2719 = vmatpush2.bf16.msra.mxu0 %v2657
      %2720 = vmatprep.subr.bf16.mxu0 0
      %2721 = vmatpush2.bf16.msra.mxu0 %v2656
      %2722 = vmatprep.subr.bf16.mxu0 0
      %2723 = vmatpush2.bf16.msra.mxu0 %v2655
      %2724 = vmatprep.subr.bf16.mxu0 0
      %2725 = vmatpush2.bf16.msra.mxu0 %v2654
      %2726 = vmatprep.mubr.bf16.mxu0 %v2261
      %2727 = vmatmul.mubr.bf16.gmra.mxu0 %v2405
      %v2728 = vpop.f32.mrf.mxu0
      %v2729 = vadd.f32 0.0, %v2728
      %v2730 = vpop.f32.mrf.mxu0
      %v2731 = vpop.f32.mrf.mxu0
      %v2732 = vadd.f32 0.0, %v2731
      %v2733 = vpop.f32.mrf.mxu0
      %2734 = vmatprep.mubr.bf16.mxu0 %v2262
      %2735 = vmatmul.mubr.bf16.gmra.mxu0 %v2406
      %v2736 = vpop.f32.mrf.mxu0
      %v2737 = vadd.f32 0.0, %v2736
      %v2738 = vpop.f32.mrf.mxu0
      %v2739 = vpop.f32.mrf.mxu0
      %v2740 = vadd.f32 0.0, %v2739
      %v2741 = vpop.f32.mrf.mxu0
      %2742 = vmatprep.mubr.bf16.mxu0 %v2263
      %2743 = vmatmul.mubr.bf16.gmra.mxu0 %v2407
      %v2744 = vpop.f32.mrf.mxu0
      %v2745 = vadd.f32 0.0, %v2744
      %v2746 = vpop.f32.mrf.mxu0
      %v2747 = vpop.f32.mrf.mxu0
      %v2748 = vadd.f32 0.0, %v2747
      %v2749 = vpop.f32.mrf.mxu0
      %2750 = vmatprep.mubr.bf16.mxu0 %v2264
      %2751 = vmatmul.mubr.bf16.gmra.mxu0 %v2408
      %v2752 = vpop.f32.mrf.mxu0
      %v2753 = vadd.f32 0.0, %v2752
      %v2754 = vpop.f32.mrf.mxu0
      %v2755 = vpop.f32.mrf.mxu0
      %v2756 = vadd.f32 0.0, %v2755
      %v2757 = vpop.f32.mrf.mxu0
      %2758 = vmatprep.mubr.bf16.mxu0 %v2265
      %2759 = vmatmul.mubr.bf16.gmra.mxu0 %v2409
      %v2760 = vpop.f32.mrf.mxu0
      %v2761 = vadd.f32 0.0, %v2760
      %v2762 = vpop.f32.mrf.mxu0
      %v2763 = vpop.f32.mrf.mxu0
      %v2764 = vadd.f32 0.0, %v2763
      %v2765 = vpop.f32.mrf.mxu0
      %2766 = vmatprep.mubr.bf16.mxu0 %v2266
      %2767 = vmatmul.mubr.bf16.gmra.mxu0 %v2410
      %v2768 = vpop.f32.mrf.mxu0
      %v2769 = vadd.f32 0.0, %v2768
      %v2770 = vpop.f32.mrf.mxu0
      %v2771 = vpop.f32.mrf.mxu0
      %v2772 = vadd.f32 0.0, %v2771
      %v2773 = vpop.f32.mrf.mxu0
      %2774 = vmatprep.mubr.bf16.mxu0 %v2267
      %2775 = vmatmul.mubr.bf16.gmra.mxu0 %v2411
      %v2776 = vpop.f32.mrf.mxu0
      %v2777 = vadd.f32 0.0, %v2776
      %v2778 = vpop.f32.mrf.mxu0
      %v2779 = vpop.f32.mrf.mxu0
      %v2780 = vadd.f32 0.0, %v2779
      %v2781 = vpop.f32.mrf.mxu0
      %2782 = vmatprep.mubr.bf16.mxu0 %v2268
      %2783 = vmatmul.mubr.bf16.gmra.mxu0 %v2412
      %v2784 = vpop.f32.mrf.mxu0
      %v2785 = vadd.f32 0.0, %v2784
      %v2786 = vpop.f32.mrf.mxu0
      %v2787 = vpop.f32.mrf.mxu0
      %v2788 = vadd.f32 0.0, %v2787
      %v2789 = vpop.f32.mrf.mxu0
      %2790 = vmatprep.mubr.bf16.mxu0 %v2269
      %2791 = vmatmul.mubr.bf16.gmra.mxu0 %v2413
      %v2792 = vpop.f32.mrf.mxu0
      %v2793 = vadd.f32 0.0, %v2792
      %v2794 = vpop.f32.mrf.mxu0
      %v2795 = vpop.f32.mrf.mxu0
      %v2796 = vadd.f32 0.0, %v2795
      %v2797 = vpop.f32.mrf.mxu0
      %2798 = vmatprep.mubr.bf16.mxu0 %v2270
      %2799 = vmatmul.mubr.bf16.gmra.mxu0 %v2414
      %v2800 = vpop.f32.mrf.mxu0
      %v2801 = vadd.f32 0.0, %v2800
      %v2802 = vpop.f32.mrf.mxu0
      %v2803 = vpop.f32.mrf.mxu0
      %v2804 = vadd.f32 0.0, %v2803
      %v2805 = vpop.f32.mrf.mxu0
      %2806 = vmatprep.mubr.bf16.mxu0 %v2271
      %2807 = vmatmul.mubr.bf16.gmra.mxu0 %v2415
      %v2808 = vpop.f32.mrf.mxu0
      %v2809 = vadd.f32 0.0, %v2808
      %v2810 = vpop.f32.mrf.mxu0
      %v2811 = vpop.f32.mrf.mxu0
      %v2812 = vadd.f32 0.0, %v2811
      %v2813 = vpop.f32.mrf.mxu0
      %2814 = vmatprep.mubr.bf16.mxu0 %v2272
      %2815 = vmatmul.mubr.bf16.gmra.mxu0 %v2416
      %v2816 = vpop.f32.mrf.mxu0
      %v2817 = vadd.f32 0.0, %v2816
      %v2818 = vpop.f32.mrf.mxu0
      %v2819 = vpop.f32.mrf.mxu0
      %v2820 = vadd.f32 0.0, %v2819
      %v2821 = vpop.f32.mrf.mxu0
      %2822 = vmatprep.mubr.bf16.mxu0 %v2273
      %2823 = vmatmul.mubr.bf16.gmra.mxu0 %v2417
      %v2824 = vpop.f32.mrf.mxu0
      %v2825 = vadd.f32 0.0, %v2824
      %v2826 = vpop.f32.mrf.mxu0
      %v2827 = vpop.f32.mrf.mxu0
      %v2828 = vadd.f32 0.0, %v2827
      %v2829 = vpop.f32.mrf.mxu0
      %2830 = vmatprep.mubr.bf16.mxu0 %v2274
      %2831 = vmatmul.mubr.bf16.gmra.mxu0 %v2418
      %v2832 = vpop.f32.mrf.mxu0
      %v2833 = vadd.f32 0.0, %v2832
      %v2834 = vpop.f32.mrf.mxu0
      %v2835 = vpop.f32.mrf.mxu0
      %v2836 = vadd.f32 0.0, %v2835
      %v2837 = vpop.f32.mrf.mxu0
      %2838 = vmatprep.mubr.bf16.mxu0 %v2275
      %2839 = vmatmul.mubr.bf16.gmra.mxu0 %v2419
      %v2840 = vpop.f32.mrf.mxu0
      %v2841 = vadd.f32 0.0, %v2840
      %v2842 = vpop.f32.mrf.mxu0
      %v2843 = vpop.f32.mrf.mxu0
      %v2844 = vadd.f32 0.0, %v2843
      %v2845 = vpop.f32.mrf.mxu0
      %2846 = vmatprep.mubr.bf16.mxu0 %v2276
      %2847 = vmatmul.mubr.bf16.gmra.mxu0 %v2420
      %v2848 = vpop.f32.mrf.mxu0
      %v2849 = vadd.f32 0.0, %v2848
      %v2850 = vpop.f32.mrf.mxu0
      %v2851 = vpop.f32.mrf.mxu0
      %v2852 = vadd.f32 0.0, %v2851
      %v2853 = vpop.f32.mrf.mxu0
      %2854 = vdwg.mxu0
      %2855 = vmatprep.subr.bf16.mxu0 0
      %2856 = vmatpush1.bf16.msra.mxu0 %v2669
      %2857 = vmatprep.subr.bf16.mxu0 0
      %2858 = vmatpush1.bf16.msra.mxu0 %v2668
      %2859 = vmatprep.subr.bf16.mxu0 0
      %2860 = vmatpush1.bf16.msra.mxu0 %v2667
      %2861 = vmatprep.subr.bf16.mxu0 0
      %2862 = vmatpush1.bf16.msra.mxu0 %v2666
      %2863 = vmatprep.subr.bf16.mxu0 0
      %2864 = vmatpush1.bf16.msra.mxu0 %v2665
      %2865 = vmatprep.subr.bf16.mxu0 0
      %2866 = vmatpush1.bf16.msra.mxu0 %v2664
      %2867 = vmatprep.subr.bf16.mxu0 0
      %2868 = vmatpush1.bf16.msra.mxu0 %v2663
      %2869 = vmatprep.subr.bf16.mxu0 0
      %2870 = vmatpush1.bf16.msra.mxu0 %v2662
      %2871 = vmatprep.subr.bf16.mxu0 0
      %2872 = vmatpush2.bf16.msra.mxu0 0
      %2873 = vmatprep.subr.bf16.mxu0 0
      %2874 = vmatpush2.bf16.msra.mxu0 0
      %2875 = vmatprep.subr.bf16.mxu0 0
      %2876 = vmatpush2.bf16.msra.mxu0 0
      %2877 = vmatprep.subr.bf16.mxu0 0
      %2878 = vmatpush2.bf16.msra.mxu0 0
      %2879 = vmatprep.subr.bf16.mxu0 0
      %2880 = vmatpush2.bf16.msra.mxu0 0
      %2881 = vmatprep.subr.bf16.mxu0 0
      %2882 = vmatpush2.bf16.msra.mxu0 0
      %2883 = vmatprep.subr.bf16.mxu0 0
      %2884 = vmatpush2.bf16.msra.mxu0 0
      %2885 = vmatprep.subr.bf16.mxu0 0
      %2886 = vmatpush2.bf16.msra.mxu0 0
      %2887 = vmatprep.mubr.bf16.mxu0 0
      %2888 = vmatmul.mubr.bf16.gmra.mxu0 %v2469
      %v2889 = vpop.f32.mrf.mxu0
      %v2890 = vadd.f32 %v2729, %v2889
      %v2891 = vpop.f32.mrf.mxu0
      %v2892 = vpop.f32.mrf.mxu0
      %v2893 = vadd.f32 %v2732, %v2892
      %v2894 = vpop.f32.mrf.mxu0
      %2895 = vmatprep.mubr.bf16.mxu0 0
      %2896 = vmatmul.mubr.bf16.gmra.mxu0 %v2470
      %v2897 = vpop.f32.mrf.mxu0
      %v2898 = vadd.f32 %v2737, %v2897
      %v2899 = vpop.f32.mrf.mxu0
      %v2900 = vpop.f32.mrf.mxu0
      %v2901 = vadd.f32 %v2740, %v2900
      %v2902 = vpop.f32.mrf.mxu0
      %2903 = vmatprep.mubr.bf16.mxu0 0
      %2904 = vmatmul.mubr.bf16.gmra.mxu0 %v2471
      %v2905 = vpop.f32.mrf.mxu0
      %v2906 = vadd.f32 %v2745, %v2905
      %v2907 = vpop.f32.mrf.mxu0
      %v2908 = vpop.f32.mrf.mxu0
      %v2909 = vadd.f32 %v2748, %v2908
      %v2910 = vpop.f32.mrf.mxu0
      %2911 = vmatprep.mubr.bf16.mxu0 0
      %2912 = vmatmul.mubr.bf16.gmra.mxu0 %v2472
      %v2913 = vpop.f32.mrf.mxu0
      %v2914 = vadd.f32 %v2753, %v2913
      %v2915 = vpop.f32.mrf.mxu0
      %v2916 = vpop.f32.mrf.mxu0
      %v2917 = vadd.f32 %v2756, %v2916
      %v2918 = vpop.f32.mrf.mxu0
      %2919 = vmatprep.mubr.bf16.mxu0 0
      %2920 = vmatmul.mubr.bf16.gmra.mxu0 %v2473
      %v2921 = vpop.f32.mrf.mxu0
      %v2922 = vadd.f32 %v2761, %v2921
      %v2923 = vpop.f32.mrf.mxu0
      %v2924 = vpop.f32.mrf.mxu0
      %v2925 = vadd.f32 %v2764, %v2924
      %v2926 = vpop.f32.mrf.mxu0
      %2927 = vmatprep.mubr.bf16.mxu0 0
      %2928 = vmatmul.mubr.bf16.gmra.mxu0 %v2474
      %v2929 = vpop.f32.mrf.mxu0
      %v2930 = vadd.f32 %v2769, %v2929
      %v2931 = vpop.f32.mrf.mxu0
      %v2932 = vpop.f32.mrf.mxu0
      %v2933 = vadd.f32 %v2772, %v2932
      %v2934 = vpop.f32.mrf.mxu0
      %2935 = vmatprep.mubr.bf16.mxu0 0
      %2936 = vmatmul.mubr.bf16.gmra.mxu0 %v2475
      %v2937 = vpop.f32.mrf.mxu0
      %v2938 = vadd.f32 %v2777, %v2937
      %v2939 = vpop.f32.mrf.mxu0
      %v2940 = vpop.f32.mrf.mxu0
      %v2941 = vadd.f32 %v2780, %v2940
      %v2942 = vpop.f32.mrf.mxu0
      %2943 = vmatprep.mubr.bf16.mxu0 0
      %2944 = vmatmul.mubr.bf16.gmra.mxu0 %v2476
      %v2945 = vpop.f32.mrf.mxu0
      %v2946 = vadd.f32 %v2785, %v2945
      %v2947 = vpop.f32.mrf.mxu0
      %v2948 = vpop.f32.mrf.mxu0
      %v2949 = vadd.f32 %v2788, %v2948
      %v2950 = vpop.f32.mrf.mxu0
      %2951 = vmatprep.mubr.bf16.mxu0 0
      %2952 = vmatmul.mubr.bf16.gmra.mxu0 %v2477
      %v2953 = vpop.f32.mrf.mxu0
      %v2954 = vadd.f32 %v2793, %v2953
      %v2955 = vpop.f32.mrf.mxu0
      %v2956 = vpop.f32.mrf.mxu0
      %v2957 = vadd.f32 %v2796, %v2956
      %v2958 = vpop.f32.mrf.mxu0
      %2959 = vmatprep.mubr.bf16.mxu0 0
      %2960 = vmatmul.mubr.bf16.gmra.mxu0 %v2478
      %v2961 = vpop.f32.mrf.mxu0
      %v2962 = vadd.f32 %v2801, %v2961
      %v2963 = vpop.f32.mrf.mxu0
      %v2964 = vpop.f32.mrf.mxu0
      %v2965 = vadd.f32 %v2804, %v2964
      %v2966 = vpop.f32.mrf.mxu0
      %2967 = vmatprep.mubr.bf16.mxu0 0
      %2968 = vmatmul.mubr.bf16.gmra.mxu0 %v2479
      %v2969 = vpop.f32.mrf.mxu0
      %v2970 = vadd.f32 %v2809, %v2969
      %v2971 = vpop.f32.mrf.mxu0
      %v2972 = vpop.f32.mrf.mxu0
      %v2973 = vadd.f32 %v2812, %v2972
      %v2974 = vpop.f32.mrf.mxu0
      %2975 = vmatprep.mubr.bf16.mxu0 0
      %2976 = vmatmul.mubr.bf16.gmra.mxu0 %v2480
      %v2977 = vpop.f32.mrf.mxu0
      %v2978 = vadd.f32 %v2817, %v2977
      %v2979 = vpop.f32.mrf.mxu0
      %v2980 = vpop.f32.mrf.mxu0
      %v2981 = vadd.f32 %v2820, %v2980
      %v2982 = vpop.f32.mrf.mxu0
      %2983 = vmatprep.mubr.bf16.mxu0 0
      %2984 = vmatmul.mubr.bf16.gmra.mxu0 %v2481
      %v2985 = vpop.f32.mrf.mxu0
      %v2986 = vadd.f32 %v2825, %v2985
      %v2987 = vpop.f32.mrf.mxu0
      %v2988 = vpop.f32.mrf.mxu0
      %v2989 = vadd.f32 %v2828, %v2988
      %v2990 = vpop.f32.mrf.mxu0
      %2991 = vmatprep.mubr.bf16.mxu0 0
      %2992 = vmatmul.mubr.bf16.gmra.mxu0 %v2482
      %v2993 = vpop.f32.mrf.mxu0
      %v2994 = vadd.f32 %v2833, %v2993
      %v2995 = vpop.f32.mrf.mxu0
      %v2996 = vpop.f32.mrf.mxu0
      %v2997 = vadd.f32 %v2836, %v2996
      %v2998 = vpop.f32.mrf.mxu0
      %2999 = vmatprep.mubr.bf16.mxu0 0
      %3000 = vmatmul.mubr.bf16.gmra.mxu0 %v2483
      %v3001 = vpop.f32.mrf.mxu0
      %v3002 = vadd.f32 %v2841, %v3001
      %v3003 = vpop.f32.mrf.mxu0
      %v3004 = vpop.f32.mrf.mxu0
      %v3005 = vadd.f32 %v2844, %v3004
      %v3006 = vpop.f32.mrf.mxu0
      %3007 = vmatprep.mubr.bf16.mxu0 0
      %3008 = vmatmul.mubr.bf16.gmra.mxu0 %v2484
      %v3009 = vpop.f32.mrf.mxu0
      %v3010 = vadd.f32 %v2849, %v3009
      %v3011 = vpop.f32.mrf.mxu0
      %v3012 = vpop.f32.mrf.mxu0
      %v3013 = vadd.f32 %v2852, %v3012
      %v3014 = vpop.f32.mrf.mxu0
      %3015 = vdwg.mxu0
      %v3016 = vadd.f32 %v2038, %v2890
      %v3017 = vadd.f32 %v2041, %v2893
      %v3018 = vadd.f32 %v2046, %v2898
      %v3019 = vadd.f32 %v2049, %v2901
      %v3020 = vadd.f32 %v2054, %v2906
      %v3021 = vadd.f32 %v2057, %v2909
      %v3022 = vadd.f32 %v2062, %v2914
      %v3023 = vadd.f32 %v2065, %v2917
      %v3024 = vadd.f32 %v2070, %v2922
      %v3025 = vadd.f32 %v2073, %v2925
      %v3026 = vadd.f32 %v2078, %v2930
      %v3027 = vadd.f32 %v2081, %v2933
      %v3028 = vadd.f32 %v2086, %v2938
      %v3029 = vadd.f32 %v2089, %v2941
      %v3030 = vadd.f32 %v2094, %v2946
      %v3031 = vadd.f32 %v2097, %v2949
      %v3032 = vadd.f32 %v2102, %v2954
      %v3033 = vadd.f32 %v2105, %v2957
      %v3034 = vadd.f32 %v2110, %v2962
      %v3035 = vadd.f32 %v2113, %v2965
      %v3036 = vadd.f32 %v2118, %v2970
      %v3037 = vadd.f32 %v2121, %v2973
      %v3038 = vadd.f32 %v2126, %v2978
      %v3039 = vadd.f32 %v2129, %v2981
      %v3040 = vadd.f32 %v2134, %v2986
      %v3041 = vadd.f32 %v2137, %v2989
      %v3042 = vadd.f32 %v2142, %v2994
      %v3043 = vadd.f32 %v2145, %v2997
      %v3044 = vadd.f32 %v2150, %v3002
      %v3045 = vadd.f32 %v2153, %v3005
      %v3046 = vadd.f32 %v2158, %v3010
      %v3047 = vadd.f32 %v2161, %v3013
      %v3048 = vpack.c.bf16 %v3017, %v3016
      %v3049 = vpack.c.bf16 %v3019, %v3018
      %v3050 = vpack.c.bf16 %v3021, %v3020
      %v3051 = vpack.c.bf16 %v3023, %v3022
      %v3052 = vpack.c.bf16 %v3025, %v3024
      %v3053 = vpack.c.bf16 %v3027, %v3026
      %v3054 = vpack.c.bf16 %v3029, %v3028
      %v3055 = vpack.c.bf16 %v3031, %v3030
      %v3056 = vpack.c.bf16 %v3033, %v3032
      %v3057 = vpack.c.bf16 %v3035, %v3034
      %v3058 = vpack.c.bf16 %v3037, %v3036
      %v3059 = vpack.c.bf16 %v3039, %v3038
      %v3060 = vpack.c.bf16 %v3041, %v3040
      %v3061 = vpack.c.bf16 %v3043, %v3042
      %v3062 = vpack.c.bf16 %v3045, %v3044
      %v3063 = vpack.c.bf16 %v3047, %v3046
      %v3080 = vunpack.c.l.b16 %v3048
      %v3081 = vunpack.c.h.b16 %v3048
      %v3082 = vunpack.c.l.b16 %v3049
      %v3083 = vunpack.c.h.b16 %v3049
      %v3084 = vunpack.c.l.b16 %v3050
      %v3085 = vunpack.c.h.b16 %v3050
      %v3086 = vunpack.c.l.b16 %v3051
      %v3087 = vunpack.c.h.b16 %v3051
      %v3088 = vunpack.c.l.b16 %v3052
      %v3089 = vunpack.c.h.b16 %v3052
      %v3090 = vunpack.c.l.b16 %v3053
      %v3091 = vunpack.c.h.b16 %v3053
      %v3092 = vunpack.c.l.b16 %v3054
      %v3093 = vunpack.c.h.b16 %v3054
      %v3094 = vunpack.c.l.b16 %v3055
      %v3095 = vunpack.c.h.b16 %v3055
      %v3096 = vunpack.c.l.b16 %v3056
      %v3097 = vunpack.c.h.b16 %v3056
      %v3098 = vunpack.c.l.b16 %v3057
      %v3099 = vunpack.c.h.b16 %v3057
      %v3100 = vunpack.c.l.b16 %v3058
      %v3101 = vunpack.c.h.b16 %v3058
      %v3102 = vunpack.c.l.b16 %v3059
      %v3103 = vunpack.c.h.b16 %v3059
      %v3104 = vunpack.c.l.b16 %v3060
      %v3105 = vunpack.c.h.b16 %v3060
      %v3106 = vunpack.c.l.b16 %v3061
      %v3107 = vunpack.c.h.b16 %v3061
      %v3108 = vunpack.c.l.b16 %v3062
      %v3109 = vunpack.c.h.b16 %v3062
      %v3110 = vunpack.c.l.b16 %v3063
      %v3111 = vunpack.c.h.b16 %v3063
      %v3112 = vpack.c.b16 %v3080, %v3080
      %v3113 = vpack.c.b16 %v3081, %v3081
      %v3114 = vpack.c.b16 %v3082, %v3082
      %v3115 = vpack.c.b16 %v3083, %v3083
      %v3116 = vpack.c.b16 %v3084, %v3084
      %v3117 = vpack.c.b16 %v3085, %v3085
      %v3118 = vpack.c.b16 %v3086, %v3086
      %v3119 = vpack.c.b16 %v3087, %v3087
      %v3120 = vpack.c.b16 %v3088, %v3088
      %v3121 = vpack.c.b16 %v3089, %v3089
      %v3122 = vpack.c.b16 %v3090, %v3090
      %v3123 = vpack.c.b16 %v3091, %v3091
      %v3124 = vpack.c.b16 %v3092, %v3092
      %v3125 = vpack.c.b16 %v3093, %v3093
      %v3126 = vpack.c.b16 %v3094, %v3094
      %v3127 = vpack.c.b16 %v3095, %v3095
      %v3128 = vpack.c.b16 %v3096, %v3096
      %v3129 = vpack.c.b16 %v3097, %v3097
      %v3130 = vpack.c.b16 %v3098, %v3098
      %v3131 = vpack.c.b16 %v3099, %v3099
      %v3132 = vpack.c.b16 %v3100, %v3100
      %v3133 = vpack.c.b16 %v3101, %v3101
      %v3134 = vpack.c.b16 %v3102, %v3102
      %v3135 = vpack.c.b16 %v3103, %v3103
      %v3136 = vpack.c.b16 %v3104, %v3104
      %v3137 = vpack.c.b16 %v3105, %v3105
      %v3138 = vpack.c.b16 %v3106, %v3106
      %v3139 = vpack.c.b16 %v3107, %v3107
      %v3140 = vpack.c.b16 %v3108, %v3108
      %v3141 = vpack.c.b16 %v3109, %v3109
      %v3142 = vpack.c.b16 %v3110, %v3110
      %v3143 = vpack.c.b16 %v3111, %v3111
      %3176 = vst [vmem:[%s363] sm:$0xf] %v3112
      %3177 = vst [vmem:[%s363 + $0x4] sm:$0xf] %v3113
      %3178 = vst [vmem:[%s363 + $0x8] sm:$0xf] %v3114
      %3179 = vst [vmem:[%s363 + $0xc] sm:$0xf] %v3115
      %3180 = vst [vmem:[%s363 + $0x10] sm:$0xf] %v3116
      %3181 = vst [vmem:[%s363 + $0x14] sm:$0xf] %v3117
      %3182 = vst [vmem:[%s363 + $0x18] sm:$0xf] %v3118
      %3183 = vst [vmem:[%s363 + $0x1c] sm:$0xf] %v3119
      %3184 = vst [vmem:[%s363 + $0x20] sm:$0xf] %v3120
      %3185 = vst [vmem:[%s363 + $0x24] sm:$0xf] %v3121
      %3186 = vst [vmem:[%s363 + $0x28] sm:$0xf] %v3122
      %3187 = vst [vmem:[%s363 + $0x2c] sm:$0xf] %v3123
      %3188 = vst [vmem:[%s363 + $0x30] sm:$0xf] %v3124
      %3189 = vst [vmem:[%s363 + $0x34] sm:$0xf] %v3125
      %3190 = vst [vmem:[%s363 + $0x38] sm:$0xf] %v3126
      %3191 = vst [vmem:[%s363 + $0x3c] sm:$0xf] %v3127
      %3192 = vst [vmem:[%s363 + $0x40] sm:$0xf] %v3128
      %3193 = vst [vmem:[%s363 + $0x44] sm:$0xf] %v3129
      %3194 = vst [vmem:[%s363 + $0x48] sm:$0xf] %v3130
      %3195 = vst [vmem:[%s363 + $0x4c] sm:$0xf] %v3131
      %3196 = vst [vmem:[%s363 + $0x50] sm:$0xf] %v3132
      %3197 = vst [vmem:[%s363 + $0x54] sm:$0xf] %v3133
      %3198 = vst [vmem:[%s363 + $0x58] sm:$0xf] %v3134
      %3199 = vst [vmem:[%s363 + $0x5c] sm:$0xf] %v3135
      %3200 = vst [vmem:[%s363 + $0x60] sm:$0xf] %v3136
      %3201 = vst [vmem:[%s363 + $0x64] sm:$0xf] %v3137
      %3202 = vst [vmem:[%s363 + $0x68] sm:$0xf] %v3138
      %3203 = vst [vmem:[%s363 + $0x6c] sm:$0xf] %v3139
      %3204 = vst [vmem:[%s363 + $0x70] sm:$0xf] %v3140
      %3205 = vst [vmem:[%s363 + $0x74] sm:$0xf] %v3141
      %3206 = vst [vmem:[%s363 + $0x78] sm:$0xf] %v3142
      %3207 = vst [vmem:[%s363 + $0x7c] sm:$0xf] %v3143
      %p3208 = scmp.eq.s32.totalorder %s23, 0
      // Predicated region
      $region41: #{double_conv_forward.3} parent=39 // pred_check
        %p3209 = pneg %p3208
      $region42: #{double_conv_forward.3} parent=39 // pred_check_branch
        %3211 = sbr.rel (%p3209) target = $region44
      $region43: #{double_conv_forward.3} parent=39 // pred_region
        %3212 = vst [vmem:[%s368] sm:$0x3] 0.0
      $region44: #{double_conv_forward.3} parent=39 // pred_fallthru
        _
      %v3213 = vadd.f32 %v3016, %v3017
      %v3214 = vadd.f32 %v3213, %v3018
      %v3215 = vadd.f32 %v3214, %v3019
      %v3216 = vadd.f32 %v3215, %v3020
      %v3217 = vadd.f32 %v3216, %v3021
      %v3218 = vadd.f32 %v3217, %v3022
      %v3219 = vadd.f32 %v3218, %v3023
      %v3220 = vadd.f32 %v3219, %v3024
      %v3221 = vadd.f32 %v3220, %v3025
      %v3222 = vadd.f32 %v3221, %v3026
      %v3223 = vadd.f32 %v3222, %v3027
      %v3224 = vadd.f32 %v3223, %v3028
      %v3225 = vadd.f32 %v3224, %v3029
      %v3226 = vadd.f32 %v3225, %v3030
      %v3227 = vadd.f32 %v3226, %v3031
      %v3228 = vadd.f32 %v3227, %v3032
      %v3229 = vadd.f32 %v3228, %v3033
      %v3230 = vadd.f32 %v3229, %v3034
      %v3231 = vadd.f32 %v3230, %v3035
      %v3232 = vadd.f32 %v3231, %v3036
      %v3233 = vadd.f32 %v3232, %v3037
      %v3234 = vadd.f32 %v3233, %v3038
      %v3235 = vadd.f32 %v3234, %v3039
      %v3236 = vadd.f32 %v3235, %v3040
      %v3237 = vadd.f32 %v3236, %v3041
      %v3238 = vadd.f32 %v3237, %v3042
      %v3239 = vadd.f32 %v3238, %v3043
      %v3240 = vadd.f32 %v3239, %v3044
      %v3241 = vadd.f32 %v3240, %v3045
      %v3242 = vadd.f32 %v3241, %v3046
      %v3243 = vadd.f32 %v3242, %v3047
      %v3244 = vrot.slane %v3243, 4
      %v3245 = vadd.f32 %v3243, %v3244
      %v3246 = vrot.slane %v3245, 2
      %v3247 = vadd.f32 %v3245, %v3246
      %v3248 = vrot.slane %v3247, 1
      %v3249 = vadd.f32 %v3247, %v3248
      %v3250 = vmul.f32 %v3016, %v3016
      %v3251 = vmul.f32 %v3017, %v3017
      %v3252 = vmul.f32 %v3018, %v3018
      %v3253 = vmul.f32 %v3019, %v3019
      %v3254 = vmul.f32 %v3020, %v3020
      %v3255 = vmul.f32 %v3021, %v3021
      %v3256 = vmul.f32 %v3022, %v3022
      %v3257 = vmul.f32 %v3023, %v3023
      %v3258 = vmul.f32 %v3024, %v3024
      %v3259 = vmul.f32 %v3025, %v3025
      %v3260 = vmul.f32 %v3026, %v3026
      %v3261 = vmul.f32 %v3027, %v3027
      %v3262 = vmul.f32 %v3028, %v3028
      %v3263 = vmul.f32 %v3029, %v3029
      %v3264 = vmul.f32 %v3030, %v3030
      %v3265 = vmul.f32 %v3031, %v3031
      %v3266 = vmul.f32 %v3032, %v3032
      %v3267 = vmul.f32 %v3033, %v3033
      %v3268 = vmul.f32 %v3034, %v3034
      %v3269 = vmul.f32 %v3035, %v3035
      %v3270 = vmul.f32 %v3036, %v3036
      %v3271 = vmul.f32 %v3037, %v3037
      %v3272 = vmul.f32 %v3038, %v3038
      %v3273 = vmul.f32 %v3039, %v3039
      %v3274 = vmul.f32 %v3040, %v3040
      %v3275 = vmul.f32 %v3041, %v3041
      %v3276 = vmul.f32 %v3042, %v3042
      %v3277 = vmul.f32 %v3043, %v3043
      %v3278 = vmul.f32 %v3044, %v3044
      %v3279 = vmul.f32 %v3045, %v3045
      %v3280 = vmul.f32 %v3046, %v3046
      %v3281 = vmul.f32 %v3047, %v3047
      %v3282 = vadd.f32 %v3250, %v3251
      %v3283 = vadd.f32 %v3282, %v3252
      %v3284 = vadd.f32 %v3283, %v3253
      %v3285 = vadd.f32 %v3284, %v3254
      %v3286 = vadd.f32 %v3285, %v3255
      %v3287 = vadd.f32 %v3286, %v3256
      %v3288 = vadd.f32 %v3287, %v3257
      %v3289 = vadd.f32 %v3288, %v3258
      %v3290 = vadd.f32 %v3289, %v3259
      %v3291 = vadd.f32 %v3290, %v3260
      %v3292 = vadd.f32 %v3291, %v3261
      %v3293 = vadd.f32 %v3292, %v3262
      %v3294 = vadd.f32 %v3293, %v3263
      %v3295 = vadd.f32 %v3294, %v3264
      %v3296 = vadd.f32 %v3295, %v3265
      %v3297 = vadd.f32 %v3296, %v3266
      %v3298 = vadd.f32 %v3297, %v3267
      %v3299 = vadd.f32 %v3298, %v3268
      %v3300 = vadd.f32 %v3299, %v3269
      %v3301 = vadd.f32 %v3300, %v3270
      %v3302 = vadd.f32 %v3301, %v3271
      %v3303 = vadd.f32 %v3302, %v3272
      %v3304 = vadd.f32 %v3303, %v3273
      %v3305 = vadd.f32 %v3304, %v3274
      %v3306 = vadd.f32 %v3305, %v3275
      %v3307 = vadd.f32 %v3306, %v3276
      %v3308 = vadd.f32 %v3307, %v3277
      %v3309 = vadd.f32 %v3308, %v3278
      %v3310 = vadd.f32 %v3309, %v3279
      %v3311 = vadd.f32 %v3310, %v3280
      %v3312 = vadd.f32 %v3311, %v3281
      %v3313 = vrot.slane %v3312, 4
      %v3314 = vadd.f32 %v3312, %v3313
      %v3315 = vrot.slane %v3314, 2
      %v3316 = vadd.f32 %v3314, %v3315
      %v3317 = vrot.slane %v3316, 1
      %v3318 = vadd.f32 %v3316, %v3317
      %v3319 = vld [vmem:[%s368] sm:$0x3]
      %vm3320 = vcmask 1040384
      %v3321 = vsel %vm3320, %v3249, %v3318
      %v3322 = vadd.f32 %v3319, %v3321
      %3323 = vst [vmem:[%s368] sm:$0x3] %v3322
      %s3324 = smul.u32 16, %s23
      %p3325 = scmp.lt.s32.totalorder %s22, 1
      %s3326 = scalar_select %p3325, %s22, 1
      %p3327 = scmp.lt.s32.totalorder %s3324, 15
      %s3328 = scalar_select %p3327, %s3324, 15
      %s3329 = smul.addr %s3328, 2
      %s3330 = smul.addr %s3326, 32
      %s3331 = sadd.s32 %s3329, %s3330
      %s3332 = smul.addr %s3331, 4
      %s3333 = scalar_lea.vmem %s5, %s3332
      %p3334 = scmp.lt.s32.totalorder %s22, 1
      %s3335 = scalar_select %p3334, %s22, 1
      %s3336 = smul.addr %s3335, 2
      %s3337 = scalar_lea.vmem %s6, %s3336
      // Predicated region
      $region45: #{double_conv_forward.3} parent=39 // pred_check
        %p3338 = pneg %p177
      $region46: #{double_conv_forward.3} parent=39 // pred_check_branch
        %3340 = sbr.rel (%p3338) target = $region48
      $region47: #{double_conv_forward.3} parent=39 // pred_region
        %s3341 = smul.u32 16, %s23
      $region48: #{double_conv_forward.3} parent=39 // pred_fallthru
        _
      // Predicated region
      $region49: #{double_conv_forward.3} parent=39 // pred_check
        %p3342 = pneg %p203
      $region50: #{double_conv_forward.3} parent=39 // pred_check_branch
        %3344 = sbr.rel (%p3342) target = $region52
      $region51: #{double_conv_forward.3} parent=39 // pred_region
        _
      $region52: #{double_conv_forward.3} parent=39 // pred_fallthru
        _
    $region40: #{double_conv_forward.3} parent=5 // pred_fallthru
      _
    %p3345 = scmp.le.s32.totalorder 2, %s13
    // Predicated region
    $region53: #{double_conv_forward.3} parent=5 // pred_check
      %p3346 = pneg %p3345
    $region54: #{double_conv_forward.3} parent=5 // pred_check_branch
      %3348 = sbr.rel (%p3346) target = $region56
    $region55: #{double_conv_forward.3} parent=5 // pred_region
      %s3349 = ssub.s32 %s13, 2
      // Predicated region
      $region57: #{double_conv_forward.3} parent=55 // pred_check
        %p3350 = pneg %p183
      $region58: #{double_conv_forward.3} parent=55 // pred_check_branch
        %3352 = sbr.rel (%p3350) target = $region60
      $region59: #{double_conv_forward.3} parent=55 // pred_region
        %s3353 = smul.u32 16, %s25
        %p3354 = scmp.lt.s32.totalorder %s24, 1
        %s3355 = scalar_select %p3354, %s24, 1
        %p3356 = scmp.lt.s32.totalorder %s3353, 15
        %s3357 = scalar_select %p3356, %s3353, 15
        %s3358 = smul.addr %s3357, 2
        %s3359 = smul.addr %s3355, 32
        %s3360 = sadd.s32 %s3358, %s3359
        %s3361 = smul.addr %s3360, 4
        %s3362 = scalar_lea.vmem %s5, %s3361
      $region60: #{double_conv_forward.3} parent=55 // pred_fallthru
        _
      // Predicated region
      $region61: #{double_conv_forward.3} parent=55 // pred_check
        %p3363 = pneg %p209
      $region62: #{double_conv_forward.3} parent=55 // pred_check_branch
        %3365 = sbr.rel (%p3363) target = $region64
      $region63: #{double_conv_forward.3} parent=55 // pred_region
        %p3366 = scmp.lt.s32.totalorder %s24, 1
        %s3367 = scalar_select %p3366, %s24, 1
        %s3368 = smul.addr %s3367, 2
        %s3369 = scalar_lea.vmem %s6, %s3368
      $region64: #{double_conv_forward.3} parent=55 // pred_fallthru
        _
    $region56: #{double_conv_forward.3} parent=5 // pred_fallthru
      _
  $region6: #{double_conv_forward.3} parent=0 // loop_footer
    %s17 = sadd.s32 1, %s13
  $region7: #{double_conv_forward.3} parent=0 // loop_footer_branch
    %12 = sbr.rel target = $region3
  $region8: #{double_conv_forward.3} parent=0 // loop_exit
    _

// kernel: double_conv_forward.4
$region0: #{double_conv_forward.4}
  #allocation0 [shape = 'u32[]', space=smem, size = 0x4, offset = 0x4, fixed_abs, tag = 'smem constant byte address 0x4 - core index']
  #allocation1 [shape = 'u32[144,128]{1,0:T(1,128)}', space=vmem, size = 0x12000, scoped, tag = 'internal scratch']
  #allocation2 [shape = 'bf16[18,16,128]{2,1,0:T(8,128)(2,1)}', space=vmem, size = 0x12000, scoped, tag = 'scratch operand']
  %s0 = inlined_call_operand.vmem [shape: bf16[2,16,16,128], index: 0, kind: input, shape index: {}, may-alias: {0,1}]
  %s1 = inlined_call_operand.vmem [shape: bf16[2,16,16,128], index: 1, kind: input, shape index: {}, may-alias: {0,1}]
  %s2 = inlined_call_operand.vmem [shape: bf16[3,384,128], index: 2, kind: input, shape index: {}]
  %s3 = inlined_call_operand.vmem [shape: f32[1,128], index: 3, kind: input, shape index: {}]
  %s4 = inlined_call_operand.vmem [shape: f32[1,128], index: 4, kind: input, shape index: {}]
  %s5 = inlined_call_operand.vmem [shape: bf16[2,16,16,128], index: 5, kind: output, shape index: {0}]
  %s6 = inlined_call_operand.vmem [shape: f32[2,2,128], index: 6, kind: output, shape index: {1}]
  %7 = xla_tuple %s5, %s6
  %s8 = sld [smem:[#allocation0]]
  $region65: #{double_conv_forward.4} parent=0
    _
  %s10 = ssub.s32 1, %s8
  %s11 = scalar_select 0, %s10, %s8
  loop: start=0, step=1, limit=4
  $region2: #{double_conv_forward.4} parent=0 // loop_pre_header
    _
  $region3: #{double_conv_forward.4} parent=0 // loop_header
    %s13 = sphi 0, %s17
    %p14 = scmp.ge.s32.totalorder %s13, 4
    %s20 = sphi 0, %s32
    %s21 = sphi 0, %s28
    %s22 = sphi 0, %s20
    %s23 = sphi 0, %s21
    %s24 = sphi 0, %s22
    %s25 = sphi 0, %s23
    %s37 = sphi 0, %s39
    %s40 = sphi 0, %s37
    %s41 = sphi 0, %s40
    %s57 = sphi 0, %s41
    %s73 = sphi 0, %s75
    %s76 = sphi 0, %s73
    %s77 = sphi 0, %s76
    %s93 = sphi 0, %s77
    %s97 = sphi 0, %s97
    %s99 = sphi 0, %s97
    %s100 = sphi 0, %s99
    %s114 = sphi 0, %s100
    %s118 = sphi 0, %s118
    %s120 = sphi 0, %s118
    %s121 = sphi 0, %s120
    %s135 = sphi 0, %s121
    %s139 = sphi 0, %s139
    %s141 = sphi 0, %s139
    %s142 = sphi 0, %s141
    %s156 = sphi 0, %s142
    %s164 = sphi 0, %s166
    %s167 = sphi 0, %s164
    %s168 = sphi 0, %s167
    %s184 = sphi 0, %s168
    %s190 = sphi 0, %s192
    %s193 = sphi 0, %s190
    %s194 = sphi 0, %s193
    %s210 = sphi 0, %s194
  $region4: #{double_conv_forward.4} parent=0 // loop_header_branch
    %16 = sbr.rel (%p14) target = $region8
  $region5: #{double_conv_forward.4} parent=0 // loop_body
    %s18 = ssub.s32 %s13, 1
    %s19 = ssub.s32 %s13, 2
    %s26 = sadd.s32 1, %s21
    %p27 = scmp.ge.s32.totalorder %s26, 1
    %s28 = scalar_select %p27, 0, %s26
    %s29 = sadd.s32 1, %s20
    %s30 = scalar_select %p27, %s29, %s20
    %p31 = scmp.ge.s32.totalorder %s30, 2
    %s32 = scalar_select %p31, 0, %s30
    %s33 = ssub.s32 %s20, %s32
    %s34 = ssub.s32 %s21, %s28
    %s35 = sor.u32 %s33, %s34
    %p36 = scmp.eq.s32.totalorder %s35, 0
    %s38 = sadd.s32 %s37, 1
    %s39 = scalar_select %p36, %s37, %s38
    %p42 = pneg %p36
    %p43 = scmp.eq.s32.totalorder %s13, 1
    %p44 = por %p42, %p43
    %p45 = scmp.ne.s32.totalorder %s37, %s40
    %p46 = scmp.eq.s32.totalorder %s13, 0
    %p47 = por %p45, %p46
    %p48 = scmp.ne.s32.totalorder %s37, %s40
    %p49 = scmp.eq.s32.totalorder %s18, 1
    %p50 = por %p48, %p49
    %p51 = scmp.ne.s32.totalorder %s40, %s41
    %p52 = scmp.eq.s32.totalorder %s18, 0
    %p53 = por %p51, %p52
    %p54 = scmp.ne.s32.totalorder %s40, %s41
    %p55 = scmp.eq.s32.totalorder %s19, 1
    %p56 = por %p54, %p55
    %p58 = scmp.ne.s32.totalorder %s41, %s57
    %p59 = scmp.eq.s32.totalorder %s19, 0
    %p60 = por %p58, %p59
    %s61 = sadd.s32 %s21, 1
    %s62 = smul.u32 %s61, 16
    %p63 = scmp.lt.s32.totalorder %s62, 15
    %s64 = scalar_select %p63, %s62, 15
    %s65 = sadd.s32 %s28, 1
    %s66 = smul.u32 %s65, 16
    %p67 = scmp.lt.s32.totalorder %s66, 15
    %s68 = scalar_select %p67, %s66, 15
    %s69 = ssub.s32 %s20, %s32
    %s70 = ssub.s32 %s64, %s68
    %s71 = sor.u32 %s69, %s70
    %p72 = scmp.eq.s32.totalorder %s71, 0
    %s74 = sadd.s32 %s73, 1
    %s75 = scalar_select %p72, %s73, %s74
    %p78 = pneg %p72
    %p79 = scmp.eq.s32.totalorder %s13, 1
    %p80 = por %p78, %p79
    %p81 = scmp.ne.s32.totalorder %s73, %s76
    %p82 = scmp.eq.s32.totalorder %s13, 0
    %p83 = por %p81, %p82
    %p84 = scmp.ne.s32.totalorder %s73, %s76
    %p85 = scmp.eq.s32.totalorder %s18, 1
    %p86 = por %p84, %p85
    %p87 = scmp.ne.s32.totalorder %s76, %s77
    %p88 = scmp.eq.s32.totalorder %s18, 0
    %p89 = por %p87, %p88
    %p90 = scmp.ne.s32.totalorder %s76, %s77
    %p91 = scmp.eq.s32.totalorder %s19, 1
    %p92 = por %p90, %p91
    %p94 = scmp.ne.s32.totalorder %s77, %s93
    %p95 = scmp.eq.s32.totalorder %s19, 0
    %p96 = por %p94, %p95
    %s98 = sadd.s32 %s97, 1
    %p101 = scmp.eq.s32.totalorder %s13, 1
    %p102 = scmp.ne.s32.totalorder %s97, %s99
    %p103 = scmp.eq.s32.totalorder %s13, 0
    %p104 = por %p102, %p103
    %p105 = scmp.ne.s32.totalorder %s97, %s99
    %p106 = scmp.eq.s32.totalorder %s18, 1
    %p107 = por %p105, %p106
    %p108 = scmp.ne.s32.totalorder %s99, %s100
    %p109 = scmp.eq.s32.totalorder %s18, 0
    %p110 = por %p108, %p109
    %p111 = scmp.ne.s32.totalorder %s99, %s100
    %p112 = scmp.eq.s32.totalorder %s19, 1
    %p113 = por %p111, %p112
    %p115 = scmp.ne.s32.totalorder %s100, %s114
    %p116 = scmp.eq.s32.totalorder %s19, 0
    %p117 = por %p115, %p116
    %s119 = sadd.s32 %s118, 1
    %p122 = scmp.eq.s32.totalorder %s13, 1
    %p123 = scmp.ne.s32.totalorder %s118, %s120
    %p124 = scmp.eq.s32.totalorder %s13, 0
    %p125 = por %p123, %p124
    %p126 = scmp.ne.s32.totalorder %s118, %s120
    %p127 = scmp.eq.s32.totalorder %s18, 1
    %p128 = por %p126, %p127
    %p129 = scmp.ne.s32.totalorder %s120, %s121
    %p130 = scmp.eq.s32.totalorder %s18, 0
    %p131 = por %p129, %p130
    %p132 = scmp.ne.s32.totalorder %s120, %s121
    %p133 = scmp.eq.s32.totalorder %s19, 1
    %p134 = por %p132, %p133
    %p136 = scmp.ne.s32.totalorder %s121, %s135
    %p137 = scmp.eq.s32.totalorder %s19, 0
    %p138 = por %p136, %p137
    %s140 = sadd.s32 %s139, 1
    %p143 = scmp.eq.s32.totalorder %s13, 1
    %p144 = scmp.ne.s32.totalorder %s139, %s141
    %p145 = scmp.eq.s32.totalorder %s13, 0
    %p146 = por %p144, %p145
    %p147 = scmp.ne.s32.totalorder %s139, %s141
    %p148 = scmp.eq.s32.totalorder %s18, 1
    %p149 = por %p147, %p148
    %p150 = scmp.ne.s32.totalorder %s141, %s142
    %p151 = scmp.eq.s32.totalorder %s18, 0
    %p152 = por %p150, %p151
    %p153 = scmp.ne.s32.totalorder %s141, %s142
    %p154 = scmp.eq.s32.totalorder %s19, 1
    %p155 = por %p153, %p154
    %p157 = scmp.ne.s32.totalorder %s142, %s156
    %p158 = scmp.eq.s32.totalorder %s19, 0
    %p159 = por %p157, %p158
    %s160 = ssub.s32 %s20, %s32
    %s161 = ssub.s32 %s21, %s28
    %s162 = sor.u32 %s160, %s161
    %p163 = scmp.eq.s32.totalorder %s162, 0
    %s165 = sadd.s32 %s164, 1
    %s166 = scalar_select %p163, %s164, %s165
    %p169 = pneg %p163
    %p170 = scmp.eq.s32.totalorder %s13, 1
    %p171 = por %p169, %p170
    %p172 = scmp.ne.s32.totalorder %s164, %s167
    %p173 = scmp.eq.s32.totalorder %s13, 0
    %p174 = por %p172, %p173
    %p175 = scmp.ne.s32.totalorder %s164, %s167
    %p176 = scmp.eq.s32.totalorder %s18, 1
    %p177 = por %p175, %p176
    %p178 = scmp.ne.s32.totalorder %s167, %s168
    %p179 = scmp.eq.s32.totalorder %s18, 0
    %p180 = por %p178, %p179
    %p181 = scmp.ne.s32.totalorder %s167, %s168
    %p182 = scmp.eq.s32.totalorder %s19, 1
    %p183 = por %p181, %p182
    %p185 = scmp.ne.s32.totalorder %s168, %s184
    %p186 = scmp.eq.s32.totalorder %s19, 0
    %p187 = por %p185, %p186
    %s188 = ssub.s32 %s20, %s32
    %p189 = scmp.eq.s32.totalorder %s188, 0
    %s191 = sadd.s32 %s190, 1
    %s192 = scalar_select %p189, %s190, %s191
    %p195 = pneg %p189
    %p196 = scmp.eq.s32.totalorder %s13, 1
    %p197 = por %p195, %p196
    %p198 = scmp.ne.s32.totalorder %s190, %s193
    %p199 = scmp.eq.s32.totalorder %s13, 0
    %p200 = por %p198, %p199
    %p201 = scmp.ne.s32.totalorder %s190, %s193
    %p202 = scmp.eq.s32.totalorder %s18, 1
    %p203 = por %p201, %p202
    %p204 = scmp.ne.s32.totalorder %s193, %s194
    %p205 = scmp.eq.s32.totalorder %s18, 0
    %p206 = por %p204, %p205
    %p207 = scmp.ne.s32.totalorder %s193, %s194
    %p208 = scmp.eq.s32.totalorder %s19, 1
    %p209 = por %p207, %p208
    %p211 = scmp.ne.s32.totalorder %s194, %s210
    %p212 = scmp.eq.s32.totalorder %s19, 0
    %p213 = por %p211, %p212
    %p214 = scmp.le.s32.totalorder 1, %s13
    %p215 = scmp.lt.s32.totalorder %s13, 3
    %p216 = pnand %p214, %p215
    %p217 = pneg %p216
    // Predicated region
    $region9: #{double_conv_forward.4} parent=5 // pred_check
      _
    $region10: #{double_conv_forward.4} parent=5 // pred_check_branch
      %219 = sbr.rel (%p216) target = $region12
    $region11: #{double_conv_forward.4} parent=5 // pred_region
      %s220 = ssub.s32 %s13, 1
      // Predicated region
      $region13: #{double_conv_forward.4} parent=11 // pred_check
        %p221 = pneg %p110
      $region14: #{double_conv_forward.4} parent=11 // pred_check_branch
        %223 = sbr.rel (%p221) target = $region16
      $region15: #{double_conv_forward.4} parent=11 // pred_region
        _
      $region16: #{double_conv_forward.4} parent=11 // pred_fallthru
        _
      // Predicated region
      $region17: #{double_conv_forward.4} parent=11 // pred_check
        %p224 = pneg %p131
      $region18: #{double_conv_forward.4} parent=11 // pred_check_branch
        %226 = sbr.rel (%p224) target = $region20
      $region19: #{double_conv_forward.4} parent=11 // pred_region
        _
      $region20: #{double_conv_forward.4} parent=11 // pred_fallthru
        _
      // Predicated region
      $region21: #{double_conv_forward.4} parent=11 // pred_check
        %p227 = pneg %p152
      $region22: #{double_conv_forward.4} parent=11 // pred_check_branch
        %229 = sbr.rel (%p227) target = $region24
      $region23: #{double_conv_forward.4} parent=11 // pred_region
        _
      $region24: #{double_conv_forward.4} parent=11 // pred_fallthru
        _
    $region12: #{double_conv_forward.4} parent=5 // pred_fallthru
      _
    %p230 = scmp.lt.s32.totalorder %s13, 2
    // Predicated region
    $region25: #{double_conv_forward.4} parent=5 // pred_check
      %p231 = pneg %p230
    $region26: #{double_conv_forward.4} parent=5 // pred_check_branch
      %233 = sbr.rel (%p231) target = $region28
    $region27: #{double_conv_forward.4} parent=5 // pred_region
      // Predicated region
      $region29: #{double_conv_forward.4} parent=27 // pred_check
        %p234 = pneg %p47
      $region30: #{double_conv_forward.4} parent=27 // pred_check_branch
        %236 = sbr.rel (%p234) target = $region32
      $region31: #{double_conv_forward.4} parent=27 // pred_region
        %s237 = smul.u32 16, %s21
        %p238 = scmp.lt.s32.totalorder %s20, 1
        %s239 = scalar_select %p238, %s20, 1
        %p240 = scmp.lt.s32.totalorder %s237, 15
        %s241 = scalar_select %p240, %s237, 15
        %s242 = smul.addr %s241, 2
        %s243 = smul.addr %s239, 32
        %s244 = sadd.s32 %s242, %s243
        %s245 = smul.addr %s244, 4
        %s246 = scalar_lea.vmem %s0, %s245
        %s247 = smul.u32 16, %s21
      $region32: #{double_conv_forward.4} parent=27 // pred_fallthru
        _
      // Predicated region
      $region33: #{double_conv_forward.4} parent=27 // pred_check
        %p248 = pneg %p83
      $region34: #{double_conv_forward.4} parent=27 // pred_check_branch
        %250 = sbr.rel (%p248) target = $region36
      $region35: #{double_conv_forward.4} parent=27 // pred_region
        %s251 = sadd.s32 %s21, 1
        %s252 = smul.u32 %s251, 16
        %p253 = scmp.lt.s32.totalorder %s252, 15
        %s254 = scalar_select %p253, %s252, 15
        %p255 = scmp.lt.s32.totalorder %s20, 1
        %s256 = scalar_select %p255, %s20, 1
        %p257 = scmp.lt.s32.totalorder %s254, 15
        %s258 = scalar_select %p257, %s254, 15
        %s259 = smul.addr %s258, 2
        %s260 = smul.addr %s256, 32
        %s261 = sadd.s32 %s259, %s260
        %s262 = smul.addr %s261, 4
        %s263 = scalar_lea.vmem %s1, %s262
        %s264 = sadd.s32 %s21, 1
        %s265 = smul.u32 %s264, 16
        %p266 = scmp.lt.s32.totalorder %s265, 15
        %s267 = scalar_select %p266, %s265, 15
      $region36: #{double_conv_forward.4} parent=27 // pred_fallthru
        _
    $region28: #{double_conv_forward.4} parent=5 // pred_fallthru
      _
    %p268 = scmp.le.s32.totalorder 1, %s13
    %p269 = scmp.lt.s32.totalorder %s13, 3
    %p270 = pnand %p268, %p269
    %p271 = pneg %p270
    // Predicated region
    $region37: #{double_conv_forward.4} parent=5 // pred_check
      _
    $region38: #{double_conv_forward.4} parent=5 // pred_check_branch
      %273 = sbr.rel (%p270) target = $region40
    $region39: #{double_conv_forward.4} parent=5 // pred_region
      %s274 = ssub.s32 %s13, 1
      %s275 = smul.u32 16, %s23
      %p276 = scmp.lt.s32.totalorder %s22, 1
      %s277 = scalar_select %p276, %s22, 1
      %p278 = scmp.lt.s32.totalorder %s275, 15
      %s279 = scalar_select %p278, %s275, 15
      %s280 = smul.addr %s279, 2
      %s281 = smul.addr %s277, 32
      %s282 = sadd.s32 %s280, %s281
      %s283 = smul.addr %s282, 4
      %s284 = scalar_lea.vmem %s0, %s283
      %p285 = pneg %p53
      %p286 = pneg %p50
      %s287 = sadd.s32 %s23, 1
      %s288 = smul.u32 %s287, 16
      %p289 = scmp.lt.s32.totalorder %s288, 15
      %s290 = scalar_select %p289, %s288, 15
      %p291 = scmp.lt.s32.totalorder %s22, 1
      %s292 = scalar_select %p291, %s22, 1
      %p293 = scmp.lt.s32.totalorder %s290, 15
      %s294 = scalar_select %p293, %s290, 15
      %s295 = smul.addr %s294, 2
      %s296 = smul.addr %s292, 32
      %s297 = sadd.s32 %s295, %s296
      %s298 = smul.addr %s297, 4
      %s299 = scalar_lea.vmem %s1, %s298
      %p300 = pneg %p89
      %p301 = pneg %p86
      %p302 = pneg %p110
      %p303 = pneg %p107
      %p304 = pneg %p131
      %p305 = pneg %p128
      %p306 = pneg %p152
      %p307 = pneg %p149
      %p308 = pneg %p180
      %p309 = pneg %p177
      %s310 = smul.u32 16, %s23
      %p311 = scmp.lt.s32.totalorder %s22, 1
      %s312 = scalar_select %p311, %s22, 1
      %p313 = scmp.lt.s32.totalorder %s310, 15
      %s314 = scalar_select %p313, %s310, 15
      %s315 = smul.addr %s314, 2
      %s316 = smul.addr %s312, 32
      %s317 = sadd.s32 %s315, %s316
      %s318 = smul.addr %s317, 4
      %s319 = scalar_lea.vmem %s5, %s318
      %p320 = pneg %p206
      %p321 = pneg %p203
      %p322 = scmp.lt.s32.totalorder %s22, 1
      %s323 = scalar_select %p322, %s22, 1
      %s324 = smul.addr %s323, 2
      %s325 = scalar_lea.vmem %s6, %s324
      %s326 = smul.u32 16, %s23
      %p327 = scmp.lt.s32.totalorder %s22, 1
      %s328 = scalar_select %p327, %s22, 1
      %p329 = scmp.lt.s32.totalorder %s326, 15
      %s330 = scalar_select %p329, %s326, 15
      %s331 = smul.addr %s330, 2
      %s332 = smul.addr %s328, 32
      %s333 = sadd.s32 %s331, %s332
      %s334 = smul.addr %s333, 4
      %s335 = scalar_lea.vmem %s0, %s334
      %s336 = smul.u32 16, %s23
      %s337 = sadd.s32 %s23, 1
      %s338 = smul.u32 %s337, 16
      %p339 = scmp.lt.s32.totalorder %s338, 15
      %s340 = scalar_select %p339, %s338, 15
      %p341 = scmp.lt.s32.totalorder %s22, 1
      %s342 = scalar_select %p341, %s22, 1
      %p343 = scmp.lt.s32.totalorder %s340, 15
      %s344 = scalar_select %p343, %s340, 15
      %s345 = smul.addr %s344, 2
      %s346 = smul.addr %s342, 32
      %s347 = sadd.s32 %s345, %s346
      %s348 = smul.addr %s347, 4
      %s349 = scalar_lea.vmem %s1, %s348
      %s350 = sadd.s32 %s23, 1
      %s351 = smul.u32 %s350, 16
      %p352 = scmp.lt.s32.totalorder %s351, 15
      %s353 = scalar_select %p352, %s351, 15
      %s354 = smul.u32 16, %s23
      %p355 = scmp.lt.s32.totalorder %s22, 1
      %s356 = scalar_select %p355, %s22, 1
      %p357 = scmp.lt.s32.totalorder %s354, 15
      %s358 = scalar_select %p357, %s354, 15
      %s359 = smul.addr %s358, 2
      %s360 = smul.addr %s356, 32
      %s361 = sadd.s32 %s359, %s360
      %s362 = smul.addr %s361, 4
      %s363 = scalar_lea.vmem %s5, %s362
      %s364 = smul.u32 16, %s23
      %p365 = scmp.lt.s32.totalorder %s22, 1
      %s366 = scalar_select %p365, %s22, 1
      %s367 = smul.addr %s366, 2
      %s368 = scalar_lea.vmem %s6, %s367
      %s370 = scalar_lea.vmem [#allocation2], 128
      %v371 = vld [vmem:[%s370] sm:$0xf]
      %v372 = vld [vmem:[%s370 + $0x4] sm:$0xf]
      %p373 = scmp.gt.s32.totalorder %s23, 0
      %s374 = scalar_select %p373, 1, 0
      %v375 = vstv %s374
      %vm376 = vcmp.eq.s32.totalorder %v375, 1
      %v377 = vsel %vm376, %v371, 0
      %v378 = vsel %vm376, %v372, 0
      %379 = vst [vmem:[#allocation2] sm:$0xf] %v377
      %380 = vst [vmem:[#allocation2 + $0x4] sm:$0xf] %v378
      %v381 = vld [vmem:[%s335] sm:$0xf]
      %v382 = vld [vmem:[%s335 + $0x4] sm:$0xf]
      %v383 = vld [vmem:[%s335 + $0x8] sm:$0xf]
      %v384 = vld [vmem:[%s335 + $0xc] sm:$0xf]
      %v385 = vld [vmem:[%s335 + $0x10] sm:$0xf]
      %v386 = vld [vmem:[%s335 + $0x14] sm:$0xf]
      %v387 = vld [vmem:[%s335 + $0x18] sm:$0xf]
      %v388 = vld [vmem:[%s335 + $0x1c] sm:$0xf]
      %v389 = vld [vmem:[%s335 + $0x20] sm:$0xf]
      %v390 = vld [vmem:[%s335 + $0x24] sm:$0xf]
      %v391 = vld [vmem:[%s335 + $0x28] sm:$0xf]
      %v392 = vld [vmem:[%s335 + $0x2c] sm:$0xf]
      %v393 = vld [vmem:[%s335 + $0x30] sm:$0xf]
      %v394 = vld [vmem:[%s335 + $0x34] sm:$0xf]
      %v395 = vld [vmem:[%s335 + $0x38] sm:$0xf]
      %v396 = vld [vmem:[%s335 + $0x3c] sm:$0xf]
      %v397 = vld [vmem:[%s335 + $0x40] sm:$0xf]
      %v398 = vld [vmem:[%s335 + $0x44] sm:$0xf]
      %v399 = vld [vmem:[%s335 + $0x48] sm:$0xf]
      %v400 = vld [vmem:[%s335 + $0x4c] sm:$0xf]
      %v401 = vld [vmem:[%s335 + $0x50] sm:$0xf]
      %v402 = vld [vmem:[%s335 + $0x54] sm:$0xf]
      %v403 = vld [vmem:[%s335 + $0x58] sm:$0xf]
      %v404 = vld [vmem:[%s335 + $0x5c] sm:$0xf]
      %v405 = vld [vmem:[%s335 + $0x60] sm:$0xf]
      %v406 = vld [vmem:[%s335 + $0x64] sm:$0xf]
      %v407 = vld [vmem:[%s335 + $0x68] sm:$0xf]
      %v408 = vld [vmem:[%s335 + $0x6c] sm:$0xf]
      %v409 = vld [vmem:[%s335 + $0x70] sm:$0xf]
      %v410 = vld [vmem:[%s335 + $0x74] sm:$0xf]
      %v411 = vld [vmem:[%s335 + $0x78] sm:$0xf]
      %v412 = vld [vmem:[%s335 + $0x7c] sm:$0xf]
      %v413 = vunpack.c.l.bf16 %v381
      %v414 = vunpack.c.l.bf16 %v382
      %v415 = vunpack.c.l.bf16 %v383
      %v416 = vunpack.c.l.bf16 %v384
      %v417 = vunpack.c.l.bf16 %v385
      %v418 = vunpack.c.l.bf16 %v386
      %v419 = vunpack.c.l.bf16 %v387
      %v420 = vunpack.c.l.bf16 %v388
      %v421 = vunpack.c.l.bf16 %v389
      %v422 = vunpack.c.l.bf16 %v390
      %v423 = vunpack.c.l.bf16 %v391
      %v424 = vunpack.c.l.bf16 %v392
      %v425 = vunpack.c.l.bf16 %v393
      %v426 = vunpack.c.l.bf16 %v394
      %v427 = vunpack.c.l.bf16 %v395
      %v428 = vunpack.c.l.bf16 %v396
      %v429 = vunpack.c.l.bf16 %v397
      %v430 = vunpack.c.l.bf16 %v398
      %v431 = vunpack.c.l.bf16 %v399
      %v432 = vunpack.c.l.bf16 %v400
      %v433 = vunpack.c.l.bf16 %v401
      %v434 = vunpack.c.l.bf16 %v402
      %v435 = vunpack.c.l.bf16 %v403
      %v436 = vunpack.c.l.bf16 %v404
      %v437 = vunpack.c.l.bf16 %v405
      %v438 = vunpack.c.l.bf16 %v406
      %v439 = vunpack.c.l.bf16 %v407
      %v440 = vunpack.c.l.bf16 %v408
      %v441 = vunpack.c.l.bf16 %v409
      %v442 = vunpack.c.l.bf16 %v410
      %v443 = vunpack.c.l.bf16 %v411
      %v444 = vunpack.c.l.bf16 %v412
      %v445 = vld [vmem:[%s3] sm:$0x1]
      %v447 = vlaneseq
      %v448 = vshrl.u32 %v447, 7
      %v449 = vsub.s32 0, %v448
      %v450 = vrot.slane %v445, %v449
      %v452 = vmul.f32 %v413, %v450
      %v453 = vmul.f32 %v414, %v450
      %v454 = vmul.f32 %v415, %v450
      %v455 = vmul.f32 %v416, %v450
      %v456 = vmul.f32 %v417, %v450
      %v457 = vmul.f32 %v418, %v450
      %v458 = vmul.f32 %v419, %v450
      %v459 = vmul.f32 %v420, %v450
      %v460 = vmul.f32 %v421, %v450
      %v461 = vmul.f32 %v422, %v450
      %v462 = vmul.f32 %v423, %v450
      %v463 = vmul.f32 %v424, %v450
      %v464 = vmul.f32 %v425, %v450
      %v465 = vmul.f32 %v426, %v450
      %v466 = vmul.f32 %v427, %v450
      %v467 = vmul.f32 %v428, %v450
      %v468 = vmul.f32 %v429, %v450
      %v469 = vmul.f32 %v430, %v450
      %v470 = vmul.f32 %v431, %v450
      %v471 = vmul.f32 %v432, %v450
      %v472 = vmul.f32 %v433, %v450
      %v473 = vmul.f32 %v434, %v450
      %v474 = vmul.f32 %v435, %v450
      %v475 = vmul.f32 %v436, %v450
      %v476 = vmul.f32 %v437, %v450
      %v477 = vmul.f32 %v438, %v450
      %v478 = vmul.f32 %v439, %v450
      %v479 = vmul.f32 %v440, %v450
      %v480 = vmul.f32 %v441, %v450
      %v481 = vmul.f32 %v442, %v450
      %v482 = vmul.f32 %v443, %v450
      %v483 = vmul.f32 %v444, %v450
      %v484 = vld [vmem:[%s4] sm:$0x1]
      %v486 = vlaneseq
      %v487 = vshrl.u32 %v486, 7
      %v488 = vsub.s32 0, %v487
      %v489 = vrot.slane %v484, %v488
      %v491 = vadd.f32 %v452, %v489
      %v492 = vadd.f32 %v453, %v489
      %v493 = vadd.f32 %v454, %v489
      %v494 = vadd.f32 %v455, %v489
      %v495 = vadd.f32 %v456, %v489
      %v496 = vadd.f32 %v457, %v489
      %v497 = vadd.f32 %v458, %v489
      %v498 = vadd.f32 %v459, %v489
      %v499 = vadd.f32 %v460, %v489
      %v500 = vadd.f32 %v461, %v489
      %v501 = vadd.f32 %v462, %v489
      %v502 = vadd.f32 %v463, %v489
      %v503 = vadd.f32 %v464, %v489
      %v504 = vadd.f32 %v465, %v489
      %v505 = vadd.f32 %v466, %v489
      %v506 = vadd.f32 %v467, %v489
      %v507 = vadd.f32 %v468, %v489
      %v508 = vadd.f32 %v469, %v489
      %v509 = vadd.f32 %v470, %v489
      %v510 = vadd.f32 %v471, %v489
      %v511 = vadd.f32 %v472, %v489
      %v512 = vadd.f32 %v473, %v489
      %v513 = vadd.f32 %v474, %v489
      %v514 = vadd.f32 %v475, %v489
      %v515 = vadd.f32 %v476, %v489
      %v516 = vadd.f32 %v477, %v489
      %v517 = vadd.f32 %v478, %v489
      %v518 = vadd.f32 %v479, %v489
      %v519 = vadd.f32 %v480, %v489
      %v520 = vadd.f32 %v481, %v489
      %v521 = vadd.f32 %v482, %v489
      %v522 = vadd.f32 %v483, %v489
      %v523 = vmax.f32 %v491, 0.0
      %v524 = vmax.f32 %v492, 0.0
      %v525 = vmax.f32 %v493, 0.0
      %v526 = vmax.f32 %v494, 0.0
      %v527 = vmax.f32 %v495, 0.0
      %v528 = vmax.f32 %v496, 0.0
      %v529 = vmax.f32 %v497, 0.0
      %v530 = vmax.f32 %v498, 0.0
      %v531 = vmax.f32 %v499, 0.0
      %v532 = vmax.f32 %v500, 0.0
      %v533 = vmax.f32 %v501, 0.0
      %v534 = vmax.f32 %v502, 0.0
      %v535 = vmax.f32 %v503, 0.0
      %v536 = vmax.f32 %v504, 0.0
      %v537 = vmax.f32 %v505, 0.0
      %v538 = vmax.f32 %v506, 0.0
      %v539 = vmax.f32 %v507, 0.0
      %v540 = vmax.f32 %v508, 0.0
      %v541 = vmax.f32 %v509, 0.0
      %v542 = vmax.f32 %v510, 0.0
      %v543 = vmax.f32 %v511, 0.0
      %v544 = vmax.f32 %v512, 0.0
      %v545 = vmax.f32 %v513, 0.0
      %v546 = vmax.f32 %v514, 0.0
      %v547 = vmax.f32 %v515, 0.0
      %v548 = vmax.f32 %v516, 0.0
      %v549 = vmax.f32 %v517, 0.0
      %v550 = vmax.f32 %v518, 0.0
      %v551 = vmax.f32 %v519, 0.0
      %v552 = vmax.f32 %v520, 0.0
      %v553 = vmax.f32 %v521, 0.0
      %v554 = vmax.f32 %v522, 0.0
      %v555 = vpack.c.bf16 %v524, %v523
      %v556 = vpack.c.bf16 %v526, %v525
      %v557 = vpack.c.bf16 %v528, %v527
      %v558 = vpack.c.bf16 %v530, %v529
      %v559 = vpack.c.bf16 %v532, %v531
      %v560 = vpack.c.bf16 %v534, %v533
      %v561 = vpack.c.bf16 %v536, %v535
      %v562 = vpack.c.bf16 %v538, %v537
      %v563 = vpack.c.bf16 %v540, %v539
      %v564 = vpack.c.bf16 %v542, %v541
      %v565 = vpack.c.bf16 %v544, %v543
      %v566 = vpack.c.bf16 %v546, %v545
      %v567 = vpack.c.bf16 %v548, %v547
      %v568 = vpack.c.bf16 %v550, %v549
      %v569 = vpack.c.bf16 %v552, %v551
      %v570 = vpack.c.bf16 %v554, %v553
      %v587 = vunpack.c.l.b16 %v555
      %v588 = vunpack.c.h.b16 %v555
      %v589 = vunpack.c.l.b16 %v556
      %v590 = vunpack.c.h.b16 %v556
      %v591 = vunpack.c.l.b16 %v557
      %v592 = vunpack.c.h.b16 %v557
      %v593 = vunpack.c.l.b16 %v558
      %v594 = vunpack.c.h.b16 %v558
      %v595 = vunpack.c.l.b16 %v559
      %v596 = vunpack.c.h.b16 %v559
      %v597 = vunpack.c.l.b16 %v560
      %v598 = vunpack.c.h.b16 %v560
      %v599 = vunpack.c.l.b16 %v561
      %v600 = vunpack.c.h.b16 %v561
      %v601 = vunpack.c.l.b16 %v562
      %v602 = vunpack.c.h.b16 %v562
      %v603 = vunpack.c.l.b16 %v563
      %v604 = vunpack.c.h.b16 %v563
      %v605 = vunpack.c.l.b16 %v564
      %v606 = vunpack.c.h.b16 %v564
      %v607 = vunpack.c.l.b16 %v565
      %v608 = vunpack.c.h.b16 %v565
      %v609 = vunpack.c.l.b16 %v566
      %v610 = vunpack.c.h.b16 %v566
      %v611 = vunpack.c.l.b16 %v567
      %v612 = vunpack.c.h.b16 %v567
      %v613 = vunpack.c.l.b16 %v568
      %v614 = vunpack.c.h.b16 %v568
      %v615 = vunpack.c.l.b16 %v569
      %v616 = vunpack.c.h.b16 %v569
      %v617 = vunpack.c.l.b16 %v570
      %v618 = vunpack.c.h.b16 %v570
      %v619 = vpack.c.b16 %v587, %v587
      %v620 = vpack.c.b16 %v588, %v588
      %v621 = vpack.c.b16 %v589, %v589
      %v622 = vpack.c.b16 %v590, %v590
      %v623 = vpack.c.b16 %v591, %v591
      %v624 = vpack.c.b16 %v592, %v592
      %v625 = vpack.c.b16 %v593, %v593
      %v626 = vpack.c.b16 %v594, %v594
      %v627 = vpack.c.b16 %v595, %v595
      %v628 = vpack.c.b16 %v596, %v596
      %v629 = vpack.c.b16 %v597, %v597
      %v630 = vpack.c.b16 %v598, %v598
      %v631 = vpack.c.b16 %v599, %v599
      %v632 = vpack.c.b16 %v600, %v600
      %v633 = vpack.c.b16 %v601, %v601
      %v634 = vpack.c.b16 %v602, %v602
      %v635 = vpack.c.b16 %v603, %v603
      %v636 = vpack.c.b16 %v604, %v604
      %v637 = vpack.c.b16 %v605, %v605
      %v638 = vpack.c.b16 %v606, %v606
      %v639 = vpack.c.b16 %v607, %v607
      %v640 = vpack.c.b16 %v608, %v608
      %v641 = vpack.c.b16 %v609, %v609
      %v642 = vpack.c.b16 %v610, %v610
      %v643 = vpack.c.b16 %v611, %v611
      %v644 = vpack.c.b16 %v612, %v612
      %v645 = vpack.c.b16 %v613, %v613
      %v646 = vpack.c.b16 %v614, %v614
      %v647 = vpack.c.b16 %v615, %v615
      %v648 = vpack.c.b16 %v616, %v616
      %v649 = vpack.c.b16 %v617, %v617
      %v650 = vpack.c.b16 %v618, %v618
      %s683 = scalar_lea.vmem [#allocation2], 8
      %684 = vst [vmem:[%s683] sm:$0xf] %v619
      %685 = vst [vmem:[%s683 + $0x4] sm:$0xf] %v620
      %686 = vst [vmem:[%s683 + $0x8] sm:$0xf] %v621
      %687 = vst [vmem:[%s683 + $0xc] sm:$0xf] %v622
      %688 = vst [vmem:[%s683 + $0x10] sm:$0xf] %v623
      %689 = vst [vmem:[%s683 + $0x14] sm:$0xf] %v624
      %690 = vst [vmem:[%s683 + $0x18] sm:$0xf] %v625
      %691 = vst [vmem:[%s683 + $0x1c] sm:$0xf] %v626
      %692 = vst [vmem:[%s683 + $0x20] sm:$0xf] %v627
      %693 = vst [vmem:[%s683 + $0x24] sm:$0xf] %v628
      %694 = vst [vmem:[%s683 + $0x28] sm:$0xf] %v629
      %695 = vst [vmem:[%s683 + $0x2c] sm:$0xf] %v630
      %696 = vst [vmem:[%s683 + $0x30] sm:$0xf] %v631
      %697 = vst [vmem:[%s683 + $0x34] sm:$0xf] %v632
      %698 = vst [vmem:[%s683 + $0x38] sm:$0xf] %v633
      %699 = vst [vmem:[%s683 + $0x3c] sm:$0xf] %v634
      %700 = vst [vmem:[%s683 + $0x40] sm:$0xf] %v635
      %701 = vst [vmem:[%s683 + $0x44] sm:$0xf] %v636
      %702 = vst [vmem:[%s683 + $0x48] sm:$0xf] %v637
      %703 = vst [vmem:[%s683 + $0x4c] sm:$0xf] %v638
      %704 = vst [vmem:[%s683 + $0x50] sm:$0xf] %v639
      %705 = vst [vmem:[%s683 + $0x54] sm:$0xf] %v640
      %706 = vst [vmem:[%s683 + $0x58] sm:$0xf] %v641
      %707 = vst [vmem:[%s683 + $0x5c] sm:$0xf] %v642
      %708 = vst [vmem:[%s683 + $0x60] sm:$0xf] %v643
      %709 = vst [vmem:[%s683 + $0x64] sm:$0xf] %v644
      %710 = vst [vmem:[%s683 + $0x68] sm:$0xf] %v645
      %711 = vst [vmem:[%s683 + $0x6c] sm:$0xf] %v646
      %712 = vst [vmem:[%s683 + $0x70] sm:$0xf] %v647
      %713 = vst [vmem:[%s683 + $0x74] sm:$0xf] %v648
      %714 = vst [vmem:[%s683 + $0x78] sm:$0xf] %v649
      %715 = vst [vmem:[%s683 + $0x7c] sm:$0xf] %v650
      %v716 = vld [vmem:[%s349] sm:$0xf]
      %v717 = vld [vmem:[%s349 + $0x4] sm:$0xf]
      %v718 = vunpack.c.l.bf16 %v716
      %v719 = vunpack.c.l.bf16 %v717
      %v720 = vld [vmem:[%s3] sm:$0x1]
      %v722 = vlaneseq
      %v723 = vshrl.u32 %v722, 7
      %v724 = vsub.s32 0, %v723
      %v725 = vrot.slane %v720, %v724
      %v727 = vmul.f32 %v718, %v725
      %v728 = vmul.f32 %v719, %v725
      %v729 = vld [vmem:[%s4] sm:$0x1]
      %v731 = vlaneseq
      %v732 = vshrl.u32 %v731, 7
      %v733 = vsub.s32 0, %v732
      %v734 = vrot.slane %v729, %v733
      %v736 = vadd.f32 %v727, %v734
      %v737 = vadd.f32 %v728, %v734
      %v738 = vmax.f32 %v736, 0.0
      %v739 = vmax.f32 %v737, 0.0
      %v740 = vpack.c.bf16 %v739, %v738
      %p741 = scmp.lt.s32.totalorder %s23, 0
      %s742 = scalar_select %p741, 1, 0
      %v743 = vstv %s742
      %vm744 = vcmp.eq.s32.totalorder %v743, 1
      %v745 = vsel %vm744, %v740, 0
      %v747 = vunpack.c.l.b16 %v745
      %v748 = vunpack.c.h.b16 %v745
      %v749 = vpack.c.b16 %v747, %v747
      %v750 = vpack.c.b16 %v748, %v748
      %s753 = scalar_lea.vmem [#allocation2], 136
      %754 = vst [vmem:[%s753] sm:$0xf] %v749
      %755 = vst [vmem:[%s753 + $0x4] sm:$0xf] %v750
      %v756 = vld [vmem:[#allocation2] sm:$0xf]
      %v757 = vld [vmem:[#allocation2 + $0x4] sm:$0xf]
      %v758 = vld [vmem:[#allocation2 + $0x8] sm:$0xf]
      %v759 = vld [vmem:[#allocation2 + $0xc] sm:$0xf]
      %v760 = vld [vmem:[#allocation2 + $0x10] sm:$0xf]
      %v761 = vld [vmem:[#allocation2 + $0x14] sm:$0xf]
      %v762 = vld [vmem:[#allocation2 + $0x18] sm:$0xf]
      %v763 = vld [vmem:[#allocation2 + $0x1c] sm:$0xf]
      %v764 = vld [vmem:[#allocation2 + $0x20] sm:$0xf]
      %v765 = vld [vmem:[#allocation2 + $0x24] sm:$0xf]
      %v766 = vld [vmem:[#allocation2 + $0x28] sm:$0xf]
      %v767 = vld [vmem:[#allocation2 + $0x2c] sm:$0xf]
      %v768 = vld [vmem:[#allocation2 + $0x30] sm:$0xf]
      %v769 = vld [vmem:[#allocation2 + $0x34] sm:$0xf]
      %v770 = vld [vmem:[#allocation2 + $0x38] sm:$0xf]
      %v771 = vld [vmem:[#allocation2 + $0x3c] sm:$0xf]
      %v772 = vld [vmem:[#allocation2 + $0x40] sm:$0xf]
      %v773 = vld [vmem:[#allocation2 + $0x44] sm:$0xf]
      %v774 = vld [vmem:[#allocation2 + $0x48] sm:$0xf]
      %v775 = vld [vmem:[#allocation2 + $0x4c] sm:$0xf]
      %v776 = vld [vmem:[#allocation2 + $0x50] sm:$0xf]
      %v777 = vld [vmem:[#allocation2 + $0x54] sm:$0xf]
      %v778 = vld [vmem:[#allocation2 + $0x58] sm:$0xf]
      %v779 = vld [vmem:[#allocation2 + $0x5c] sm:$0xf]
      %v780 = vld [vmem:[#allocation2 + $0x60] sm:$0xf]
      %v781 = vld [vmem:[#allocation2 + $0x64] sm:$0xf]
      %v782 = vld [vmem:[#allocation2 + $0x68] sm:$0xf]
      %v783 = vld [vmem:[#allocation2 + $0x6c] sm:$0xf]
      %v784 = vld [vmem:[#allocation2 + $0x70] sm:$0xf]
      %v785 = vld [vmem:[#allocation2 + $0x74] sm:$0xf]
      %v786 = vld [vmem:[#allocation2 + $0x78] sm:$0xf]
      %v787 = vld [vmem:[#allocation2 + $0x7c] sm:$0xf]
      %v820 = vunpack.c.l.b16 %v756
      %v821 = vunpack.c.l.b16 %v757
      %v822 = vunpack.c.l.b16 %v758
      %v823 = vunpack.c.l.b16 %v759
      %v824 = vunpack.c.l.b16 %v760
      %v825 = vunpack.c.l.b16 %v761
      %v826 = vunpack.c.l.b16 %v762
      %v827 = vunpack.c.l.b16 %v763
      %v828 = vunpack.c.l.b16 %v764
      %v829 = vunpack.c.l.b16 %v765
      %v830 = vunpack.c.l.b16 %v766
      %v831 = vunpack.c.l.b16 %v767
      %v832 = vunpack.c.l.b16 %v768
      %v833 = vunpack.c.l.b16 %v769
      %v834 = vunpack.c.l.b16 %v770
      %v835 = vunpack.c.l.b16 %v771
      %v836 = vunpack.c.l.b16 %v772
      %v837 = vunpack.c.l.b16 %v773
      %v838 = vunpack.c.l.b16 %v774
      %v839 = vunpack.c.l.b16 %v775
      %v840 = vunpack.c.l.b16 %v776
      %v841 = vunpack.c.l.b16 %v777
      %v842 = vunpack.c.l.b16 %v778
      %v843 = vunpack.c.l.b16 %v779
      %v844 = vunpack.c.l.b16 %v780
      %v845 = vunpack.c.l.b16 %v781
      %v846 = vunpack.c.l.b16 %v782
      %v847 = vunpack.c.l.b16 %v783
      %v848 = vunpack.c.l.b16 %v784
      %v849 = vunpack.c.l.b16 %v785
      %v850 = vunpack.c.l.b16 %v786
      %v851 = vunpack.c.l.b16 %v787
      %v852 = vpack.c.b16 %v821, %v820
      %v853 = vpack.c.b16 %v823, %v822
      %v854 = vpack.c.b16 %v825, %v824
      %v855 = vpack.c.b16 %v827, %v826
      %v856 = vpack.c.b16 %v829, %v828
      %v857 = vpack.c.b16 %v831, %v830
      %v858 = vpack.c.b16 %v833, %v832
      %v859 = vpack.c.b16 %v835, %v834
      %v860 = vpack.c.b16 %v837, %v836
      %v861 = vpack.c.b16 %v839, %v838
      %v862 = vpack.c.b16 %v841, %v840
      %v863 = vpack.c.b16 %v843, %v842
      %v864 = vpack.c.b16 %v845, %v844
      %v865 = vpack.c.b16 %v847, %v846
      %v866 = vpack.c.b16 %v849, %v848
      %v867 = vpack.c.b16 %v851, %v850
      %v869 = vshrl.u32 %v852, 16
      %v871 = vrot.slane %v869, 7
      %v872 = vshll.u32 %v852, 16
      %v874 = vor.u32 %v871, %v872
      %v876 = vshrl.u32 %v853, 16
      %v878 = vrot.slane %v876, 7
      %v879 = vshll.u32 %v853, 16
      %v881 = vor.u32 %v878, %v879
      %v883 = vshrl.u32 %v854, 16
      %v885 = vrot.slane %v883, 7
      %v886 = vshll.u32 %v854, 16
      %v888 = vor.u32 %v885, %v886
      %v890 = vshrl.u32 %v855, 16
      %v892 = vrot.slane %v890, 7
      %v893 = vshll.u32 %v855, 16
      %v895 = vor.u32 %v892, %v893
      %v897 = vshrl.u32 %v856, 16
      %v899 = vrot.slane %v897, 7
      %v900 = vshll.u32 %v856, 16
      %v902 = vor.u32 %v899, %v900
      %v904 = vshrl.u32 %v857, 16
      %v906 = vrot.slane %v904, 7
      %v907 = vshll.u32 %v857, 16
      %v909 = vor.u32 %v906, %v907
      %v911 = vshrl.u32 %v858, 16
      %v913 = vrot.slane %v911, 7
      %v914 = vshll.u32 %v858, 16
      %v916 = vor.u32 %v913, %v914
      %v918 = vshrl.u32 %v859, 16
      %v920 = vrot.slane %v918, 7
      %v921 = vshll.u32 %v859, 16
      %v923 = vor.u32 %v920, %v921
      %v925 = vshrl.u32 %v860, 16
      %v927 = vrot.slane %v925, 7
      %v928 = vshll.u32 %v860, 16
      %v930 = vor.u32 %v927, %v928
      %v932 = vshrl.u32 %v861, 16
      %v934 = vrot.slane %v932, 7
      %v935 = vshll.u32 %v861, 16
      %v937 = vor.u32 %v934, %v935
      %v939 = vshrl.u32 %v862, 16
      %v941 = vrot.slane %v939, 7
      %v942 = vshll.u32 %v862, 16
      %v944 = vor.u32 %v941, %v942
      %v946 = vshrl.u32 %v863, 16
      %v948 = vrot.slane %v946, 7
      %v949 = vshll.u32 %v863, 16
      %v951 = vor.u32 %v948, %v949
      %v953 = vshrl.u32 %v864, 16
      %v955 = vrot.slane %v953, 7
      %v956 = vshll.u32 %v864, 16
      %v958 = vor.u32 %v955, %v956
      %v960 = vshrl.u32 %v865, 16
      %v962 = vrot.slane %v960, 7
      %v963 = vshll.u32 %v865, 16
      %v965 = vor.u32 %v962, %v963
      %v967 = vshrl.u32 %v866, 16
      %v969 = vrot.slane %v967, 7
      %v970 = vshll.u32 %v866, 16
      %v972 = vor.u32 %v969, %v970
      %v974 = vshrl.u32 %v867, 16
      %v976 = vrot.slane %v974, 7
      %v977 = vshll.u32 %v867, 16
      %v979 = vor.u32 %v976, %v977
      %vm996 = vcmask 1040384
      %vm997 = vsmask.f32 256
      %vm998 = vmand %vm996, %vm997
      %v999 = vsel %vm998, 0, %v874
      %v1000 = vsel %vm998, 0, %v881
      %v1001 = vsel %vm998, 0, %v888
      %v1002 = vsel %vm998, 0, %v895
      %v1003 = vsel %vm998, 0, %v902
      %v1004 = vsel %vm998, 0, %v909
      %v1005 = vsel %vm998, 0, %v916
      %v1006 = vsel %vm998, 0, %v923
      %v1007 = vsel %vm998, 0, %v930
      %v1008 = vsel %vm998, 0, %v937
      %v1009 = vsel %vm998, 0, %v944
      %v1010 = vsel %vm998, 0, %v951
      %v1011 = vsel %vm998, 0, %v958
      %v1012 = vsel %vm998, 0, %v965
      %v1013 = vsel %vm998, 0, %v972
      %v1014 = vsel %vm998, 0, %v979
      %v1015 = vrot.slane %v872, 1
      %v1016 = vor.u32 %v869, %v1015
      %v1017 = vrot.slane %v879, 1
      %v1018 = vor.u32 %v876, %v1017
      %v1019 = vrot.slane %v886, 1
      %v1020 = vor.u32 %v883, %v1019
      %v1021 = vrot.slane %v893, 1
      %v1022 = vor.u32 %v890, %v1021
      %v1023 = vrot.slane %v900, 1
      %v1024 = vor.u32 %v897, %v1023
      %v1025 = vrot.slane %v907, 1
      %v1026 = vor.u32 %v904, %v1025
      %v1027 = vrot.slane %v914, 1
      %v1028 = vor.u32 %v911, %v1027
      %v1029 = vrot.slane %v921, 1
      %v1030 = vor.u32 %v918, %v1029
      %v1031 = vrot.slane %v928, 1
      %v1032 = vor.u32 %v925, %v1031
      %v1033 = vrot.slane %v935, 1
      %v1034 = vor.u32 %v932, %v1033
      %v1035 = vrot.slane %v942, 1
      %v1036 = vor.u32 %v939, %v1035
      %v1037 = vrot.slane %v949, 1
      %v1038 = vor.u32 %v946, %v1037
      %v1039 = vrot.slane %v956, 1
      %v1040 = vor.u32 %v953, %v1039
      %v1041 = vrot.slane %v963, 1
      %v1042 = vor.u32 %v960, %v1041
      %v1043 = vrot.slane %v970, 1
      %v1044 = vor.u32 %v967, %v1043
      %v1045 = vrot.slane %v977, 1
      %v1046 = vor.u32 %v974, %v1045
      %vm1063 = vcmask 1047552
      %vm1064 = vsmask.f32 7424
      %vm1065 = vmand %vm1063, %vm1064
      %v1066 = vsel %vm1065, %v1016, 0
      %v1067 = vsel %vm1065, %v1018, 0
      %v1068 = vsel %vm1065, %v1020, 0
      %v1069 = vsel %vm1065, %v1022, 0
      %v1070 = vsel %vm1065, %v1024, 0
      %v1071 = vsel %vm1065, %v1026, 0
      %v1072 = vsel %vm1065, %v1028, 0
      %v1073 = vsel %vm1065, %v1030, 0
      %v1074 = vsel %vm1065, %v1032, 0
      %v1075 = vsel %vm1065, %v1034, 0
      %v1076 = vsel %vm1065, %v1036, 0
      %v1077 = vsel %vm1065, %v1038, 0
      %v1078 = vsel %vm1065, %v1040, 0
      %v1079 = vsel %vm1065, %v1042, 0
      %v1080 = vsel %vm1065, %v1044, 0
      %v1081 = vsel %vm1065, %v1046, 0
      %v1098 = vld [vmem:[%s2] sm:$0xf]
      %v1099 = vld [vmem:[%s2 + $0x4] sm:$0xf]
      %v1100 = vld [vmem:[%s2 + $0x8] sm:$0xf]
      %v1101 = vld [vmem:[%s2 + $0xc] sm:$0xf]
      %v1102 = vld [vmem:[%s2 + $0x10] sm:$0xf]
      %v1103 = vld [vmem:[%s2 + $0x14] sm:$0xf]
      %v1104 = vld [vmem:[%s2 + $0x18] sm:$0xf]
      %v1105 = vld [vmem:[%s2 + $0x1c] sm:$0xf]
      %v1106 = vld [vmem:[%s2 + $0x20] sm:$0xf]
      %v1107 = vld [vmem:[%s2 + $0x24] sm:$0xf]
      %v1108 = vld [vmem:[%s2 + $0x28] sm:$0xf]
      %v1109 = vld [vmem:[%s2 + $0x2c] sm:$0xf]
      %v1110 = vld [vmem:[%s2 + $0x30] sm:$0xf]
      %v1111 = vld [vmem:[%s2 + $0x34] sm:$0xf]
      %v1112 = vld [vmem:[%s2 + $0x38] sm:$0xf]
      %v1113 = vld [vmem:[%s2 + $0x3c] sm:$0xf]
      %v1114 = vld [vmem:[%s2 + $0x40] sm:$0xf]
      %v1115 = vld [vmem:[%s2 + $0x44] sm:$0xf]
      %v1116 = vld [vmem:[%s2 + $0x48] sm:$0xf]
      %v1117 = vld [vmem:[%s2 + $0x4c] sm:$0xf]
      %v1118 = vld [vmem:[%s2 + $0x50] sm:$0xf]
      %v1119 = vld [vmem:[%s2 + $0x54] sm:$0xf]
      %v1120 = vld [vmem:[%s2 + $0x58] sm:$0xf]
      %v1121 = vld [vmem:[%s2 + $0x5c] sm:$0xf]
      %v1122 = vld [vmem:[%s2 + $0x60] sm:$0xf]
      %v1123 = vld [vmem:[%s2 + $0x64] sm:$0xf]
      %v1124 = vld [vmem:[%s2 + $0x68] sm:$0xf]
      %v1125 = vld [vmem:[%s2 + $0x6c] sm:$0xf]
      %v1126 = vld [vmem:[%s2 + $0x70] sm:$0xf]
      %v1127 = vld [vmem:[%s2 + $0x74] sm:$0xf]
      %v1128 = vld [vmem:[%s2 + $0x78] sm:$0xf]
      %v1129 = vld [vmem:[%s2 + $0x7c] sm:$0xf]
      %v1130 = vld [vmem:[%s2 + $0x80] sm:$0xf]
      %v1131 = vld [vmem:[%s2 + $0x84] sm:$0xf]
      %v1132 = vld [vmem:[%s2 + $0x88] sm:$0xf]
      %v1133 = vld [vmem:[%s2 + $0x8c] sm:$0xf]
      %v1134 = vld [vmem:[%s2 + $0x90] sm:$0xf]
      %v1135 = vld [vmem:[%s2 + $0x94] sm:$0xf]
      %v1136 = vld [vmem:[%s2 + $0x98] sm:$0xf]
      %v1137 = vld [vmem:[%s2 + $0x9c] sm:$0xf]
      %v1138 = vld [vmem:[%s2 + $0xa0] sm:$0xf]
      %v1139 = vld [vmem:[%s2 + $0xa4] sm:$0xf]
      %v1140 = vld [vmem:[%s2 + $0xa8] sm:$0xf]
      %v1141 = vld [vmem:[%s2 + $0xac] sm:$0xf]
      %v1142 = vld [vmem:[%s2 + $0xb0] sm:$0xf]
      %v1143 = vld [vmem:[%s2 + $0xb4] sm:$0xf]
      %v1144 = vld [vmem:[%s2 + $0xb8] sm:$0xf]
      %v1145 = vld [vmem:[%s2 + $0xbc] sm:$0xf]
      %v1146 = vld [vmem:[%s683] sm:$0xf]
      %v1147 = vld [vmem:[%s683 + $0x4] sm:$0xf]
      %v1148 = vld [vmem:[%s683 + $0x8] sm:$0xf]
      %v1149 = vld [vmem:[%s683 + $0xc] sm:$0xf]
      %v1150 = vld [vmem:[%s683 + $0x10] sm:$0xf]
      %v1151 = vld [vmem:[%s683 + $0x14] sm:$0xf]
      %v1152 = vld [vmem:[%s683 + $0x18] sm:$0xf]
      %v1153 = vld [vmem:[%s683 + $0x1c] sm:$0xf]
      %v1154 = vld [vmem:[%s683 + $0x20] sm:$0xf]
      %v1155 = vld [vmem:[%s683 + $0x24] sm:$0xf]
      %v1156 = vld [vmem:[%s683 + $0x28] sm:$0xf]
      %v1157 = vld [vmem:[%s683 + $0x2c] sm:$0xf]
      %v1158 = vld [vmem:[%s683 + $0x30] sm:$0xf]
      %v1159 = vld [vmem:[%s683 + $0x34] sm:$0xf]
      %v1160 = vld [vmem:[%s683 + $0x38] sm:$0xf]
      %v1161 = vld [vmem:[%s683 + $0x3c] sm:$0xf]
      %v1162 = vld [vmem:[%s683 + $0x40] sm:$0xf]
      %v1163 = vld [vmem:[%s683 + $0x44] sm:$0xf]
      %v1164 = vld [vmem:[%s683 + $0x48] sm:$0xf]
      %v1165 = vld [vmem:[%s683 + $0x4c] sm:$0xf]
      %v1166 = vld [vmem:[%s683 + $0x50] sm:$0xf]
      %v1167 = vld [vmem:[%s683 + $0x54] sm:$0xf]
      %v1168 = vld [vmem:[%s683 + $0x58] sm:$0xf]
      %v1169 = vld [vmem:[%s683 + $0x5c] sm:$0xf]
      %v1170 = vld [vmem:[%s683 + $0x60] sm:$0xf]
      %v1171 = vld [vmem:[%s683 + $0x64] sm:$0xf]
      %v1172 = vld [vmem:[%s683 + $0x68] sm:$0xf]
      %v1173 = vld [vmem:[%s683 + $0x6c] sm:$0xf]
      %v1174 = vld [vmem:[%s683 + $0x70] sm:$0xf]
      %v1175 = vld [vmem:[%s683 + $0x74] sm:$0xf]
      %v1176 = vld [vmem:[%s683 + $0x78] sm:$0xf]
      %v1177 = vld [vmem:[%s683 + $0x7c] sm:$0xf]
      %v1210 = vunpack.c.l.b16 %v1146
      %v1211 = vunpack.c.l.b16 %v1147
      %v1212 = vunpack.c.l.b16 %v1148
      %v1213 = vunpack.c.l.b16 %v1149
      %v1214 = vunpack.c.l.b16 %v1150
      %v1215 = vunpack.c.l.b16 %v1151
      %v1216 = vunpack.c.l.b16 %v1152
      %v1217 = vunpack.c.l.b16 %v1153
      %v1218 = vunpack.c.l.b16 %v1154
      %v1219 = vunpack.c.l.b16 %v1155
      %v1220 = vunpack.c.l.b16 %v1156
      %v1221 = vunpack.c.l.b16 %v1157
      %v1222 = vunpack.c.l.b16 %v1158
      %v1223 = vunpack.c.l.b16 %v1159
      %v1224 = vunpack.c.l.b16 %v1160
      %v1225 = vunpack.c.l.b16 %v1161
      %v1226 = vunpack.c.l.b16 %v1162
      %v1227 = vunpack.c.l.b16 %v1163
      %v1228 = vunpack.c.l.b16 %v1164
      %v1229 = vunpack.c.l.b16 %v1165
      %v1230 = vunpack.c.l.b16 %v1166
      %v1231 = vunpack.c.l.b16 %v1167
      %v1232 = vunpack.c.l.b16 %v1168
      %v1233 = vunpack.c.l.b16 %v1169
      %v1234 = vunpack.c.l.b16 %v1170
      %v1235 = vunpack.c.l.b16 %v1171
      %v1236 = vunpack.c.l.b16 %v1172
      %v1237 = vunpack.c.l.b16 %v1173
      %v1238 = vunpack.c.l.b16 %v1174
      %v1239 = vunpack.c.l.b16 %v1175
      %v1240 = vunpack.c.l.b16 %v1176
      %v1241 = vunpack.c.l.b16 %v1177
      %v1242 = vpack.c.b16 %v1211, %v1210
      %v1243 = vpack.c.b16 %v1213, %v1212
      %v1244 = vpack.c.b16 %v1215, %v1214
      %v1245 = vpack.c.b16 %v1217, %v1216
      %v1246 = vpack.c.b16 %v1219, %v1218
      %v1247 = vpack.c.b16 %v1221, %v1220
      %v1248 = vpack.c.b16 %v1223, %v1222
      %v1249 = vpack.c.b16 %v1225, %v1224
      %v1250 = vpack.c.b16 %v1227, %v1226
      %v1251 = vpack.c.b16 %v1229, %v1228
      %v1252 = vpack.c.b16 %v1231, %v1230
      %v1253 = vpack.c.b16 %v1233, %v1232
      %v1254 = vpack.c.b16 %v1235, %v1234
      %v1255 = vpack.c.b16 %v1237, %v1236
      %v1256 = vpack.c.b16 %v1239, %v1238
      %v1257 = vpack.c.b16 %v1241, %v1240
      %v1259 = vshrl.u32 %v1242, 16
      %v1261 = vrot.slane %v1259, 7
      %v1262 = vshll.u32 %v1242, 16
      %v1264 = vor.u32 %v1261, %v1262
      %v1266 = vshrl.u32 %v1243, 16
      %v1268 = vrot.slane %v1266, 7
      %v1269 = vshll.u32 %v1243, 16
      %v1271 = vor.u32 %v1268, %v1269
      %v1273 = vshrl.u32 %v1244, 16
      %v1275 = vrot.slane %v1273, 7
      %v1276 = vshll.u32 %v1244, 16
      %v1278 = vor.u32 %v1275, %v1276
      %v1280 = vshrl.u32 %v1245, 16
      %v1282 = vrot.slane %v1280, 7
      %v1283 = vshll.u32 %v1245, 16
      %v1285 = vor.u32 %v1282, %v1283
      %v1287 = vshrl.u32 %v1246, 16
      %v1289 = vrot.slane %v1287, 7
      %v1290 = vshll.u32 %v1246, 16
      %v1292 = vor.u32 %v1289, %v1290
      %v1294 = vshrl.u32 %v1247, 16
      %v1296 = vrot.slane %v1294, 7
      %v1297 = vshll.u32 %v1247, 16
      %v1299 = vor.u32 %v1296, %v1297
      %v1301 = vshrl.u32 %v1248, 16
      %v1303 = vrot.slane %v1301, 7
      %v1304 = vshll.u32 %v1248, 16
      %v1306 = vor.u32 %v1303, %v1304
      %v1308 = vshrl.u32 %v1249, 16
      %v1310 = vrot.slane %v1308, 7
      %v1311 = vshll.u32 %v1249, 16
      %v1313 = vor.u32 %v1310, %v1311
      %v1315 = vshrl.u32 %v1250, 16
      %v1317 = vrot.slane %v1315, 7
      %v1318 = vshll.u32 %v1250, 16
      %v1320 = vor.u32 %v1317, %v1318
      %v1322 = vshrl.u32 %v1251, 16
      %v1324 = vrot.slane %v1322, 7
      %v1325 = vshll.u32 %v1251, 16
      %v1327 = vor.u32 %v1324, %v1325
      %v1329 = vshrl.u32 %v1252, 16
      %v1331 = vrot.slane %v1329, 7
      %v1332 = vshll.u32 %v1252, 16
      %v1334 = vor.u32 %v1331, %v1332
      %v1336 = vshrl.u32 %v1253, 16
      %v1338 = vrot.slane %v1336, 7
      %v1339 = vshll.u32 %v1253, 16
      %v1341 = vor.u32 %v1338, %v1339
      %v1343 = vshrl.u32 %v1254, 16
      %v1345 = vrot.slane %v1343, 7
      %v1346 = vshll.u32 %v1254, 16
      %v1348 = vor.u32 %v1345, %v1346
      %v1350 = vshrl.u32 %v1255, 16
      %v1352 = vrot.slane %v1350, 7
      %v1353 = vshll.u32 %v1255, 16
      %v1355 = vor.u32 %v1352, %v1353
      %v1357 = vshrl.u32 %v1256, 16
      %v1359 = vrot.slane %v1357, 7
      %v1360 = vshll.u32 %v1256, 16
      %v1362 = vor.u32 %v1359, %v1360
      %v1364 = vshrl.u32 %v1257, 16
      %v1366 = vrot.slane %v1364, 7
      %v1367 = vshll.u32 %v1257, 16
      %v1369 = vor.u32 %v1366, %v1367
      %v1386 = vsel %vm998, 0, %v1264
      %v1387 = vsel %vm998, 0, %v1271
      %v1388 = vsel %vm998, 0, %v1278
      %v1389 = vsel %vm998, 0, %v1285
      %v1390 = vsel %vm998, 0, %v1292
      %v1391 = vsel %vm998, 0, %v1299
      %v1392 = vsel %vm998, 0, %v1306
      %v1393 = vsel %vm998, 0, %v1313
      %v1394 = vsel %vm998, 0, %v1320
      %v1395 = vsel %vm998, 0, %v1327
      %v1396 = vsel %vm998, 0, %v1334
      %v1397 = vsel %vm998, 0, %v1341
      %v1398 = vsel %vm998, 0, %v1348
      %v1399 = vsel %vm998, 0, %v1355
      %v1400 = vsel %vm998, 0, %v1362
      %v1401 = vsel %vm998, 0, %v1369
      %v1402 = vrot.slane %v1262, 1
      %v1403 = vor.u32 %v1259, %v1402
      %v1404 = vrot.slane %v1269, 1
      %v1405 = vor.u32 %v1266, %v1404
      %v1406 = vrot.slane %v1276, 1
      %v1407 = vor.u32 %v1273, %v1406
      %v1408 = vrot.slane %v1283, 1
      %v1409 = vor.u32 %v1280, %v1408
      %v1410 = vrot.slane %v1290, 1
      %v1411 = vor.u32 %v1287, %v1410
      %v1412 = vrot.slane %v1297, 1
      %v1413 = vor.u32 %v1294, %v1412
      %v1414 = vrot.slane %v1304, 1
      %v1415 = vor.u32 %v1301, %v1414
      %v1416 = vrot.slane %v1311, 1
      %v1417 = vor.u32 %v1308, %v1416
      %v1418 = vrot.slane %v1318, 1
      %v1419 = vor.u32 %v1315, %v1418
      %v1420 = vrot.slane %v1325, 1
      %v1421 = vor.u32 %v1322, %v1420
      %v1422 = vrot.slane %v1332, 1
      %v1423 = vor.u32 %v1329, %v1422
      %v1424 = vrot.slane %v1339, 1
      %v1425 = vor.u32 %v1336, %v1424
      %v1426 = vrot.slane %v1346, 1
      %v1427 = vor.u32 %v1343, %v1426
      %v1428 = vrot.slane %v1353, 1
      %v1429 = vor.u32 %v1350, %v1428
      %v1430 = vrot.slane %v1360, 1
      %v1431 = vor.u32 %v1357, %v1430
      %v1432 = vrot.slane %v1367, 1
      %v1433 = vor.u32 %v1364, %v1432
      %v1450 = vsel %vm1065, %v1403, 0
      %v1451 = vsel %vm1065, %v1405, 0
      %v1452 = vsel %vm1065, %v1407, 0
      %v1453 = vsel %vm1065, %v1409, 0
      %v1454 = vsel %vm1065, %v1411, 0
      %v1455 = vsel %vm1065, %v1413, 0
      %v1456 = vsel %vm1065, %v1415, 0
      %v1457 = vsel %vm1065, %v1417, 0
      %v1458 = vsel %vm1065, %v1419, 0
      %v1459 = vsel %vm1065, %v1421, 0
      %v1460 = vsel %vm1065, %v1423, 0
      %v1461 = vsel %vm1065, %v1425, 0
      %v1462 = vsel %vm1065, %v1427, 0
      %v1463 = vsel %vm1065, %v1429, 0
      %v1464 = vsel %vm1065, %v1431, 0
      %v1465 = vsel %vm1065, %v1433, 0
      %s1482 = scalar_lea.vmem %s2, 192
      %v1483 = vld [vmem:[%s1482] sm:$0xf]
      %v1484 = vld [vmem:[%s1482 + $0x4] sm:$0xf]
      %v1485 = vld [vmem:[%s1482 + $0x8] sm:$0xf]
      %v1486 = vld [vmem:[%s1482 + $0xc] sm:$0xf]
      %v1487 = vld [vmem:[%s1482 + $0x10] sm:$0xf]
      %v1488 = vld [vmem:[%s1482 + $0x14] sm:$0xf]
      %v1489 = vld [vmem:[%s1482 + $0x18] sm:$0xf]
      %v1490 = vld [vmem:[%s1482 + $0x1c] sm:$0xf]
      %v1491 = vld [vmem:[%s1482 + $0x20] sm:$0xf]
      %v1492 = vld [vmem:[%s1482 + $0x24] sm:$0xf]
      %v1493 = vld [vmem:[%s1482 + $0x28] sm:$0xf]
      %v1494 = vld [vmem:[%s1482 + $0x2c] sm:$0xf]
      %v1495 = vld [vmem:[%s1482 + $0x30] sm:$0xf]
      %v1496 = vld [vmem:[%s1482 + $0x34] sm:$0xf]
      %v1497 = vld [vmem:[%s1482 + $0x38] sm:$0xf]
      %v1498 = vld [vmem:[%s1482 + $0x3c] sm:$0xf]
      %v1499 = vld [vmem:[%s1482 + $0x40] sm:$0xf]
      %v1500 = vld [vmem:[%s1482 + $0x44] sm:$0xf]
      %v1501 = vld [vmem:[%s1482 + $0x48] sm:$0xf]
      %v1502 = vld [vmem:[%s1482 + $0x4c] sm:$0xf]
      %v1503 = vld [vmem:[%s1482 + $0x50] sm:$0xf]
      %v1504 = vld [vmem:[%s1482 + $0x54] sm:$0xf]
      %v1505 = vld [vmem:[%s1482 + $0x58] sm:$0xf]
      %v1506 = vld [vmem:[%s1482 + $0x5c] sm:$0xf]
      %v1507 = vld [vmem:[%s1482 + $0x60] sm:$0xf]
      %v1508 = vld [vmem:[%s1482 + $0x64] sm:$0xf]
      %v1509 = vld [vmem:[%s1482 + $0x68] sm:$0xf]
      %v1510 = vld [vmem:[%s1482 + $0x6c] sm:$0xf]
      %v1511 = vld [vmem:[%s1482 + $0x70] sm:$0xf]
      %v1512 = vld [vmem:[%s1482 + $0x74] sm:$0xf]
      %v1513 = vld [vmem:[%s1482 + $0x78] sm:$0xf]
      %v1514 = vld [vmem:[%s1482 + $0x7c] sm:$0xf]
      %v1515 = vld [vmem:[%s1482 + $0x80] sm:$0xf]
      %v1516 = vld [vmem:[%s1482 + $0x84] sm:$0xf]
      %v1517 = vld [vmem:[%s1482 + $0x88] sm:$0xf]
      %v1518 = vld [vmem:[%s1482 + $0x8c] sm:$0xf]
      %v1519 = vld [vmem:[%s1482 + $0x90] sm:$0xf]
      %v1520 = vld [vmem:[%s1482 + $0x94] sm:$0xf]
      %v1521 = vld [vmem:[%s1482 + $0x98] sm:$0xf]
      %v1522 = vld [vmem:[%s1482 + $0x9c] sm:$0xf]
      %v1523 = vld [vmem:[%s1482 + $0xa0] sm:$0xf]
      %v1524 = vld [vmem:[%s1482 + $0xa4] sm:$0xf]
      %v1525 = vld [vmem:[%s1482 + $0xa8] sm:$0xf]
      %v1526 = vld [vmem:[%s1482 + $0xac] sm:$0xf]
      %v1527 = vld [vmem:[%s1482 + $0xb0] sm:$0xf]
      %v1528 = vld [vmem:[%s1482 + $0xb4] sm:$0xf]
      %v1529 = vld [vmem:[%s1482 + $0xb8] sm:$0xf]
      %v1530 = vld [vmem:[%s1482 + $0xbc] sm:$0xf]
      %v1579 = vunpack.c.l.b16 %v1483
      %v1580 = vunpack.c.l.b16 %v1484
      %v1581 = vunpack.c.l.b16 %v1485
      %v1582 = vunpack.c.l.b16 %v1486
      %v1583 = vunpack.c.l.b16 %v1487
      %v1584 = vunpack.c.l.b16 %v1488
      %v1585 = vunpack.c.l.b16 %v1489
      %v1586 = vunpack.c.l.b16 %v1490
      %v1587 = vunpack.c.l.b16 %v1491
      %v1588 = vunpack.c.l.b16 %v1492
      %v1589 = vunpack.c.l.b16 %v1493
      %v1590 = vunpack.c.l.b16 %v1494
      %v1591 = vunpack.c.l.b16 %v1495
      %v1592 = vunpack.c.l.b16 %v1496
      %v1593 = vunpack.c.l.b16 %v1497
      %v1594 = vunpack.c.l.b16 %v1498
      %v1595 = vunpack.c.l.b16 %v1499
      %v1596 = vunpack.c.l.b16 %v1500
      %v1597 = vunpack.c.l.b16 %v1501
      %v1598 = vunpack.c.l.b16 %v1502
      %v1599 = vunpack.c.l.b16 %v1503
      %v1600 = vunpack.c.l.b16 %v1504
      %v1601 = vunpack.c.l.b16 %v1505
      %v1602 = vunpack.c.l.b16 %v1506
      %v1603 = vunpack.c.l.b16 %v1507
      %v1604 = vunpack.c.l.b16 %v1508
      %v1605 = vunpack.c.l.b16 %v1509
      %v1606 = vunpack.c.l.b16 %v1510
      %v1607 = vunpack.c.l.b16 %v1511
      %v1608 = vunpack.c.l.b16 %v1512
      %v1609 = vunpack.c.l.b16 %v1513
      %v1610 = vunpack.c.l.b16 %v1514
      %v1611 = vunpack.c.l.b16 %v1515
      %v1612 = vunpack.c.l.b16 %v1516
      %v1613 = vunpack.c.l.b16 %v1517
      %v1614 = vunpack.c.l.b16 %v1518
      %v1615 = vunpack.c.l.b16 %v1519
      %v1616 = vunpack.c.l.b16 %v1520
      %v1617 = vunpack.c.l.b16 %v1521
      %v1618 = vunpack.c.l.b16 %v1522
      %v1619 = vunpack.c.l.b16 %v1523
      %v1620 = vunpack.c.l.b16 %v1524
      %v1621 = vunpack.c.l.b16 %v1525
      %v1622 = vunpack.c.l.b16 %v1526
      %v1623 = vunpack.c.l.b16 %v1527
      %v1624 = vunpack.c.l.b16 %v1528
      %v1625 = vunpack.c.l.b16 %v1529
      %v1626 = vunpack.c.l.b16 %v1530
      %v1627 = vpack.c.b16 %v1580, %v1579
      %v1628 = vpack.c.b16 %v1582, %v1581
      %v1629 = vpack.c.b16 %v1584, %v1583
      %v1630 = vpack.c.b16 %v1586, %v1585
      %v1631 = vpack.c.b16 %v1588, %v1587
      %v1632 = vpack.c.b16 %v1590, %v1589
      %v1633 = vpack.c.b16 %v1592, %v1591
      %v1634 = vpack.c.b16 %v1594, %v1593
      %v1635 = vpack.c.b16 %v1596, %v1595
      %v1636 = vpack.c.b16 %v1598, %v1597
      %v1637 = vpack.c.b16 %v1600, %v1599
      %v1638 = vpack.c.b16 %v1602, %v1601
      %v1639 = vpack.c.b16 %v1604, %v1603
      %v1640 = vpack.c.b16 %v1606, %v1605
      %v1641 = vpack.c.b16 %v1608, %v1607
      %v1642 = vpack.c.b16 %v1610, %v1609
      %v1643 = vpack.c.b16 %v1612, %v1611
      %v1644 = vpack.c.b16 %v1614, %v1613
      %v1645 = vpack.c.b16 %v1616, %v1615
      %v1646 = vpack.c.b16 %v1618, %v1617
      %v1647 = vpack.c.b16 %v1620, %v1619
      %v1648 = vpack.c.b16 %v1622, %v1621
      %v1649 = vpack.c.b16 %v1624, %v1623
      %v1650 = vpack.c.b16 %v1626, %v1625
      %1675 = vmatprep.subr.bf16.mxu0 0
      %1676 = vmatpush1.bf16.msra.mxu0 %v1634
      %1677 = vmatprep.subr.bf16.mxu0 0
      %1678 = vmatpush1.bf16.msra.mxu0 %v1633
      %1679 = vmatprep.subr.bf16.mxu0 0
      %1680 = vmatpush1.bf16.msra.mxu0 %v1632
      %1681 = vmatprep.subr.bf16.mxu0 0
      %1682 = vmatpush1.bf16.msra.mxu0 %v1631
      %1683 = vmatprep.subr.bf16.mxu0 0
      %1684 = vmatpush1.bf16.msra.mxu0 %v1630
      %1685 = vmatprep.subr.bf16.mxu0 0
      %1686 = vmatpush1.bf16.msra.mxu0 %v1629
      %1687 = vmatprep.subr.bf16.mxu0 0
      %1688 = vmatpush1.bf16.msra.mxu0 %v1628
      %1689 = vmatprep.subr.bf16.mxu0 0
      %1690 = vmatpush1.bf16.msra.mxu0 %v1627
      %1691 = vmatprep.subr.bf16.mxu0 0
      %1692 = vmatpush2.bf16.msra.mxu0 %v1642
      %1693 = vmatprep.subr.bf16.mxu0 0
      %1694 = vmatpush2.bf16.msra.mxu0 %v1641
      %1695 = vmatprep.subr.bf16.mxu0 0
      %1696 = vmatpush2.bf16.msra.mxu0 %v1640
      %1697 = vmatprep.subr.bf16.mxu0 0
      %1698 = vmatpush2.bf16.msra.mxu0 %v1639
      %1699 = vmatprep.subr.bf16.mxu0 0
      %1700 = vmatpush2.bf16.msra.mxu0 %v1638
      %1701 = vmatprep.subr.bf16.mxu0 0
      %1702 = vmatpush2.bf16.msra.mxu0 %v1637
      %1703 = vmatprep.subr.bf16.mxu0 0
      %1704 = vmatpush2.bf16.msra.mxu0 %v1636
      %1705 = vmatprep.subr.bf16.mxu0 0
      %1706 = vmatpush2.bf16.msra.mxu0 %v1635
      %1707 = vmatprep.mubr.bf16.mxu0 %v1242
      %1708 = vmatmul.mubr.bf16.gmra.mxu0 %v1386
      %v1709 = vpop.f32.mrf.mxu0
      %v1710 = vadd.f32 0.0, %v1709
      %v1711 = vpop.f32.mrf.mxu0
      %v1712 = vpop.f32.mrf.mxu0
      %v1713 = vadd.f32 0.0, %v1712
      %v1714 = vpop.f32.mrf.mxu0
      %1715 = vmatprep.mubr.bf16.mxu0 %v1243
      %1716 = vmatmul.mubr.bf16.gmra.mxu0 %v1387
      %v1717 = vpop.f32.mrf.mxu0
      %v1718 = vadd.f32 0.0, %v1717
      %v1719 = vpop.f32.mrf.mxu0
      %v1720 = vpop.f32.mrf.mxu0
      %v1721 = vadd.f32 0.0, %v1720
      %v1722 = vpop.f32.mrf.mxu0
      %1723 = vmatprep.mubr.bf16.mxu0 %v1244
      %1724 = vmatmul.mubr.bf16.gmra.mxu0 %v1388
      %v1725 = vpop.f32.mrf.mxu0
      %v1726 = vadd.f32 0.0, %v1725
      %v1727 = vpop.f32.mrf.mxu0
      %v1728 = vpop.f32.mrf.mxu0
      %v1729 = vadd.f32 0.0, %v1728
      %v1730 = vpop.f32.mrf.mxu0
      %1731 = vmatprep.mubr.bf16.mxu0 %v1245
      %1732 = vmatmul.mubr.bf16.gmra.mxu0 %v1389
      %v1733 = vpop.f32.mrf.mxu0
      %v1734 = vadd.f32 0.0, %v1733
      %v1735 = vpop.f32.mrf.mxu0
      %v1736 = vpop.f32.mrf.mxu0
      %v1737 = vadd.f32 0.0, %v1736
      %v1738 = vpop.f32.mrf.mxu0
      %1739 = vmatprep.mubr.bf16.mxu0 %v1246
      %1740 = vmatmul.mubr.bf16.gmra.mxu0 %v1390
      %v1741 = vpop.f32.mrf.mxu0
      %v1742 = vadd.f32 0.0, %v1741
      %v1743 = vpop.f32.mrf.mxu0
      %v1744 = vpop.f32.mrf.mxu0
      %v1745 = vadd.f32 0.0, %v1744
      %v1746 = vpop.f32.mrf.mxu0
      %1747 = vmatprep.mubr.bf16.mxu0 %v1247
      %1748 = vmatmul.mubr.bf16.gmra.mxu0 %v1391
      %v1749 = vpop.f32.mrf.mxu0
      %v1750 = vadd.f32 0.0, %v1749
      %v1751 = vpop.f32.mrf.mxu0
      %v1752 = vpop.f32.mrf.mxu0
      %v1753 = vadd.f32 0.0, %v1752
      %v1754 = vpop.f32.mrf.mxu0
      %1755 = vmatprep.mubr.bf16.mxu0 %v1248
      %1756 = vmatmul.mubr.bf16.gmra.mxu0 %v1392
      %v1757 = vpop.f32.mrf.mxu0
      %v1758 = vadd.f32 0.0, %v1757
      %v1759 = vpop.f32.mrf.mxu0
      %v1760 = vpop.f32.mrf.mxu0
      %v1761 = vadd.f32 0.0, %v1760
      %v1762 = vpop.f32.mrf.mxu0
      %1763 = vmatprep.mubr.bf16.mxu0 %v1249
      %1764 = vmatmul.mubr.bf16.gmra.mxu0 %v1393
      %v1765 = vpop.f32.mrf.mxu0
      %v1766 = vadd.f32 0.0, %v1765
      %v1767 = vpop.f32.mrf.mxu0
      %v1768 = vpop.f32.mrf.mxu0
      %v1769 = vadd.f32 0.0, %v1768
      %v1770 = vpop.f32.mrf.mxu0
      %1771 = vmatprep.mubr.bf16.mxu0 %v1250
      %1772 = vmatmul.mubr.bf16.gmra.mxu0 %v1394
      %v1773 = vpop.f32.mrf.mxu0
      %v1774 = vadd.f32 0.0, %v1773
      %v1775 = vpop.f32.mrf.mxu0
      %v1776 = vpop.f32.mrf.mxu0
      %v1777 = vadd.f32 0.0, %v1776
      %v1778 = vpop.f32.mrf.mxu0
      %1779 = vmatprep.mubr.bf16.mxu0 %v1251
      %1780 = vmatmul.mubr.bf16.gmra.mxu0 %v1395
      %v1781 = vpop.f32.mrf.mxu0
      %v1782 = vadd.f32 0.0, %v1781
      %v1783 = vpop.f32.mrf.mxu0
      %v1784 = vpop.f32.mrf.mxu0
      %v1785 = vadd.f32 0.0, %v1784
      %v1786 = vpop.f32.mrf.mxu0
      %1787 = vmatprep.mubr.bf16.mxu0 %v1252
      %1788 = vmatmul.mubr.bf16.gmra.mxu0 %v1396
      %v1789 = vpop.f32.mrf.mxu0
      %v1790 = vadd.f32 0.0, %v1789
      %v1791 = vpop.f32.mrf.mxu0
      %v1792 = vpop.f32.mrf.mxu0
      %v1793 = vadd.f32 0.0, %v1792
      %v1794 = vpop.f32.mrf.mxu0
      %1795 = vmatprep.mubr.bf16.mxu0 %v1253
      %1796 = vmatmul.mubr.bf16.gmra.mxu0 %v1397
      %v1797 = vpop.f32.mrf.mxu0
      %v1798 = vadd.f32 0.0, %v1797
      %v1799 = vpop.f32.mrf.mxu0
      %v1800 = vpop.f32.mrf.mxu0
      %v1801 = vadd.f32 0.0, %v1800
      %v1802 = vpop.f32.mrf.mxu0
      %1803 = vmatprep.mubr.bf16.mxu0 %v1254
      %1804 = vmatmul.mubr.bf16.gmra.mxu0 %v1398
      %v1805 = vpop.f32.mrf.mxu0
      %v1806 = vadd.f32 0.0, %v1805
      %v1807 = vpop.f32.mrf.mxu0
      %v1808 = vpop.f32.mrf.mxu0
      %v1809 = vadd.f32 0.0, %v1808
      %v1810 = vpop.f32.mrf.mxu0
      %1811 = vmatprep.mubr.bf16.mxu0 %v1255
      %1812 = vmatmul.mubr.bf16.gmra.mxu0 %v1399
      %v1813 = vpop.f32.mrf.mxu0
      %v1814 = vadd.f32 0.0, %v1813
      %v1815 = vpop.f32.mrf.mxu0
      %v1816 = vpop.f32.mrf.mxu0
      %v1817 = vadd.f32 0.0, %v1816
      %v1818 = vpop.f32.mrf.mxu0
      %1819 = vmatprep.mubr.bf16.mxu0 %v1256
      %1820 = vmatmul.mubr.bf16.gmra.mxu0 %v1400
      %v1821 = vpop.f32.mrf.mxu0
      %v1822 = vadd.f32 0.0, %v1821
      %v1823 = vpop.f32.mrf.mxu0
      %v1824 = vpop.f32.mrf.mxu0
      %v1825 = vadd.f32 0.0, %v1824
      %v1826 = vpop.f32.mrf.mxu0
      %1827 = vmatprep.mubr.bf16.mxu0 %v1257
      %1828 = vmatmul.mubr.bf16.gmra.mxu0 %v1401
      %v1829 = vpop.f32.mrf.mxu0
      %v1830 = vadd.f32 0.0, %v1829
      %v1831 = vpop.f32.mrf.mxu0
      %v1832 = vpop.f32.mrf.mxu0
      %v1833 = vadd.f32 0.0, %v1832
      %v1834 = vpop.f32.mrf.mxu0
      %1835 = vdwg.mxu0
      %1836 = vmatprep.subr.bf16.mxu0 0
      %1837 = vmatpush1.bf16.msra.mxu0 %v1650
      %1838 = vmatprep.subr.bf16.mxu0 0
      %1839 = vmatpush1.bf16.msra.mxu0 %v1649
      %1840 = vmatprep.subr.bf16.mxu0 0
      %1841 = vmatpush1.bf16.msra.mxu0 %v1648
      %1842 = vmatprep.subr.bf16.mxu0 0
      %1843 = vmatpush1.bf16.msra.mxu0 %v1647
      %1844 = vmatprep.subr.bf16.mxu0 0
      %1845 = vmatpush1.bf16.msra.mxu0 %v1646
      %1846 = vmatprep.subr.bf16.mxu0 0
      %1847 = vmatpush1.bf16.msra.mxu0 %v1645
      %1848 = vmatprep.subr.bf16.mxu0 0
      %1849 = vmatpush1.bf16.msra.mxu0 %v1644
      %1850 = vmatprep.subr.bf16.mxu0 0
      %1851 = vmatpush1.bf16.msra.mxu0 %v1643
      %1852 = vmatprep.subr.bf16.mxu0 0
      %1853 = vmatpush2.bf16.msra.mxu0 0
      %1854 = vmatprep.subr.bf16.mxu0 0
      %1855 = vmatpush2.bf16.msra.mxu0 0
      %1856 = vmatprep.subr.bf16.mxu0 0
      %1857 = vmatpush2.bf16.msra.mxu0 0
      %1858 = vmatprep.subr.bf16.mxu0 0
      %1859 = vmatpush2.bf16.msra.mxu0 0
      %1860 = vmatprep.subr.bf16.mxu0 0
      %1861 = vmatpush2.bf16.msra.mxu0 0
      %1862 = vmatprep.subr.bf16.mxu0 0
      %1863 = vmatpush2.bf16.msra.mxu0 0
      %1864 = vmatprep.subr.bf16.mxu0 0
      %1865 = vmatpush2.bf16.msra.mxu0 0
      %1866 = vmatprep.subr.bf16.mxu0 0
      %1867 = vmatpush2.bf16.msra.mxu0 0
      %1868 = vmatprep.mubr.bf16.mxu0 0
      %1869 = vmatmul.mubr.bf16.gmra.mxu0 %v1450
      %v1870 = vpop.f32.mrf.mxu0
      %v1871 = vadd.f32 %v1710, %v1870
      %v1872 = vpop.f32.mrf.mxu0
      %v1873 = vpop.f32.mrf.mxu0
      %v1874 = vadd.f32 %v1713, %v1873
      %v1875 = vpop.f32.mrf.mxu0
      %1876 = vmatprep.mubr.bf16.mxu0 0
      %1877 = vmatmul.mubr.bf16.gmra.mxu0 %v1451
      %v1878 = vpop.f32.mrf.mxu0
      %v1879 = vadd.f32 %v1718, %v1878
      %v1880 = vpop.f32.mrf.mxu0
      %v1881 = vpop.f32.mrf.mxu0
      %v1882 = vadd.f32 %v1721, %v1881
      %v1883 = vpop.f32.mrf.mxu0
      %1884 = vmatprep.mubr.bf16.mxu0 0
      %1885 = vmatmul.mubr.bf16.gmra.mxu0 %v1452
      %v1886 = vpop.f32.mrf.mxu0
      %v1887 = vadd.f32 %v1726, %v1886
      %v1888 = vpop.f32.mrf.mxu0
      %v1889 = vpop.f32.mrf.mxu0
      %v1890 = vadd.f32 %v1729, %v1889
      %v1891 = vpop.f32.mrf.mxu0
      %1892 = vmatprep.mubr.bf16.mxu0 0
      %1893 = vmatmul.mubr.bf16.gmra.mxu0 %v1453
      %v1894 = vpop.f32.mrf.mxu0
      %v1895 = vadd.f32 %v1734, %v1894
      %v1896 = vpop.f32.mrf.mxu0
      %v1897 = vpop.f32.mrf.mxu0
      %v1898 = vadd.f32 %v1737, %v1897
      %v1899 = vpop.f32.mrf.mxu0
      %1900 = vmatprep.mubr.bf16.mxu0 0
      %1901 = vmatmul.mubr.bf16.gmra.mxu0 %v1454
      %v1902 = vpop.f32.mrf.mxu0
      %v1903 = vadd.f32 %v1742, %v1902
      %v1904 = vpop.f32.mrf.mxu0
      %v1905 = vpop.f32.mrf.mxu0
      %v1906 = vadd.f32 %v1745, %v1905
      %v1907 = vpop.f32.mrf.mxu0
      %1908 = vmatprep.mubr.bf16.mxu0 0
      %1909 = vmatmul.mubr.bf16.gmra.mxu0 %v1455
      %v1910 = vpop.f32.mrf.mxu0
      %v1911 = vadd.f32 %v1750, %v1910
      %v1912 = vpop.f32.mrf.mxu0
      %v1913 = vpop.f32.mrf.mxu0
      %v1914 = vadd.f32 %v1753, %v1913
      %v1915 = vpop.f32.mrf.mxu0
      %1916 = vmatprep.mubr.bf16.mxu0 0
      %1917 = vmatmul.mubr.bf16.gmra.mxu0 %v1456
      %v1918 = vpop.f32.mrf.mxu0
      %v1919 = vadd.f32 %v1758, %v1918
      %v1920 = vpop.f32.mrf.mxu0
      %v1921 = vpop.f32.mrf.mxu0
      %v1922 = vadd.f32 %v1761, %v1921
      %v1923 = vpop.f32.mrf.mxu0
      %1924 = vmatprep.mubr.bf16.mxu0 0
      %1925 = vmatmul.mubr.bf16.gmra.mxu0 %v1457
      %v1926 = vpop.f32.mrf.mxu0
      %v1927 = vadd.f32 %v1766, %v1926
      %v1928 = vpop.f32.mrf.mxu0
      %v1929 = vpop.f32.mrf.mxu0
      %v1930 = vadd.f32 %v1769, %v1929
      %v1931 = vpop.f32.mrf.mxu0
      %1932 = vmatprep.mubr.bf16.mxu0 0
      %1933 = vmatmul.mubr.bf16.gmra.mxu0 %v1458
      %v1934 = vpop.f32.mrf.mxu0
      %v1935 = vadd.f32 %v1774, %v1934
      %v1936 = vpop.f32.mrf.mxu0
      %v1937 = vpop.f32.mrf.mxu0
      %v1938 = vadd.f32 %v1777, %v1937
      %v1939 = vpop.f32.mrf.mxu0
      %1940 = vmatprep.mubr.bf16.mxu0 0
      %1941 = vmatmul.mubr.bf16.gmra.mxu0 %v1459
      %v1942 = vpop.f32.mrf.mxu0
      %v1943 = vadd.f32 %v1782, %v1942
      %v1944 = vpop.f32.mrf.mxu0
      %v1945 = vpop.f32.mrf.mxu0
      %v1946 = vadd.f32 %v1785, %v1945
      %v1947 = vpop.f32.mrf.mxu0
      %1948 = vmatprep.mubr.bf16.mxu0 0
      %1949 = vmatmul.mubr.bf16.gmra.mxu0 %v1460
      %v1950 = vpop.f32.mrf.mxu0
      %v1951 = vadd.f32 %v1790, %v1950
      %v1952 = vpop.f32.mrf.mxu0
      %v1953 = vpop.f32.mrf.mxu0
      %v1954 = vadd.f32 %v1793, %v1953
      %v1955 = vpop.f32.mrf.mxu0
      %1956 = vmatprep.mubr.bf16.mxu0 0
      %1957 = vmatmul.mubr.bf16.gmra.mxu0 %v1461
      %v1958 = vpop.f32.mrf.mxu0
      %v1959 = vadd.f32 %v1798, %v1958
      %v1960 = vpop.f32.mrf.mxu0
      %v1961 = vpop.f32.mrf.mxu0
      %v1962 = vadd.f32 %v1801, %v1961
      %v1963 = vpop.f32.mrf.mxu0
      %1964 = vmatprep.mubr.bf16.mxu0 0
      %1965 = vmatmul.mubr.bf16.gmra.mxu0 %v1462
      %v1966 = vpop.f32.mrf.mxu0
      %v1967 = vadd.f32 %v1806, %v1966
      %v1968 = vpop.f32.mrf.mxu0
      %v1969 = vpop.f32.mrf.mxu0
      %v1970 = vadd.f32 %v1809, %v1969
      %v1971 = vpop.f32.mrf.mxu0
      %1972 = vmatprep.mubr.bf16.mxu0 0
      %1973 = vmatmul.mubr.bf16.gmra.mxu0 %v1463
      %v1974 = vpop.f32.mrf.mxu0
      %v1975 = vadd.f32 %v1814, %v1974
      %v1976 = vpop.f32.mrf.mxu0
      %v1977 = vpop.f32.mrf.mxu0
      %v1978 = vadd.f32 %v1817, %v1977
      %v1979 = vpop.f32.mrf.mxu0
      %1980 = vmatprep.mubr.bf16.mxu0 0
      %1981 = vmatmul.mubr.bf16.gmra.mxu0 %v1464
      %v1982 = vpop.f32.mrf.mxu0
      %v1983 = vadd.f32 %v1822, %v1982
      %v1984 = vpop.f32.mrf.mxu0
      %v1985 = vpop.f32.mrf.mxu0
      %v1986 = vadd.f32 %v1825, %v1985
      %v1987 = vpop.f32.mrf.mxu0
      %1988 = vmatprep.mubr.bf16.mxu0 0
      %1989 = vmatmul.mubr.bf16.gmra.mxu0 %v1465
      %v1990 = vpop.f32.mrf.mxu0
      %v1991 = vadd.f32 %v1830, %v1990
      %v1992 = vpop.f32.mrf.mxu0
      %v1993 = vpop.f32.mrf.mxu0
      %v1994 = vadd.f32 %v1833, %v1993
      %v1995 = vpop.f32.mrf.mxu0
      %1996 = vdwg.mxu0
      %v2045 = vunpack.c.l.b16 %v1098
      %v2046 = vunpack.c.l.b16 %v1099
      %v2047 = vunpack.c.l.b16 %v1100
      %v2048 = vunpack.c.l.b16 %v1101
      %v2049 = vunpack.c.l.b16 %v1102
      %v2050 = vunpack.c.l.b16 %v1103
      %v2051 = vunpack.c.l.b16 %v1104
      %v2052 = vunpack.c.l.b16 %v1105
      %v2053 = vunpack.c.l.b16 %v1106
      %v2054 = vunpack.c.l.b16 %v1107
      %v2055 = vunpack.c.l.b16 %v1108
      %v2056 = vunpack.c.l.b16 %v1109
      %v2057 = vunpack.c.l.b16 %v1110
      %v2058 = vunpack.c.l.b16 %v1111
      %v2059 = vunpack.c.l.b16 %v1112
      %v2060 = vunpack.c.l.b16 %v1113
      %v2061 = vunpack.c.l.b16 %v1114
      %v2062 = vunpack.c.l.b16 %v1115
      %v2063 = vunpack.c.l.b16 %v1116
      %v2064 = vunpack.c.l.b16 %v1117
      %v2065 = vunpack.c.l.b16 %v1118
      %v2066 = vunpack.c.l.b16 %v1119
      %v2067 = vunpack.c.l.b16 %v1120
      %v2068 = vunpack.c.l.b16 %v1121
      %v2069 = vunpack.c.l.b16 %v1122
      %v2070 = vunpack.c.l.b16 %v1123
      %v2071 = vunpack.c.l.b16 %v1124
      %v2072 = vunpack.c.l.b16 %v1125
      %v2073 = vunpack.c.l.b16 %v1126
      %v2074 = vunpack.c.l.b16 %v1127
      %v2075 = vunpack.c.l.b16 %v1128
      %v2076 = vunpack.c.l.b16 %v1129
      %v2077 = vunpack.c.l.b16 %v1130
      %v2078 = vunpack.c.l.b16 %v1131
      %v2079 = vunpack.c.l.b16 %v1132
      %v2080 = vunpack.c.l.b16 %v1133
      %v2081 = vunpack.c.l.b16 %v1134
      %v2082 = vunpack.c.l.b16 %v1135
      %v2083 = vunpack.c.l.b16 %v1136
      %v2084 = vunpack.c.l.b16 %v1137
      %v2085 = vunpack.c.l.b16 %v1138
      %v2086 = vunpack.c.l.b16 %v1139
      %v2087 = vunpack.c.l.b16 %v1140
      %v2088 = vunpack.c.l.b16 %v1141
      %v2089 = vunpack.c.l.b16 %v1142
      %v2090 = vunpack.c.l.b16 %v1143
      %v2091 = vunpack.c.l.b16 %v1144
      %v2092 = vunpack.c.l.b16 %v1145
      %v2093 = vpack.c.b16 %v2046, %v2045
      %v2094 = vpack.c.b16 %v2048, %v2047
      %v2095 = vpack.c.b16 %v2050, %v2049
      %v2096 = vpack.c.b16 %v2052, %v2051
      %v2097 = vpack.c.b16 %v2054, %v2053
      %v2098 = vpack.c.b16 %v2056, %v2055
      %v2099 = vpack.c.b16 %v2058, %v2057
      %v2100 = vpack.c.b16 %v2060, %v2059
      %v2101 = vpack.c.b16 %v2062, %v2061
      %v2102 = vpack.c.b16 %v2064, %v2063
      %v2103 = vpack.c.b16 %v2066, %v2065
      %v2104 = vpack.c.b16 %v2068, %v2067
      %v2105 = vpack.c.b16 %v2070, %v2069
      %v2106 = vpack.c.b16 %v2072, %v2071
      %v2107 = vpack.c.b16 %v2074, %v2073
      %v2108 = vpack.c.b16 %v2076, %v2075
      %v2109 = vpack.c.b16 %v2078, %v2077
      %v2110 = vpack.c.b16 %v2080, %v2079
      %v2111 = vpack.c.b16 %v2082, %v2081
      %v2112 = vpack.c.b16 %v2084, %v2083
      %v2113 = vpack.c.b16 %v2086, %v2085
      %v2114 = vpack.c.b16 %v2088, %v2087
      %v2115 = vpack.c.b16 %v2090, %v2089
      %v2116 = vpack.c.b16 %v2092, %v2091
      %2141 = vmatprep.subr.bf16.mxu0 0
      %2142 = vmatpush1.bf16.msra.mxu0 %v2100
      %2143 = vmatprep.subr.bf16.mxu0 0
      %2144 = vmatpush1.bf16.msra.mxu0 %v2099
      %2145 = vmatprep.subr.bf16.mxu0 0
      %2146 = vmatpush1.bf16.msra.mxu0 %v2098
      %2147 = vmatprep.subr.bf16.mxu0 0
      %2148 = vmatpush1.bf16.msra.mxu0 %v2097
      %2149 = vmatprep.subr.bf16.mxu0 0
      %2150 = vmatpush1.bf16.msra.mxu0 %v2096
      %2151 = vmatprep.subr.bf16.mxu0 0
      %2152 = vmatpush1.bf16.msra.mxu0 %v2095
      %2153 = vmatprep.subr.bf16.mxu0 0
      %2154 = vmatpush1.bf16.msra.mxu0 %v2094
      %2155 = vmatprep.subr.bf16.mxu0 0
      %2156 = vmatpush1.bf16.msra.mxu0 %v2093
      %2157 = vmatprep.subr.bf16.mxu0 0
      %2158 = vmatpush2.bf16.msra.mxu0 %v2108
      %2159 = vmatprep.subr.bf16.mxu0 0
      %2160 = vmatpush2.bf16.msra.mxu0 %v2107
      %2161 = vmatprep.subr.bf16.mxu0 0
      %2162 = vmatpush2.bf16.msra.mxu0 %v2106
      %2163 = vmatprep.subr.bf16.mxu0 0
      %2164 = vmatpush2.bf16.msra.mxu0 %v2105
      %2165 = vmatprep.subr.bf16.mxu0 0
      %2166 = vmatpush2.bf16.msra.mxu0 %v2104
      %2167 = vmatprep.subr.bf16.mxu0 0
      %2168 = vmatpush2.bf16.msra.mxu0 %v2103
      %2169 = vmatprep.subr.bf16.mxu0 0
      %2170 = vmatpush2.bf16.msra.mxu0 %v2102
      %2171 = vmatprep.subr.bf16.mxu0 0
      %2172 = vmatpush2.bf16.msra.mxu0 %v2101
      %2173 = vmatprep.mubr.bf16.mxu0 %v852
      %2174 = vmatmul.mubr.bf16.gmra.mxu0 %v999
      %v2175 = vpop.f32.mrf.mxu0
      %v2176 = vadd.f32 %v1871, %v2175
      %v2177 = vpop.f32.mrf.mxu0
      %v2178 = vpop.f32.mrf.mxu0
      %v2179 = vadd.f32 %v1874, %v2178
      %v2180 = vpop.f32.mrf.mxu0
      %2181 = vmatprep.mubr.bf16.mxu0 %v853
      %2182 = vmatmul.mubr.bf16.gmra.mxu0 %v1000
      %v2183 = vpop.f32.mrf.mxu0
      %v2184 = vadd.f32 %v1879, %v2183
      %v2185 = vpop.f32.mrf.mxu0
      %v2186 = vpop.f32.mrf.mxu0
      %v2187 = vadd.f32 %v1882, %v2186
      %v2188 = vpop.f32.mrf.mxu0
      %2189 = vmatprep.mubr.bf16.mxu0 %v854
      %2190 = vmatmul.mubr.bf16.gmra.mxu0 %v1001
      %v2191 = vpop.f32.mrf.mxu0
      %v2192 = vadd.f32 %v1887, %v2191
      %v2193 = vpop.f32.mrf.mxu0
      %v2194 = vpop.f32.mrf.mxu0
      %v2195 = vadd.f32 %v1890, %v2194
      %v2196 = vpop.f32.mrf.mxu0
      %2197 = vmatprep.mubr.bf16.mxu0 %v855
      %2198 = vmatmul.mubr.bf16.gmra.mxu0 %v1002
      %v2199 = vpop.f32.mrf.mxu0
      %v2200 = vadd.f32 %v1895, %v2199
      %v2201 = vpop.f32.mrf.mxu0
      %v2202 = vpop.f32.mrf.mxu0
      %v2203 = vadd.f32 %v1898, %v2202
      %v2204 = vpop.f32.mrf.mxu0
      %2205 = vmatprep.mubr.bf16.mxu0 %v856
      %2206 = vmatmul.mubr.bf16.gmra.mxu0 %v1003
      %v2207 = vpop.f32.mrf.mxu0
      %v2208 = vadd.f32 %v1903, %v2207
      %v2209 = vpop.f32.mrf.mxu0
      %v2210 = vpop.f32.mrf.mxu0
      %v2211 = vadd.f32 %v1906, %v2210
      %v2212 = vpop.f32.mrf.mxu0
      %2213 = vmatprep.mubr.bf16.mxu0 %v857
      %2214 = vmatmul.mubr.bf16.gmra.mxu0 %v1004
      %v2215 = vpop.f32.mrf.mxu0
      %v2216 = vadd.f32 %v1911, %v2215
      %v2217 = vpop.f32.mrf.mxu0
      %v2218 = vpop.f32.mrf.mxu0
      %v2219 = vadd.f32 %v1914, %v2218
      %v2220 = vpop.f32.mrf.mxu0
      %2221 = vmatprep.mubr.bf16.mxu0 %v858
      %2222 = vmatmul.mubr.bf16.gmra.mxu0 %v1005
      %v2223 = vpop.f32.mrf.mxu0
      %v2224 = vadd.f32 %v1919, %v2223
      %v2225 = vpop.f32.mrf.mxu0
      %v2226 = vpop.f32.mrf.mxu0
      %v2227 = vadd.f32 %v1922, %v2226
      %v2228 = vpop.f32.mrf.mxu0
      %2229 = vmatprep.mubr.bf16.mxu0 %v859
      %2230 = vmatmul.mubr.bf16.gmra.mxu0 %v1006
      %v2231 = vpop.f32.mrf.mxu0
      %v2232 = vadd.f32 %v1927, %v2231
      %v2233 = vpop.f32.mrf.mxu0
      %v2234 = vpop.f32.mrf.mxu0
      %v2235 = vadd.f32 %v1930, %v2234
      %v2236 = vpop.f32.mrf.mxu0
      %2237 = vmatprep.mubr.bf16.mxu0 %v860
      %2238 = vmatmul.mubr.bf16.gmra.mxu0 %v1007
      %v2239 = vpop.f32.mrf.mxu0
      %v2240 = vadd.f32 %v1935, %v2239
      %v2241 = vpop.f32.mrf.mxu0
      %v2242 = vpop.f32.mrf.mxu0
      %v2243 = vadd.f32 %v1938, %v2242
      %v2244 = vpop.f32.mrf.mxu0
      %2245 = vmatprep.mubr.bf16.mxu0 %v861
      %2246 = vmatmul.mubr.bf16.gmra.mxu0 %v1008
      %v2247 = vpop.f32.mrf.mxu0
      %v2248 = vadd.f32 %v1943, %v2247
      %v2249 = vpop.f32.mrf.mxu0
      %v2250 = vpop.f32.mrf.mxu0
      %v2251 = vadd.f32 %v1946, %v2250
      %v2252 = vpop.f32.mrf.mxu0
      %2253 = vmatprep.mubr.bf16.mxu0 %v862
      %2254 = vmatmul.mubr.bf16.gmra.mxu0 %v1009
      %v2255 = vpop.f32.mrf.mxu0
      %v2256 = vadd.f32 %v1951, %v2255
      %v2257 = vpop.f32.mrf.mxu0
      %v2258 = vpop.f32.mrf.mxu0
      %v2259 = vadd.f32 %v1954, %v2258
      %v2260 = vpop.f32.mrf.mxu0
      %2261 = vmatprep.mubr.bf16.mxu0 %v863
      %2262 = vmatmul.mubr.bf16.gmra.mxu0 %v1010
      %v2263 = vpop.f32.mrf.mxu0
      %v2264 = vadd.f32 %v1959, %v2263
      %v2265 = vpop.f32.mrf.mxu0
      %v2266 = vpop.f32.mrf.mxu0
      %v2267 = vadd.f32 %v1962, %v2266
      %v2268 = vpop.f32.mrf.mxu0
      %2269 = vmatprep.mubr.bf16.mxu0 %v864
      %2270 = vmatmul.mubr.bf16.gmra.mxu0 %v1011
      %v2271 = vpop.f32.mrf.mxu0
      %v2272 = vadd.f32 %v1967, %v2271
      %v2273 = vpop.f32.mrf.mxu0
      %v2274 = vpop.f32.mrf.mxu0
      %v2275 = vadd.f32 %v1970, %v2274
      %v2276 = vpop.f32.mrf.mxu0
      %2277 = vmatprep.mubr.bf16.mxu0 %v865
      %2278 = vmatmul.mubr.bf16.gmra.mxu0 %v1012
      %v2279 = vpop.f32.mrf.mxu0
      %v2280 = vadd.f32 %v1975, %v2279
      %v2281 = vpop.f32.mrf.mxu0
      %v2282 = vpop.f32.mrf.mxu0
      %v2283 = vadd.f32 %v1978, %v2282
      %v2284 = vpop.f32.mrf.mxu0
      %2285 = vmatprep.mubr.bf16.mxu0 %v866
      %2286 = vmatmul.mubr.bf16.gmra.mxu0 %v1013
      %v2287 = vpop.f32.mrf.mxu0
      %v2288 = vadd.f32 %v1983, %v2287
      %v2289 = vpop.f32.mrf.mxu0
      %v2290 = vpop.f32.mrf.mxu0
      %v2291 = vadd.f32 %v1986, %v2290
      %v2292 = vpop.f32.mrf.mxu0
      %2293 = vmatprep.mubr.bf16.mxu0 %v867
      %2294 = vmatmul.mubr.bf16.gmra.mxu0 %v1014
      %v2295 = vpop.f32.mrf.mxu0
      %v2296 = vadd.f32 %v1991, %v2295
      %v2297 = vpop.f32.mrf.mxu0
      %v2298 = vpop.f32.mrf.mxu0
      %v2299 = vadd.f32 %v1994, %v2298
      %v2300 = vpop.f32.mrf.mxu0
      %2301 = vdwg.mxu0
      %2302 = vmatprep.subr.bf16.mxu0 0
      %2303 = vmatpush1.bf16.msra.mxu0 %v2116
      %2304 = vmatprep.subr.bf16.mxu0 0
      %2305 = vmatpush1.bf16.msra.mxu0 %v2115
      %2306 = vmatprep.subr.bf16.mxu0 0
      %2307 = vmatpush1.bf16.msra.mxu0 %v2114
      %2308 = vmatprep.subr.bf16.mxu0 0
      %2309 = vmatpush1.bf16.msra.mxu0 %v2113
      %2310 = vmatprep.subr.bf16.mxu0 0
      %2311 = vmatpush1.bf16.msra.mxu0 %v2112
      %2312 = vmatprep.subr.bf16.mxu0 0
      %2313 = vmatpush1.bf16.msra.mxu0 %v2111
      %2314 = vmatprep.subr.bf16.mxu0 0
      %2315 = vmatpush1.bf16.msra.mxu0 %v2110
      %2316 = vmatprep.subr.bf16.mxu0 0
      %2317 = vmatpush1.bf16.msra.mxu0 %v2109
      %2318 = vmatprep.subr.bf16.mxu0 0
      %2319 = vmatpush2.bf16.msra.mxu0 0
      %2320 = vmatprep.subr.bf16.mxu0 0
      %2321 = vmatpush2.bf16.msra.mxu0 0
      %2322 = vmatprep.subr.bf16.mxu0 0
      %2323 = vmatpush2.bf16.msra.mxu0 0
      %2324 = vmatprep.subr.bf16.mxu0 0
      %2325 = vmatpush2.bf16.msra.mxu0 0
      %2326 = vmatprep.subr.bf16.mxu0 0
      %2327 = vmatpush2.bf16.msra.mxu0 0
      %2328 = vmatprep.subr.bf16.mxu0 0
      %2329 = vmatpush2.bf16.msra.mxu0 0
      %2330 = vmatprep.subr.bf16.mxu0 0
      %2331 = vmatpush2.bf16.msra.mxu0 0
      %2332 = vmatprep.subr.bf16.mxu0 0
      %2333 = vmatpush2.bf16.msra.mxu0 0
      %2334 = vmatprep.mubr.bf16.mxu0 0
      %2335 = vmatmul.mubr.bf16.gmra.mxu0 %v1066
      %v2336 = vpop.f32.mrf.mxu0
      %v2337 = vadd.f32 %v2176, %v2336
      %v2338 = vpop.f32.mrf.mxu0
      %v2339 = vpop.f32.mrf.mxu0
      %v2340 = vadd.f32 %v2179, %v2339
      %v2341 = vpop.f32.mrf.mxu0
      %2342 = vmatprep.mubr.bf16.mxu0 0
      %2343 = vmatmul.mubr.bf16.gmra.mxu0 %v1067
      %v2344 = vpop.f32.mrf.mxu0
      %v2345 = vadd.f32 %v2184, %v2344
      %v2346 = vpop.f32.mrf.mxu0
      %v2347 = vpop.f32.mrf.mxu0
      %v2348 = vadd.f32 %v2187, %v2347
      %v2349 = vpop.f32.mrf.mxu0
      %2350 = vmatprep.mubr.bf16.mxu0 0
      %2351 = vmatmul.mubr.bf16.gmra.mxu0 %v1068
      %v2352 = vpop.f32.mrf.mxu0
      %v2353 = vadd.f32 %v2192, %v2352
      %v2354 = vpop.f32.mrf.mxu0
      %v2355 = vpop.f32.mrf.mxu0
      %v2356 = vadd.f32 %v2195, %v2355
      %v2357 = vpop.f32.mrf.mxu0
      %2358 = vmatprep.mubr.bf16.mxu0 0
      %2359 = vmatmul.mubr.bf16.gmra.mxu0 %v1069
      %v2360 = vpop.f32.mrf.mxu0
      %v2361 = vadd.f32 %v2200, %v2360
      %v2362 = vpop.f32.mrf.mxu0
      %v2363 = vpop.f32.mrf.mxu0
      %v2364 = vadd.f32 %v2203, %v2363
      %v2365 = vpop.f32.mrf.mxu0
      %2366 = vmatprep.mubr.bf16.mxu0 0
      %2367 = vmatmul.mubr.bf16.gmra.mxu0 %v1070
      %v2368 = vpop.f32.mrf.mxu0
      %v2369 = vadd.f32 %v2208, %v2368
      %v2370 = vpop.f32.mrf.mxu0
      %v2371 = vpop.f32.mrf.mxu0
      %v2372 = vadd.f32 %v2211, %v2371
      %v2373 = vpop.f32.mrf.mxu0
      %2374 = vmatprep.mubr.bf16.mxu0 0
      %2375 = vmatmul.mubr.bf16.gmra.mxu0 %v1071
      %v2376 = vpop.f32.mrf.mxu0
      %v2377 = vadd.f32 %v2216, %v2376
      %v2378 = vpop.f32.mrf.mxu0
      %v2379 = vpop.f32.mrf.mxu0
      %v2380 = vadd.f32 %v2219, %v2379
      %v2381 = vpop.f32.mrf.mxu0
      %2382 = vmatprep.mubr.bf16.mxu0 0
      %2383 = vmatmul.mubr.bf16.gmra.mxu0 %v1072
      %v2384 = vpop.f32.mrf.mxu0
      %v2385 = vadd.f32 %v2224, %v2384
      %v2386 = vpop.f32.mrf.mxu0
      %v2387 = vpop.f32.mrf.mxu0
      %v2388 = vadd.f32 %v2227, %v2387
      %v2389 = vpop.f32.mrf.mxu0
      %2390 = vmatprep.mubr.bf16.mxu0 0
      %2391 = vmatmul.mubr.bf16.gmra.mxu0 %v1073
      %v2392 = vpop.f32.mrf.mxu0
      %v2393 = vadd.f32 %v2232, %v2392
      %v2394 = vpop.f32.mrf.mxu0
      %v2395 = vpop.f32.mrf.mxu0
      %v2396 = vadd.f32 %v2235, %v2395
      %v2397 = vpop.f32.mrf.mxu0
      %2398 = vmatprep.mubr.bf16.mxu0 0
      %2399 = vmatmul.mubr.bf16.gmra.mxu0 %v1074
      %v2400 = vpop.f32.mrf.mxu0
      %v2401 = vadd.f32 %v2240, %v2400
      %v2402 = vpop.f32.mrf.mxu0
      %v2403 = vpop.f32.mrf.mxu0
      %v2404 = vadd.f32 %v2243, %v2403
      %v2405 = vpop.f32.mrf.mxu0
      %2406 = vmatprep.mubr.bf16.mxu0 0
      %2407 = vmatmul.mubr.bf16.gmra.mxu0 %v1075
      %v2408 = vpop.f32.mrf.mxu0
      %v2409 = vadd.f32 %v2248, %v2408
      %v2410 = vpop.f32.mrf.mxu0
      %v2411 = vpop.f32.mrf.mxu0
      %v2412 = vadd.f32 %v2251, %v2411
      %v2413 = vpop.f32.mrf.mxu0
      %2414 = vmatprep.mubr.bf16.mxu0 0
      %2415 = vmatmul.mubr.bf16.gmra.mxu0 %v1076
      %v2416 = vpop.f32.mrf.mxu0
      %v2417 = vadd.f32 %v2256, %v2416
      %v2418 = vpop.f32.mrf.mxu0
      %v2419 = vpop.f32.mrf.mxu0
      %v2420 = vadd.f32 %v2259, %v2419
      %v2421 = vpop.f32.mrf.mxu0
      %2422 = vmatprep.mubr.bf16.mxu0 0
      %2423 = vmatmul.mubr.bf16.gmra.mxu0 %v1077
      %v2424 = vpop.f32.mrf.mxu0
      %v2425 = vadd.f32 %v2264, %v2424
      %v2426 = vpop.f32.mrf.mxu0
      %v2427 = vpop.f32.mrf.mxu0
      %v2428 = vadd.f32 %v2267, %v2427
      %v2429 = vpop.f32.mrf.mxu0
      %2430 = vmatprep.mubr.bf16.mxu0 0
      %2431 = vmatmul.mubr.bf16.gmra.mxu0 %v1078
      %v2432 = vpop.f32.mrf.mxu0
      %v2433 = vadd.f32 %v2272, %v2432
      %v2434 = vpop.f32.mrf.mxu0
      %v2435 = vpop.f32.mrf.mxu0
      %v2436 = vadd.f32 %v2275, %v2435
      %v2437 = vpop.f32.mrf.mxu0
      %2438 = vmatprep.mubr.bf16.mxu0 0
      %2439 = vmatmul.mubr.bf16.gmra.mxu0 %v1079
      %v2440 = vpop.f32.mrf.mxu0
      %v2441 = vadd.f32 %v2280, %v2440
      %v2442 = vpop.f32.mrf.mxu0
      %v2443 = vpop.f32.mrf.mxu0
      %v2444 = vadd.f32 %v2283, %v2443
      %v2445 = vpop.f32.mrf.mxu0
      %2446 = vmatprep.mubr.bf16.mxu0 0
      %2447 = vmatmul.mubr.bf16.gmra.mxu0 %v1080
      %v2448 = vpop.f32.mrf.mxu0
      %v2449 = vadd.f32 %v2288, %v2448
      %v2450 = vpop.f32.mrf.mxu0
      %v2451 = vpop.f32.mrf.mxu0
      %v2452 = vadd.f32 %v2291, %v2451
      %v2453 = vpop.f32.mrf.mxu0
      %2454 = vmatprep.mubr.bf16.mxu0 0
      %2455 = vmatmul.mubr.bf16.gmra.mxu0 %v1081
      %v2456 = vpop.f32.mrf.mxu0
      %v2457 = vadd.f32 %v2296, %v2456
      %v2458 = vpop.f32.mrf.mxu0
      %v2459 = vpop.f32.mrf.mxu0
      %v2460 = vadd.f32 %v2299, %v2459
      %v2461 = vpop.f32.mrf.mxu0
      %2462 = vdwg.mxu0
      %s2463 = scalar_lea.vmem [#allocation2], 16
      %v2464 = vld [vmem:[%s2463] sm:$0xf]
      %v2465 = vld [vmem:[%s2463 + $0x4] sm:$0xf]
      %v2466 = vld [vmem:[%s2463 + $0x8] sm:$0xf]
      %v2467 = vld [vmem:[%s2463 + $0xc] sm:$0xf]
      %v2468 = vld [vmem:[%s2463 + $0x10] sm:$0xf]
      %v2469 = vld [vmem:[%s2463 + $0x14] sm:$0xf]
      %v2470 = vld [vmem:[%s2463 + $0x18] sm:$0xf]
      %v2471 = vld [vmem:[%s2463 + $0x1c] sm:$0xf]
      %v2472 = vld [vmem:[%s2463 + $0x20] sm:$0xf]
      %v2473 = vld [vmem:[%s2463 + $0x24] sm:$0xf]
      %v2474 = vld [vmem:[%s2463 + $0x28] sm:$0xf]
      %v2475 = vld [vmem:[%s2463 + $0x2c] sm:$0xf]
      %v2476 = vld [vmem:[%s2463 + $0x30] sm:$0xf]
      %v2477 = vld [vmem:[%s2463 + $0x34] sm:$0xf]
      %v2478 = vld [vmem:[%s2463 + $0x38] sm:$0xf]
      %v2479 = vld [vmem:[%s2463 + $0x3c] sm:$0xf]
      %v2480 = vld [vmem:[%s2463 + $0x40] sm:$0xf]
      %v2481 = vld [vmem:[%s2463 + $0x44] sm:$0xf]
      %v2482 = vld [vmem:[%s2463 + $0x48] sm:$0xf]
      %v2483 = vld [vmem:[%s2463 + $0x4c] sm:$0xf]
      %v2484 = vld [vmem:[%s2463 + $0x50] sm:$0xf]
      %v2485 = vld [vmem:[%s2463 + $0x54] sm:$0xf]
      %v2486 = vld [vmem:[%s2463 + $0x58] sm:$0xf]
      %v2487 = vld [vmem:[%s2463 + $0x5c] sm:$0xf]
      %v2488 = vld [vmem:[%s2463 + $0x60] sm:$0xf]
      %v2489 = vld [vmem:[%s2463 + $0x64] sm:$0xf]
      %v2490 = vld [vmem:[%s2463 + $0x68] sm:$0xf]
      %v2491 = vld [vmem:[%s2463 + $0x6c] sm:$0xf]
      %v2492 = vld [vmem:[%s2463 + $0x70] sm:$0xf]
      %v2493 = vld [vmem:[%s2463 + $0x74] sm:$0xf]
      %v2494 = vld [vmem:[%s2463 + $0x78] sm:$0xf]
      %v2495 = vld [vmem:[%s2463 + $0x7c] sm:$0xf]
      %v2528 = vunpack.c.l.b16 %v2464
      %v2529 = vunpack.c.l.b16 %v2465
      %v2530 = vunpack.c.l.b16 %v2466
      %v2531 = vunpack.c.l.b16 %v2467
      %v2532 = vunpack.c.l.b16 %v2468
      %v2533 = vunpack.c.l.b16 %v2469
      %v2534 = vunpack.c.l.b16 %v2470
      %v2535 = vunpack.c.l.b16 %v2471
      %v2536 = vunpack.c.l.b16 %v2472
      %v2537 = vunpack.c.l.b16 %v2473
      %v2538 = vunpack.c.l.b16 %v2474
      %v2539 = vunpack.c.l.b16 %v2475
      %v2540 = vunpack.c.l.b16 %v2476
      %v2541 = vunpack.c.l.b16 %v2477
      %v2542 = vunpack.c.l.b16 %v2478
      %v2543 = vunpack.c.l.b16 %v2479
      %v2544 = vunpack.c.l.b16 %v2480
      %v2545 = vunpack.c.l.b16 %v2481
      %v2546 = vunpack.c.l.b16 %v2482
      %v2547 = vunpack.c.l.b16 %v2483
      %v2548 = vunpack.c.l.b16 %v2484
      %v2549 = vunpack.c.l.b16 %v2485
      %v2550 = vunpack.c.l.b16 %v2486
      %v2551 = vunpack.c.l.b16 %v2487
      %v2552 = vunpack.c.l.b16 %v2488
      %v2553 = vunpack.c.l.b16 %v2489
      %v2554 = vunpack.c.l.b16 %v2490
      %v2555 = vunpack.c.l.b16 %v2491
      %v2556 = vunpack.c.l.b16 %v2492
      %v2557 = vunpack.c.l.b16 %v2493
      %v2558 = vunpack.c.l.b16 %v2494
      %v2559 = vunpack.c.l.b16 %v2495
      %v2560 = vpack.c.b16 %v2529, %v2528
      %v2561 = vpack.c.b16 %v2531, %v2530
      %v2562 = vpack.c.b16 %v2533, %v2532
      %v2563 = vpack.c.b16 %v2535, %v2534
      %v2564 = vpack.c.b16 %v2537, %v2536
      %v2565 = vpack.c.b16 %v2539, %v2538
      %v2566 = vpack.c.b16 %v2541, %v2540
      %v2567 = vpack.c.b16 %v2543, %v2542
      %v2568 = vpack.c.b16 %v2545, %v2544
      %v2569 = vpack.c.b16 %v2547, %v2546
      %v2570 = vpack.c.b16 %v2549, %v2548
      %v2571 = vpack.c.b16 %v2551, %v2550
      %v2572 = vpack.c.b16 %v2553, %v2552
      %v2573 = vpack.c.b16 %v2555, %v2554
      %v2574 = vpack.c.b16 %v2557, %v2556
      %v2575 = vpack.c.b16 %v2559, %v2558
      %v2577 = vshrl.u32 %v2560, 16
      %v2579 = vrot.slane %v2577, 7
      %v2580 = vshll.u32 %v2560, 16
      %v2582 = vor.u32 %v2579, %v2580
      %v2584 = vshrl.u32 %v2561, 16
      %v2586 = vrot.slane %v2584, 7
      %v2587 = vshll.u32 %v2561, 16
      %v2589 = vor.u32 %v2586, %v2587
      %v2591 = vshrl.u32 %v2562, 16
      %v2593 = vrot.slane %v2591, 7
      %v2594 = vshll.u32 %v2562, 16
      %v2596 = vor.u32 %v2593, %v2594
      %v2598 = vshrl.u32 %v2563, 16
      %v2600 = vrot.slane %v2598, 7
      %v2601 = vshll.u32 %v2563, 16
      %v2603 = vor.u32 %v2600, %v2601
      %v2605 = vshrl.u32 %v2564, 16
      %v2607 = vrot.slane %v2605, 7
      %v2608 = vshll.u32 %v2564, 16
      %v2610 = vor.u32 %v2607, %v2608
      %v2612 = vshrl.u32 %v2565, 16
      %v2614 = vrot.slane %v2612, 7
      %v2615 = vshll.u32 %v2565, 16
      %v2617 = vor.u32 %v2614, %v2615
      %v2619 = vshrl.u32 %v2566, 16
      %v2621 = vrot.slane %v2619, 7
      %v2622 = vshll.u32 %v2566, 16
      %v2624 = vor.u32 %v2621, %v2622
      %v2626 = vshrl.u32 %v2567, 16
      %v2628 = vrot.slane %v2626, 7
      %v2629 = vshll.u32 %v2567, 16
      %v2631 = vor.u32 %v2628, %v2629
      %v2633 = vshrl.u32 %v2568, 16
      %v2635 = vrot.slane %v2633, 7
      %v2636 = vshll.u32 %v2568, 16
      %v2638 = vor.u32 %v2635, %v2636
      %v2640 = vshrl.u32 %v2569, 16
      %v2642 = vrot.slane %v2640, 7
      %v2643 = vshll.u32 %v2569, 16
      %v2645 = vor.u32 %v2642, %v2643
      %v2647 = vshrl.u32 %v2570, 16
      %v2649 = vrot.slane %v2647, 7
      %v2650 = vshll.u32 %v2570, 16
      %v2652 = vor.u32 %v2649, %v2650
      %v2654 = vshrl.u32 %v2571, 16
      %v2656 = vrot.slane %v2654, 7
      %v2657 = vshll.u32 %v2571, 16
      %v2659 = vor.u32 %v2656, %v2657
      %v2661 = vshrl.u32 %v2572, 16
      %v2663 = vrot.slane %v2661, 7
      %v2664 = vshll.u32 %v2572, 16
      %v2666 = vor.u32 %v2663, %v2664
      %v2668 = vshrl.u32 %v2573, 16
      %v2670 = vrot.slane %v2668, 7
      %v2671 = vshll.u32 %v2573, 16
      %v2673 = vor.u32 %v2670, %v2671
      %v2675 = vshrl.u32 %v2574, 16
      %v2677 = vrot.slane %v2675, 7
      %v2678 = vshll.u32 %v2574, 16
      %v2680 = vor.u32 %v2677, %v2678
      %v2682 = vshrl.u32 %v2575, 16
      %v2684 = vrot.slane %v2682, 7
      %v2685 = vshll.u32 %v2575, 16
      %v2687 = vor.u32 %v2684, %v2685
      %v2704 = vsel %vm998, 0, %v2582
      %v2705 = vsel %vm998, 0, %v2589
      %v2706 = vsel %vm998, 0, %v2596
      %v2707 = vsel %vm998, 0, %v2603
      %v2708 = vsel %vm998, 0, %v2610
      %v2709 = vsel %vm998, 0, %v2617
      %v2710 = vsel %vm998, 0, %v2624
      %v2711 = vsel %vm998, 0, %v2631
      %v2712 = vsel %vm998, 0, %v2638
      %v2713 = vsel %vm998, 0, %v2645
      %v2714 = vsel %vm998, 0, %v2652
      %v2715 = vsel %vm998, 0, %v2659
      %v2716 = vsel %vm998, 0, %v2666
      %v2717 = vsel %vm998, 0, %v2673
      %v2718 = vsel %vm998, 0, %v2680
      %v2719 = vsel %vm998, 0, %v2687
      %v2720 = vrot.slane %v2580, 1
      %v2721 = vor.u32 %v2577, %v2720
      %v2722 = vrot.slane %v2587, 1
      %v2723 = vor.u32 %v2584, %v2722
      %v2724 = vrot.slane %v2594, 1
      %v2725 = vor.u32 %v2591, %v2724
      %v2726 = vrot.slane %v2601, 1
      %v2727 = vor.u32 %v2598, %v2726
      %v2728 = vrot.slane %v2608, 1
      %v2729 = vor.u32 %v2605, %v2728
      %v2730 = vrot.slane %v2615, 1
      %v2731 = vor.u32 %v2612, %v2730
      %v2732 = vrot.slane %v2622, 1
      %v2733 = vor.u32 %v2619, %v2732
      %v2734 = vrot.slane %v2629, 1
      %v2735 = vor.u32 %v2626, %v2734
      %v2736 = vrot.slane %v2636, 1
      %v2737 = vor.u32 %v2633, %v2736
      %v2738 = vrot.slane %v2643, 1
      %v2739 = vor.u32 %v2640, %v2738
      %v2740 = vrot.slane %v2650, 1
      %v2741 = vor.u32 %v2647, %v2740
      %v2742 = vrot.slane %v2657, 1
      %v2743 = vor.u32 %v2654, %v2742
      %v2744 = vrot.slane %v2664, 1
      %v2745 = vor.u32 %v2661, %v2744
      %v2746 = vrot.slane %v2671, 1
      %v2747 = vor.u32 %v2668, %v2746
      %v2748 = vrot.slane %v2678, 1
      %v2749 = vor.u32 %v2675, %v2748
      %v2750 = vrot.slane %v2685, 1
      %v2751 = vor.u32 %v2682, %v2750
      %v2768 = vsel %vm1065, %v2721, 0
      %v2769 = vsel %vm1065, %v2723, 0
      %v2770 = vsel %vm1065, %v2725, 0
      %v2771 = vsel %vm1065, %v2727, 0
      %v2772 = vsel %vm1065, %v2729, 0
      %v2773 = vsel %vm1065, %v2731, 0
      %v2774 = vsel %vm1065, %v2733, 0
      %v2775 = vsel %vm1065, %v2735, 0
      %v2776 = vsel %vm1065, %v2737, 0
      %v2777 = vsel %vm1065, %v2739, 0
      %v2778 = vsel %vm1065, %v2741, 0
      %v2779 = vsel %vm1065, %v2743, 0
      %v2780 = vsel %vm1065, %v2745, 0
      %v2781 = vsel %vm1065, %v2747, 0
      %v2782 = vsel %vm1065, %v2749, 0
      %v2783 = vsel %vm1065, %v2751, 0
      %s2800 = scalar_lea.vmem %s2, 384
      %v2801 = vld [vmem:[%s2800] sm:$0xf]
      %v2802 = vld [vmem:[%s2800 + $0x4] sm:$0xf]
      %v2803 = vld [vmem:[%s2800 + $0x8] sm:$0xf]
      %v2804 = vld [vmem:[%s2800 + $0xc] sm:$0xf]
      %v2805 = vld [vmem:[%s2800 + $0x10] sm:$0xf]
      %v2806 = vld [vmem:[%s2800 + $0x14] sm:$0xf]
      %v2807 = vld [vmem:[%s2800 + $0x18] sm:$0xf]
      %v2808 = vld [vmem:[%s2800 + $0x1c] sm:$0xf]
      %v2809 = vld [vmem:[%s2800 + $0x20] sm:$0xf]
      %v2810 = vld [vmem:[%s2800 + $0x24] sm:$0xf]
      %v2811 = vld [vmem:[%s2800 + $0x28] sm:$0xf]
      %v2812 = vld [vmem:[%s2800 + $0x2c] sm:$0xf]
      %v2813 = vld [vmem:[%s2800 + $0x30] sm:$0xf]
      %v2814 = vld [vmem:[%s2800 + $0x34] sm:$0xf]
      %v2815 = vld [vmem:[%s2800 + $0x38] sm:$0xf]
      %v2816 = vld [vmem:[%s2800 + $0x3c] sm:$0xf]
      %v2817 = vld [vmem:[%s2800 + $0x40] sm:$0xf]
      %v2818 = vld [vmem:[%s2800 + $0x44] sm:$0xf]
      %v2819 = vld [vmem:[%s2800 + $0x48] sm:$0xf]
      %v2820 = vld [vmem:[%s2800 + $0x4c] sm:$0xf]
      %v2821 = vld [vmem:[%s2800 + $0x50] sm:$0xf]
      %v2822 = vld [vmem:[%s2800 + $0x54] sm:$0xf]
      %v2823 = vld [vmem:[%s2800 + $0x58] sm:$0xf]
      %v2824 = vld [vmem:[%s2800 + $0x5c] sm:$0xf]
      %v2825 = vld [vmem:[%s2800 + $0x60] sm:$0xf]
      %v2826 = vld [vmem:[%s2800 + $0x64] sm:$0xf]
      %v2827 = vld [vmem:[%s2800 + $0x68] sm:$0xf]
      %v2828 = vld [vmem:[%s2800 + $0x6c] sm:$0xf]
      %v2829 = vld [vmem:[%s2800 + $0x70] sm:$0xf]
      %v2830 = vld [vmem:[%s2800 + $0x74] sm:$0xf]
      %v2831 = vld [vmem:[%s2800 + $0x78] sm:$0xf]
      %v2832 = vld [vmem:[%s2800 + $0x7c] sm:$0xf]
      %v2833 = vld [vmem:[%s2800 + $0x80] sm:$0xf]
      %v2834 = vld [vmem:[%s2800 + $0x84] sm:$0xf]
      %v2835 = vld [vmem:[%s2800 + $0x88] sm:$0xf]
      %v2836 = vld [vmem:[%s2800 + $0x8c] sm:$0xf]
      %v2837 = vld [vmem:[%s2800 + $0x90] sm:$0xf]
      %v2838 = vld [vmem:[%s2800 + $0x94] sm:$0xf]
      %v2839 = vld [vmem:[%s2800 + $0x98] sm:$0xf]
      %v2840 = vld [vmem:[%s2800 + $0x9c] sm:$0xf]
      %v2841 = vld [vmem:[%s2800 + $0xa0] sm:$0xf]
      %v2842 = vld [vmem:[%s2800 + $0xa4] sm:$0xf]
      %v2843 = vld [vmem:[%s2800 + $0xa8] sm:$0xf]
      %v2844 = vld [vmem:[%s2800 + $0xac] sm:$0xf]
      %v2845 = vld [vmem:[%s2800 + $0xb0] sm:$0xf]
      %v2846 = vld [vmem:[%s2800 + $0xb4] sm:$0xf]
      %v2847 = vld [vmem:[%s2800 + $0xb8] sm:$0xf]
      %v2848 = vld [vmem:[%s2800 + $0xbc] sm:$0xf]
      %v2897 = vunpack.c.l.b16 %v2801
      %v2898 = vunpack.c.l.b16 %v2802
      %v2899 = vunpack.c.l.b16 %v2803
      %v2900 = vunpack.c.l.b16 %v2804
      %v2901 = vunpack.c.l.b16 %v2805
      %v2902 = vunpack.c.l.b16 %v2806
      %v2903 = vunpack.c.l.b16 %v2807
      %v2904 = vunpack.c.l.b16 %v2808
      %v2905 = vunpack.c.l.b16 %v2809
      %v2906 = vunpack.c.l.b16 %v2810
      %v2907 = vunpack.c.l.b16 %v2811
      %v2908 = vunpack.c.l.b16 %v2812
      %v2909 = vunpack.c.l.b16 %v2813
      %v2910 = vunpack.c.l.b16 %v2814
      %v2911 = vunpack.c.l.b16 %v2815
      %v2912 = vunpack.c.l.b16 %v2816
      %v2913 = vunpack.c.l.b16 %v2817
      %v2914 = vunpack.c.l.b16 %v2818
      %v2915 = vunpack.c.l.b16 %v2819
      %v2916 = vunpack.c.l.b16 %v2820
      %v2917 = vunpack.c.l.b16 %v2821
      %v2918 = vunpack.c.l.b16 %v2822
      %v2919 = vunpack.c.l.b16 %v2823
      %v2920 = vunpack.c.l.b16 %v2824
      %v2921 = vunpack.c.l.b16 %v2825
      %v2922 = vunpack.c.l.b16 %v2826
      %v2923 = vunpack.c.l.b16 %v2827
      %v2924 = vunpack.c.l.b16 %v2828
      %v2925 = vunpack.c.l.b16 %v2829
      %v2926 = vunpack.c.l.b16 %v2830
      %v2927 = vunpack.c.l.b16 %v2831
      %v2928 = vunpack.c.l.b16 %v2832
      %v2929 = vunpack.c.l.b16 %v2833
      %v2930 = vunpack.c.l.b16 %v2834
      %v2931 = vunpack.c.l.b16 %v2835
      %v2932 = vunpack.c.l.b16 %v2836
      %v2933 = vunpack.c.l.b16 %v2837
      %v2934 = vunpack.c.l.b16 %v2838
      %v2935 = vunpack.c.l.b16 %v2839
      %v2936 = vunpack.c.l.b16 %v2840
      %v2937 = vunpack.c.l.b16 %v2841
      %v2938 = vunpack.c.l.b16 %v2842
      %v2939 = vunpack.c.l.b16 %v2843
      %v2940 = vunpack.c.l.b16 %v2844
      %v2941 = vunpack.c.l.b16 %v2845
      %v2942 = vunpack.c.l.b16 %v2846
      %v2943 = vunpack.c.l.b16 %v2847
      %v2944 = vunpack.c.l.b16 %v2848
      %v2945 = vpack.c.b16 %v2898, %v2897
      %v2946 = vpack.c.b16 %v2900, %v2899
      %v2947 = vpack.c.b16 %v2902, %v2901
      %v2948 = vpack.c.b16 %v2904, %v2903
      %v2949 = vpack.c.b16 %v2906, %v2905
      %v2950 = vpack.c.b16 %v2908, %v2907
      %v2951 = vpack.c.b16 %v2910, %v2909
      %v2952 = vpack.c.b16 %v2912, %v2911
      %v2953 = vpack.c.b16 %v2914, %v2913
      %v2954 = vpack.c.b16 %v2916, %v2915
      %v2955 = vpack.c.b16 %v2918, %v2917
      %v2956 = vpack.c.b16 %v2920, %v2919
      %v2957 = vpack.c.b16 %v2922, %v2921
      %v2958 = vpack.c.b16 %v2924, %v2923
      %v2959 = vpack.c.b16 %v2926, %v2925
      %v2960 = vpack.c.b16 %v2928, %v2927
      %v2961 = vpack.c.b16 %v2930, %v2929
      %v2962 = vpack.c.b16 %v2932, %v2931
      %v2963 = vpack.c.b16 %v2934, %v2933
      %v2964 = vpack.c.b16 %v2936, %v2935
      %v2965 = vpack.c.b16 %v2938, %v2937
      %v2966 = vpack.c.b16 %v2940, %v2939
      %v2967 = vpack.c.b16 %v2942, %v2941
      %v2968 = vpack.c.b16 %v2944, %v2943
      %2993 = vmatprep.subr.bf16.mxu0 0
      %2994 = vmatpush1.bf16.msra.mxu0 %v2952
      %2995 = vmatprep.subr.bf16.mxu0 0
      %2996 = vmatpush1.bf16.msra.mxu0 %v2951
      %2997 = vmatprep.subr.bf16.mxu0 0
      %2998 = vmatpush1.bf16.msra.mxu0 %v2950
      %2999 = vmatprep.subr.bf16.mxu0 0
      %3000 = vmatpush1.bf16.msra.mxu0 %v2949
      %3001 = vmatprep.subr.bf16.mxu0 0
      %3002 = vmatpush1.bf16.msra.mxu0 %v2948
      %3003 = vmatprep.subr.bf16.mxu0 0
      %3004 = vmatpush1.bf16.msra.mxu0 %v2947
      %3005 = vmatprep.subr.bf16.mxu0 0
      %3006 = vmatpush1.bf16.msra.mxu0 %v2946
      %3007 = vmatprep.subr.bf16.mxu0 0
      %3008 = vmatpush1.bf16.msra.mxu0 %v2945
      %3009 = vmatprep.subr.bf16.mxu0 0
      %3010 = vmatpush2.bf16.msra.mxu0 %v2960
      %3011 = vmatprep.subr.bf16.mxu0 0
      %3012 = vmatpush2.bf16.msra.mxu0 %v2959
      %3013 = vmatprep.subr.bf16.mxu0 0
      %3014 = vmatpush2.bf16.msra.mxu0 %v2958
      %3015 = vmatprep.subr.bf16.mxu0 0
      %3016 = vmatpush2.bf16.msra.mxu0 %v2957
      %3017 = vmatprep.subr.bf16.mxu0 0
      %3018 = vmatpush2.bf16.msra.mxu0 %v2956
      %3019 = vmatprep.subr.bf16.mxu0 0
      %3020 = vmatpush2.bf16.msra.mxu0 %v2955
      %3021 = vmatprep.subr.bf16.mxu0 0
      %3022 = vmatpush2.bf16.msra.mxu0 %v2954
      %3023 = vmatprep.subr.bf16.mxu0 0
      %3024 = vmatpush2.bf16.msra.mxu0 %v2953
      %3025 = vmatprep.mubr.bf16.mxu0 %v2560
      %3026 = vmatmul.mubr.bf16.gmra.mxu0 %v2704
      %v3027 = vpop.f32.mrf.mxu0
      %v3028 = vadd.f32 0.0, %v3027
      %v3029 = vpop.f32.mrf.mxu0
      %v3030 = vpop.f32.mrf.mxu0
      %v3031 = vadd.f32 0.0, %v3030
      %v3032 = vpop.f32.mrf.mxu0
      %3033 = vmatprep.mubr.bf16.mxu0 %v2561
      %3034 = vmatmul.mubr.bf16.gmra.mxu0 %v2705
      %v3035 = vpop.f32.mrf.mxu0
      %v3036 = vadd.f32 0.0, %v3035
      %v3037 = vpop.f32.mrf.mxu0
      %v3038 = vpop.f32.mrf.mxu0
      %v3039 = vadd.f32 0.0, %v3038
      %v3040 = vpop.f32.mrf.mxu0
      %3041 = vmatprep.mubr.bf16.mxu0 %v2562
      %3042 = vmatmul.mubr.bf16.gmra.mxu0 %v2706
      %v3043 = vpop.f32.mrf.mxu0
      %v3044 = vadd.f32 0.0, %v3043
      %v3045 = vpop.f32.mrf.mxu0
      %v3046 = vpop.f32.mrf.mxu0
      %v3047 = vadd.f32 0.0, %v3046
      %v3048 = vpop.f32.mrf.mxu0
      %3049 = vmatprep.mubr.bf16.mxu0 %v2563
      %3050 = vmatmul.mubr.bf16.gmra.mxu0 %v2707
      %v3051 = vpop.f32.mrf.mxu0
      %v3052 = vadd.f32 0.0, %v3051
      %v3053 = vpop.f32.mrf.mxu0
      %v3054 = vpop.f32.mrf.mxu0
      %v3055 = vadd.f32 0.0, %v3054
      %v3056 = vpop.f32.mrf.mxu0
      %3057 = vmatprep.mubr.bf16.mxu0 %v2564
      %3058 = vmatmul.mubr.bf16.gmra.mxu0 %v2708
      %v3059 = vpop.f32.mrf.mxu0
      %v3060 = vadd.f32 0.0, %v3059
      %v3061 = vpop.f32.mrf.mxu0
      %v3062 = vpop.f32.mrf.mxu0
      %v3063 = vadd.f32 0.0, %v3062
      %v3064 = vpop.f32.mrf.mxu0
      %3065 = vmatprep.mubr.bf16.mxu0 %v2565
      %3066 = vmatmul.mubr.bf16.gmra.mxu0 %v2709
      %v3067 = vpop.f32.mrf.mxu0
      %v3068 = vadd.f32 0.0, %v3067
      %v3069 = vpop.f32.mrf.mxu0
      %v3070 = vpop.f32.mrf.mxu0
      %v3071 = vadd.f32 0.0, %v3070
      %v3072 = vpop.f32.mrf.mxu0
      %3073 = vmatprep.mubr.bf16.mxu0 %v2566
      %3074 = vmatmul.mubr.bf16.gmra.mxu0 %v2710
      %v3075 = vpop.f32.mrf.mxu0
      %v3076 = vadd.f32 0.0, %v3075
      %v3077 = vpop.f32.mrf.mxu0
      %v3078 = vpop.f32.mrf.mxu0
      %v3079 = vadd.f32 0.0, %v3078
      %v3080 = vpop.f32.mrf.mxu0
      %3081 = vmatprep.mubr.bf16.mxu0 %v2567
      %3082 = vmatmul.mubr.bf16.gmra.mxu0 %v2711
      %v3083 = vpop.f32.mrf.mxu0
      %v3084 = vadd.f32 0.0, %v3083
      %v3085 = vpop.f32.mrf.mxu0
      %v3086 = vpop.f32.mrf.mxu0
      %v3087 = vadd.f32 0.0, %v3086
      %v3088 = vpop.f32.mrf.mxu0
      %3089 = vmatprep.mubr.bf16.mxu0 %v2568
      %3090 = vmatmul.mubr.bf16.gmra.mxu0 %v2712
      %v3091 = vpop.f32.mrf.mxu0
      %v3092 = vadd.f32 0.0, %v3091
      %v3093 = vpop.f32.mrf.mxu0
      %v3094 = vpop.f32.mrf.mxu0
      %v3095 = vadd.f32 0.0, %v3094
      %v3096 = vpop.f32.mrf.mxu0
      %3097 = vmatprep.mubr.bf16.mxu0 %v2569
      %3098 = vmatmul.mubr.bf16.gmra.mxu0 %v2713
      %v3099 = vpop.f32.mrf.mxu0
      %v3100 = vadd.f32 0.0, %v3099
      %v3101 = vpop.f32.mrf.mxu0
      %v3102 = vpop.f32.mrf.mxu0
      %v3103 = vadd.f32 0.0, %v3102
      %v3104 = vpop.f32.mrf.mxu0
      %3105 = vmatprep.mubr.bf16.mxu0 %v2570
      %3106 = vmatmul.mubr.bf16.gmra.mxu0 %v2714
      %v3107 = vpop.f32.mrf.mxu0
      %v3108 = vadd.f32 0.0, %v3107
      %v3109 = vpop.f32.mrf.mxu0
      %v3110 = vpop.f32.mrf.mxu0
      %v3111 = vadd.f32 0.0, %v3110
      %v3112 = vpop.f32.mrf.mxu0
      %3113 = vmatprep.mubr.bf16.mxu0 %v2571
      %3114 = vmatmul.mubr.bf16.gmra.mxu0 %v2715
      %v3115 = vpop.f32.mrf.mxu0
      %v3116 = vadd.f32 0.0, %v3115
      %v3117 = vpop.f32.mrf.mxu0
      %v3118 = vpop.f32.mrf.mxu0
      %v3119 = vadd.f32 0.0, %v3118
      %v3120 = vpop.f32.mrf.mxu0
      %3121 = vmatprep.mubr.bf16.mxu0 %v2572
      %3122 = vmatmul.mubr.bf16.gmra.mxu0 %v2716
      %v3123 = vpop.f32.mrf.mxu0
      %v3124 = vadd.f32 0.0, %v3123
      %v3125 = vpop.f32.mrf.mxu0
      %v3126 = vpop.f32.mrf.mxu0
      %v3127 = vadd.f32 0.0, %v3126
      %v3128 = vpop.f32.mrf.mxu0
      %3129 = vmatprep.mubr.bf16.mxu0 %v2573
      %3130 = vmatmul.mubr.bf16.gmra.mxu0 %v2717
      %v3131 = vpop.f32.mrf.mxu0
      %v3132 = vadd.f32 0.0, %v3131
      %v3133 = vpop.f32.mrf.mxu0
      %v3134 = vpop.f32.mrf.mxu0
      %v3135 = vadd.f32 0.0, %v3134
      %v3136 = vpop.f32.mrf.mxu0
      %3137 = vmatprep.mubr.bf16.mxu0 %v2574
      %3138 = vmatmul.mubr.bf16.gmra.mxu0 %v2718
      %v3139 = vpop.f32.mrf.mxu0
      %v3140 = vadd.f32 0.0, %v3139
      %v3141 = vpop.f32.mrf.mxu0
      %v3142 = vpop.f32.mrf.mxu0
      %v3143 = vadd.f32 0.0, %v3142
      %v3144 = vpop.f32.mrf.mxu0
      %3145 = vmatprep.mubr.bf16.mxu0 %v2575
      %3146 = vmatmul.mubr.bf16.gmra.mxu0 %v2719
      %v3147 = vpop.f32.mrf.mxu0
      %v3148 = vadd.f32 0.0, %v3147
      %v3149 = vpop.f32.mrf.mxu0
      %v3150 = vpop.f32.mrf.mxu0
      %v3151 = vadd.f32 0.0, %v3150
      %v3152 = vpop.f32.mrf.mxu0
      %3153 = vdwg.mxu0
      %3154 = vmatprep.subr.bf16.mxu0 0
      %3155 = vmatpush1.bf16.msra.mxu0 %v2968
      %3156 = vmatprep.subr.bf16.mxu0 0
      %3157 = vmatpush1.bf16.msra.mxu0 %v2967
      %3158 = vmatprep.subr.bf16.mxu0 0
      %3159 = vmatpush1.bf16.msra.mxu0 %v2966
      %3160 = vmatprep.subr.bf16.mxu0 0
      %3161 = vmatpush1.bf16.msra.mxu0 %v2965
      %3162 = vmatprep.subr.bf16.mxu0 0
      %3163 = vmatpush1.bf16.msra.mxu0 %v2964
      %3164 = vmatprep.subr.bf16.mxu0 0
      %3165 = vmatpush1.bf16.msra.mxu0 %v2963
      %3166 = vmatprep.subr.bf16.mxu0 0
      %3167 = vmatpush1.bf16.msra.mxu0 %v2962
      %3168 = vmatprep.subr.bf16.mxu0 0
      %3169 = vmatpush1.bf16.msra.mxu0 %v2961
      %3170 = vmatprep.subr.bf16.mxu0 0
      %3171 = vmatpush2.bf16.msra.mxu0 0
      %3172 = vmatprep.subr.bf16.mxu0 0
      %3173 = vmatpush2.bf16.msra.mxu0 0
      %3174 = vmatprep.subr.bf16.mxu0 0
      %3175 = vmatpush2.bf16.msra.mxu0 0
      %3176 = vmatprep.subr.bf16.mxu0 0
      %3177 = vmatpush2.bf16.msra.mxu0 0
      %3178 = vmatprep.subr.bf16.mxu0 0
      %3179 = vmatpush2.bf16.msra.mxu0 0
      %3180 = vmatprep.subr.bf16.mxu0 0
      %3181 = vmatpush2.bf16.msra.mxu0 0
      %3182 = vmatprep.subr.bf16.mxu0 0
      %3183 = vmatpush2.bf16.msra.mxu0 0
      %3184 = vmatprep.subr.bf16.mxu0 0
      %3185 = vmatpush2.bf16.msra.mxu0 0
      %3186 = vmatprep.mubr.bf16.mxu0 0
      %3187 = vmatmul.mubr.bf16.gmra.mxu0 %v2768
      %v3188 = vpop.f32.mrf.mxu0
      %v3189 = vadd.f32 %v3028, %v3188
      %v3190 = vpop.f32.mrf.mxu0
      %v3191 = vpop.f32.mrf.mxu0
      %v3192 = vadd.f32 %v3031, %v3191
      %v3193 = vpop.f32.mrf.mxu0
      %3194 = vmatprep.mubr.bf16.mxu0 0
      %3195 = vmatmul.mubr.bf16.gmra.mxu0 %v2769
      %v3196 = vpop.f32.mrf.mxu0
      %v3197 = vadd.f32 %v3036, %v3196
      %v3198 = vpop.f32.mrf.mxu0
      %v3199 = vpop.f32.mrf.mxu0
      %v3200 = vadd.f32 %v3039, %v3199
      %v3201 = vpop.f32.mrf.mxu0
      %3202 = vmatprep.mubr.bf16.mxu0 0
      %3203 = vmatmul.mubr.bf16.gmra.mxu0 %v2770
      %v3204 = vpop.f32.mrf.mxu0
      %v3205 = vadd.f32 %v3044, %v3204
      %v3206 = vpop.f32.mrf.mxu0
      %v3207 = vpop.f32.mrf.mxu0
      %v3208 = vadd.f32 %v3047, %v3207
      %v3209 = vpop.f32.mrf.mxu0
      %3210 = vmatprep.mubr.bf16.mxu0 0
      %3211 = vmatmul.mubr.bf16.gmra.mxu0 %v2771
      %v3212 = vpop.f32.mrf.mxu0
      %v3213 = vadd.f32 %v3052, %v3212
      %v3214 = vpop.f32.mrf.mxu0
      %v3215 = vpop.f32.mrf.mxu0
      %v3216 = vadd.f32 %v3055, %v3215
      %v3217 = vpop.f32.mrf.mxu0
      %3218 = vmatprep.mubr.bf16.mxu0 0
      %3219 = vmatmul.mubr.bf16.gmra.mxu0 %v2772
      %v3220 = vpop.f32.mrf.mxu0
      %v3221 = vadd.f32 %v3060, %v3220
      %v3222 = vpop.f32.mrf.mxu0
      %v3223 = vpop.f32.mrf.mxu0
      %v3224 = vadd.f32 %v3063, %v3223
      %v3225 = vpop.f32.mrf.mxu0
      %3226 = vmatprep.mubr.bf16.mxu0 0
      %3227 = vmatmul.mubr.bf16.gmra.mxu0 %v2773
      %v3228 = vpop.f32.mrf.mxu0
      %v3229 = vadd.f32 %v3068, %v3228
      %v3230 = vpop.f32.mrf.mxu0
      %v3231 = vpop.f32.mrf.mxu0
      %v3232 = vadd.f32 %v3071, %v3231
      %v3233 = vpop.f32.mrf.mxu0
      %3234 = vmatprep.mubr.bf16.mxu0 0
      %3235 = vmatmul.mubr.bf16.gmra.mxu0 %v2774
      %v3236 = vpop.f32.mrf.mxu0
      %v3237 = vadd.f32 %v3076, %v3236
      %v3238 = vpop.f32.mrf.mxu0
      %v3239 = vpop.f32.mrf.mxu0
      %v3240 = vadd.f32 %v3079, %v3239
      %v3241 = vpop.f32.mrf.mxu0
      %3242 = vmatprep.mubr.bf16.mxu0 0
      %3243 = vmatmul.mubr.bf16.gmra.mxu0 %v2775
      %v3244 = vpop.f32.mrf.mxu0
      %v3245 = vadd.f32 %v3084, %v3244
      %v3246 = vpop.f32.mrf.mxu0
      %v3247 = vpop.f32.mrf.mxu0
      %v3248 = vadd.f32 %v3087, %v3247
      %v3249 = vpop.f32.mrf.mxu0
      %3250 = vmatprep.mubr.bf16.mxu0 0
      %3251 = vmatmul.mubr.bf16.gmra.mxu0 %v2776
      %v3252 = vpop.f32.mrf.mxu0
      %v3253 = vadd.f32 %v3092, %v3252
      %v3254 = vpop.f32.mrf.mxu0
      %v3255 = vpop.f32.mrf.mxu0
      %v3256 = vadd.f32 %v3095, %v3255
      %v3257 = vpop.f32.mrf.mxu0
      %3258 = vmatprep.mubr.bf16.mxu0 0
      %3259 = vmatmul.mubr.bf16.gmra.mxu0 %v2777
      %v3260 = vpop.f32.mrf.mxu0
      %v3261 = vadd.f32 %v3100, %v3260
      %v3262 = vpop.f32.mrf.mxu0
      %v3263 = vpop.f32.mrf.mxu0
      %v3264 = vadd.f32 %v3103, %v3263
      %v3265 = vpop.f32.mrf.mxu0
      %3266 = vmatprep.mubr.bf16.mxu0 0
      %3267 = vmatmul.mubr.bf16.gmra.mxu0 %v2778
      %v3268 = vpop.f32.mrf.mxu0
      %v3269 = vadd.f32 %v3108, %v3268
      %v3270 = vpop.f32.mrf.mxu0
      %v3271 = vpop.f32.mrf.mxu0
      %v3272 = vadd.f32 %v3111, %v3271
      %v3273 = vpop.f32.mrf.mxu0
      %3274 = vmatprep.mubr.bf16.mxu0 0
      %3275 = vmatmul.mubr.bf16.gmra.mxu0 %v2779
      %v3276 = vpop.f32.mrf.mxu0
      %v3277 = vadd.f32 %v3116, %v3276
      %v3278 = vpop.f32.mrf.mxu0
      %v3279 = vpop.f32.mrf.mxu0
      %v3280 = vadd.f32 %v3119, %v3279
      %v3281 = vpop.f32.mrf.mxu0
      %3282 = vmatprep.mubr.bf16.mxu0 0
      %3283 = vmatmul.mubr.bf16.gmra.mxu0 %v2780
      %v3284 = vpop.f32.mrf.mxu0
      %v3285 = vadd.f32 %v3124, %v3284
      %v3286 = vpop.f32.mrf.mxu0
      %v3287 = vpop.f32.mrf.mxu0
      %v3288 = vadd.f32 %v3127, %v3287
      %v3289 = vpop.f32.mrf.mxu0
      %3290 = vmatprep.mubr.bf16.mxu0 0
      %3291 = vmatmul.mubr.bf16.gmra.mxu0 %v2781
      %v3292 = vpop.f32.mrf.mxu0
      %v3293 = vadd.f32 %v3132, %v3292
      %v3294 = vpop.f32.mrf.mxu0
      %v3295 = vpop.f32.mrf.mxu0
      %v3296 = vadd.f32 %v3135, %v3295
      %v3297 = vpop.f32.mrf.mxu0
      %3298 = vmatprep.mubr.bf16.mxu0 0
      %3299 = vmatmul.mubr.bf16.gmra.mxu0 %v2782
      %v3300 = vpop.f32.mrf.mxu0
      %v3301 = vadd.f32 %v3140, %v3300
      %v3302 = vpop.f32.mrf.mxu0
      %v3303 = vpop.f32.mrf.mxu0
      %v3304 = vadd.f32 %v3143, %v3303
      %v3305 = vpop.f32.mrf.mxu0
      %3306 = vmatprep.mubr.bf16.mxu0 0
      %3307 = vmatmul.mubr.bf16.gmra.mxu0 %v2783
      %v3308 = vpop.f32.mrf.mxu0
      %v3309 = vadd.f32 %v3148, %v3308
      %v3310 = vpop.f32.mrf.mxu0
      %v3311 = vpop.f32.mrf.mxu0
      %v3312 = vadd.f32 %v3151, %v3311
      %v3313 = vpop.f32.mrf.mxu0
      %3314 = vdwg.mxu0
      %v3315 = vadd.f32 %v2337, %v3189
      %v3316 = vadd.f32 %v2340, %v3192
      %v3317 = vadd.f32 %v2345, %v3197
      %v3318 = vadd.f32 %v2348, %v3200
      %v3319 = vadd.f32 %v2353, %v3205
      %v3320 = vadd.f32 %v2356, %v3208
      %v3321 = vadd.f32 %v2361, %v3213
      %v3322 = vadd.f32 %v2364, %v3216
      %v3323 = vadd.f32 %v2369, %v3221
      %v3324 = vadd.f32 %v2372, %v3224
      %v3325 = vadd.f32 %v2377, %v3229
      %v3326 = vadd.f32 %v2380, %v3232
      %v3327 = vadd.f32 %v2385, %v3237
      %v3328 = vadd.f32 %v2388, %v3240
      %v3329 = vadd.f32 %v2393, %v3245
      %v3330 = vadd.f32 %v2396, %v3248
      %v3331 = vadd.f32 %v2401, %v3253
      %v3332 = vadd.f32 %v2404, %v3256
      %v3333 = vadd.f32 %v2409, %v3261
      %v3334 = vadd.f32 %v2412, %v3264
      %v3335 = vadd.f32 %v2417, %v3269
      %v3336 = vadd.f32 %v2420, %v3272
      %v3337 = vadd.f32 %v2425, %v3277
      %v3338 = vadd.f32 %v2428, %v3280
      %v3339 = vadd.f32 %v2433, %v3285
      %v3340 = vadd.f32 %v2436, %v3288
      %v3341 = vadd.f32 %v2441, %v3293
      %v3342 = vadd.f32 %v2444, %v3296
      %v3343 = vadd.f32 %v2449, %v3301
      %v3344 = vadd.f32 %v2452, %v3304
      %v3345 = vadd.f32 %v2457, %v3309
      %v3346 = vadd.f32 %v2460, %v3312
      %v3347 = vpack.c.bf16 %v3316, %v3315
      %v3348 = vpack.c.bf16 %v3318, %v3317
      %v3349 = vpack.c.bf16 %v3320, %v3319
      %v3350 = vpack.c.bf16 %v3322, %v3321
      %v3351 = vpack.c.bf16 %v3324, %v3323
      %v3352 = vpack.c.bf16 %v3326, %v3325
      %v3353 = vpack.c.bf16 %v3328, %v3327
      %v3354 = vpack.c.bf16 %v3330, %v3329
      %v3355 = vpack.c.bf16 %v3332, %v3331
      %v3356 = vpack.c.bf16 %v3334, %v3333
      %v3357 = vpack.c.bf16 %v3336, %v3335
      %v3358 = vpack.c.bf16 %v3338, %v3337
      %v3359 = vpack.c.bf16 %v3340, %v3339
      %v3360 = vpack.c.bf16 %v3342, %v3341
      %v3361 = vpack.c.bf16 %v3344, %v3343
      %v3362 = vpack.c.bf16 %v3346, %v3345
      %v3379 = vunpack.c.l.b16 %v3347
      %v3380 = vunpack.c.h.b16 %v3347
      %v3381 = vunpack.c.l.b16 %v3348
      %v3382 = vunpack.c.h.b16 %v3348
      %v3383 = vunpack.c.l.b16 %v3349
      %v3384 = vunpack.c.h.b16 %v3349
      %v3385 = vunpack.c.l.b16 %v3350
      %v3386 = vunpack.c.h.b16 %v3350
      %v3387 = vunpack.c.l.b16 %v3351
      %v3388 = vunpack.c.h.b16 %v3351
      %v3389 = vunpack.c.l.b16 %v3352
      %v3390 = vunpack.c.h.b16 %v3352
      %v3391 = vunpack.c.l.b16 %v3353
      %v3392 = vunpack.c.h.b16 %v3353
      %v3393 = vunpack.c.l.b16 %v3354
      %v3394 = vunpack.c.h.b16 %v3354
      %v3395 = vunpack.c.l.b16 %v3355
      %v3396 = vunpack.c.h.b16 %v3355
      %v3397 = vunpack.c.l.b16 %v3356
      %v3398 = vunpack.c.h.b16 %v3356
      %v3399 = vunpack.c.l.b16 %v3357
      %v3400 = vunpack.c.h.b16 %v3357
      %v3401 = vunpack.c.l.b16 %v3358
      %v3402 = vunpack.c.h.b16 %v3358
      %v3403 = vunpack.c.l.b16 %v3359
      %v3404 = vunpack.c.h.b16 %v3359
      %v3405 = vunpack.c.l.b16 %v3360
      %v3406 = vunpack.c.h.b16 %v3360
      %v3407 = vunpack.c.l.b16 %v3361
      %v3408 = vunpack.c.h.b16 %v3361
      %v3409 = vunpack.c.l.b16 %v3362
      %v3410 = vunpack.c.h.b16 %v3362
      %v3411 = vpack.c.b16 %v3379, %v3379
      %v3412 = vpack.c.b16 %v3380, %v3380
      %v3413 = vpack.c.b16 %v3381, %v3381
      %v3414 = vpack.c.b16 %v3382, %v3382
      %v3415 = vpack.c.b16 %v3383, %v3383
      %v3416 = vpack.c.b16 %v3384, %v3384
      %v3417 = vpack.c.b16 %v3385, %v3385
      %v3418 = vpack.c.b16 %v3386, %v3386
      %v3419 = vpack.c.b16 %v3387, %v3387
      %v3420 = vpack.c.b16 %v3388, %v3388
      %v3421 = vpack.c.b16 %v3389, %v3389
      %v3422 = vpack.c.b16 %v3390, %v3390
      %v3423 = vpack.c.b16 %v3391, %v3391
      %v3424 = vpack.c.b16 %v3392, %v3392
      %v3425 = vpack.c.b16 %v3393, %v3393
      %v3426 = vpack.c.b16 %v3394, %v3394
      %v3427 = vpack.c.b16 %v3395, %v3395
      %v3428 = vpack.c.b16 %v3396, %v3396
      %v3429 = vpack.c.b16 %v3397, %v3397
      %v3430 = vpack.c.b16 %v3398, %v3398
      %v3431 = vpack.c.b16 %v3399, %v3399
      %v3432 = vpack.c.b16 %v3400, %v3400
      %v3433 = vpack.c.b16 %v3401, %v3401
      %v3434 = vpack.c.b16 %v3402, %v3402
      %v3435 = vpack.c.b16 %v3403, %v3403
      %v3436 = vpack.c.b16 %v3404, %v3404
      %v3437 = vpack.c.b16 %v3405, %v3405
      %v3438 = vpack.c.b16 %v3406, %v3406
      %v3439 = vpack.c.b16 %v3407, %v3407
      %v3440 = vpack.c.b16 %v3408, %v3408
      %v3441 = vpack.c.b16 %v3409, %v3409
      %v3442 = vpack.c.b16 %v3410, %v3410
      %3475 = vst [vmem:[%s363] sm:$0xf] %v3411
      %3476 = vst [vmem:[%s363 + $0x4] sm:$0xf] %v3412
      %3477 = vst [vmem:[%s363 + $0x8] sm:$0xf] %v3413
      %3478 = vst [vmem:[%s363 + $0xc] sm:$0xf] %v3414
      %3479 = vst [vmem:[%s363 + $0x10] sm:$0xf] %v3415
      %3480 = vst [vmem:[%s363 + $0x14] sm:$0xf] %v3416
      %3481 = vst [vmem:[%s363 + $0x18] sm:$0xf] %v3417
      %3482 = vst [vmem:[%s363 + $0x1c] sm:$0xf] %v3418
      %3483 = vst [vmem:[%s363 + $0x20] sm:$0xf] %v3419
      %3484 = vst [vmem:[%s363 + $0x24] sm:$0xf] %v3420
      %3485 = vst [vmem:[%s363 + $0x28] sm:$0xf] %v3421
      %3486 = vst [vmem:[%s363 + $0x2c] sm:$0xf] %v3422
      %3487 = vst [vmem:[%s363 + $0x30] sm:$0xf] %v3423
      %3488 = vst [vmem:[%s363 + $0x34] sm:$0xf] %v3424
      %3489 = vst [vmem:[%s363 + $0x38] sm:$0xf] %v3425
      %3490 = vst [vmem:[%s363 + $0x3c] sm:$0xf] %v3426
      %3491 = vst [vmem:[%s363 + $0x40] sm:$0xf] %v3427
      %3492 = vst [vmem:[%s363 + $0x44] sm:$0xf] %v3428
      %3493 = vst [vmem:[%s363 + $0x48] sm:$0xf] %v3429
      %3494 = vst [vmem:[%s363 + $0x4c] sm:$0xf] %v3430
      %3495 = vst [vmem:[%s363 + $0x50] sm:$0xf] %v3431
      %3496 = vst [vmem:[%s363 + $0x54] sm:$0xf] %v3432
      %3497 = vst [vmem:[%s363 + $0x58] sm:$0xf] %v3433
      %3498 = vst [vmem:[%s363 + $0x5c] sm:$0xf] %v3434
      %3499 = vst [vmem:[%s363 + $0x60] sm:$0xf] %v3435
      %3500 = vst [vmem:[%s363 + $0x64] sm:$0xf] %v3436
      %3501 = vst [vmem:[%s363 + $0x68] sm:$0xf] %v3437
      %3502 = vst [vmem:[%s363 + $0x6c] sm:$0xf] %v3438
      %3503 = vst [vmem:[%s363 + $0x70] sm:$0xf] %v3439
      %3504 = vst [vmem:[%s363 + $0x74] sm:$0xf] %v3440
      %3505 = vst [vmem:[%s363 + $0x78] sm:$0xf] %v3441
      %3506 = vst [vmem:[%s363 + $0x7c] sm:$0xf] %v3442
      %p3507 = scmp.eq.s32.totalorder %s23, 0
      // Predicated region
      $region41: #{double_conv_forward.4} parent=39 // pred_check
        %p3508 = pneg %p3507
      $region42: #{double_conv_forward.4} parent=39 // pred_check_branch
        %3510 = sbr.rel (%p3508) target = $region44
      $region43: #{double_conv_forward.4} parent=39 // pred_region
        %3511 = vst [vmem:[%s368] sm:$0x3] 0.0
      $region44: #{double_conv_forward.4} parent=39 // pred_fallthru
        _
      %v3512 = vadd.f32 %v3315, %v3316
      %v3513 = vadd.f32 %v3512, %v3317
      %v3514 = vadd.f32 %v3513, %v3318
      %v3515 = vadd.f32 %v3514, %v3319
      %v3516 = vadd.f32 %v3515, %v3320
      %v3517 = vadd.f32 %v3516, %v3321
      %v3518 = vadd.f32 %v3517, %v3322
      %v3519 = vadd.f32 %v3518, %v3323
      %v3520 = vadd.f32 %v3519, %v3324
      %v3521 = vadd.f32 %v3520, %v3325
      %v3522 = vadd.f32 %v3521, %v3326
      %v3523 = vadd.f32 %v3522, %v3327
      %v3524 = vadd.f32 %v3523, %v3328
      %v3525 = vadd.f32 %v3524, %v3329
      %v3526 = vadd.f32 %v3525, %v3330
      %v3527 = vadd.f32 %v3526, %v3331
      %v3528 = vadd.f32 %v3527, %v3332
      %v3529 = vadd.f32 %v3528, %v3333
      %v3530 = vadd.f32 %v3529, %v3334
      %v3531 = vadd.f32 %v3530, %v3335
      %v3532 = vadd.f32 %v3531, %v3336
      %v3533 = vadd.f32 %v3532, %v3337
      %v3534 = vadd.f32 %v3533, %v3338
      %v3535 = vadd.f32 %v3534, %v3339
      %v3536 = vadd.f32 %v3535, %v3340
      %v3537 = vadd.f32 %v3536, %v3341
      %v3538 = vadd.f32 %v3537, %v3342
      %v3539 = vadd.f32 %v3538, %v3343
      %v3540 = vadd.f32 %v3539, %v3344
      %v3541 = vadd.f32 %v3540, %v3345
      %v3542 = vadd.f32 %v3541, %v3346
      %v3543 = vrot.slane %v3542, 4
      %v3544 = vadd.f32 %v3542, %v3543
      %v3545 = vrot.slane %v3544, 2
      %v3546 = vadd.f32 %v3544, %v3545
      %v3547 = vrot.slane %v3546, 1
      %v3548 = vadd.f32 %v3546, %v3547
      %v3549 = vmul.f32 %v3315, %v3315
      %v3550 = vmul.f32 %v3316, %v3316
      %v3551 = vmul.f32 %v3317, %v3317
      %v3552 = vmul.f32 %v3318, %v3318
      %v3553 = vmul.f32 %v3319, %v3319
      %v3554 = vmul.f32 %v3320, %v3320
      %v3555 = vmul.f32 %v3321, %v3321
      %v3556 = vmul.f32 %v3322, %v3322
      %v3557 = vmul.f32 %v3323, %v3323
      %v3558 = vmul.f32 %v3324, %v3324
      %v3559 = vmul.f32 %v3325, %v3325
      %v3560 = vmul.f32 %v3326, %v3326
      %v3561 = vmul.f32 %v3327, %v3327
      %v3562 = vmul.f32 %v3328, %v3328
      %v3563 = vmul.f32 %v3329, %v3329
      %v3564 = vmul.f32 %v3330, %v3330
      %v3565 = vmul.f32 %v3331, %v3331
      %v3566 = vmul.f32 %v3332, %v3332
      %v3567 = vmul.f32 %v3333, %v3333
      %v3568 = vmul.f32 %v3334, %v3334
      %v3569 = vmul.f32 %v3335, %v3335
      %v3570 = vmul.f32 %v3336, %v3336
      %v3571 = vmul.f32 %v3337, %v3337
      %v3572 = vmul.f32 %v3338, %v3338
      %v3573 = vmul.f32 %v3339, %v3339
      %v3574 = vmul.f32 %v3340, %v3340
      %v3575 = vmul.f32 %v3341, %v3341
      %v3576 = vmul.f32 %v3342, %v3342
      %v3577 = vmul.f32 %v3343, %v3343
      %v3578 = vmul.f32 %v3344, %v3344
      %v3579 = vmul.f32 %v3345, %v3345
      %v3580 = vmul.f32 %v3346, %v3346
      %v3581 = vadd.f32 %v3549, %v3550
      %v3582 = vadd.f32 %v3581, %v3551
      %v3583 = vadd.f32 %v3582, %v3552
      %v3584 = vadd.f32 %v3583, %v3553
      %v3585 = vadd.f32 %v3584, %v3554
      %v3586 = vadd.f32 %v3585, %v3555
      %v3587 = vadd.f32 %v3586, %v3556
      %v3588 = vadd.f32 %v3587, %v3557
      %v3589 = vadd.f32 %v3588, %v3558
      %v3590 = vadd.f32 %v3589, %v3559
      %v3591 = vadd.f32 %v3590, %v3560
      %v3592 = vadd.f32 %v3591, %v3561
      %v3593 = vadd.f32 %v3592, %v3562
      %v3594 = vadd.f32 %v3593, %v3563
      %v3595 = vadd.f32 %v3594, %v3564
      %v3596 = vadd.f32 %v3595, %v3565
      %v3597 = vadd.f32 %v3596, %v3566
      %v3598 = vadd.f32 %v3597, %v3567
      %v3599 = vadd.f32 %v3598, %v3568
      %v3600 = vadd.f32 %v3599, %v3569
      %v3601 = vadd.f32 %v3600, %v3570
      %v3602 = vadd.f32 %v3601, %v3571
      %v3603 = vadd.f32 %v3602, %v3572
      %v3604 = vadd.f32 %v3603, %v3573
      %v3605 = vadd.f32 %v3604, %v3574
      %v3606 = vadd.f32 %v3605, %v3575
      %v3607 = vadd.f32 %v3606, %v3576
      %v3608 = vadd.f32 %v3607, %v3577
      %v3609 = vadd.f32 %v3608, %v3578
      %v3610 = vadd.f32 %v3609, %v3579
      %v3611 = vadd.f32 %v3610, %v3580
      %v3612 = vrot.slane %v3611, 4
      %v3613 = vadd.f32 %v3611, %v3612
      %v3614 = vrot.slane %v3613, 2
      %v3615 = vadd.f32 %v3613, %v3614
      %v3616 = vrot.slane %v3615, 1
      %v3617 = vadd.f32 %v3615, %v3616
      %v3618 = vld [vmem:[%s368] sm:$0x3]
      %vm3619 = vcmask 1040384
      %v3620 = vsel %vm3619, %v3548, %v3617
      %v3621 = vadd.f32 %v3618, %v3620
      %3622 = vst [vmem:[%s368] sm:$0x3] %v3621
      %s3623 = smul.u32 16, %s23
      %p3624 = scmp.lt.s32.totalorder %s22, 1
      %s3625 = scalar_select %p3624, %s22, 1
      %p3626 = scmp.lt.s32.totalorder %s3623, 15
      %s3627 = scalar_select %p3626, %s3623, 15
      %s3628 = smul.addr %s3627, 2
      %s3629 = smul.addr %s3625, 32
      %s3630 = sadd.s32 %s3628, %s3629
      %s3631 = smul.addr %s3630, 4
      %s3632 = scalar_lea.vmem %s5, %s3631
      %p3633 = scmp.lt.s32.totalorder %s22, 1
      %s3634 = scalar_select %p3633, %s22, 1
      %s3635 = smul.addr %s3634, 2
      %s3636 = scalar_lea.vmem %s6, %s3635
      // Predicated region
      $region45: #{double_conv_forward.4} parent=39 // pred_check
        %p3637 = pneg %p177
      $region46: #{double_conv_forward.4} parent=39 // pred_check_branch
        %3639 = sbr.rel (%p3637) target = $region48
      $region47: #{double_conv_forward.4} parent=39 // pred_region
        %s3640 = smul.u32 16, %s23
      $region48: #{double_conv_forward.4} parent=39 // pred_fallthru
        _
      // Predicated region
      $region49: #{double_conv_forward.4} parent=39 // pred_check
        %p3641 = pneg %p203
      $region50: #{double_conv_forward.4} parent=39 // pred_check_branch
        %3643 = sbr.rel (%p3641) target = $region52
      $region51: #{double_conv_forward.4} parent=39 // pred_region
        _
      $region52: #{double_conv_forward.4} parent=39 // pred_fallthru
        _
    $region40: #{double_conv_forward.4} parent=5 // pred_fallthru
      _
    %p3644 = scmp.le.s32.totalorder 2, %s13
    // Predicated region
    $region53: #{double_conv_forward.4} parent=5 // pred_check
      %p3645 = pneg %p3644
    $region54: #{double_conv_forward.4} parent=5 // pred_check_branch
      %3647 = sbr.rel (%p3645) target = $region56
    $region55: #{double_conv_forward.4} parent=5 // pred_region
      %s3648 = ssub.s32 %s13, 2
      // Predicated region
      $region57: #{double_conv_forward.4} parent=55 // pred_check
        %p3649 = pneg %p183
      $region58: #{double_conv_forward.4} parent=55 // pred_check_branch
        %3651 = sbr.rel (%p3649) target = $region60
      $region59: #{double_conv_forward.4} parent=55 // pred_region
        %s3652 = smul.u32 16, %s25
        %p3653 = scmp.lt.s32.totalorder %s24, 1
        %s3654 = scalar_select %p3653, %s24, 1
        %p3655 = scmp.lt.s32.totalorder %s3652, 15
        %s3656 = scalar_select %p3655, %s3652, 15
        %s3657 = smul.addr %s3656, 2
        %s3658 = smul.addr %s3654, 32
        %s3659 = sadd.s32 %s3657, %s3658
        %s3660 = smul.addr %s3659, 4
        %s3661 = scalar_lea.vmem %s5, %s3660
      $region60: #{double_conv_forward.4} parent=55 // pred_fallthru
        _
      // Predicated region
      $region61: #{double_conv_forward.4} parent=55 // pred_check
        %p3662 = pneg %p209
      $region62: #{double_conv_forward.4} parent=55 // pred_check_branch
        %3664 = sbr.rel (%p3662) target = $region64
      $region63: #{double_conv_forward.4} parent=55 // pred_region
        %p3665 = scmp.lt.s32.totalorder %s24, 1
        %s3666 = scalar_select %p3665, %s24, 1
        %s3667 = smul.addr %s3666, 2
        %s3668 = scalar_lea.vmem %s6, %s3667
      $region64: #{double_conv_forward.4} parent=55 // pred_fallthru
        _
    $region56: #{double_conv_forward.4} parent=5 // pred_fallthru
      _
  $region6: #{double_conv_forward.4} parent=0 // loop_footer
    %s17 = sadd.s32 1, %s13
  $region7: #{double_conv_forward.4} parent=0 // loop_footer_branch
    %12 = sbr.rel target = $region3
  $region8: #{double_conv_forward.4} parent=0 // loop_exit
    _

</llo_original>
